<compile_context>
chip_gen: v5e
topology: v5e:2x2
jax: 0.10.0
libtpu: 0.0.40
codegen_flags: <defaults>
</compile_context>

<pallas_src>
import functools

import jax
import jax.numpy as jnp
from jax import lax
from jax.experimental import pallas as pl
from jax.experimental.pallas import tpu as pltpu

NFEAT = 32  # small stand-in for the module's default nfeat=128


# ----------------------------------------------------------------------------
# Fused Pallas kernel: normalize-padded-input -> GLU1 -> GLU2 -> GLU3 -> mean
# ----------------------------------------------------------------------------
def _cnn3_kernel(x_ref, w1_ref, b1_ref, w2_ref, b2_ref, w3_ref, b3_ref,
                 o_ref, pad1, pad2, pad3, *,
                 B, H, W, C1, C2, C3, ph1, pw1, ph2, pw2, compute_dtype):
    """Whole-batch fused CNN3 forward (single grid step).

    x_ref : (B, H, W, 1)       normalized NHWC input
    wK_ref: (9*CinK, CoutK)    conv weight * BN scale, rows ordered (dy, dx, cin)
    bK_ref: (1, CoutK)         folded BN bias
    o_ref : (B, C3)            torch.mean(G3, dim=(2,3))
    padK  : (B, Hk+2, Wk+2, CinK) zero-padded VMEM scratch feeding conv K
    """
    H1, W1 = H // ph1, W // pw1          # spatial after GLU1 pool
    H2, W2 = H1 // ph2, W1 // pw2        # spatial after GLU2 pool

    def conv_bn_relu(pad_ref, Hc, Wc, Cin, Cout, w_ref, b_ref):
        """3x3 same-conv (input pre-padded in pad_ref) as 9 accumulated
        matmuls + folded-BN bias + ReLU.
        Returns (B*Hc*Wc, Cout) f32 with rows in (b, h, w) row-major order."""
        M = B * Hc * Wc
        w = w_ref[...]                                   # (9*Cin, Cout)
        acc = jnp.zeros((M, Cout), jnp.float32)
        # With a 1x1 spatial extent only the centre tap sees non-padding data.
        only_center = (Hc == 1 and Wc == 1)
        for t in range(9):
            dy, dx = divmod(t, 3)
            if only_center and not (dy == 1 and dx == 1):
                continue
            xs = pad_ref[:, dy:dy + Hc, dx:dx + Wc, :].reshape(M, Cin)
            wt = w[t * Cin:(t + 1) * Cin, :]             # (Cin, Cout)
            if Cin == 1:
                # Degenerate K=1: VPU broadcast outer-product, skip the MXU.
                acc = acc + xs * wt
            else:
                acc = acc + jnp.dot(xs.astype(compute_dtype),
                                    wt.astype(compute_dtype),
                                    preferred_element_type=jnp.float32)
        return jnp.maximum(acc + b_ref[...], 0.0)        # bias + ReLU

    def maxpool(y, Hc, Wc, Cout, ph, pw):
        """(B*Hc*Wc, Cout) rows (b,h,w) -> (B, Hc//ph, Wc//pw, Cout)."""
        Ho, Wo = Hc // ph, Wc // pw
        if pw > 1:
            y = jnp.max(y.reshape(B * Hc * Wo, pw, Cout), axis=1)
        if ph > 1:
            y = jnp.max(y.reshape(B * Ho, ph, Wo, Cout), axis=1)
        return y.reshape(B, Ho, Wo, Cout)

    # -- stage 0: normalized input -> zero-padded VMEM scratch ----------------
    pad1[...] = jnp.zeros_like(pad1)
    pad1[:, 1:H + 1, 1:W + 1, :] = x_ref[...]

    # -- GLU1: conv(1 -> C1) + BN + ReLU + maxpool(ph1, pw1) -------------------
    y1 = conv_bn_relu(pad1, H, W, 1, C1, w1_ref, b1_ref)
    pad2[...] = jnp.zeros_like(pad2)
    pad2[:, 1:H1 + 1, 1:W1 + 1, :] = maxpool(y1, H, W, C1, ph1, pw1)

    # -- GLU2: conv(C1 -> C2) + BN + ReLU + maxpool(ph2, pw2) ------------------
    y2 = conv_bn_relu(pad2, H1, W1, C1, C2, w2_ref, b2_ref)
    pad3[...] = jnp.zeros_like(pad3)
    pad3[:, 1:H2 + 1, 1:W2 + 1, :] = maxpool(y2, H1, W1, C2, ph2, pw2)

    # -- GLU3: conv(C2 -> C3) + BN + ReLU, pool (1,1) == identity --------------
    y3 = conv_bn_relu(pad3, H2, W2, C2, C3, w3_ref, b3_ref)   # (B*H2*W2, C3)

    # -- torch.mean(G3, dim=(2,3)) -> single store -----------------------------
    o_ref[...] = jnp.mean(y3.reshape(B, H2 * W2, C3), axis=1).astype(o_ref.dtype)


# ----------------------------------------------------------------------------
# Wrapper: one pallas_call for the whole forward pass
# ----------------------------------------------------------------------------
def cnn3_forward(x_nchw, params, *, compute_dtype=jnp.float32):
    """x_nchw: (B, 1, n_mels, frames) mel-spectrogram (melspec itself omitted)."""
    B, Cin0, H, W = x_nchw.shape
    assert Cin0 == 1
    ph1 = pw1 = 4
    ph2 = pw2 = 4
    assert H % ph1 == 0 and W % pw1 == 0
    H1, W1 = H // ph1, W // pw1
    assert H1 % ph2 == 0 and W1 % pw2 == 0
    H2, W2 = H1 // ph2, W1 // pw2

    C1 = params["g1"]["w"].shape[-1]
    C2 = params["g2"]["w"].shape[-1]
    C3 = params["g3"]["w"].shape[-1]

    # normalize = BatchNorm2d(1) in eval mode -> scalar affine (tiny XLA op);
    # NCHW -> NHWC is effectively a reshape since C == 1.
    zx = x_nchw * params["in_scale"] + params["in_bias"]
    x = jnp.transpose(zx, (0, 2, 3, 1))                    # (B, H, W, 1)

    kernel = functools.partial(
        _cnn3_kernel, B=B, H=H, W=W, C1=C1, C2=C2, C3=C3,
        ph1=ph1, pw1=pw1, ph2=ph2, pw2=pw2, compute_dtype=compute_dtype)

    # NOTE: at real module scale (nfeat=128, long frame axis), split H into
    # row-bands / grid over batch and budget scratch against 64 MiB on v7x.
    return pl.pallas_call(
        kernel,
        out_shape=jax.ShapeDtypeStruct((B, C3), jnp.float32),
        grid_spec=pltpu.PrefetchScalarGridSpec(
            num_scalar_prefetch=0,
            grid=(1,),
            in_specs=[
                pl.BlockSpec((B, H, W, 1), lambda i: (0, 0, 0, 0)),
                pl.BlockSpec((9 * 1, C1), lambda i: (0, 0)),
                pl.BlockSpec((1, C1), lambda i: (0, 0)),
                pl.BlockSpec((9 * C1, C2), lambda i: (0, 0)),
                pl.BlockSpec((1, C2), lambda i: (0, 0)),
                pl.BlockSpec((9 * C2, C3), lambda i: (0, 0)),
                pl.BlockSpec((1, C3), lambda i: (0, 0)),
            ],
            out_specs=pl.BlockSpec((B, C3), lambda i: (0, 0)),
            scratch_shapes=[
                pltpu.VMEM((B, H + 2, W + 2, 1), jnp.float32),
                pltpu.VMEM((B, H1 + 2, W1 + 2, C1), jnp.float32),
                pltpu.VMEM((B, H2 + 2, W2 + 2, C2), jnp.float32),
            ],
        ),
        compiler_params=pltpu.CompilerParams(
            dimension_semantics=("arbitrary",)),
    )(x, params["g1"]["w"], params["g1"]["bias"],
      params["g2"]["w"], params["g2"]["bias"],
      params["g3"]["w"], params["g3"]["bias"])


# ----------------------------------------------------------------------------
# Parameter init (deterministic, PyTorch shapes) with BN folding
# ----------------------------------------------------------------------------
def init_params(key, nfeat=NFEAT):
    eps = 1e-5

    def bn_fold(k, c):
        kg, kb, km, kv = jax.random.split(k, 4)
        gamma = 1.0 + 0.1 * jax.random.normal(kg, (c,), jnp.float32)
        beta = 0.1 * jax.random.normal(kb, (c,), jnp.float32)
        mean = 0.1 * jax.random.normal(km, (c,), jnp.float32)
        var = 0.5 + jax.random.uniform(kv, (c,), jnp.float32)
        s = gamma / jnp.sqrt(var + eps)
        b = beta - mean * s
        return s, b

    k_in, k1, k2, k3 = jax.random.split(key, 4)
    params = {}

    # self.normalize = nn.BatchNorm2d(1), eval mode -> scalar affine.
    s_in, b_in = bn_fold(k_in, 1)
    params["in_scale"], params["in_bias"] = s_in[0], b_in[0]

    specs = [("g1", 1, nfeat), ("g2", nfeat, 2 * nfeat), ("g3", 2 * nfeat, 3 * nfeat)]
    for (name, cin, cout), k in zip(specs, (k1, k2, k3)):
        kw, kb = jax.random.split(k)
        # PyTorch Conv2d weight layout (Cout, Cin, 3, 3), Kaiming-ish scale.
        w_oihw = jax.random.normal(kw, (cout, cin, 3, 3), jnp.float32) \
            * (1.0 / jnp.sqrt(9.0 * cin))
        scale, bias = bn_fold(kb, cout)
        # Fold BN scale into the conv weight (per output channel) and reorder
        # to (9*Cin, Cout) with rows ordered (dy, dx, cin) for the kernel.
        w_scaled = w_oihw * scale[:, None, None, None]
        w_flat = jnp.transpose(w_scaled, (2, 3, 1, 0)).reshape(9 * cin, cout)
        params[name] = dict(w=w_flat, bias=bias.reshape(1, cout),
                            w_oihw=w_oihw, scale=scale, bias_unfolded=bias)
    return params


# ----------------------------------------------------------------------------
# Pure-JAX reference for correctness check
# ----------------------------------------------------------------------------
def _ref_glu(x_nhwc, w_oihw, scale, bias, ms):
    w_hwio = jnp.transpose(w_oihw, (2, 3, 1, 0))
    y = lax.conv_general_dilated(x_nhwc, w_hwio, window_strides=(1, 1),
                                 padding=((1, 1), (1, 1)),
                                 dimension_numbers=("NHWC", "HWIO", "NHWC"))
    y = jnp.maximum(y * scale.reshape(1, 1, 1, -1) + bias.reshape(1, 1, 1, -1), 0.0)
    ph, pw = ms
    y = lax.reduce_window(y, -jnp.inf, lax.max,
                          (1, ph, pw, 1), (1, ph, pw, 1), "VALID")
    return y


def ref_forward(x_nchw, params):
    zx = x_nchw * params["in_scale"] + params["in_bias"]
    x = jnp.transpose(zx, (0, 2, 3, 1))
    g1 = _ref_glu(x, params["g1"]["w_oihw"], params["g1"]["scale"],
                  params["g1"]["bias_unfolded"], (4, 4))
    g2 = _ref_glu(g1, params["g2"]["w_oihw"], params["g2"]["scale"],
                  params["g2"]["bias_unfolded"], (4, 4))
    g3 = _ref_glu(g2, params["g3"]["w_oihw"], params["g3"]["scale"],
                  params["g3"]["bias_unfolded"], (1, 1))
    return jnp.mean(g3, axis=(1, 2))


if __name__ == "__main__":
    key = jax.random.PRNGKey(0)
    kx, kp = jax.random.split(key)

    B, n_mels, frames = 2, 16, 16
    x = jax.random.normal(kx, (B, 1, n_mels, frames), jnp.float32)
    params = init_params(kp, nfeat=NFEAT)

    out = jax.block_until_ready(cnn3_forward(x, params))
    assert out.shape == (B, 3 * NFEAT), out.shape

    ref = jax.block_until_ready(ref_forward(x, params))
    if not bool(jnp.allclose(out, ref, rtol=1e-2, atol=1e-2)):
        raise AssertionError(
            f"mismatch vs reference, max abs err = "
            f"{float(jnp.max(jnp.abs(out - ref)))}")

    print("KERNEL_OK")
</pallas_src>

<mosaic_0001>
module attributes {stable_mosaic.version = 11 : i64} {
  func.func @_cnn3_kernel(%arg0: i32, %arg1: memref<2x16x16x1xf32, #tpu.memory_space<vmem>>, %arg2: memref<9x32xf32, #tpu.memory_space<vmem>>, %arg3: memref<1x32xf32, #tpu.memory_space<vmem>>, %arg4: memref<288x64xf32, #tpu.memory_space<vmem>>, %arg5: memref<1x64xf32, #tpu.memory_space<vmem>>, %arg6: memref<576x96xf32, #tpu.memory_space<vmem>>, %arg7: memref<1x96xf32, #tpu.memory_space<vmem>>, %arg8: memref<2x96xf32, #tpu.memory_space<vmem>>, %arg9: memref<2x18x18x1xf32, #tpu.memory_space<vmem>>, %arg10: memref<2x6x6x32xf32, #tpu.memory_space<vmem>>, %arg11: memref<2x3x3x64xf32, #tpu.memory_space<vmem>>) attributes {dimension_semantics = [#tpu.dimension_semantics<arbitrary>], iteration_bounds = array<i64: 1>, scalar_prefetch = 0 : i64, scratch_operands = 3 : i64, tpu.core_type = #tpu.core_type<tc>, window_params = [{pipeline_mode = #tpu.pipeline_mode<synchronous>, transform_indices = @transform_0, window_bounds = array<i64: 2, 16, 16, 1>}, {pipeline_mode = #tpu.pipeline_mode<synchronous>, transform_indices = @transform_1, window_bounds = array<i64: 9, 32>}, {pipeline_mode = #tpu.pipeline_mode<synchronous>, transform_indices = @transform_2, window_bounds = array<i64: 1, 32>}, {pipeline_mode = #tpu.pipeline_mode<synchronous>, transform_indices = @transform_3, window_bounds = array<i64: 288, 64>}, {pipeline_mode = #tpu.pipeline_mode<synchronous>, transform_indices = @transform_4, window_bounds = array<i64: 1, 64>}, {pipeline_mode = #tpu.pipeline_mode<synchronous>, transform_indices = @transform_5, window_bounds = array<i64: 576, 96>}, {pipeline_mode = #tpu.pipeline_mode<synchronous>, transform_indices = @transform_6, window_bounds = array<i64: 1, 96>}, {pipeline_mode = #tpu.pipeline_mode<synchronous>, transform_indices = @transform_7, window_bounds = array<i64: 2, 96>}]} {
    %cst = arith.constant 0.000000e+00 : f32
    %0 = vector.broadcast %cst : f32 to vector<2x18x18x1xf32>
    %c0 = arith.constant 0 : index
    %c0_0 = arith.constant 0 : index
    %c0_1 = arith.constant 0 : index
    %c0_2 = arith.constant 0 : index
    %1 = vector.load %arg9[%c0, %c0_0, %c0_1, %c0_2] : memref<2x18x18x1xf32, #tpu.memory_space<vmem>>, vector<2x18x18x1xf32>
    tpu.vector_store %arg9[%c0, %c0_0, %c0_1, %c0_2], %0 {strides = array<i32>} : memref<2x18x18x1xf32, #tpu.memory_space<vmem>>, vector<2x18x18x1xf32>,
    %c0_3 = arith.constant 0 : index
    %c0_4 = arith.constant 0 : index
    %c0_5 = arith.constant 0 : index
    %c0_6 = arith.constant 0 : index
    %2 = vector.load %arg1[%c0_3, %c0_4, %c0_5, %c0_6] : memref<2x16x16x1xf32, #tpu.memory_space<vmem>>, vector<2x16x16x1xf32>
    %c0_7 = arith.constant 0 : index
    %c1 = arith.constant 1 : index
    %c1_8 = arith.constant 1 : index
    %c0_9 = arith.constant 0 : index
    %3 = vector.load %arg9[%c0_7, %c1, %c1_8, %c0_9] : memref<2x18x18x1xf32, #tpu.memory_space<vmem>>, vector<2x16x16x1xf32>
    tpu.vector_store %arg9[%c0_7, %c1, %c1_8, %c0_9], %2 {strides = array<i32>} : memref<2x18x18x1xf32, #tpu.memory_space<vmem>>, vector<2x16x16x1xf32>,
    %c0_10 = arith.constant 0 : index
    %c0_11 = arith.constant 0 : index
    %4 = vector.load %arg2[%c0_10, %c0_11] : memref<9x32xf32, #tpu.memory_space<vmem>>, vector<9x32xf32>
    %cst_12 = arith.constant 0.000000e+00 : f32
    %5 = vector.broadcast %cst_12 : f32 to vector<512x32xf32>
    %c0_13 = arith.constant 0 : index
    %c0_14 = arith.constant 0 : index
    %c0_15 = arith.constant 0 : index
    %c0_16 = arith.constant 0 : index
    %6 = vector.load %arg9[%c0_13, %c0_14, %c0_15, %c0_16] : memref<2x18x18x1xf32, #tpu.memory_space<vmem>>, vector<2x16x16x1xf32>
    %7 = vector.shape_cast %6 : vector<2x16x16x1xf32> to vector<512x1xf32>
    %8 = vector.extract_strided_slice %4 {offsets = [0, 0], sizes = [1, 32], strides = [1, 1]} : vector<9x32xf32> to vector<1x32xf32>
    %9 = vector.broadcast %7 : vector<512x1xf32> to vector<512x32xf32>
    %10 = vector.broadcast %8 : vector<1x32xf32> to vector<512x32xf32>
    %11 = arith.mulf %9, %10 : vector<512x32xf32>
    %12 = arith.addf %5, %11 : vector<512x32xf32>
    %c0_17 = arith.constant 0 : index
    %c0_18 = arith.constant 0 : index
    %c1_19 = arith.constant 1 : index
    %c0_20 = arith.constant 0 : index
    %13 = vector.load %arg9[%c0_17, %c0_18, %c1_19, %c0_20] : memref<2x18x18x1xf32, #tpu.memory_space<vmem>>, vector<2x16x16x1xf32>
    %14 = vector.shape_cast %13 : vector<2x16x16x1xf32> to vector<512x1xf32>
    %15 = vector.extract_strided_slice %4 {offsets = [1, 0], sizes = [1, 32], strides = [1, 1]} : vector<9x32xf32> to vector<1x32xf32>
    %16 = vector.broadcast %14 : vector<512x1xf32> to vector<512x32xf32>
    %17 = vector.broadcast %15 : vector<1x32xf32> to vector<512x32xf32>
    %18 = arith.mulf %16, %17 : vector<512x32xf32>
    %19 = arith.addf %12, %18 : vector<512x32xf32>
    %c0_21 = arith.constant 0 : index
    %c0_22 = arith.constant 0 : index
    %c2 = arith.constant 2 : index
    %c0_23 = arith.constant 0 : index
    %20 = vector.load %arg9[%c0_21, %c0_22, %c2, %c0_23] : memref<2x18x18x1xf32, #tpu.memory_space<vmem>>, vector<2x16x16x1xf32>
    %21 = vector.shape_cast %20 : vector<2x16x16x1xf32> to vector<512x1xf32>
    %22 = vector.extract_strided_slice %4 {offsets = [2, 0], sizes = [1, 32], strides = [1, 1]} : vector<9x32xf32> to vector<1x32xf32>
    %23 = vector.broadcast %21 : vector<512x1xf32> to vector<512x32xf32>
    %24 = vector.broadcast %22 : vector<1x32xf32> to vector<512x32xf32>
    %25 = arith.mulf %23, %24 : vector<512x32xf32>
    %26 = arith.addf %19, %25 : vector<512x32xf32>
    %c0_24 = arith.constant 0 : index
    %c1_25 = arith.constant 1 : index
    %c0_26 = arith.constant 0 : index
    %c0_27 = arith.constant 0 : index
    %27 = vector.load %arg9[%c0_24, %c1_25, %c0_26, %c0_27] : memref<2x18x18x1xf32, #tpu.memory_space<vmem>>, vector<2x16x16x1xf32>
    %28 = vector.shape_cast %27 : vector<2x16x16x1xf32> to vector<512x1xf32>
    %29 = vector.extract_strided_slice %4 {offsets = [3, 0], sizes = [1, 32], strides = [1, 1]} : vector<9x32xf32> to vector<1x32xf32>
    %30 = vector.broadcast %28 : vector<512x1xf32> to vector<512x32xf32>
    %31 = vector.broadcast %29 : vector<1x32xf32> to vector<512x32xf32>
    %32 = arith.mulf %30, %31 : vector<512x32xf32>
    %33 = arith.addf %26, %32 : vector<512x32xf32>
    %c0_28 = arith.constant 0 : index
    %c1_29 = arith.constant 1 : index
    %c1_30 = arith.constant 1 : index
    %c0_31 = arith.constant 0 : index
    %34 = vector.load %arg9[%c0_28, %c1_29, %c1_30, %c0_31] : memref<2x18x18x1xf32, #tpu.memory_space<vmem>>, vector<2x16x16x1xf32>
    %35 = vector.shape_cast %34 : vector<2x16x16x1xf32> to vector<512x1xf32>
    %36 = vector.extract_strided_slice %4 {offsets = [4, 0], sizes = [1, 32], strides = [1, 1]} : vector<9x32xf32> to vector<1x32xf32>
    %37 = vector.broadcast %35 : vector<512x1xf32> to vector<512x32xf32>
    %38 = vector.broadcast %36 : vector<1x32xf32> to vector<512x32xf32>
    %39 = arith.mulf %37, %38 : vector<512x32xf32>
    %40 = arith.addf %33, %39 : vector<512x32xf32>
    %c0_32 = arith.constant 0 : index
    %c1_33 = arith.constant 1 : index
    %c2_34 = arith.constant 2 : index
    %c0_35 = arith.constant 0 : index
    %41 = vector.load %arg9[%c0_32, %c1_33, %c2_34, %c0_35] : memref<2x18x18x1xf32, #tpu.memory_space<vmem>>, vector<2x16x16x1xf32>
    %42 = vector.shape_cast %41 : vector<2x16x16x1xf32> to vector<512x1xf32>
    %43 = vector.extract_strided_slice %4 {offsets = [5, 0], sizes = [1, 32], strides = [1, 1]} : vector<9x32xf32> to vector<1x32xf32>
    %44 = vector.broadcast %42 : vector<512x1xf32> to vector<512x32xf32>
    %45 = vector.broadcast %43 : vector<1x32xf32> to vector<512x32xf32>
    %46 = arith.mulf %44, %45 : vector<512x32xf32>
    %47 = arith.addf %40, %46 : vector<512x32xf32>
    %c0_36 = arith.constant 0 : index
    %c2_37 = arith.constant 2 : index
    %c0_38 = arith.constant 0 : index
    %c0_39 = arith.constant 0 : index
    %48 = vector.load %arg9[%c0_36, %c2_37, %c0_38, %c0_39] : memref<2x18x18x1xf32, #tpu.memory_space<vmem>>, vector<2x16x16x1xf32>
    %49 = vector.shape_cast %48 : vector<2x16x16x1xf32> to vector<512x1xf32>
    %50 = vector.extract_strided_slice %4 {offsets = [6, 0], sizes = [1, 32], strides = [1, 1]} : vector<9x32xf32> to vector<1x32xf32>
    %51 = vector.broadcast %49 : vector<512x1xf32> to vector<512x32xf32>
    %52 = vector.broadcast %50 : vector<1x32xf32> to vector<512x32xf32>
    %53 = arith.mulf %51, %52 : vector<512x32xf32>
    %54 = arith.addf %47, %53 : vector<512x32xf32>
    %c0_40 = arith.constant 0 : index
    %c2_41 = arith.constant 2 : index
    %c1_42 = arith.constant 1 : index
    %c0_43 = arith.constant 0 : index
    %55 = vector.load %arg9[%c0_40, %c2_41, %c1_42, %c0_43] : memref<2x18x18x1xf32, #tpu.memory_space<vmem>>, vector<2x16x16x1xf32>
    %56 = vector.shape_cast %55 : vector<2x16x16x1xf32> to vector<512x1xf32>
    %57 = vector.extract_strided_slice %4 {offsets = [7, 0], sizes = [1, 32], strides = [1, 1]} : vector<9x32xf32> to vector<1x32xf32>
    %58 = vector.broadcast %56 : vector<512x1xf32> to vector<512x32xf32>
    %59 = vector.broadcast %57 : vector<1x32xf32> to vector<512x32xf32>
    %60 = arith.mulf %58, %59 : vector<512x32xf32>
    %61 = arith.addf %54, %60 : vector<512x32xf32>
    %c0_44 = arith.constant 0 : index
    %c2_45 = arith.constant 2 : index
    %c2_46 = arith.constant 2 : index
    %c0_47 = arith.constant 0 : index
    %62 = vector.load %arg9[%c0_44, %c2_45, %c2_46, %c0_47] : memref<2x18x18x1xf32, #tpu.memory_space<vmem>>, vector<2x16x16x1xf32>
    %63 = vector.shape_cast %62 : vector<2x16x16x1xf32> to vector<512x1xf32>
    %64 = vector.extract_strided_slice %4 {offsets = [8, 0], sizes = [1, 32], strides = [1, 1]} : vector<9x32xf32> to vector<1x32xf32>
    %65 = vector.broadcast %63 : vector<512x1xf32> to vector<512x32xf32>
    %66 = vector.broadcast %64 : vector<1x32xf32> to vector<512x32xf32>
    %67 = arith.mulf %65, %66 : vector<512x32xf32>
    %68 = arith.addf %61, %67 : vector<512x32xf32>
    %c0_48 = arith.constant 0 : index
    %c0_49 = arith.constant 0 : index
    %69 = vector.load %arg3[%c0_48, %c0_49] : memref<1x32xf32, #tpu.memory_space<vmem>>, vector<1x32xf32>
    %70 = vector.broadcast %69 : vector<1x32xf32> to vector<512x32xf32>
    %71 = arith.addf %68, %70 : vector<512x32xf32>
    %cst_50 = arith.constant 0.000000e+00 : f32
    %72 = vector.broadcast %cst_50 : f32 to vector<512x32xf32>
    %73 = arith.maximumf %71, %72 : vector<512x32xf32>
    %cst_51 = arith.constant 0.000000e+00 : f32
    %74 = vector.broadcast %cst_51 : f32 to vector<2x6x6x32xf32>
    %c0_52 = arith.constant 0 : index
    %c0_53 = arith.constant 0 : index
    %c0_54 = arith.constant 0 : index
    %c0_55 = arith.constant 0 : index
    %75 = vector.load %arg10[%c0_52, %c0_53, %c0_54, %c0_55] : memref<2x6x6x32xf32, #tpu.memory_space<vmem>>, vector<2x6x6x32xf32>
    tpu.vector_store %arg10[%c0_52, %c0_53, %c0_54, %c0_55], %74 {strides = array<i32>} : memref<2x6x6x32xf32, #tpu.memory_space<vmem>>, vector<2x6x6x32xf32>,
    %76 = vector.shape_cast %73 : vector<512x32xf32> to vector<128x4x32xf32>
    %cst_56 = arith.constant dense<0xFF800000> : vector<128x32xf32>
    %77 = vector.multi_reduction <maximumf>, %76, %cst_56 [1] : vector<128x4x32xf32> to vector<128x32xf32>
    %78 = vector.shape_cast %77 : vector<128x32xf32> to vector<8x4x4x32xf32>
    %cst_57 = arith.constant dense<0xFF800000> : vector<8x4x32xf32>
    %79 = vector.multi_reduction <maximumf>, %78, %cst_57 [1] : vector<8x4x4x32xf32> to vector<8x4x32xf32>
    %80 = vector.shape_cast %79 : vector<8x4x32xf32> to vector<2x4x4x32xf32>
    %c0_58 = arith.constant 0 : index
    %c1_59 = arith.constant 1 : index
    %c1_60 = arith.constant 1 : index
    %c0_61 = arith.constant 0 : index
    %81 = vector.load %arg10[%c0_58, %c1_59, %c1_60, %c0_61] : memref<2x6x6x32xf32, #tpu.memory_space<vmem>>, vector<2x4x4x32xf32>
    tpu.vector_store %arg10[%c0_58, %c1_59, %c1_60, %c0_61], %80 {strides = array<i32>} : memref<2x6x6x32xf32, #tpu.memory_space<vmem>>, vector<2x4x4x32xf32>,
    %c0_62 = arith.constant 0 : index
    %c0_63 = arith.constant 0 : index
    %82 = vector.load %arg4[%c0_62, %c0_63] : memref<288x64xf32, #tpu.memory_space<vmem>>, vector<288x64xf32>
    %cst_64 = arith.constant 0.000000e+00 : f32
    %83 = vector.broadcast %cst_64 : f32 to vector<32x64xf32>
    %c0_65 = arith.constant 0 : index
    %c0_66 = arith.constant 0 : index
    %c0_67 = arith.constant 0 : index
    %c0_68 = arith.constant 0 : index
    %84 = vector.load %arg10[%c0_65, %c0_66, %c0_67, %c0_68] : memref<2x6x6x32xf32, #tpu.memory_space<vmem>>, vector<2x4x4x32xf32>
    %85 = vector.shape_cast %84 : vector<2x4x4x32xf32> to vector<32x32xf32>
    %86 = vector.extract_strided_slice %82 {offsets = [0, 0], sizes = [32, 64], strides = [1, 1]} : vector<288x64xf32> to vector<32x64xf32>
    %cst_69 = arith.constant dense<0.000000e+00> : vector<32x64xf32>
    %87 = tpu.matmul %85, %86, %cst_69 {dimension_numbers = #tpu.dot_dimension_numbers<[1], [0], [0], [1], [0, 0, 1, 1], [], []>} : vector<32x32xf32>, vector<32x64xf32>, vector<32x64xf32> -> vector<32x64xf32>
    %88 = arith.addf %83, %87 : vector<32x64xf32>
    %c0_70 = arith.constant 0 : index
    %c0_71 = arith.constant 0 : index
    %c1_72 = arith.constant 1 : index
    %c0_73 = arith.constant 0 : index
    %89 = vector.load %arg10[%c0_70, %c0_71, %c1_72, %c0_73] : memref<2x6x6x32xf32, #tpu.memory_space<vmem>>, vector<2x4x4x32xf32>
    %90 = vector.shape_cast %89 : vector<2x4x4x32xf32> to vector<32x32xf32>
    %91 = vector.extract_strided_slice %82 {offsets = [32, 0], sizes = [32, 64], strides = [1, 1]} : vector<288x64xf32> to vector<32x64xf32>
    %cst_74 = arith.constant dense<0.000000e+00> : vector<32x64xf32>
    %92 = tpu.matmul %90, %91, %cst_74 {dimension_numbers = #tpu.dot_dimension_numbers<[1], [0], [0], [1], [0, 0, 1, 1], [], []>} : vector<32x32xf32>, vector<32x64xf32>, vector<32x64xf32> -> vector<32x64xf32>
    %93 = arith.addf %88, %92 : vector<32x64xf32>
    %c0_75 = arith.constant 0 : index
    %c0_76 = arith.constant 0 : index
    %c2_77 = arith.constant 2 : index
    %c0_78 = arith.constant 0 : index
    %94 = vector.load %arg10[%c0_75, %c0_76, %c2_77, %c0_78] : memref<2x6x6x32xf32, #tpu.memory_space<vmem>>, vector<2x4x4x32xf32>
    %95 = vector.shape_cast %94 : vector<2x4x4x32xf32> to vector<32x32xf32>
    %96 = vector.extract_strided_slice %82 {offsets = [64, 0], sizes = [32, 64], strides = [1, 1]} : vector<288x64xf32> to vector<32x64xf32>
    %cst_79 = arith.constant dense<0.000000e+00> : vector<32x64xf32>
    %97 = tpu.matmul %95, %96, %cst_79 {dimension_numbers = #tpu.dot_dimension_numbers<[1], [0], [0], [1], [0, 0, 1, 1], [], []>} : vector<32x32xf32>, vector<32x64xf32>, vector<32x64xf32> -> vector<32x64xf32>
    %98 = arith.addf %93, %97 : vector<32x64xf32>
    %c0_80 = arith.constant 0 : index
    %c1_81 = arith.constant 1 : index
    %c0_82 = arith.constant 0 : index
    %c0_83 = arith.constant 0 : index
    %99 = vector.load %arg10[%c0_80, %c1_81, %c0_82, %c0_83] : memref<2x6x6x32xf32, #tpu.memory_space<vmem>>, vector<2x4x4x32xf32>
    %100 = vector.shape_cast %99 : vector<2x4x4x32xf32> to vector<32x32xf32>
    %101 = vector.extract_strided_slice %82 {offsets = [96, 0], sizes = [32, 64], strides = [1, 1]} : vector<288x64xf32> to vector<32x64xf32>
    %cst_84 = arith.constant dense<0.000000e+00> : vector<32x64xf32>
    %102 = tpu.matmul %100, %101, %cst_84 {dimension_numbers = #tpu.dot_dimension_numbers<[1], [0], [0], [1], [0, 0, 1, 1], [], []>} : vector<32x32xf32>, vector<32x64xf32>, vector<32x64xf32> -> vector<32x64xf32>
    %103 = arith.addf %98, %102 : vector<32x64xf32>
    %c0_85 = arith.constant 0 : index
    %c1_86 = arith.constant 1 : index
    %c1_87 = arith.constant 1 : index
    %c0_88 = arith.constant 0 : index
    %104 = vector.load %arg10[%c0_85, %c1_86, %c1_87, %c0_88] : memref<2x6x6x32xf32, #tpu.memory_space<vmem>>, vector<2x4x4x32xf32>
    %105 = vector.shape_cast %104 : vector<2x4x4x32xf32> to vector<32x32xf32>
    %106 = vector.extract_strided_slice %82 {offsets = [128, 0], sizes = [32, 64], strides = [1, 1]} : vector<288x64xf32> to vector<32x64xf32>
    %cst_89 = arith.constant dense<0.000000e+00> : vector<32x64xf32>
    %107 = tpu.matmul %105, %106, %cst_89 {dimension_numbers = #tpu.dot_dimension_numbers<[1], [0], [0], [1], [0, 0, 1, 1], [], []>} : vector<32x32xf32>, vector<32x64xf32>, vector<32x64xf32> -> vector<32x64xf32>
    %108 = arith.addf %103, %107 : vector<32x64xf32>
    %c0_90 = arith.constant 0 : index
    %c1_91 = arith.constant 1 : index
    %c2_92 = arith.constant 2 : index
    %c0_93 = arith.constant 0 : index
    %109 = vector.load %arg10[%c0_90, %c1_91, %c2_92, %c0_93] : memref<2x6x6x32xf32, #tpu.memory_space<vmem>>, vector<2x4x4x32xf32>
    %110 = vector.shape_cast %109 : vector<2x4x4x32xf32> to vector<32x32xf32>
    %111 = vector.extract_strided_slice %82 {offsets = [160, 0], sizes = [32, 64], strides = [1, 1]} : vector<288x64xf32> to vector<32x64xf32>
    %cst_94 = arith.constant dense<0.000000e+00> : vector<32x64xf32>
    %112 = tpu.matmul %110, %111, %cst_94 {dimension_numbers = #tpu.dot_dimension_numbers<[1], [0], [0], [1], [0, 0, 1, 1], [], []>} : vector<32x32xf32>, vector<32x64xf32>, vector<32x64xf32> -> vector<32x64xf32>
    %113 = arith.addf %108, %112 : vector<32x64xf32>
    %c0_95 = arith.constant 0 : index
    %c2_96 = arith.constant 2 : index
    %c0_97 = arith.constant 0 : index
    %c0_98 = arith.constant 0 : index
    %114 = vector.load %arg10[%c0_95, %c2_96, %c0_97, %c0_98] : memref<2x6x6x32xf32, #tpu.memory_space<vmem>>, vector<2x4x4x32xf32>
    %115 = vector.shape_cast %114 : vector<2x4x4x32xf32> to vector<32x32xf32>
    %116 = vector.extract_strided_slice %82 {offsets = [192, 0], sizes = [32, 64], strides = [1, 1]} : vector<288x64xf32> to vector<32x64xf32>
    %cst_99 = arith.constant dense<0.000000e+00> : vector<32x64xf32>
    %117 = tpu.matmul %115, %116, %cst_99 {dimension_numbers = #tpu.dot_dimension_numbers<[1], [0], [0], [1], [0, 0, 1, 1], [], []>} : vector<32x32xf32>, vector<32x64xf32>, vector<32x64xf32> -> vector<32x64xf32>
    %118 = arith.addf %113, %117 : vector<32x64xf32>
    %c0_100 = arith.constant 0 : index
    %c2_101 = arith.constant 2 : index
    %c1_102 = arith.constant 1 : index
    %c0_103 = arith.constant 0 : index
    %119 = vector.load %arg10[%c0_100, %c2_101, %c1_102, %c0_103] : memref<2x6x6x32xf32, #tpu.memory_space<vmem>>, vector<2x4x4x32xf32>
    %120 = vector.shape_cast %119 : vector<2x4x4x32xf32> to vector<32x32xf32>
    %121 = vector.extract_strided_slice %82 {offsets = [224, 0], sizes = [32, 64], strides = [1, 1]} : vector<288x64xf32> to vector<32x64xf32>
    %cst_104 = arith.constant dense<0.000000e+00> : vector<32x64xf32>
    %122 = tpu.matmul %120, %121, %cst_104 {dimension_numbers = #tpu.dot_dimension_numbers<[1], [0], [0], [1], [0, 0, 1, 1], [], []>} : vector<32x32xf32>, vector<32x64xf32>, vector<32x64xf32> -> vector<32x64xf32>
    %123 = arith.addf %118, %122 : vector<32x64xf32>
    %c0_105 = arith.constant 0 : index
    %c2_106 = arith.constant 2 : index
    %c2_107 = arith.constant 2 : index
    %c0_108 = arith.constant 0 : index
    %124 = vector.load %arg10[%c0_105, %c2_106, %c2_107, %c0_108] : memref<2x6x6x32xf32, #tpu.memory_space<vmem>>, vector<2x4x4x32xf32>
    %125 = vector.shape_cast %124 : vector<2x4x4x32xf32> to vector<32x32xf32>
    %126 = vector.extract_strided_slice %82 {offsets = [256, 0], sizes = [32, 64], strides = [1, 1]} : vector<288x64xf32> to vector<32x64xf32>
    %cst_109 = arith.constant dense<0.000000e+00> : vector<32x64xf32>
    %127 = tpu.matmul %125, %126, %cst_109 {dimension_numbers = #tpu.dot_dimension_numbers<[1], [0], [0], [1], [0, 0, 1, 1], [], []>} : vector<32x32xf32>, vector<32x64xf32>, vector<32x64xf32> -> vector<32x64xf32>
    %128 = arith.addf %123, %127 : vector<32x64xf32>
    %c0_110 = arith.constant 0 : index
    %c0_111 = arith.constant 0 : index
    %129 = vector.load %arg5[%c0_110, %c0_111] : memref<1x64xf32, #tpu.memory_space<vmem>>, vector<1x64xf32>
    %130 = vector.broadcast %129 : vector<1x64xf32> to vector<32x64xf32>
    %131 = arith.addf %128, %130 : vector<32x64xf32>
    %cst_112 = arith.constant 0.000000e+00 : f32
    %132 = vector.broadcast %cst_112 : f32 to vector<32x64xf32>
    %133 = arith.maximumf %131, %132 : vector<32x64xf32>
    %cst_113 = arith.constant 0.000000e+00 : f32
    %134 = vector.broadcast %cst_113 : f32 to vector<2x3x3x64xf32>
    %c0_114 = arith.constant 0 : index
    %c0_115 = arith.constant 0 : index
    %c0_116 = arith.constant 0 : index
    %c0_117 = arith.constant 0 : index
    %135 = vector.load %arg11[%c0_114, %c0_115, %c0_116, %c0_117] : memref<2x3x3x64xf32, #tpu.memory_space<vmem>>, vector<2x3x3x64xf32>
    tpu.vector_store %arg11[%c0_114, %c0_115, %c0_116, %c0_117], %134 {strides = array<i32>} : memref<2x3x3x64xf32, #tpu.memory_space<vmem>>, vector<2x3x3x64xf32>,
    %136 = vector.shape_cast %133 : vector<32x64xf32> to vector<8x4x64xf32>
    %cst_118 = arith.constant dense<0xFF800000> : vector<8x64xf32>
    %137 = vector.multi_reduction <maximumf>, %136, %cst_118 [1] : vector<8x4x64xf32> to vector<8x64xf32>
    %138 = vector.shape_cast %137 : vector<8x64xf32> to vector<2x4x1x64xf32>
    %cst_119 = arith.constant dense<0xFF800000> : vector<2x1x64xf32>
    %139 = vector.multi_reduction <maximumf>, %138, %cst_119 [1] : vector<2x4x1x64xf32> to vector<2x1x64xf32>
    %140 = vector.shape_cast %139 : vector<2x1x64xf32> to vector<2x1x1x64xf32>
    %c0_120 = arith.constant 0 : index
    %c1_121 = arith.constant 1 : index
    %c1_122 = arith.constant 1 : index
    %c0_123 = arith.constant 0 : index
    %141 = vector.load %arg11[%c0_120, %c1_121, %c1_122, %c0_123] : memref<2x3x3x64xf32, #tpu.memory_space<vmem>>, vector<2x1x1x64xf32>
    tpu.vector_store %arg11[%c0_120, %c1_121, %c1_122, %c0_123], %140 {strides = array<i32>} : memref<2x3x3x64xf32, #tpu.memory_space<vmem>>, vector<2x1x1x64xf32>,
    %c0_124 = arith.constant 0 : index
    %c0_125 = arith.constant 0 : index
    %142 = vector.load %arg6[%c0_124, %c0_125] : memref<576x96xf32, #tpu.memory_space<vmem>>, vector<576x96xf32>
    %cst_126 = arith.constant 0.000000e+00 : f32
    %143 = vector.broadcast %cst_126 : f32 to vector<2x96xf32>
    %c0_127 = arith.constant 0 : index
    %c1_128 = arith.constant 1 : index
    %c1_129 = arith.constant 1 : index
    %c0_130 = arith.constant 0 : index
    %144 = vector.load %arg11[%c0_127, %c1_128, %c1_129, %c0_130] : memref<2x3x3x64xf32, #tpu.memory_space<vmem>>, vector<2x1x1x64xf32>
    %145 = vector.shape_cast %144 : vector<2x1x1x64xf32> to vector<2x64xf32>
    %146 = vector.extract_strided_slice %142 {offsets = [256, 0], sizes = [64, 96], strides = [1, 1]} : vector<576x96xf32> to vector<64x96xf32>
    %cst_131 = arith.constant dense<0.000000e+00> : vector<2x96xf32>
    %147 = tpu.matmul %145, %146, %cst_131 {dimension_numbers = #tpu.dot_dimension_numbers<[1], [0], [0], [1], [0, 0, 1, 1], [], []>} : vector<2x64xf32>, vector<64x96xf32>, vector<2x96xf32> -> vector<2x96xf32>
    %148 = arith.addf %143, %147 : vector<2x96xf32>
    %c0_132 = arith.constant 0 : index
    %c0_133 = arith.constant 0 : index
    %149 = vector.load %arg7[%c0_132, %c0_133] : memref<1x96xf32, #tpu.memory_space<vmem>>, vector<1x96xf32>
    %150 = vector.broadcast %149 : vector<1x96xf32> to vector<2x96xf32>
    %151 = arith.addf %148, %150 : vector<2x96xf32>
    %cst_134 = arith.constant 0.000000e+00 : f32
    %152 = vector.broadcast %cst_134 : f32 to vector<2x96xf32>
    %153 = arith.maximumf %151, %152 : vector<2x96xf32>
    %154 = vector.shape_cast %153 : vector<2x96xf32> to vector<2x1x96xf32>
    %cst_135 = arith.constant dense<0.000000e+00> : vector<2x96xf32>
    %155 = vector.multi_reduction <add>, %154, %cst_135 [1] : vector<2x1x96xf32> to vector<2x96xf32>
    %cst_136 = arith.constant 1.000000e+00 : f32
    %156 = vector.broadcast %cst_136 : f32 to vector<2x96xf32>
    %157 = arith.divf %155, %156 : vector<2x96xf32>
    %c0_137 = arith.constant 0 : index
    %c0_138 = arith.constant 0 : index
    %158 = vector.load %arg8[%c0_137, %c0_138] : memref<2x96xf32, #tpu.memory_space<vmem>>, vector<2x96xf32>
    tpu.vector_store %arg8[%c0_137, %c0_138], %157 {strides = array<i32>} : memref<2x96xf32, #tpu.memory_space<vmem>>, vector<2x96xf32>,
    return
  }
  func.func @transform_0(%arg0: i32) -> (i32, i32, i32, i32) {
    %c0_i32 = arith.constant 0 : i32
    %c0_i32_0 = arith.constant 0 : i32
    %c0_i32_1 = arith.constant 0 : i32
    %c0_i32_2 = arith.constant 0 : i32
    %c0_i32_3 = arith.constant 0 : i32
    return %c0_i32, %c0_i32_0, %c0_i32_1, %c0_i32_2 : i32, i32, i32, i32
  }
  func.func @transform_1(%arg0: i32) -> (i32, i32) {
    %c0_i32 = arith.constant 0 : i32
    %c0_i32_0 = arith.constant 0 : i32
    %c0_i32_1 = arith.constant 0 : i32
    return %c0_i32, %c0_i32_0 : i32, i32
  }
  func.func @transform_2(%arg0: i32) -> (i32, i32) {
    %c0_i32 = arith.constant 0 : i32
    %c0_i32_0 = arith.constant 0 : i32
    %c0_i32_1 = arith.constant 0 : i32
    return %c0_i32, %c0_i32_0 : i32, i32
  }
  func.func @transform_3(%arg0: i32) -> (i32, i32) {
    %c0_i32 = arith.constant 0 : i32
    %c0_i32_0 = arith.constant 0 : i32
    %c0_i32_1 = arith.constant 0 : i32
    return %c0_i32, %c0_i32_0 : i32, i32
  }
  func.func @transform_4(%arg0: i32) -> (i32, i32) {
    %c0_i32 = arith.constant 0 : i32
    %c0_i32_0 = arith.constant 0 : i32
    %c0_i32_1 = arith.constant 0 : i32
    return %c0_i32, %c0_i32_0 : i32, i32
  }
  func.func @transform_5(%arg0: i32) -> (i32, i32) {
    %c0_i32 = arith.constant 0 : i32
    %c0_i32_0 = arith.constant 0 : i32
    %c0_i32_1 = arith.constant 0 : i32
    return %c0_i32, %c0_i32_0 : i32, i32
  }
  func.func @transform_6(%arg0: i32) -> (i32, i32) {
    %c0_i32 = arith.constant 0 : i32
    %c0_i32_0 = arith.constant 0 : i32
    %c0_i32_1 = arith.constant 0 : i32
    return %c0_i32, %c0_i32_0 : i32, i32
  }
  func.func @transform_7(%arg0: i32) -> (i32, i32) {
    %c0_i32 = arith.constant 0 : i32
    %c0_i32_0 = arith.constant 0 : i32
    %c0_i32_1 = arith.constant 0 : i32
    return %c0_i32, %c0_i32_0 : i32, i32
  }
}

</mosaic_0001>

<llo_original>
// kernel: tpu_custom_call.1
$region0: #{tpu_custom_call.1}
  #allocation0 [shape = 'u32[]', space=smem, size = 0x4, offset = 0x4, fixed_abs, tag = 'smem constant byte address 0x4 - core index']
  #allocation1 [shape = 'u32[72,128]{1,0:T(1,128)}', space=vmem, size = 0x9000, scoped, tag = 'internal scratch']
  #allocation2 [shape = 'f32[2,18,18,1]{3,2,1,0:T(8,128)}', space=vmem, size = 0x6c000, scoped, tag = 'scratch operand']
  #allocation3 [shape = 'f32[2,6,6,32]{3,2,1,0:T(8,128)}', space=vmem, size = 0xc000, scoped, tag = 'scratch operand']
  #allocation4 [shape = 'f32[2,3,3,64]{3,2,1,0:T(4,128)}', space=vmem, size = 0x3000, scoped, tag = 'scratch operand']
  %s0 = inlined_call_operand.vmem [shape: f32[2,16,16,1], index: 0, kind: input, shape index: {}]
  %s1 = inlined_call_operand.vmem [shape: f32[9,32], index: 1, kind: input, shape index: {}]
  %s2 = inlined_call_operand.vmem [shape: f32[1,32], index: 2, kind: input, shape index: {}]
  %s3 = inlined_call_operand.vmem [shape: f32[288,64], index: 3, kind: input, shape index: {}]
  %s4 = inlined_call_operand.vmem [shape: f32[1,64], index: 4, kind: input, shape index: {}]
  %s5 = inlined_call_operand.vmem [shape: f32[576,96], index: 5, kind: input, shape index: {}]
  %s6 = inlined_call_operand.vmem [shape: f32[1,96], index: 6, kind: input, shape index: {}]
  %s7 = inlined_call_operand.hbm [shape: f32[2,96], index: 7, kind: output, shape index: {}]
  %s8 = sld [smem:[#allocation0]]
  $region38: #{tpu_custom_call.1} parent=0
    _
  %s10 = ssub.s32 1, %s8
  %s11 = scalar_select 0, %s10, %s8
  $region1: #{tpu_custom_call.1} parent=0
    #allocation5 [shape = 'u8[1024]{0}', space=vmem, size = 0x400, scoped, tag = 'output window, operand 0, single buffered']
    #allocation6 [shape = 's32[1]{0}', space=sflag, size = 0x4, scoped, tag = 'scoped memory for tpu_custom_call.1']
    %12 = vsyncpa [#allocation6], 0
    // Predicated region
    $region2: #{tpu_custom_call.1} parent=1 // pred_check
      _
    $region3: #{tpu_custom_call.1} parent=1 // pred_check_branch
      %14 = sbr.rel (0) target = $region5
    $region4: #{tpu_custom_call.1} parent=1 // pred_region
      _
    $region5: #{tpu_custom_call.1} parent=1 // pred_fallthru
      _
    // Predicated region
    $region6: #{tpu_custom_call.1} parent=1 // pred_check
      _
    $region7: #{tpu_custom_call.1} parent=1 // pred_check_branch
      %16 = sbr.rel (0) target = $region9
    $region8: #{tpu_custom_call.1} parent=1 // pred_region
      _
    $region9: #{tpu_custom_call.1} parent=1 // pred_fallthru
      _
    // Predicated region
    $region10: #{tpu_custom_call.1} parent=1 // pred_check
      _
    $region11: #{tpu_custom_call.1} parent=1 // pred_check_branch
      %18 = sbr.rel (0) target = $region13
    $region12: #{tpu_custom_call.1} parent=1 // pred_region
      _
    $region13: #{tpu_custom_call.1} parent=1 // pred_fallthru
      _
    // Predicated region
    $region14: #{tpu_custom_call.1} parent=1 // pred_check
      _
    $region15: #{tpu_custom_call.1} parent=1 // pred_check_branch
      %20 = sbr.rel (0) target = $region17
    $region16: #{tpu_custom_call.1} parent=1 // pred_region
      _
    $region17: #{tpu_custom_call.1} parent=1 // pred_fallthru
      _
    // Predicated region
    $region18: #{tpu_custom_call.1} parent=1 // pred_check
      _
    $region19: #{tpu_custom_call.1} parent=1 // pred_check_branch
      %22 = sbr.rel (0) target = $region21
    $region20: #{tpu_custom_call.1} parent=1 // pred_region
      _
    $region21: #{tpu_custom_call.1} parent=1 // pred_fallthru
      _
    // Predicated region
    $region22: #{tpu_custom_call.1} parent=1 // pred_check
      _
    $region23: #{tpu_custom_call.1} parent=1 // pred_check_branch
      %24 = sbr.rel (0) target = $region25
    $region24: #{tpu_custom_call.1} parent=1 // pred_region
      _
    $region25: #{tpu_custom_call.1} parent=1 // pred_fallthru
      _
    // Predicated region
    $region26: #{tpu_custom_call.1} parent=1 // pred_check
      _
    $region27: #{tpu_custom_call.1} parent=1 // pred_check_branch
      %26 = sbr.rel (0) target = $region29
    $region28: #{tpu_custom_call.1} parent=1 // pred_region
      _
    $region29: #{tpu_custom_call.1} parent=1 // pred_fallthru
      _
    %vm27 = vcmask 7168
    %28 = vst.msk [vmem:[#allocation2] sm:$0xff] %vm27, 0.0
    %29 = vst.msk [vmem:[#allocation2 + $0x8] sm:$0xff] %vm27, 0.0
    %vm30 = vcmask 1024
    %31 = vst.msk [vmem:[#allocation2 + $0x10] sm:$0x3] %vm30, 0.0
    %32 = vst.msk [vmem:[#allocation2 + $0x18] sm:$0xff] %vm27, 0.0
    %33 = vst.msk [vmem:[#allocation2 + $0x20] sm:$0xff] %vm27, 0.0
    %34 = vst.msk [vmem:[#allocation2 + $0x28] sm:$0x3] %vm30, 0.0
    %35 = vst.msk [vmem:[#allocation2 + $0x30] sm:$0xff] %vm27, 0.0
    %36 = vst.msk [vmem:[#allocation2 + $0x38] sm:$0xff] %vm27, 0.0
    %37 = vst.msk [vmem:[#allocation2 + $0x40] sm:$0x3] %vm30, 0.0
    %38 = vst.msk [vmem:[#allocation2 + $0x48] sm:$0xff] %vm27, 0.0
    %39 = vst.msk [vmem:[#allocation2 + $0x50] sm:$0xff] %vm27, 0.0
    %40 = vst.msk [vmem:[#allocation2 + $0x58] sm:$0x3] %vm30, 0.0
    %41 = vst.msk [vmem:[#allocation2 + $0x60] sm:$0xff] %vm27, 0.0
    %42 = vst.msk [vmem:[#allocation2 + $0x68] sm:$0xff] %vm27, 0.0
    %43 = vst.msk [vmem:[#allocation2 + $0x70] sm:$0x3] %vm30, 0.0
    %44 = vst.msk [vmem:[#allocation2 + $0x78] sm:$0xff] %vm27, 0.0
    %45 = vst.msk [vmem:[#allocation2 + $0x80] sm:$0xff] %vm27, 0.0
    %46 = vst.msk [vmem:[#allocation2 + $0x88] sm:$0x3] %vm30, 0.0
    %47 = vst.msk [vmem:[#allocation2 + $0x90] sm:$0xff] %vm27, 0.0
    %48 = vst.msk [vmem:[#allocation2 + $0x98] sm:$0xff] %vm27, 0.0
    %49 = vst.msk [vmem:[#allocation2 + $0xa0] sm:$0x3] %vm30, 0.0
    %50 = vst.msk [vmem:[#allocation2 + $0xa8] sm:$0xff] %vm27, 0.0
    %51 = vst.msk [vmem:[#allocation2 + $0xb0] sm:$0xff] %vm27, 0.0
    %52 = vst.msk [vmem:[#allocation2 + $0xb8] sm:$0x3] %vm30, 0.0
    %53 = vst.msk [vmem:[#allocation2 + $0xc0] sm:$0xff] %vm27, 0.0
    %54 = vst.msk [vmem:[#allocation2 + $0xc8] sm:$0xff] %vm27, 0.0
    %55 = vst.msk [vmem:[#allocation2 + $0xd0] sm:$0x3] %vm30, 0.0
    %56 = vst.msk [vmem:[#allocation2 + $0xd8] sm:$0xff] %vm27, 0.0
    %57 = vst.msk [vmem:[#allocation2 + $0xe0] sm:$0xff] %vm27, 0.0
    %58 = vst.msk [vmem:[#allocation2 + $0xe8] sm:$0x3] %vm30, 0.0
    %59 = vst.msk [vmem:[#allocation2 + $0xf0] sm:$0xff] %vm27, 0.0
    %60 = vst.msk [vmem:[#allocation2 + $0xf8] sm:$0xff] %vm27, 0.0
    %61 = vst.msk [vmem:[#allocation2 + $0x100] sm:$0x3] %vm30, 0.0
    %62 = vst.msk [vmem:[#allocation2 + $0x108] sm:$0xff] %vm27, 0.0
    %63 = vst.msk [vmem:[#allocation2 + $0x110] sm:$0xff] %vm27, 0.0
    %64 = vst.msk [vmem:[#allocation2 + $0x118] sm:$0x3] %vm30, 0.0
    %65 = vst.msk [vmem:[#allocation2 + $0x120] sm:$0xff] %vm27, 0.0
    %66 = vst.msk [vmem:[#allocation2 + $0x128] sm:$0xff] %vm27, 0.0
    %67 = vst.msk [vmem:[#allocation2 + $0x130] sm:$0x3] %vm30, 0.0
    %68 = vst.msk [vmem:[#allocation2 + $0x138] sm:$0xff] %vm27, 0.0
    %69 = vst.msk [vmem:[#allocation2 + $0x140] sm:$0xff] %vm27, 0.0
    %70 = vst.msk [vmem:[#allocation2 + $0x148] sm:$0x3] %vm30, 0.0
    %71 = vst.msk [vmem:[#allocation2 + $0x150] sm:$0xff] %vm27, 0.0
    %72 = vst.msk [vmem:[#allocation2 + $0x158] sm:$0xff] %vm27, 0.0
    %73 = vst.msk [vmem:[#allocation2 + $0x160] sm:$0x3] %vm30, 0.0
    %74 = vst.msk [vmem:[#allocation2 + $0x168] sm:$0xff] %vm27, 0.0
    %75 = vst.msk [vmem:[#allocation2 + $0x170] sm:$0xff] %vm27, 0.0
    %76 = vst.msk [vmem:[#allocation2 + $0x178] sm:$0x3] %vm30, 0.0
    %77 = vst.msk [vmem:[#allocation2 + $0x180] sm:$0xff] %vm27, 0.0
    %78 = vst.msk [vmem:[#allocation2 + $0x188] sm:$0xff] %vm27, 0.0
    %79 = vst.msk [vmem:[#allocation2 + $0x190] sm:$0x3] %vm30, 0.0
    %80 = vst.msk [vmem:[#allocation2 + $0x198] sm:$0xff] %vm27, 0.0
    %81 = vst.msk [vmem:[#allocation2 + $0x1a0] sm:$0xff] %vm27, 0.0
    %82 = vst.msk [vmem:[#allocation2 + $0x1a8] sm:$0x3] %vm30, 0.0
    %83 = vst.msk [vmem:[#allocation2 + $0x1b0] sm:$0xff] %vm27, 0.0
    %84 = vst.msk [vmem:[#allocation2 + $0x1b8] sm:$0xff] %vm27, 0.0
    %85 = vst.msk [vmem:[#allocation2 + $0x1c0] sm:$0x3] %vm30, 0.0
    %86 = vst.msk [vmem:[#allocation2 + $0x1c8] sm:$0xff] %vm27, 0.0
    %87 = vst.msk [vmem:[#allocation2 + $0x1d0] sm:$0xff] %vm27, 0.0
    %88 = vst.msk [vmem:[#allocation2 + $0x1d8] sm:$0x3] %vm30, 0.0
    %89 = vst.msk [vmem:[#allocation2 + $0x1e0] sm:$0xff] %vm27, 0.0
    %90 = vst.msk [vmem:[#allocation2 + $0x1e8] sm:$0xff] %vm27, 0.0
    %91 = vst.msk [vmem:[#allocation2 + $0x1f0] sm:$0x3] %vm30, 0.0
    %92 = vst.msk [vmem:[#allocation2 + $0x1f8] sm:$0xff] %vm27, 0.0
    %93 = vst.msk [vmem:[#allocation2 + $0x200] sm:$0xff] %vm27, 0.0
    %94 = vst.msk [vmem:[#allocation2 + $0x208] sm:$0x3] %vm30, 0.0
    %95 = vst.msk [vmem:[#allocation2 + $0x210] sm:$0xff] %vm27, 0.0
    %96 = vst.msk [vmem:[#allocation2 + $0x218] sm:$0xff] %vm27, 0.0
    %97 = vst.msk [vmem:[#allocation2 + $0x220] sm:$0x3] %vm30, 0.0
    %98 = vst.msk [vmem:[#allocation2 + $0x228] sm:$0xff] %vm27, 0.0
    %99 = vst.msk [vmem:[#allocation2 + $0x230] sm:$0xff] %vm27, 0.0
    %100 = vst.msk [vmem:[#allocation2 + $0x238] sm:$0x3] %vm30, 0.0
    %101 = vst.msk [vmem:[#allocation2 + $0x240] sm:$0xff] %vm27, 0.0
    %102 = vst.msk [vmem:[#allocation2 + $0x248] sm:$0xff] %vm27, 0.0
    %103 = vst.msk [vmem:[#allocation2 + $0x250] sm:$0x3] %vm30, 0.0
    %104 = vst.msk [vmem:[#allocation2 + $0x258] sm:$0xff] %vm27, 0.0
    %105 = vst.msk [vmem:[#allocation2 + $0x260] sm:$0xff] %vm27, 0.0
    %106 = vst.msk [vmem:[#allocation2 + $0x268] sm:$0x3] %vm30, 0.0
    %107 = vst.msk [vmem:[#allocation2 + $0x270] sm:$0xff] %vm27, 0.0
    %108 = vst.msk [vmem:[#allocation2 + $0x278] sm:$0xff] %vm27, 0.0
    %109 = vst.msk [vmem:[#allocation2 + $0x280] sm:$0x3] %vm30, 0.0
    %110 = vst.msk [vmem:[#allocation2 + $0x288] sm:$0xff] %vm27, 0.0
    %111 = vst.msk [vmem:[#allocation2 + $0x290] sm:$0xff] %vm27, 0.0
    %112 = vst.msk [vmem:[#allocation2 + $0x298] sm:$0x3] %vm30, 0.0
    %113 = vst.msk [vmem:[#allocation2 + $0x2a0] sm:$0xff] %vm27, 0.0
    %114 = vst.msk [vmem:[#allocation2 + $0x2a8] sm:$0xff] %vm27, 0.0
    %115 = vst.msk [vmem:[#allocation2 + $0x2b0] sm:$0x3] %vm30, 0.0
    %116 = vst.msk [vmem:[#allocation2 + $0x2b8] sm:$0xff] %vm27, 0.0
    %117 = vst.msk [vmem:[#allocation2 + $0x2c0] sm:$0xff] %vm27, 0.0
    %118 = vst.msk [vmem:[#allocation2 + $0x2c8] sm:$0x3] %vm30, 0.0
    %119 = vst.msk [vmem:[#allocation2 + $0x2d0] sm:$0xff] %vm27, 0.0
    %120 = vst.msk [vmem:[#allocation2 + $0x2d8] sm:$0xff] %vm27, 0.0
    %121 = vst.msk [vmem:[#allocation2 + $0x2e0] sm:$0x3] %vm30, 0.0
    %122 = vst.msk [vmem:[#allocation2 + $0x2e8] sm:$0xff] %vm27, 0.0
    %123 = vst.msk [vmem:[#allocation2 + $0x2f0] sm:$0xff] %vm27, 0.0
    %124 = vst.msk [vmem:[#allocation2 + $0x2f8] sm:$0x3] %vm30, 0.0
    %125 = vst.msk [vmem:[#allocation2 + $0x300] sm:$0xff] %vm27, 0.0
    %126 = vst.msk [vmem:[#allocation2 + $0x308] sm:$0xff] %vm27, 0.0
    %127 = vst.msk [vmem:[#allocation2 + $0x310] sm:$0x3] %vm30, 0.0
    %128 = vst.msk [vmem:[#allocation2 + $0x318] sm:$0xff] %vm27, 0.0
    %129 = vst.msk [vmem:[#allocation2 + $0x320] sm:$0xff] %vm27, 0.0
    %130 = vst.msk [vmem:[#allocation2 + $0x328] sm:$0x3] %vm30, 0.0
    %131 = vst.msk [vmem:[#allocation2 + $0x330] sm:$0xff] %vm27, 0.0
    %132 = vst.msk [vmem:[#allocation2 + $0x338] sm:$0xff] %vm27, 0.0
    %133 = vst.msk [vmem:[#allocation2 + $0x340] sm:$0x3] %vm30, 0.0
    %134 = vst.msk [vmem:[#allocation2 + $0x348] sm:$0xff] %vm27, 0.0
    %135 = vst.msk [vmem:[#allocation2 + $0x350] sm:$0xff] %vm27, 0.0
    %136 = vst.msk [vmem:[#allocation2 + $0x358] sm:$0x3] %vm30, 0.0
    %v137 = vld [vmem:[%s0] sm:$0xff]
    %v138 = vld [vmem:[%s0 + $0x8] sm:$0xff]
    %v139 = vld [vmem:[%s0 + $0x10] sm:$0xff]
    %v140 = vld [vmem:[%s0 + $0x18] sm:$0xff]
    %v141 = vld [vmem:[%s0 + $0x20] sm:$0xff]
    %v142 = vld [vmem:[%s0 + $0x28] sm:$0xff]
    %v143 = vld [vmem:[%s0 + $0x30] sm:$0xff]
    %v144 = vld [vmem:[%s0 + $0x38] sm:$0xff]
    %v145 = vld [vmem:[%s0 + $0x40] sm:$0xff]
    %v146 = vld [vmem:[%s0 + $0x48] sm:$0xff]
    %v147 = vld [vmem:[%s0 + $0x50] sm:$0xff]
    %v148 = vld [vmem:[%s0 + $0x58] sm:$0xff]
    %v149 = vld [vmem:[%s0 + $0x60] sm:$0xff]
    %v150 = vld [vmem:[%s0 + $0x68] sm:$0xff]
    %v151 = vld [vmem:[%s0 + $0x70] sm:$0xff]
    %v152 = vld [vmem:[%s0 + $0x78] sm:$0xff]
    %v153 = vld [vmem:[%s0 + $0x80] sm:$0xff]
    %v154 = vld [vmem:[%s0 + $0x88] sm:$0xff]
    %v155 = vld [vmem:[%s0 + $0x90] sm:$0xff]
    %v156 = vld [vmem:[%s0 + $0x98] sm:$0xff]
    %v157 = vld [vmem:[%s0 + $0xa0] sm:$0xff]
    %v158 = vld [vmem:[%s0 + $0xa8] sm:$0xff]
    %v159 = vld [vmem:[%s0 + $0xb0] sm:$0xff]
    %v160 = vld [vmem:[%s0 + $0xb8] sm:$0xff]
    %v161 = vld [vmem:[%s0 + $0xc0] sm:$0xff]
    %v162 = vld [vmem:[%s0 + $0xc8] sm:$0xff]
    %v163 = vld [vmem:[%s0 + $0xd0] sm:$0xff]
    %v164 = vld [vmem:[%s0 + $0xd8] sm:$0xff]
    %v165 = vld [vmem:[%s0 + $0xe0] sm:$0xff]
    %v166 = vld [vmem:[%s0 + $0xe8] sm:$0xff]
    %v167 = vld [vmem:[%s0 + $0xf0] sm:$0xff]
    %v168 = vld [vmem:[%s0 + $0xf8] sm:$0xff]
    %v169 = vld [vmem:[%s0 + $0x100] sm:$0xff]
    %v170 = vld [vmem:[%s0 + $0x108] sm:$0xff]
    %v171 = vld [vmem:[%s0 + $0x110] sm:$0xff]
    %v172 = vld [vmem:[%s0 + $0x118] sm:$0xff]
    %v173 = vld [vmem:[%s0 + $0x120] sm:$0xff]
    %v174 = vld [vmem:[%s0 + $0x128] sm:$0xff]
    %v175 = vld [vmem:[%s0 + $0x130] sm:$0xff]
    %v176 = vld [vmem:[%s0 + $0x138] sm:$0xff]
    %v177 = vld [vmem:[%s0 + $0x140] sm:$0xff]
    %v178 = vld [vmem:[%s0 + $0x148] sm:$0xff]
    %v179 = vld [vmem:[%s0 + $0x150] sm:$0xff]
    %v180 = vld [vmem:[%s0 + $0x158] sm:$0xff]
    %v181 = vld [vmem:[%s0 + $0x160] sm:$0xff]
    %v182 = vld [vmem:[%s0 + $0x168] sm:$0xff]
    %v183 = vld [vmem:[%s0 + $0x170] sm:$0xff]
    %v184 = vld [vmem:[%s0 + $0x178] sm:$0xff]
    %v185 = vld [vmem:[%s0 + $0x180] sm:$0xff]
    %v186 = vld [vmem:[%s0 + $0x188] sm:$0xff]
    %v187 = vld [vmem:[%s0 + $0x190] sm:$0xff]
    %v188 = vld [vmem:[%s0 + $0x198] sm:$0xff]
    %v189 = vld [vmem:[%s0 + $0x1a0] sm:$0xff]
    %v190 = vld [vmem:[%s0 + $0x1a8] sm:$0xff]
    %v191 = vld [vmem:[%s0 + $0x1b0] sm:$0xff]
    %v192 = vld [vmem:[%s0 + $0x1b8] sm:$0xff]
    %v193 = vld [vmem:[%s0 + $0x1c0] sm:$0xff]
    %v194 = vld [vmem:[%s0 + $0x1c8] sm:$0xff]
    %v195 = vld [vmem:[%s0 + $0x1d0] sm:$0xff]
    %v196 = vld [vmem:[%s0 + $0x1d8] sm:$0xff]
    %v197 = vld [vmem:[%s0 + $0x1e0] sm:$0xff]
    %v198 = vld [vmem:[%s0 + $0x1e8] sm:$0xff]
    %v199 = vld [vmem:[%s0 + $0x1f0] sm:$0xff]
    %v200 = vld [vmem:[%s0 + $0x1f8] sm:$0xff]
    %s201 = scalar_lea.vmem [#allocation2], 24
    %202 = vst.msk [vmem:[%s201 + $0x1] sm:$0xff] %vm27, %v137
    %203 = vst.msk [vmem:[%s201 + $0x9] sm:$0xff] %vm27, %v138
    %204 = vst.msk [vmem:[%s201 + $0x19] sm:$0xff] %vm27, %v139
    %205 = vst.msk [vmem:[%s201 + $0x21] sm:$0xff] %vm27, %v140
    %206 = vst.msk [vmem:[%s201 + $0x31] sm:$0xff] %vm27, %v141
    %207 = vst.msk [vmem:[%s201 + $0x39] sm:$0xff] %vm27, %v142
    %208 = vst.msk [vmem:[%s201 + $0x49] sm:$0xff] %vm27, %v143
    %209 = vst.msk [vmem:[%s201 + $0x51] sm:$0xff] %vm27, %v144
    %210 = vst.msk [vmem:[%s201 + $0x61] sm:$0xff] %vm27, %v145
    %211 = vst.msk [vmem:[%s201 + $0x69] sm:$0xff] %vm27, %v146
    %212 = vst.msk [vmem:[%s201 + $0x79] sm:$0xff] %vm27, %v147
    %213 = vst.msk [vmem:[%s201 + $0x81] sm:$0xff] %vm27, %v148
    %214 = vst.msk [vmem:[%s201 + $0x91] sm:$0xff] %vm27, %v149
    %215 = vst.msk [vmem:[%s201 + $0x99] sm:$0xff] %vm27, %v150
    %216 = vst.msk [vmem:[%s201 + $0xa9] sm:$0xff] %vm27, %v151
    %217 = vst.msk [vmem:[%s201 + $0xb1] sm:$0xff] %vm27, %v152
    %218 = vst.msk [vmem:[%s201 + $0xc1] sm:$0xff] %vm27, %v153
    %219 = vst.msk [vmem:[%s201 + $0xc9] sm:$0xff] %vm27, %v154
    %220 = vst.msk [vmem:[%s201 + $0xd9] sm:$0xff] %vm27, %v155
    %221 = vst.msk [vmem:[%s201 + $0xe1] sm:$0xff] %vm27, %v156
    %222 = vst.msk [vmem:[%s201 + $0xf1] sm:$0xff] %vm27, %v157
    %223 = vst.msk [vmem:[%s201 + $0xf9] sm:$0xff] %vm27, %v158
    %224 = vst.msk [vmem:[%s201 + $0x109] sm:$0xff] %vm27, %v159
    %225 = vst.msk [vmem:[%s201 + $0x111] sm:$0xff] %vm27, %v160
    %226 = vst.msk [vmem:[%s201 + $0x121] sm:$0xff] %vm27, %v161
    %227 = vst.msk [vmem:[%s201 + $0x129] sm:$0xff] %vm27, %v162
    %228 = vst.msk [vmem:[%s201 + $0x139] sm:$0xff] %vm27, %v163
    %229 = vst.msk [vmem:[%s201 + $0x141] sm:$0xff] %vm27, %v164
    %230 = vst.msk [vmem:[%s201 + $0x151] sm:$0xff] %vm27, %v165
    %231 = vst.msk [vmem:[%s201 + $0x159] sm:$0xff] %vm27, %v166
    %232 = vst.msk [vmem:[%s201 + $0x169] sm:$0xff] %vm27, %v167
    %233 = vst.msk [vmem:[%s201 + $0x171] sm:$0xff] %vm27, %v168
    %234 = vst.msk [vmem:[%s201 + $0x1b1] sm:$0xff] %vm27, %v169
    %235 = vst.msk [vmem:[%s201 + $0x1b9] sm:$0xff] %vm27, %v170
    %236 = vst.msk [vmem:[%s201 + $0x1c9] sm:$0xff] %vm27, %v171
    %237 = vst.msk [vmem:[%s201 + $0x1d1] sm:$0xff] %vm27, %v172
    %238 = vst.msk [vmem:[%s201 + $0x1e1] sm:$0xff] %vm27, %v173
    %239 = vst.msk [vmem:[%s201 + $0x1e9] sm:$0xff] %vm27, %v174
    %240 = vst.msk [vmem:[%s201 + $0x1f9] sm:$0xff] %vm27, %v175
    %241 = vst.msk [vmem:[%s201 + $0x201] sm:$0xff] %vm27, %v176
    %242 = vst.msk [vmem:[%s201 + $0x211] sm:$0xff] %vm27, %v177
    %243 = vst.msk [vmem:[%s201 + $0x219] sm:$0xff] %vm27, %v178
    %244 = vst.msk [vmem:[%s201 + $0x229] sm:$0xff] %vm27, %v179
    %245 = vst.msk [vmem:[%s201 + $0x231] sm:$0xff] %vm27, %v180
    %246 = vst.msk [vmem:[%s201 + $0x241] sm:$0xff] %vm27, %v181
    %247 = vst.msk [vmem:[%s201 + $0x249] sm:$0xff] %vm27, %v182
    %248 = vst.msk [vmem:[%s201 + $0x259] sm:$0xff] %vm27, %v183
    %249 = vst.msk [vmem:[%s201 + $0x261] sm:$0xff] %vm27, %v184
    %250 = vst.msk [vmem:[%s201 + $0x271] sm:$0xff] %vm27, %v185
    %251 = vst.msk [vmem:[%s201 + $0x279] sm:$0xff] %vm27, %v186
    %252 = vst.msk [vmem:[%s201 + $0x289] sm:$0xff] %vm27, %v187
    %253 = vst.msk [vmem:[%s201 + $0x291] sm:$0xff] %vm27, %v188
    %254 = vst.msk [vmem:[%s201 + $0x2a1] sm:$0xff] %vm27, %v189
    %255 = vst.msk [vmem:[%s201 + $0x2a9] sm:$0xff] %vm27, %v190
    %256 = vst.msk [vmem:[%s201 + $0x2b9] sm:$0xff] %vm27, %v191
    %257 = vst.msk [vmem:[%s201 + $0x2c1] sm:$0xff] %vm27, %v192
    %258 = vst.msk [vmem:[%s201 + $0x2d1] sm:$0xff] %vm27, %v193
    %259 = vst.msk [vmem:[%s201 + $0x2d9] sm:$0xff] %vm27, %v194
    %260 = vst.msk [vmem:[%s201 + $0x2e9] sm:$0xff] %vm27, %v195
    %261 = vst.msk [vmem:[%s201 + $0x2f1] sm:$0xff] %vm27, %v196
    %262 = vst.msk [vmem:[%s201 + $0x301] sm:$0xff] %vm27, %v197
    %263 = vst.msk [vmem:[%s201 + $0x309] sm:$0xff] %vm27, %v198
    %264 = vst.msk [vmem:[%s201 + $0x319] sm:$0xff] %vm27, %v199
    %265 = vst.msk [vmem:[%s201 + $0x321] sm:$0xff] %vm27, %v200
    %v266 = vld [vmem:[%s1] sm:$0xff]
    %v267 = vld [vmem:[%s1 + $0x8] sm:$0x1]
    %v268 = vld [vmem:[#allocation2] sm:$0xff]
    %v269 = vld [vmem:[#allocation2 + $0x8] sm:$0xff]
    %v270 = vld [vmem:[#allocation2 + $0x18] sm:$0xff]
    %v271 = vld [vmem:[#allocation2 + $0x20] sm:$0xff]
    %v272 = vld [vmem:[#allocation2 + $0x30] sm:$0xff]
    %v273 = vld [vmem:[#allocation2 + $0x38] sm:$0xff]
    %v274 = vld [vmem:[#allocation2 + $0x48] sm:$0xff]
    %v275 = vld [vmem:[#allocation2 + $0x50] sm:$0xff]
    %v276 = vld [vmem:[#allocation2 + $0x60] sm:$0xff]
    %v277 = vld [vmem:[#allocation2 + $0x68] sm:$0xff]
    %v278 = vld [vmem:[#allocation2 + $0x78] sm:$0xff]
    %v279 = vld [vmem:[#allocation2 + $0x80] sm:$0xff]
    %v280 = vld [vmem:[#allocation2 + $0x90] sm:$0xff]
    %v281 = vld [vmem:[#allocation2 + $0x98] sm:$0xff]
    %v282 = vld [vmem:[#allocation2 + $0xa8] sm:$0xff]
    %v283 = vld [vmem:[#allocation2 + $0xb0] sm:$0xff]
    %v284 = vld [vmem:[#allocation2 + $0xc0] sm:$0xff]
    %v285 = vld [vmem:[#allocation2 + $0xc8] sm:$0xff]
    %v286 = vld [vmem:[#allocation2 + $0xd8] sm:$0xff]
    %v287 = vld [vmem:[#allocation2 + $0xe0] sm:$0xff]
    %v288 = vld [vmem:[#allocation2 + $0xf0] sm:$0xff]
    %v289 = vld [vmem:[#allocation2 + $0xf8] sm:$0xff]
    %v290 = vld [vmem:[#allocation2 + $0x108] sm:$0xff]
    %v291 = vld [vmem:[#allocation2 + $0x110] sm:$0xff]
    %v292 = vld [vmem:[#allocation2 + $0x120] sm:$0xff]
    %v293 = vld [vmem:[#allocation2 + $0x128] sm:$0xff]
    %v294 = vld [vmem:[#allocation2 + $0x138] sm:$0xff]
    %v295 = vld [vmem:[#allocation2 + $0x140] sm:$0xff]
    %v296 = vld [vmem:[#allocation2 + $0x150] sm:$0xff]
    %v297 = vld [vmem:[#allocation2 + $0x158] sm:$0xff]
    %v298 = vld [vmem:[#allocation2 + $0x168] sm:$0xff]
    %v299 = vld [vmem:[#allocation2 + $0x170] sm:$0xff]
    %v300 = vld [vmem:[#allocation2 + $0x1b0] sm:$0xff]
    %v301 = vld [vmem:[#allocation2 + $0x1b8] sm:$0xff]
    %v302 = vld [vmem:[#allocation2 + $0x1c8] sm:$0xff]
    %v303 = vld [vmem:[#allocation2 + $0x1d0] sm:$0xff]
    %v304 = vld [vmem:[#allocation2 + $0x1e0] sm:$0xff]
    %v305 = vld [vmem:[#allocation2 + $0x1e8] sm:$0xff]
    %v306 = vld [vmem:[#allocation2 + $0x1f8] sm:$0xff]
    %v307 = vld [vmem:[#allocation2 + $0x200] sm:$0xff]
    %v308 = vld [vmem:[#allocation2 + $0x210] sm:$0xff]
    %v309 = vld [vmem:[#allocation2 + $0x218] sm:$0xff]
    %v310 = vld [vmem:[#allocation2 + $0x228] sm:$0xff]
    %v311 = vld [vmem:[#allocation2 + $0x230] sm:$0xff]
    %v312 = vld [vmem:[#allocation2 + $0x240] sm:$0xff]
    %v313 = vld [vmem:[#allocation2 + $0x248] sm:$0xff]
    %v314 = vld [vmem:[#allocation2 + $0x258] sm:$0xff]
    %v315 = vld [vmem:[#allocation2 + $0x260] sm:$0xff]
    %v316 = vld [vmem:[#allocation2 + $0x270] sm:$0xff]
    %v317 = vld [vmem:[#allocation2 + $0x278] sm:$0xff]
    %v318 = vld [vmem:[#allocation2 + $0x288] sm:$0xff]
    %v319 = vld [vmem:[#allocation2 + $0x290] sm:$0xff]
    %v320 = vld [vmem:[#allocation2 + $0x2a0] sm:$0xff]
    %v321 = vld [vmem:[#allocation2 + $0x2a8] sm:$0xff]
    %v322 = vld [vmem:[#allocation2 + $0x2b8] sm:$0xff]
    %v323 = vld [vmem:[#allocation2 + $0x2c0] sm:$0xff]
    %v324 = vld [vmem:[#allocation2 + $0x2d0] sm:$0xff]
    %v325 = vld [vmem:[#allocation2 + $0x2d8] sm:$0xff]
    %v326 = vld [vmem:[#allocation2 + $0x2e8] sm:$0xff]
    %v327 = vld [vmem:[#allocation2 + $0x2f0] sm:$0xff]
    %v328 = vld [vmem:[#allocation2 + $0x300] sm:$0xff]
    %v329 = vld [vmem:[#allocation2 + $0x308] sm:$0xff]
    %v330 = vld [vmem:[#allocation2 + $0x318] sm:$0xff]
    %v331 = vld [vmem:[#allocation2 + $0x320] sm:$0xff]
    %333 = vset.pattern.permute.xlu0 0
    %334 = vperm.xlu0 %333, %v268
    %v335 = vpop.permute.xlu0 %334
    %338 = vset.pattern.permute.xlu0 0
    %339 = vperm.xlu0 %338, %v269
    %v340 = vpop.permute.xlu0 %339
    %343 = vset.pattern.permute.xlu0 0
    %344 = vperm.xlu0 %343, %v270
    %v345 = vpop.permute.xlu0 %344
    %348 = vset.pattern.permute.xlu0 0
    %349 = vperm.xlu0 %348, %v271
    %v350 = vpop.permute.xlu0 %349
    %353 = vset.pattern.permute.xlu0 0
    %354 = vperm.xlu0 %353, %v272
    %v355 = vpop.permute.xlu0 %354
    %358 = vset.pattern.permute.xlu0 0
    %359 = vperm.xlu0 %358, %v273
    %v360 = vpop.permute.xlu0 %359
    %363 = vset.pattern.permute.xlu0 0
    %364 = vperm.xlu0 %363, %v274
    %v365 = vpop.permute.xlu0 %364
    %368 = vset.pattern.permute.xlu0 0
    %369 = vperm.xlu0 %368, %v275
    %v370 = vpop.permute.xlu0 %369
    %373 = vset.pattern.permute.xlu0 0
    %374 = vperm.xlu0 %373, %v276
    %v375 = vpop.permute.xlu0 %374
    %378 = vset.pattern.permute.xlu0 0
    %379 = vperm.xlu0 %378, %v277
    %v380 = vpop.permute.xlu0 %379
    %383 = vset.pattern.permute.xlu0 0
    %384 = vperm.xlu0 %383, %v278
    %v385 = vpop.permute.xlu0 %384
    %388 = vset.pattern.permute.xlu0 0
    %389 = vperm.xlu0 %388, %v279
    %v390 = vpop.permute.xlu0 %389
    %393 = vset.pattern.permute.xlu0 0
    %394 = vperm.xlu0 %393, %v280
    %v395 = vpop.permute.xlu0 %394
    %398 = vset.pattern.permute.xlu0 0
    %399 = vperm.xlu0 %398, %v281
    %v400 = vpop.permute.xlu0 %399
    %403 = vset.pattern.permute.xlu0 0
    %404 = vperm.xlu0 %403, %v282
    %v405 = vpop.permute.xlu0 %404
    %408 = vset.pattern.permute.xlu0 0
    %409 = vperm.xlu0 %408, %v283
    %v410 = vpop.permute.xlu0 %409
    %413 = vset.pattern.permute.xlu0 0
    %414 = vperm.xlu0 %413, %v284
    %v415 = vpop.permute.xlu0 %414
    %418 = vset.pattern.permute.xlu0 0
    %419 = vperm.xlu0 %418, %v285
    %v420 = vpop.permute.xlu0 %419
    %423 = vset.pattern.permute.xlu0 0
    %424 = vperm.xlu0 %423, %v286
    %v425 = vpop.permute.xlu0 %424
    %428 = vset.pattern.permute.xlu0 0
    %429 = vperm.xlu0 %428, %v287
    %v430 = vpop.permute.xlu0 %429
    %433 = vset.pattern.permute.xlu0 0
    %434 = vperm.xlu0 %433, %v288
    %v435 = vpop.permute.xlu0 %434
    %438 = vset.pattern.permute.xlu0 0
    %439 = vperm.xlu0 %438, %v289
    %v440 = vpop.permute.xlu0 %439
    %443 = vset.pattern.permute.xlu0 0
    %444 = vperm.xlu0 %443, %v290
    %v445 = vpop.permute.xlu0 %444
    %448 = vset.pattern.permute.xlu0 0
    %449 = vperm.xlu0 %448, %v291
    %v450 = vpop.permute.xlu0 %449
    %453 = vset.pattern.permute.xlu0 0
    %454 = vperm.xlu0 %453, %v292
    %v455 = vpop.permute.xlu0 %454
    %458 = vset.pattern.permute.xlu0 0
    %459 = vperm.xlu0 %458, %v293
    %v460 = vpop.permute.xlu0 %459
    %463 = vset.pattern.permute.xlu0 0
    %464 = vperm.xlu0 %463, %v294
    %v465 = vpop.permute.xlu0 %464
    %468 = vset.pattern.permute.xlu0 0
    %469 = vperm.xlu0 %468, %v295
    %v470 = vpop.permute.xlu0 %469
    %473 = vset.pattern.permute.xlu0 0
    %474 = vperm.xlu0 %473, %v296
    %v475 = vpop.permute.xlu0 %474
    %478 = vset.pattern.permute.xlu0 0
    %479 = vperm.xlu0 %478, %v297
    %v480 = vpop.permute.xlu0 %479
    %483 = vset.pattern.permute.xlu0 0
    %484 = vperm.xlu0 %483, %v298
    %v485 = vpop.permute.xlu0 %484
    %488 = vset.pattern.permute.xlu0 0
    %489 = vperm.xlu0 %488, %v299
    %v490 = vpop.permute.xlu0 %489
    %493 = vset.pattern.permute.xlu0 0
    %494 = vperm.xlu0 %493, %v300
    %v495 = vpop.permute.xlu0 %494
    %498 = vset.pattern.permute.xlu0 0
    %499 = vperm.xlu0 %498, %v301
    %v500 = vpop.permute.xlu0 %499
    %503 = vset.pattern.permute.xlu0 0
    %504 = vperm.xlu0 %503, %v302
    %v505 = vpop.permute.xlu0 %504
    %508 = vset.pattern.permute.xlu0 0
    %509 = vperm.xlu0 %508, %v303
    %v510 = vpop.permute.xlu0 %509
    %513 = vset.pattern.permute.xlu0 0
    %514 = vperm.xlu0 %513, %v304
    %v515 = vpop.permute.xlu0 %514
    %518 = vset.pattern.permute.xlu0 0
    %519 = vperm.xlu0 %518, %v305
    %v520 = vpop.permute.xlu0 %519
    %523 = vset.pattern.permute.xlu0 0
    %524 = vperm.xlu0 %523, %v306
    %v525 = vpop.permute.xlu0 %524
    %528 = vset.pattern.permute.xlu0 0
    %529 = vperm.xlu0 %528, %v307
    %v530 = vpop.permute.xlu0 %529
    %533 = vset.pattern.permute.xlu0 0
    %534 = vperm.xlu0 %533, %v308
    %v535 = vpop.permute.xlu0 %534
    %538 = vset.pattern.permute.xlu0 0
    %539 = vperm.xlu0 %538, %v309
    %v540 = vpop.permute.xlu0 %539
    %543 = vset.pattern.permute.xlu0 0
    %544 = vperm.xlu0 %543, %v310
    %v545 = vpop.permute.xlu0 %544
    %548 = vset.pattern.permute.xlu0 0
    %549 = vperm.xlu0 %548, %v311
    %v550 = vpop.permute.xlu0 %549
    %553 = vset.pattern.permute.xlu0 0
    %554 = vperm.xlu0 %553, %v312
    %v555 = vpop.permute.xlu0 %554
    %558 = vset.pattern.permute.xlu0 0
    %559 = vperm.xlu0 %558, %v313
    %v560 = vpop.permute.xlu0 %559
    %563 = vset.pattern.permute.xlu0 0
    %564 = vperm.xlu0 %563, %v314
    %v565 = vpop.permute.xlu0 %564
    %568 = vset.pattern.permute.xlu0 0
    %569 = vperm.xlu0 %568, %v315
    %v570 = vpop.permute.xlu0 %569
    %573 = vset.pattern.permute.xlu0 0
    %574 = vperm.xlu0 %573, %v316
    %v575 = vpop.permute.xlu0 %574
    %578 = vset.pattern.permute.xlu0 0
    %579 = vperm.xlu0 %578, %v317
    %v580 = vpop.permute.xlu0 %579
    %583 = vset.pattern.permute.xlu0 0
    %584 = vperm.xlu0 %583, %v318
    %v585 = vpop.permute.xlu0 %584
    %588 = vset.pattern.permute.xlu0 0
    %589 = vperm.xlu0 %588, %v319
    %v590 = vpop.permute.xlu0 %589
    %593 = vset.pattern.permute.xlu0 0
    %594 = vperm.xlu0 %593, %v320
    %v595 = vpop.permute.xlu0 %594
    %598 = vset.pattern.permute.xlu0 0
    %599 = vperm.xlu0 %598, %v321
    %v600 = vpop.permute.xlu0 %599
    %603 = vset.pattern.permute.xlu0 0
    %604 = vperm.xlu0 %603, %v322
    %v605 = vpop.permute.xlu0 %604
    %608 = vset.pattern.permute.xlu0 0
    %609 = vperm.xlu0 %608, %v323
    %v610 = vpop.permute.xlu0 %609
    %613 = vset.pattern.permute.xlu0 0
    %614 = vperm.xlu0 %613, %v324
    %v615 = vpop.permute.xlu0 %614
    %618 = vset.pattern.permute.xlu0 0
    %619 = vperm.xlu0 %618, %v325
    %v620 = vpop.permute.xlu0 %619
    %623 = vset.pattern.permute.xlu0 0
    %624 = vperm.xlu0 %623, %v326
    %v625 = vpop.permute.xlu0 %624
    %628 = vset.pattern.permute.xlu0 0
    %629 = vperm.xlu0 %628, %v327
    %v630 = vpop.permute.xlu0 %629
    %633 = vset.pattern.permute.xlu0 0
    %634 = vperm.xlu0 %633, %v328
    %v635 = vpop.permute.xlu0 %634
    %638 = vset.pattern.permute.xlu0 0
    %639 = vperm.xlu0 %638, %v329
    %v640 = vpop.permute.xlu0 %639
    %643 = vset.pattern.permute.xlu0 0
    %644 = vperm.xlu0 %643, %v330
    %v645 = vpop.permute.xlu0 %644
    %648 = vset.pattern.permute.xlu0 0
    %649 = vperm.xlu0 %648, %v331
    %v650 = vpop.permute.xlu0 %649
    %v652 = vperm.slane %v266, 0
    %v653 = vmul.f32 %v335, %v652
    %v654 = vmul.f32 %v340, %v652
    %v655 = vmul.f32 %v345, %v652
    %v656 = vmul.f32 %v350, %v652
    %v657 = vmul.f32 %v355, %v652
    %v658 = vmul.f32 %v360, %v652
    %v659 = vmul.f32 %v365, %v652
    %v660 = vmul.f32 %v370, %v652
    %v661 = vmul.f32 %v375, %v652
    %v662 = vmul.f32 %v380, %v652
    %v663 = vmul.f32 %v385, %v652
    %v664 = vmul.f32 %v390, %v652
    %v665 = vmul.f32 %v395, %v652
    %v666 = vmul.f32 %v400, %v652
    %v667 = vmul.f32 %v405, %v652
    %v668 = vmul.f32 %v410, %v652
    %v669 = vmul.f32 %v415, %v652
    %v670 = vmul.f32 %v420, %v652
    %v671 = vmul.f32 %v425, %v652
    %v672 = vmul.f32 %v430, %v652
    %v673 = vmul.f32 %v435, %v652
    %v674 = vmul.f32 %v440, %v652
    %v675 = vmul.f32 %v445, %v652
    %v676 = vmul.f32 %v450, %v652
    %v677 = vmul.f32 %v455, %v652
    %v678 = vmul.f32 %v460, %v652
    %v679 = vmul.f32 %v465, %v652
    %v680 = vmul.f32 %v470, %v652
    %v681 = vmul.f32 %v475, %v652
    %v682 = vmul.f32 %v480, %v652
    %v683 = vmul.f32 %v485, %v652
    %v684 = vmul.f32 %v490, %v652
    %v685 = vmul.f32 %v495, %v652
    %v686 = vmul.f32 %v500, %v652
    %v687 = vmul.f32 %v505, %v652
    %v688 = vmul.f32 %v510, %v652
    %v689 = vmul.f32 %v515, %v652
    %v690 = vmul.f32 %v520, %v652
    %v691 = vmul.f32 %v525, %v652
    %v692 = vmul.f32 %v530, %v652
    %v693 = vmul.f32 %v535, %v652
    %v694 = vmul.f32 %v540, %v652
    %v695 = vmul.f32 %v545, %v652
    %v696 = vmul.f32 %v550, %v652
    %v697 = vmul.f32 %v555, %v652
    %v698 = vmul.f32 %v560, %v652
    %v699 = vmul.f32 %v565, %v652
    %v700 = vmul.f32 %v570, %v652
    %v701 = vmul.f32 %v575, %v652
    %v702 = vmul.f32 %v580, %v652
    %v703 = vmul.f32 %v585, %v652
    %v704 = vmul.f32 %v590, %v652
    %v705 = vmul.f32 %v595, %v652
    %v706 = vmul.f32 %v600, %v652
    %v707 = vmul.f32 %v605, %v652
    %v708 = vmul.f32 %v610, %v652
    %v709 = vmul.f32 %v615, %v652
    %v710 = vmul.f32 %v620, %v652
    %v711 = vmul.f32 %v625, %v652
    %v712 = vmul.f32 %v630, %v652
    %v713 = vmul.f32 %v635, %v652
    %v714 = vmul.f32 %v640, %v652
    %v715 = vmul.f32 %v645, %v652
    %v716 = vmul.f32 %v650, %v652
    %v717 = vadd.f32 %v653, 0.0
    %v718 = vadd.f32 %v654, 0.0
    %v719 = vadd.f32 %v655, 0.0
    %v720 = vadd.f32 %v656, 0.0
    %v721 = vadd.f32 %v657, 0.0
    %v722 = vadd.f32 %v658, 0.0
    %v723 = vadd.f32 %v659, 0.0
    %v724 = vadd.f32 %v660, 0.0
    %v725 = vadd.f32 %v661, 0.0
    %v726 = vadd.f32 %v662, 0.0
    %v727 = vadd.f32 %v663, 0.0
    %v728 = vadd.f32 %v664, 0.0
    %v729 = vadd.f32 %v665, 0.0
    %v730 = vadd.f32 %v666, 0.0
    %v731 = vadd.f32 %v667, 0.0
    %v732 = vadd.f32 %v668, 0.0
    %v733 = vadd.f32 %v669, 0.0
    %v734 = vadd.f32 %v670, 0.0
    %v735 = vadd.f32 %v671, 0.0
    %v736 = vadd.f32 %v672, 0.0
    %v737 = vadd.f32 %v673, 0.0
    %v738 = vadd.f32 %v674, 0.0
    %v739 = vadd.f32 %v675, 0.0
    %v740 = vadd.f32 %v676, 0.0
    %v741 = vadd.f32 %v677, 0.0
    %v742 = vadd.f32 %v678, 0.0
    %v743 = vadd.f32 %v679, 0.0
    %v744 = vadd.f32 %v680, 0.0
    %v745 = vadd.f32 %v681, 0.0
    %v746 = vadd.f32 %v682, 0.0
    %v747 = vadd.f32 %v683, 0.0
    %v748 = vadd.f32 %v684, 0.0
    %v749 = vadd.f32 %v685, 0.0
    %v750 = vadd.f32 %v686, 0.0
    %v751 = vadd.f32 %v687, 0.0
    %v752 = vadd.f32 %v688, 0.0
    %v753 = vadd.f32 %v689, 0.0
    %v754 = vadd.f32 %v690, 0.0
    %v755 = vadd.f32 %v691, 0.0
    %v756 = vadd.f32 %v692, 0.0
    %v757 = vadd.f32 %v693, 0.0
    %v758 = vadd.f32 %v694, 0.0
    %v759 = vadd.f32 %v695, 0.0
    %v760 = vadd.f32 %v696, 0.0
    %v761 = vadd.f32 %v697, 0.0
    %v762 = vadd.f32 %v698, 0.0
    %v763 = vadd.f32 %v699, 0.0
    %v764 = vadd.f32 %v700, 0.0
    %v765 = vadd.f32 %v701, 0.0
    %v766 = vadd.f32 %v702, 0.0
    %v767 = vadd.f32 %v703, 0.0
    %v768 = vadd.f32 %v704, 0.0
    %v769 = vadd.f32 %v705, 0.0
    %v770 = vadd.f32 %v706, 0.0
    %v771 = vadd.f32 %v707, 0.0
    %v772 = vadd.f32 %v708, 0.0
    %v773 = vadd.f32 %v709, 0.0
    %v774 = vadd.f32 %v710, 0.0
    %v775 = vadd.f32 %v711, 0.0
    %v776 = vadd.f32 %v712, 0.0
    %v777 = vadd.f32 %v713, 0.0
    %v778 = vadd.f32 %v714, 0.0
    %v779 = vadd.f32 %v715, 0.0
    %v780 = vadd.f32 %v716, 0.0
    %v781 = vld [vmem:[#allocation2 + $0x1] sm:$0xff]
    %v782 = vld [vmem:[#allocation2 + $0x9] sm:$0xff]
    %v783 = vld [vmem:[#allocation2 + $0x19] sm:$0xff]
    %v784 = vld [vmem:[#allocation2 + $0x21] sm:$0xff]
    %v785 = vld [vmem:[#allocation2 + $0x31] sm:$0xff]
    %v786 = vld [vmem:[#allocation2 + $0x39] sm:$0xff]
    %v787 = vld [vmem:[#allocation2 + $0x49] sm:$0xff]
    %v788 = vld [vmem:[#allocation2 + $0x51] sm:$0xff]
    %v789 = vld [vmem:[#allocation2 + $0x61] sm:$0xff]
    %v790 = vld [vmem:[#allocation2 + $0x69] sm:$0xff]
    %v791 = vld [vmem:[#allocation2 + $0x79] sm:$0xff]
    %v792 = vld [vmem:[#allocation2 + $0x81] sm:$0xff]
    %v793 = vld [vmem:[#allocation2 + $0x91] sm:$0xff]
    %v794 = vld [vmem:[#allocation2 + $0x99] sm:$0xff]
    %v795 = vld [vmem:[#allocation2 + $0xa9] sm:$0xff]
    %v796 = vld [vmem:[#allocation2 + $0xb1] sm:$0xff]
    %v797 = vld [vmem:[#allocation2 + $0xc1] sm:$0xff]
    %v798 = vld [vmem:[#allocation2 + $0xc9] sm:$0xff]
    %v799 = vld [vmem:[#allocation2 + $0xd9] sm:$0xff]
    %v800 = vld [vmem:[#allocation2 + $0xe1] sm:$0xff]
    %v801 = vld [vmem:[#allocation2 + $0xf1] sm:$0xff]
    %v802 = vld [vmem:[#allocation2 + $0xf9] sm:$0xff]
    %v803 = vld [vmem:[#allocation2 + $0x109] sm:$0xff]
    %v804 = vld [vmem:[#allocation2 + $0x111] sm:$0xff]
    %v805 = vld [vmem:[#allocation2 + $0x121] sm:$0xff]
    %v806 = vld [vmem:[#allocation2 + $0x129] sm:$0xff]
    %v807 = vld [vmem:[#allocation2 + $0x139] sm:$0xff]
    %v808 = vld [vmem:[#allocation2 + $0x141] sm:$0xff]
    %v809 = vld [vmem:[#allocation2 + $0x151] sm:$0xff]
    %v810 = vld [vmem:[#allocation2 + $0x159] sm:$0xff]
    %v811 = vld [vmem:[#allocation2 + $0x169] sm:$0xff]
    %v812 = vld [vmem:[#allocation2 + $0x171] sm:$0xff]
    %v813 = vld [vmem:[#allocation2 + $0x1b1] sm:$0xff]
    %v814 = vld [vmem:[#allocation2 + $0x1b9] sm:$0xff]
    %v815 = vld [vmem:[#allocation2 + $0x1c9] sm:$0xff]
    %v816 = vld [vmem:[#allocation2 + $0x1d1] sm:$0xff]
    %v817 = vld [vmem:[#allocation2 + $0x1e1] sm:$0xff]
    %v818 = vld [vmem:[#allocation2 + $0x1e9] sm:$0xff]
    %v819 = vld [vmem:[#allocation2 + $0x1f9] sm:$0xff]
    %v820 = vld [vmem:[#allocation2 + $0x201] sm:$0xff]
    %v821 = vld [vmem:[#allocation2 + $0x211] sm:$0xff]
    %v822 = vld [vmem:[#allocation2 + $0x219] sm:$0xff]
    %v823 = vld [vmem:[#allocation2 + $0x229] sm:$0xff]
    %v824 = vld [vmem:[#allocation2 + $0x231] sm:$0xff]
    %v825 = vld [vmem:[#allocation2 + $0x241] sm:$0xff]
    %v826 = vld [vmem:[#allocation2 + $0x249] sm:$0xff]
    %v827 = vld [vmem:[#allocation2 + $0x259] sm:$0xff]
    %v828 = vld [vmem:[#allocation2 + $0x261] sm:$0xff]
    %v829 = vld [vmem:[#allocation2 + $0x271] sm:$0xff]
    %v830 = vld [vmem:[#allocation2 + $0x279] sm:$0xff]
    %v831 = vld [vmem:[#allocation2 + $0x289] sm:$0xff]
    %v832 = vld [vmem:[#allocation2 + $0x291] sm:$0xff]
    %v833 = vld [vmem:[#allocation2 + $0x2a1] sm:$0xff]
    %v834 = vld [vmem:[#allocation2 + $0x2a9] sm:$0xff]
    %v835 = vld [vmem:[#allocation2 + $0x2b9] sm:$0xff]
    %v836 = vld [vmem:[#allocation2 + $0x2c1] sm:$0xff]
    %v837 = vld [vmem:[#allocation2 + $0x2d1] sm:$0xff]
    %v838 = vld [vmem:[#allocation2 + $0x2d9] sm:$0xff]
    %v839 = vld [vmem:[#allocation2 + $0x2e9] sm:$0xff]
    %v840 = vld [vmem:[#allocation2 + $0x2f1] sm:$0xff]
    %v841 = vld [vmem:[#allocation2 + $0x301] sm:$0xff]
    %v842 = vld [vmem:[#allocation2 + $0x309] sm:$0xff]
    %v843 = vld [vmem:[#allocation2 + $0x319] sm:$0xff]
    %v844 = vld [vmem:[#allocation2 + $0x321] sm:$0xff]
    %846 = vset.pattern.permute.xlu0 0
    %847 = vperm.xlu0 %846, %v781
    %v848 = vpop.permute.xlu0 %847
    %851 = vset.pattern.permute.xlu0 0
    %852 = vperm.xlu0 %851, %v782
    %v853 = vpop.permute.xlu0 %852
    %856 = vset.pattern.permute.xlu0 0
    %857 = vperm.xlu0 %856, %v783
    %v858 = vpop.permute.xlu0 %857
    %861 = vset.pattern.permute.xlu0 0
    %862 = vperm.xlu0 %861, %v784
    %v863 = vpop.permute.xlu0 %862
    %866 = vset.pattern.permute.xlu0 0
    %867 = vperm.xlu0 %866, %v785
    %v868 = vpop.permute.xlu0 %867
    %871 = vset.pattern.permute.xlu0 0
    %872 = vperm.xlu0 %871, %v786
    %v873 = vpop.permute.xlu0 %872
    %876 = vset.pattern.permute.xlu0 0
    %877 = vperm.xlu0 %876, %v787
    %v878 = vpop.permute.xlu0 %877
    %881 = vset.pattern.permute.xlu0 0
    %882 = vperm.xlu0 %881, %v788
    %v883 = vpop.permute.xlu0 %882
    %886 = vset.pattern.permute.xlu0 0
    %887 = vperm.xlu0 %886, %v789
    %v888 = vpop.permute.xlu0 %887
    %891 = vset.pattern.permute.xlu0 0
    %892 = vperm.xlu0 %891, %v790
    %v893 = vpop.permute.xlu0 %892
    %896 = vset.pattern.permute.xlu0 0
    %897 = vperm.xlu0 %896, %v791
    %v898 = vpop.permute.xlu0 %897
    %901 = vset.pattern.permute.xlu0 0
    %902 = vperm.xlu0 %901, %v792
    %v903 = vpop.permute.xlu0 %902
    %906 = vset.pattern.permute.xlu0 0
    %907 = vperm.xlu0 %906, %v793
    %v908 = vpop.permute.xlu0 %907
    %911 = vset.pattern.permute.xlu0 0
    %912 = vperm.xlu0 %911, %v794
    %v913 = vpop.permute.xlu0 %912
    %916 = vset.pattern.permute.xlu0 0
    %917 = vperm.xlu0 %916, %v795
    %v918 = vpop.permute.xlu0 %917
    %921 = vset.pattern.permute.xlu0 0
    %922 = vperm.xlu0 %921, %v796
    %v923 = vpop.permute.xlu0 %922
    %926 = vset.pattern.permute.xlu0 0
    %927 = vperm.xlu0 %926, %v797
    %v928 = vpop.permute.xlu0 %927
    %931 = vset.pattern.permute.xlu0 0
    %932 = vperm.xlu0 %931, %v798
    %v933 = vpop.permute.xlu0 %932
    %936 = vset.pattern.permute.xlu0 0
    %937 = vperm.xlu0 %936, %v799
    %v938 = vpop.permute.xlu0 %937
    %941 = vset.pattern.permute.xlu0 0
    %942 = vperm.xlu0 %941, %v800
    %v943 = vpop.permute.xlu0 %942
    %946 = vset.pattern.permute.xlu0 0
    %947 = vperm.xlu0 %946, %v801
    %v948 = vpop.permute.xlu0 %947
    %951 = vset.pattern.permute.xlu0 0
    %952 = vperm.xlu0 %951, %v802
    %v953 = vpop.permute.xlu0 %952
    %956 = vset.pattern.permute.xlu0 0
    %957 = vperm.xlu0 %956, %v803
    %v958 = vpop.permute.xlu0 %957
    %961 = vset.pattern.permute.xlu0 0
    %962 = vperm.xlu0 %961, %v804
    %v963 = vpop.permute.xlu0 %962
    %966 = vset.pattern.permute.xlu0 0
    %967 = vperm.xlu0 %966, %v805
    %v968 = vpop.permute.xlu0 %967
    %971 = vset.pattern.permute.xlu0 0
    %972 = vperm.xlu0 %971, %v806
    %v973 = vpop.permute.xlu0 %972
    %976 = vset.pattern.permute.xlu0 0
    %977 = vperm.xlu0 %976, %v807
    %v978 = vpop.permute.xlu0 %977
    %981 = vset.pattern.permute.xlu0 0
    %982 = vperm.xlu0 %981, %v808
    %v983 = vpop.permute.xlu0 %982
    %986 = vset.pattern.permute.xlu0 0
    %987 = vperm.xlu0 %986, %v809
    %v988 = vpop.permute.xlu0 %987
    %991 = vset.pattern.permute.xlu0 0
    %992 = vperm.xlu0 %991, %v810
    %v993 = vpop.permute.xlu0 %992
    %996 = vset.pattern.permute.xlu0 0
    %997 = vperm.xlu0 %996, %v811
    %v998 = vpop.permute.xlu0 %997
    %1001 = vset.pattern.permute.xlu0 0
    %1002 = vperm.xlu0 %1001, %v812
    %v1003 = vpop.permute.xlu0 %1002
    %1006 = vset.pattern.permute.xlu0 0
    %1007 = vperm.xlu0 %1006, %v813
    %v1008 = vpop.permute.xlu0 %1007
    %1011 = vset.pattern.permute.xlu0 0
    %1012 = vperm.xlu0 %1011, %v814
    %v1013 = vpop.permute.xlu0 %1012
    %1016 = vset.pattern.permute.xlu0 0
    %1017 = vperm.xlu0 %1016, %v815
    %v1018 = vpop.permute.xlu0 %1017
    %1021 = vset.pattern.permute.xlu0 0
    %1022 = vperm.xlu0 %1021, %v816
    %v1023 = vpop.permute.xlu0 %1022
    %1026 = vset.pattern.permute.xlu0 0
    %1027 = vperm.xlu0 %1026, %v817
    %v1028 = vpop.permute.xlu0 %1027
    %1031 = vset.pattern.permute.xlu0 0
    %1032 = vperm.xlu0 %1031, %v818
    %v1033 = vpop.permute.xlu0 %1032
    %1036 = vset.pattern.permute.xlu0 0
    %1037 = vperm.xlu0 %1036, %v819
    %v1038 = vpop.permute.xlu0 %1037
    %1041 = vset.pattern.permute.xlu0 0
    %1042 = vperm.xlu0 %1041, %v820
    %v1043 = vpop.permute.xlu0 %1042
    %1046 = vset.pattern.permute.xlu0 0
    %1047 = vperm.xlu0 %1046, %v821
    %v1048 = vpop.permute.xlu0 %1047
    %1051 = vset.pattern.permute.xlu0 0
    %1052 = vperm.xlu0 %1051, %v822
    %v1053 = vpop.permute.xlu0 %1052
    %1056 = vset.pattern.permute.xlu0 0
    %1057 = vperm.xlu0 %1056, %v823
    %v1058 = vpop.permute.xlu0 %1057
    %1061 = vset.pattern.permute.xlu0 0
    %1062 = vperm.xlu0 %1061, %v824
    %v1063 = vpop.permute.xlu0 %1062
    %1066 = vset.pattern.permute.xlu0 0
    %1067 = vperm.xlu0 %1066, %v825
    %v1068 = vpop.permute.xlu0 %1067
    %1071 = vset.pattern.permute.xlu0 0
    %1072 = vperm.xlu0 %1071, %v826
    %v1073 = vpop.permute.xlu0 %1072
    %1076 = vset.pattern.permute.xlu0 0
    %1077 = vperm.xlu0 %1076, %v827
    %v1078 = vpop.permute.xlu0 %1077
    %1081 = vset.pattern.permute.xlu0 0
    %1082 = vperm.xlu0 %1081, %v828
    %v1083 = vpop.permute.xlu0 %1082
    %1086 = vset.pattern.permute.xlu0 0
    %1087 = vperm.xlu0 %1086, %v829
    %v1088 = vpop.permute.xlu0 %1087
    %1091 = vset.pattern.permute.xlu0 0
    %1092 = vperm.xlu0 %1091, %v830
    %v1093 = vpop.permute.xlu0 %1092
    %1096 = vset.pattern.permute.xlu0 0
    %1097 = vperm.xlu0 %1096, %v831
    %v1098 = vpop.permute.xlu0 %1097
    %1101 = vset.pattern.permute.xlu0 0
    %1102 = vperm.xlu0 %1101, %v832
    %v1103 = vpop.permute.xlu0 %1102
    %1106 = vset.pattern.permute.xlu0 0
    %1107 = vperm.xlu0 %1106, %v833
    %v1108 = vpop.permute.xlu0 %1107
    %1111 = vset.pattern.permute.xlu0 0
    %1112 = vperm.xlu0 %1111, %v834
    %v1113 = vpop.permute.xlu0 %1112
    %1116 = vset.pattern.permute.xlu0 0
    %1117 = vperm.xlu0 %1116, %v835
    %v1118 = vpop.permute.xlu0 %1117
    %1121 = vset.pattern.permute.xlu0 0
    %1122 = vperm.xlu0 %1121, %v836
    %v1123 = vpop.permute.xlu0 %1122
    %1126 = vset.pattern.permute.xlu0 0
    %1127 = vperm.xlu0 %1126, %v837
    %v1128 = vpop.permute.xlu0 %1127
    %1131 = vset.pattern.permute.xlu0 0
    %1132 = vperm.xlu0 %1131, %v838
    %v1133 = vpop.permute.xlu0 %1132
    %1136 = vset.pattern.permute.xlu0 0
    %1137 = vperm.xlu0 %1136, %v839
    %v1138 = vpop.permute.xlu0 %1137
    %1141 = vset.pattern.permute.xlu0 0
    %1142 = vperm.xlu0 %1141, %v840
    %v1143 = vpop.permute.xlu0 %1142
    %1146 = vset.pattern.permute.xlu0 0
    %1147 = vperm.xlu0 %1146, %v841
    %v1148 = vpop.permute.xlu0 %1147
    %1151 = vset.pattern.permute.xlu0 0
    %1152 = vperm.xlu0 %1151, %v842
    %v1153 = vpop.permute.xlu0 %1152
    %1156 = vset.pattern.permute.xlu0 0
    %1157 = vperm.xlu0 %1156, %v843
    %v1158 = vpop.permute.xlu0 %1157
    %1161 = vset.pattern.permute.xlu0 0
    %1162 = vperm.xlu0 %1161, %v844
    %v1163 = vpop.permute.xlu0 %1162
    %v1165 = vperm.slane %v266, 1
    %v1166 = vmul.f32 %v848, %v1165
    %v1167 = vmul.f32 %v853, %v1165
    %v1168 = vmul.f32 %v858, %v1165
    %v1169 = vmul.f32 %v863, %v1165
    %v1170 = vmul.f32 %v868, %v1165
    %v1171 = vmul.f32 %v873, %v1165
    %v1172 = vmul.f32 %v878, %v1165
    %v1173 = vmul.f32 %v883, %v1165
    %v1174 = vmul.f32 %v888, %v1165
    %v1175 = vmul.f32 %v893, %v1165
    %v1176 = vmul.f32 %v898, %v1165
    %v1177 = vmul.f32 %v903, %v1165
    %v1178 = vmul.f32 %v908, %v1165
    %v1179 = vmul.f32 %v913, %v1165
    %v1180 = vmul.f32 %v918, %v1165
    %v1181 = vmul.f32 %v923, %v1165
    %v1182 = vmul.f32 %v928, %v1165
    %v1183 = vmul.f32 %v933, %v1165
    %v1184 = vmul.f32 %v938, %v1165
    %v1185 = vmul.f32 %v943, %v1165
    %v1186 = vmul.f32 %v948, %v1165
    %v1187 = vmul.f32 %v953, %v1165
    %v1188 = vmul.f32 %v958, %v1165
    %v1189 = vmul.f32 %v963, %v1165
    %v1190 = vmul.f32 %v968, %v1165
    %v1191 = vmul.f32 %v973, %v1165
    %v1192 = vmul.f32 %v978, %v1165
    %v1193 = vmul.f32 %v983, %v1165
    %v1194 = vmul.f32 %v988, %v1165
    %v1195 = vmul.f32 %v993, %v1165
    %v1196 = vmul.f32 %v998, %v1165
    %v1197 = vmul.f32 %v1003, %v1165
    %v1198 = vmul.f32 %v1008, %v1165
    %v1199 = vmul.f32 %v1013, %v1165
    %v1200 = vmul.f32 %v1018, %v1165
    %v1201 = vmul.f32 %v1023, %v1165
    %v1202 = vmul.f32 %v1028, %v1165
    %v1203 = vmul.f32 %v1033, %v1165
    %v1204 = vmul.f32 %v1038, %v1165
    %v1205 = vmul.f32 %v1043, %v1165
    %v1206 = vmul.f32 %v1048, %v1165
    %v1207 = vmul.f32 %v1053, %v1165
    %v1208 = vmul.f32 %v1058, %v1165
    %v1209 = vmul.f32 %v1063, %v1165
    %v1210 = vmul.f32 %v1068, %v1165
    %v1211 = vmul.f32 %v1073, %v1165
    %v1212 = vmul.f32 %v1078, %v1165
    %v1213 = vmul.f32 %v1083, %v1165
    %v1214 = vmul.f32 %v1088, %v1165
    %v1215 = vmul.f32 %v1093, %v1165
    %v1216 = vmul.f32 %v1098, %v1165
    %v1217 = vmul.f32 %v1103, %v1165
    %v1218 = vmul.f32 %v1108, %v1165
    %v1219 = vmul.f32 %v1113, %v1165
    %v1220 = vmul.f32 %v1118, %v1165
    %v1221 = vmul.f32 %v1123, %v1165
    %v1222 = vmul.f32 %v1128, %v1165
    %v1223 = vmul.f32 %v1133, %v1165
    %v1224 = vmul.f32 %v1138, %v1165
    %v1225 = vmul.f32 %v1143, %v1165
    %v1226 = vmul.f32 %v1148, %v1165
    %v1227 = vmul.f32 %v1153, %v1165
    %v1228 = vmul.f32 %v1158, %v1165
    %v1229 = vmul.f32 %v1163, %v1165
    %v1230 = vadd.f32 %v717, %v1166
    %v1231 = vadd.f32 %v718, %v1167
    %v1232 = vadd.f32 %v719, %v1168
    %v1233 = vadd.f32 %v720, %v1169
    %v1234 = vadd.f32 %v721, %v1170
    %v1235 = vadd.f32 %v722, %v1171
    %v1236 = vadd.f32 %v723, %v1172
    %v1237 = vadd.f32 %v724, %v1173
    %v1238 = vadd.f32 %v725, %v1174
    %v1239 = vadd.f32 %v726, %v1175
    %v1240 = vadd.f32 %v727, %v1176
    %v1241 = vadd.f32 %v728, %v1177
    %v1242 = vadd.f32 %v729, %v1178
    %v1243 = vadd.f32 %v730, %v1179
    %v1244 = vadd.f32 %v731, %v1180
    %v1245 = vadd.f32 %v732, %v1181
    %v1246 = vadd.f32 %v733, %v1182
    %v1247 = vadd.f32 %v734, %v1183
    %v1248 = vadd.f32 %v735, %v1184
    %v1249 = vadd.f32 %v736, %v1185
    %v1250 = vadd.f32 %v737, %v1186
    %v1251 = vadd.f32 %v738, %v1187
    %v1252 = vadd.f32 %v739, %v1188
    %v1253 = vadd.f32 %v740, %v1189
    %v1254 = vadd.f32 %v741, %v1190
    %v1255 = vadd.f32 %v742, %v1191
    %v1256 = vadd.f32 %v743, %v1192
    %v1257 = vadd.f32 %v744, %v1193
    %v1258 = vadd.f32 %v745, %v1194
    %v1259 = vadd.f32 %v746, %v1195
    %v1260 = vadd.f32 %v747, %v1196
    %v1261 = vadd.f32 %v748, %v1197
    %v1262 = vadd.f32 %v749, %v1198
    %v1263 = vadd.f32 %v750, %v1199
    %v1264 = vadd.f32 %v751, %v1200
    %v1265 = vadd.f32 %v752, %v1201
    %v1266 = vadd.f32 %v753, %v1202
    %v1267 = vadd.f32 %v754, %v1203
    %v1268 = vadd.f32 %v755, %v1204
    %v1269 = vadd.f32 %v756, %v1205
    %v1270 = vadd.f32 %v757, %v1206
    %v1271 = vadd.f32 %v758, %v1207
    %v1272 = vadd.f32 %v759, %v1208
    %v1273 = vadd.f32 %v760, %v1209
    %v1274 = vadd.f32 %v761, %v1210
    %v1275 = vadd.f32 %v762, %v1211
    %v1276 = vadd.f32 %v763, %v1212
    %v1277 = vadd.f32 %v764, %v1213
    %v1278 = vadd.f32 %v765, %v1214
    %v1279 = vadd.f32 %v766, %v1215
    %v1280 = vadd.f32 %v767, %v1216
    %v1281 = vadd.f32 %v768, %v1217
    %v1282 = vadd.f32 %v769, %v1218
    %v1283 = vadd.f32 %v770, %v1219
    %v1284 = vadd.f32 %v771, %v1220
    %v1285 = vadd.f32 %v772, %v1221
    %v1286 = vadd.f32 %v773, %v1222
    %v1287 = vadd.f32 %v774, %v1223
    %v1288 = vadd.f32 %v775, %v1224
    %v1289 = vadd.f32 %v776, %v1225
    %v1290 = vadd.f32 %v777, %v1226
    %v1291 = vadd.f32 %v778, %v1227
    %v1292 = vadd.f32 %v779, %v1228
    %v1293 = vadd.f32 %v780, %v1229
    %v1294 = vld [vmem:[#allocation2 + $0x2] sm:$0xff]
    %v1295 = vld [vmem:[#allocation2 + $0xa] sm:$0xff]
    %v1296 = vld [vmem:[#allocation2 + $0x1a] sm:$0xff]
    %v1297 = vld [vmem:[#allocation2 + $0x22] sm:$0xff]
    %v1298 = vld [vmem:[#allocation2 + $0x32] sm:$0xff]
    %v1299 = vld [vmem:[#allocation2 + $0x3a] sm:$0xff]
    %v1300 = vld [vmem:[#allocation2 + $0x4a] sm:$0xff]
    %v1301 = vld [vmem:[#allocation2 + $0x52] sm:$0xff]
    %v1302 = vld [vmem:[#allocation2 + $0x62] sm:$0xff]
    %v1303 = vld [vmem:[#allocation2 + $0x6a] sm:$0xff]
    %v1304 = vld [vmem:[#allocation2 + $0x7a] sm:$0xff]
    %v1305 = vld [vmem:[#allocation2 + $0x82] sm:$0xff]
    %v1306 = vld [vmem:[#allocation2 + $0x92] sm:$0xff]
    %v1307 = vld [vmem:[#allocation2 + $0x9a] sm:$0xff]
    %v1308 = vld [vmem:[#allocation2 + $0xaa] sm:$0xff]
    %v1309 = vld [vmem:[#allocation2 + $0xb2] sm:$0xff]
    %v1310 = vld [vmem:[#allocation2 + $0xc2] sm:$0xff]
    %v1311 = vld [vmem:[#allocation2 + $0xca] sm:$0xff]
    %v1312 = vld [vmem:[#allocation2 + $0xda] sm:$0xff]
    %v1313 = vld [vmem:[#allocation2 + $0xe2] sm:$0xff]
    %v1314 = vld [vmem:[#allocation2 + $0xf2] sm:$0xff]
    %v1315 = vld [vmem:[#allocation2 + $0xfa] sm:$0xff]
    %v1316 = vld [vmem:[#allocation2 + $0x10a] sm:$0xff]
    %v1317 = vld [vmem:[#allocation2 + $0x112] sm:$0xff]
    %v1318 = vld [vmem:[#allocation2 + $0x122] sm:$0xff]
    %v1319 = vld [vmem:[#allocation2 + $0x12a] sm:$0xff]
    %v1320 = vld [vmem:[#allocation2 + $0x13a] sm:$0xff]
    %v1321 = vld [vmem:[#allocation2 + $0x142] sm:$0xff]
    %v1322 = vld [vmem:[#allocation2 + $0x152] sm:$0xff]
    %v1323 = vld [vmem:[#allocation2 + $0x15a] sm:$0xff]
    %v1324 = vld [vmem:[#allocation2 + $0x16a] sm:$0xff]
    %v1325 = vld [vmem:[#allocation2 + $0x172] sm:$0xff]
    %v1326 = vld [vmem:[#allocation2 + $0x1b2] sm:$0xff]
    %v1327 = vld [vmem:[#allocation2 + $0x1ba] sm:$0xff]
    %v1328 = vld [vmem:[#allocation2 + $0x1ca] sm:$0xff]
    %v1329 = vld [vmem:[#allocation2 + $0x1d2] sm:$0xff]
    %v1330 = vld [vmem:[#allocation2 + $0x1e2] sm:$0xff]
    %v1331 = vld [vmem:[#allocation2 + $0x1ea] sm:$0xff]
    %v1332 = vld [vmem:[#allocation2 + $0x1fa] sm:$0xff]
    %v1333 = vld [vmem:[#allocation2 + $0x202] sm:$0xff]
    %v1334 = vld [vmem:[#allocation2 + $0x212] sm:$0xff]
    %v1335 = vld [vmem:[#allocation2 + $0x21a] sm:$0xff]
    %v1336 = vld [vmem:[#allocation2 + $0x22a] sm:$0xff]
    %v1337 = vld [vmem:[#allocation2 + $0x232] sm:$0xff]
    %v1338 = vld [vmem:[#allocation2 + $0x242] sm:$0xff]
    %v1339 = vld [vmem:[#allocation2 + $0x24a] sm:$0xff]
    %v1340 = vld [vmem:[#allocation2 + $0x25a] sm:$0xff]
    %v1341 = vld [vmem:[#allocation2 + $0x262] sm:$0xff]
    %v1342 = vld [vmem:[#allocation2 + $0x272] sm:$0xff]
    %v1343 = vld [vmem:[#allocation2 + $0x27a] sm:$0xff]
    %v1344 = vld [vmem:[#allocation2 + $0x28a] sm:$0xff]
    %v1345 = vld [vmem:[#allocation2 + $0x292] sm:$0xff]
    %v1346 = vld [vmem:[#allocation2 + $0x2a2] sm:$0xff]
    %v1347 = vld [vmem:[#allocation2 + $0x2aa] sm:$0xff]
    %v1348 = vld [vmem:[#allocation2 + $0x2ba] sm:$0xff]
    %v1349 = vld [vmem:[#allocation2 + $0x2c2] sm:$0xff]
    %v1350 = vld [vmem:[#allocation2 + $0x2d2] sm:$0xff]
    %v1351 = vld [vmem:[#allocation2 + $0x2da] sm:$0xff]
    %v1352 = vld [vmem:[#allocation2 + $0x2ea] sm:$0xff]
    %v1353 = vld [vmem:[#allocation2 + $0x2f2] sm:$0xff]
    %v1354 = vld [vmem:[#allocation2 + $0x302] sm:$0xff]
    %v1355 = vld [vmem:[#allocation2 + $0x30a] sm:$0xff]
    %v1356 = vld [vmem:[#allocation2 + $0x31a] sm:$0xff]
    %v1357 = vld [vmem:[#allocation2 + $0x322] sm:$0xff]
    %1359 = vset.pattern.permute.xlu0 0
    %1360 = vperm.xlu0 %1359, %v1294
    %v1361 = vpop.permute.xlu0 %1360
    %1364 = vset.pattern.permute.xlu0 0
    %1365 = vperm.xlu0 %1364, %v1295
    %v1366 = vpop.permute.xlu0 %1365
    %1369 = vset.pattern.permute.xlu0 0
    %1370 = vperm.xlu0 %1369, %v1296
    %v1371 = vpop.permute.xlu0 %1370
    %1374 = vset.pattern.permute.xlu0 0
    %1375 = vperm.xlu0 %1374, %v1297
    %v1376 = vpop.permute.xlu0 %1375
    %1379 = vset.pattern.permute.xlu0 0
    %1380 = vperm.xlu0 %1379, %v1298
    %v1381 = vpop.permute.xlu0 %1380
    %1384 = vset.pattern.permute.xlu0 0
    %1385 = vperm.xlu0 %1384, %v1299
    %v1386 = vpop.permute.xlu0 %1385
    %1389 = vset.pattern.permute.xlu0 0
    %1390 = vperm.xlu0 %1389, %v1300
    %v1391 = vpop.permute.xlu0 %1390
    %1394 = vset.pattern.permute.xlu0 0
    %1395 = vperm.xlu0 %1394, %v1301
    %v1396 = vpop.permute.xlu0 %1395
    %1399 = vset.pattern.permute.xlu0 0
    %1400 = vperm.xlu0 %1399, %v1302
    %v1401 = vpop.permute.xlu0 %1400
    %1404 = vset.pattern.permute.xlu0 0
    %1405 = vperm.xlu0 %1404, %v1303
    %v1406 = vpop.permute.xlu0 %1405
    %1409 = vset.pattern.permute.xlu0 0
    %1410 = vperm.xlu0 %1409, %v1304
    %v1411 = vpop.permute.xlu0 %1410
    %1414 = vset.pattern.permute.xlu0 0
    %1415 = vperm.xlu0 %1414, %v1305
    %v1416 = vpop.permute.xlu0 %1415
    %1419 = vset.pattern.permute.xlu0 0
    %1420 = vperm.xlu0 %1419, %v1306
    %v1421 = vpop.permute.xlu0 %1420
    %1424 = vset.pattern.permute.xlu0 0
    %1425 = vperm.xlu0 %1424, %v1307
    %v1426 = vpop.permute.xlu0 %1425
    %1429 = vset.pattern.permute.xlu0 0
    %1430 = vperm.xlu0 %1429, %v1308
    %v1431 = vpop.permute.xlu0 %1430
    %1434 = vset.pattern.permute.xlu0 0
    %1435 = vperm.xlu0 %1434, %v1309
    %v1436 = vpop.permute.xlu0 %1435
    %1439 = vset.pattern.permute.xlu0 0
    %1440 = vperm.xlu0 %1439, %v1310
    %v1441 = vpop.permute.xlu0 %1440
    %1444 = vset.pattern.permute.xlu0 0
    %1445 = vperm.xlu0 %1444, %v1311
    %v1446 = vpop.permute.xlu0 %1445
    %1449 = vset.pattern.permute.xlu0 0
    %1450 = vperm.xlu0 %1449, %v1312
    %v1451 = vpop.permute.xlu0 %1450
    %1454 = vset.pattern.permute.xlu0 0
    %1455 = vperm.xlu0 %1454, %v1313
    %v1456 = vpop.permute.xlu0 %1455
    %1459 = vset.pattern.permute.xlu0 0
    %1460 = vperm.xlu0 %1459, %v1314
    %v1461 = vpop.permute.xlu0 %1460
    %1464 = vset.pattern.permute.xlu0 0
    %1465 = vperm.xlu0 %1464, %v1315
    %v1466 = vpop.permute.xlu0 %1465
    %1469 = vset.pattern.permute.xlu0 0
    %1470 = vperm.xlu0 %1469, %v1316
    %v1471 = vpop.permute.xlu0 %1470
    %1474 = vset.pattern.permute.xlu0 0
    %1475 = vperm.xlu0 %1474, %v1317
    %v1476 = vpop.permute.xlu0 %1475
    %1479 = vset.pattern.permute.xlu0 0
    %1480 = vperm.xlu0 %1479, %v1318
    %v1481 = vpop.permute.xlu0 %1480
    %1484 = vset.pattern.permute.xlu0 0
    %1485 = vperm.xlu0 %1484, %v1319
    %v1486 = vpop.permute.xlu0 %1485
    %1489 = vset.pattern.permute.xlu0 0
    %1490 = vperm.xlu0 %1489, %v1320
    %v1491 = vpop.permute.xlu0 %1490
    %1494 = vset.pattern.permute.xlu0 0
    %1495 = vperm.xlu0 %1494, %v1321
    %v1496 = vpop.permute.xlu0 %1495
    %1499 = vset.pattern.permute.xlu0 0
    %1500 = vperm.xlu0 %1499, %v1322
    %v1501 = vpop.permute.xlu0 %1500
    %1504 = vset.pattern.permute.xlu0 0
    %1505 = vperm.xlu0 %1504, %v1323
    %v1506 = vpop.permute.xlu0 %1505
    %1509 = vset.pattern.permute.xlu0 0
    %1510 = vperm.xlu0 %1509, %v1324
    %v1511 = vpop.permute.xlu0 %1510
    %1514 = vset.pattern.permute.xlu0 0
    %1515 = vperm.xlu0 %1514, %v1325
    %v1516 = vpop.permute.xlu0 %1515
    %1519 = vset.pattern.permute.xlu0 0
    %1520 = vperm.xlu0 %1519, %v1326
    %v1521 = vpop.permute.xlu0 %1520
    %1524 = vset.pattern.permute.xlu0 0
    %1525 = vperm.xlu0 %1524, %v1327
    %v1526 = vpop.permute.xlu0 %1525
    %1529 = vset.pattern.permute.xlu0 0
    %1530 = vperm.xlu0 %1529, %v1328
    %v1531 = vpop.permute.xlu0 %1530
    %1534 = vset.pattern.permute.xlu0 0
    %1535 = vperm.xlu0 %1534, %v1329
    %v1536 = vpop.permute.xlu0 %1535
    %1539 = vset.pattern.permute.xlu0 0
    %1540 = vperm.xlu0 %1539, %v1330
    %v1541 = vpop.permute.xlu0 %1540
    %1544 = vset.pattern.permute.xlu0 0
    %1545 = vperm.xlu0 %1544, %v1331
    %v1546 = vpop.permute.xlu0 %1545
    %1549 = vset.pattern.permute.xlu0 0
    %1550 = vperm.xlu0 %1549, %v1332
    %v1551 = vpop.permute.xlu0 %1550
    %1554 = vset.pattern.permute.xlu0 0
    %1555 = vperm.xlu0 %1554, %v1333
    %v1556 = vpop.permute.xlu0 %1555
    %1559 = vset.pattern.permute.xlu0 0
    %1560 = vperm.xlu0 %1559, %v1334
    %v1561 = vpop.permute.xlu0 %1560
    %1564 = vset.pattern.permute.xlu0 0
    %1565 = vperm.xlu0 %1564, %v1335
    %v1566 = vpop.permute.xlu0 %1565
    %1569 = vset.pattern.permute.xlu0 0
    %1570 = vperm.xlu0 %1569, %v1336
    %v1571 = vpop.permute.xlu0 %1570
    %1574 = vset.pattern.permute.xlu0 0
    %1575 = vperm.xlu0 %1574, %v1337
    %v1576 = vpop.permute.xlu0 %1575
    %1579 = vset.pattern.permute.xlu0 0
    %1580 = vperm.xlu0 %1579, %v1338
    %v1581 = vpop.permute.xlu0 %1580
    %1584 = vset.pattern.permute.xlu0 0
    %1585 = vperm.xlu0 %1584, %v1339
    %v1586 = vpop.permute.xlu0 %1585
    %1589 = vset.pattern.permute.xlu0 0
    %1590 = vperm.xlu0 %1589, %v1340
    %v1591 = vpop.permute.xlu0 %1590
    %1594 = vset.pattern.permute.xlu0 0
    %1595 = vperm.xlu0 %1594, %v1341
    %v1596 = vpop.permute.xlu0 %1595
    %1599 = vset.pattern.permute.xlu0 0
    %1600 = vperm.xlu0 %1599, %v1342
    %v1601 = vpop.permute.xlu0 %1600
    %1604 = vset.pattern.permute.xlu0 0
    %1605 = vperm.xlu0 %1604, %v1343
    %v1606 = vpop.permute.xlu0 %1605
    %1609 = vset.pattern.permute.xlu0 0
    %1610 = vperm.xlu0 %1609, %v1344
    %v1611 = vpop.permute.xlu0 %1610
    %1614 = vset.pattern.permute.xlu0 0
    %1615 = vperm.xlu0 %1614, %v1345
    %v1616 = vpop.permute.xlu0 %1615
    %1619 = vset.pattern.permute.xlu0 0
    %1620 = vperm.xlu0 %1619, %v1346
    %v1621 = vpop.permute.xlu0 %1620
    %1624 = vset.pattern.permute.xlu0 0
    %1625 = vperm.xlu0 %1624, %v1347
    %v1626 = vpop.permute.xlu0 %1625
    %1629 = vset.pattern.permute.xlu0 0
    %1630 = vperm.xlu0 %1629, %v1348
    %v1631 = vpop.permute.xlu0 %1630
    %1634 = vset.pattern.permute.xlu0 0
    %1635 = vperm.xlu0 %1634, %v1349
    %v1636 = vpop.permute.xlu0 %1635
    %1639 = vset.pattern.permute.xlu0 0
    %1640 = vperm.xlu0 %1639, %v1350
    %v1641 = vpop.permute.xlu0 %1640
    %1644 = vset.pattern.permute.xlu0 0
    %1645 = vperm.xlu0 %1644, %v1351
    %v1646 = vpop.permute.xlu0 %1645
    %1649 = vset.pattern.permute.xlu0 0
    %1650 = vperm.xlu0 %1649, %v1352
    %v1651 = vpop.permute.xlu0 %1650
    %1654 = vset.pattern.permute.xlu0 0
    %1655 = vperm.xlu0 %1654, %v1353
    %v1656 = vpop.permute.xlu0 %1655
    %1659 = vset.pattern.permute.xlu0 0
    %1660 = vperm.xlu0 %1659, %v1354
    %v1661 = vpop.permute.xlu0 %1660
    %1664 = vset.pattern.permute.xlu0 0
    %1665 = vperm.xlu0 %1664, %v1355
    %v1666 = vpop.permute.xlu0 %1665
    %1669 = vset.pattern.permute.xlu0 0
    %1670 = vperm.xlu0 %1669, %v1356
    %v1671 = vpop.permute.xlu0 %1670
    %1674 = vset.pattern.permute.xlu0 0
    %1675 = vperm.xlu0 %1674, %v1357
    %v1676 = vpop.permute.xlu0 %1675
    %v1678 = vperm.slane %v266, 2
    %v1679 = vmul.f32 %v1361, %v1678
    %v1680 = vmul.f32 %v1366, %v1678
    %v1681 = vmul.f32 %v1371, %v1678
    %v1682 = vmul.f32 %v1376, %v1678
    %v1683 = vmul.f32 %v1381, %v1678
    %v1684 = vmul.f32 %v1386, %v1678
    %v1685 = vmul.f32 %v1391, %v1678
    %v1686 = vmul.f32 %v1396, %v1678
    %v1687 = vmul.f32 %v1401, %v1678
    %v1688 = vmul.f32 %v1406, %v1678
    %v1689 = vmul.f32 %v1411, %v1678
    %v1690 = vmul.f32 %v1416, %v1678
    %v1691 = vmul.f32 %v1421, %v1678
    %v1692 = vmul.f32 %v1426, %v1678
    %v1693 = vmul.f32 %v1431, %v1678
    %v1694 = vmul.f32 %v1436, %v1678
    %v1695 = vmul.f32 %v1441, %v1678
    %v1696 = vmul.f32 %v1446, %v1678
    %v1697 = vmul.f32 %v1451, %v1678
    %v1698 = vmul.f32 %v1456, %v1678
    %v1699 = vmul.f32 %v1461, %v1678
    %v1700 = vmul.f32 %v1466, %v1678
    %v1701 = vmul.f32 %v1471, %v1678
    %v1702 = vmul.f32 %v1476, %v1678
    %v1703 = vmul.f32 %v1481, %v1678
    %v1704 = vmul.f32 %v1486, %v1678
    %v1705 = vmul.f32 %v1491, %v1678
    %v1706 = vmul.f32 %v1496, %v1678
    %v1707 = vmul.f32 %v1501, %v1678
    %v1708 = vmul.f32 %v1506, %v1678
    %v1709 = vmul.f32 %v1511, %v1678
    %v1710 = vmul.f32 %v1516, %v1678
    %v1711 = vmul.f32 %v1521, %v1678
    %v1712 = vmul.f32 %v1526, %v1678
    %v1713 = vmul.f32 %v1531, %v1678
    %v1714 = vmul.f32 %v1536, %v1678
    %v1715 = vmul.f32 %v1541, %v1678
    %v1716 = vmul.f32 %v1546, %v1678
    %v1717 = vmul.f32 %v1551, %v1678
    %v1718 = vmul.f32 %v1556, %v1678
    %v1719 = vmul.f32 %v1561, %v1678
    %v1720 = vmul.f32 %v1566, %v1678
    %v1721 = vmul.f32 %v1571, %v1678
    %v1722 = vmul.f32 %v1576, %v1678
    %v1723 = vmul.f32 %v1581, %v1678
    %v1724 = vmul.f32 %v1586, %v1678
    %v1725 = vmul.f32 %v1591, %v1678
    %v1726 = vmul.f32 %v1596, %v1678
    %v1727 = vmul.f32 %v1601, %v1678
    %v1728 = vmul.f32 %v1606, %v1678
    %v1729 = vmul.f32 %v1611, %v1678
    %v1730 = vmul.f32 %v1616, %v1678
    %v1731 = vmul.f32 %v1621, %v1678
    %v1732 = vmul.f32 %v1626, %v1678
    %v1733 = vmul.f32 %v1631, %v1678
    %v1734 = vmul.f32 %v1636, %v1678
    %v1735 = vmul.f32 %v1641, %v1678
    %v1736 = vmul.f32 %v1646, %v1678
    %v1737 = vmul.f32 %v1651, %v1678
    %v1738 = vmul.f32 %v1656, %v1678
    %v1739 = vmul.f32 %v1661, %v1678
    %v1740 = vmul.f32 %v1666, %v1678
    %v1741 = vmul.f32 %v1671, %v1678
    %v1742 = vmul.f32 %v1676, %v1678
    %v1743 = vadd.f32 %v1230, %v1679
    %v1744 = vadd.f32 %v1231, %v1680
    %v1745 = vadd.f32 %v1232, %v1681
    %v1746 = vadd.f32 %v1233, %v1682
    %v1747 = vadd.f32 %v1234, %v1683
    %v1748 = vadd.f32 %v1235, %v1684
    %v1749 = vadd.f32 %v1236, %v1685
    %v1750 = vadd.f32 %v1237, %v1686
    %v1751 = vadd.f32 %v1238, %v1687
    %v1752 = vadd.f32 %v1239, %v1688
    %v1753 = vadd.f32 %v1240, %v1689
    %v1754 = vadd.f32 %v1241, %v1690
    %v1755 = vadd.f32 %v1242, %v1691
    %v1756 = vadd.f32 %v1243, %v1692
    %v1757 = vadd.f32 %v1244, %v1693
    %v1758 = vadd.f32 %v1245, %v1694
    %v1759 = vadd.f32 %v1246, %v1695
    %v1760 = vadd.f32 %v1247, %v1696
    %v1761 = vadd.f32 %v1248, %v1697
    %v1762 = vadd.f32 %v1249, %v1698
    %v1763 = vadd.f32 %v1250, %v1699
    %v1764 = vadd.f32 %v1251, %v1700
    %v1765 = vadd.f32 %v1252, %v1701
    %v1766 = vadd.f32 %v1253, %v1702
    %v1767 = vadd.f32 %v1254, %v1703
    %v1768 = vadd.f32 %v1255, %v1704
    %v1769 = vadd.f32 %v1256, %v1705
    %v1770 = vadd.f32 %v1257, %v1706
    %v1771 = vadd.f32 %v1258, %v1707
    %v1772 = vadd.f32 %v1259, %v1708
    %v1773 = vadd.f32 %v1260, %v1709
    %v1774 = vadd.f32 %v1261, %v1710
    %v1775 = vadd.f32 %v1262, %v1711
    %v1776 = vadd.f32 %v1263, %v1712
    %v1777 = vadd.f32 %v1264, %v1713
    %v1778 = vadd.f32 %v1265, %v1714
    %v1779 = vadd.f32 %v1266, %v1715
    %v1780 = vadd.f32 %v1267, %v1716
    %v1781 = vadd.f32 %v1268, %v1717
    %v1782 = vadd.f32 %v1269, %v1718
    %v1783 = vadd.f32 %v1270, %v1719
    %v1784 = vadd.f32 %v1271, %v1720
    %v1785 = vadd.f32 %v1272, %v1721
    %v1786 = vadd.f32 %v1273, %v1722
    %v1787 = vadd.f32 %v1274, %v1723
    %v1788 = vadd.f32 %v1275, %v1724
    %v1789 = vadd.f32 %v1276, %v1725
    %v1790 = vadd.f32 %v1277, %v1726
    %v1791 = vadd.f32 %v1278, %v1727
    %v1792 = vadd.f32 %v1279, %v1728
    %v1793 = vadd.f32 %v1280, %v1729
    %v1794 = vadd.f32 %v1281, %v1730
    %v1795 = vadd.f32 %v1282, %v1731
    %v1796 = vadd.f32 %v1283, %v1732
    %v1797 = vadd.f32 %v1284, %v1733
    %v1798 = vadd.f32 %v1285, %v1734
    %v1799 = vadd.f32 %v1286, %v1735
    %v1800 = vadd.f32 %v1287, %v1736
    %v1801 = vadd.f32 %v1288, %v1737
    %v1802 = vadd.f32 %v1289, %v1738
    %v1803 = vadd.f32 %v1290, %v1739
    %v1804 = vadd.f32 %v1291, %v1740
    %v1805 = vadd.f32 %v1292, %v1741
    %v1806 = vadd.f32 %v1293, %v1742
    %v1807 = vld [vmem:[%s201] sm:$0xff]
    %v1808 = vld [vmem:[%s201 + $0x8] sm:$0xff]
    %v1809 = vld [vmem:[%s201 + $0x18] sm:$0xff]
    %v1810 = vld [vmem:[%s201 + $0x20] sm:$0xff]
    %v1811 = vld [vmem:[%s201 + $0x30] sm:$0xff]
    %v1812 = vld [vmem:[%s201 + $0x38] sm:$0xff]
    %v1813 = vld [vmem:[%s201 + $0x48] sm:$0xff]
    %v1814 = vld [vmem:[%s201 + $0x50] sm:$0xff]
    %v1815 = vld [vmem:[%s201 + $0x60] sm:$0xff]
    %v1816 = vld [vmem:[%s201 + $0x68] sm:$0xff]
    %v1817 = vld [vmem:[%s201 + $0x78] sm:$0xff]
    %v1818 = vld [vmem:[%s201 + $0x80] sm:$0xff]
    %v1819 = vld [vmem:[%s201 + $0x90] sm:$0xff]
    %v1820 = vld [vmem:[%s201 + $0x98] sm:$0xff]
    %v1821 = vld [vmem:[%s201 + $0xa8] sm:$0xff]
    %v1822 = vld [vmem:[%s201 + $0xb0] sm:$0xff]
    %v1823 = vld [vmem:[%s201 + $0xc0] sm:$0xff]
    %v1824 = vld [vmem:[%s201 + $0xc8] sm:$0xff]
    %v1825 = vld [vmem:[%s201 + $0xd8] sm:$0xff]
    %v1826 = vld [vmem:[%s201 + $0xe0] sm:$0xff]
    %v1827 = vld [vmem:[%s201 + $0xf0] sm:$0xff]
    %v1828 = vld [vmem:[%s201 + $0xf8] sm:$0xff]
    %v1829 = vld [vmem:[%s201 + $0x108] sm:$0xff]
    %v1830 = vld [vmem:[%s201 + $0x110] sm:$0xff]
    %v1831 = vld [vmem:[%s201 + $0x120] sm:$0xff]
    %v1832 = vld [vmem:[%s201 + $0x128] sm:$0xff]
    %v1833 = vld [vmem:[%s201 + $0x138] sm:$0xff]
    %v1834 = vld [vmem:[%s201 + $0x140] sm:$0xff]
    %v1835 = vld [vmem:[%s201 + $0x150] sm:$0xff]
    %v1836 = vld [vmem:[%s201 + $0x158] sm:$0xff]
    %v1837 = vld [vmem:[%s201 + $0x168] sm:$0xff]
    %v1838 = vld [vmem:[%s201 + $0x170] sm:$0xff]
    %v1839 = vld [vmem:[%s201 + $0x1b0] sm:$0xff]
    %v1840 = vld [vmem:[%s201 + $0x1b8] sm:$0xff]
    %v1841 = vld [vmem:[%s201 + $0x1c8] sm:$0xff]
    %v1842 = vld [vmem:[%s201 + $0x1d0] sm:$0xff]
    %v1843 = vld [vmem:[%s201 + $0x1e0] sm:$0xff]
    %v1844 = vld [vmem:[%s201 + $0x1e8] sm:$0xff]
    %v1845 = vld [vmem:[%s201 + $0x1f8] sm:$0xff]
    %v1846 = vld [vmem:[%s201 + $0x200] sm:$0xff]
    %v1847 = vld [vmem:[%s201 + $0x210] sm:$0xff]
    %v1848 = vld [vmem:[%s201 + $0x218] sm:$0xff]
    %v1849 = vld [vmem:[%s201 + $0x228] sm:$0xff]
    %v1850 = vld [vmem:[%s201 + $0x230] sm:$0xff]
    %v1851 = vld [vmem:[%s201 + $0x240] sm:$0xff]
    %v1852 = vld [vmem:[%s201 + $0x248] sm:$0xff]
    %v1853 = vld [vmem:[%s201 + $0x258] sm:$0xff]
    %v1854 = vld [vmem:[%s201 + $0x260] sm:$0xff]
    %v1855 = vld [vmem:[%s201 + $0x270] sm:$0xff]
    %v1856 = vld [vmem:[%s201 + $0x278] sm:$0xff]
    %v1857 = vld [vmem:[%s201 + $0x288] sm:$0xff]
    %v1858 = vld [vmem:[%s201 + $0x290] sm:$0xff]
    %v1859 = vld [vmem:[%s201 + $0x2a0] sm:$0xff]
    %v1860 = vld [vmem:[%s201 + $0x2a8] sm:$0xff]
    %v1861 = vld [vmem:[%s201 + $0x2b8] sm:$0xff]
    %v1862 = vld [vmem:[%s201 + $0x2c0] sm:$0xff]
    %v1863 = vld [vmem:[%s201 + $0x2d0] sm:$0xff]
    %v1864 = vld [vmem:[%s201 + $0x2d8] sm:$0xff]
    %v1865 = vld [vmem:[%s201 + $0x2e8] sm:$0xff]
    %v1866 = vld [vmem:[%s201 + $0x2f0] sm:$0xff]
    %v1867 = vld [vmem:[%s201 + $0x300] sm:$0xff]
    %v1868 = vld [vmem:[%s201 + $0x308] sm:$0xff]
    %v1869 = vld [vmem:[%s201 + $0x318] sm:$0xff]
    %v1870 = vld [vmem:[%s201 + $0x320] sm:$0xff]
    %1872 = vset.pattern.permute.xlu0 0
    %1873 = vperm.xlu0 %1872, %v1807
    %v1874 = vpop.permute.xlu0 %1873
    %1877 = vset.pattern.permute.xlu0 0
    %1878 = vperm.xlu0 %1877, %v1808
    %v1879 = vpop.permute.xlu0 %1878
    %1882 = vset.pattern.permute.xlu0 0
    %1883 = vperm.xlu0 %1882, %v1809
    %v1884 = vpop.permute.xlu0 %1883
    %1887 = vset.pattern.permute.xlu0 0
    %1888 = vperm.xlu0 %1887, %v1810
    %v1889 = vpop.permute.xlu0 %1888
    %1892 = vset.pattern.permute.xlu0 0
    %1893 = vperm.xlu0 %1892, %v1811
    %v1894 = vpop.permute.xlu0 %1893
    %1897 = vset.pattern.permute.xlu0 0
    %1898 = vperm.xlu0 %1897, %v1812
    %v1899 = vpop.permute.xlu0 %1898
    %1902 = vset.pattern.permute.xlu0 0
    %1903 = vperm.xlu0 %1902, %v1813
    %v1904 = vpop.permute.xlu0 %1903
    %1907 = vset.pattern.permute.xlu0 0
    %1908 = vperm.xlu0 %1907, %v1814
    %v1909 = vpop.permute.xlu0 %1908
    %1912 = vset.pattern.permute.xlu0 0
    %1913 = vperm.xlu0 %1912, %v1815
    %v1914 = vpop.permute.xlu0 %1913
    %1917 = vset.pattern.permute.xlu0 0
    %1918 = vperm.xlu0 %1917, %v1816
    %v1919 = vpop.permute.xlu0 %1918
    %1922 = vset.pattern.permute.xlu0 0
    %1923 = vperm.xlu0 %1922, %v1817
    %v1924 = vpop.permute.xlu0 %1923
    %1927 = vset.pattern.permute.xlu0 0
    %1928 = vperm.xlu0 %1927, %v1818
    %v1929 = vpop.permute.xlu0 %1928
    %1932 = vset.pattern.permute.xlu0 0
    %1933 = vperm.xlu0 %1932, %v1819
    %v1934 = vpop.permute.xlu0 %1933
    %1937 = vset.pattern.permute.xlu0 0
    %1938 = vperm.xlu0 %1937, %v1820
    %v1939 = vpop.permute.xlu0 %1938
    %1942 = vset.pattern.permute.xlu0 0
    %1943 = vperm.xlu0 %1942, %v1821
    %v1944 = vpop.permute.xlu0 %1943
    %1947 = vset.pattern.permute.xlu0 0
    %1948 = vperm.xlu0 %1947, %v1822
    %v1949 = vpop.permute.xlu0 %1948
    %1952 = vset.pattern.permute.xlu0 0
    %1953 = vperm.xlu0 %1952, %v1823
    %v1954 = vpop.permute.xlu0 %1953
    %1957 = vset.pattern.permute.xlu0 0
    %1958 = vperm.xlu0 %1957, %v1824
    %v1959 = vpop.permute.xlu0 %1958
    %1962 = vset.pattern.permute.xlu0 0
    %1963 = vperm.xlu0 %1962, %v1825
    %v1964 = vpop.permute.xlu0 %1963
    %1967 = vset.pattern.permute.xlu0 0
    %1968 = vperm.xlu0 %1967, %v1826
    %v1969 = vpop.permute.xlu0 %1968
    %1972 = vset.pattern.permute.xlu0 0
    %1973 = vperm.xlu0 %1972, %v1827
    %v1974 = vpop.permute.xlu0 %1973
    %1977 = vset.pattern.permute.xlu0 0
    %1978 = vperm.xlu0 %1977, %v1828
    %v1979 = vpop.permute.xlu0 %1978
    %1982 = vset.pattern.permute.xlu0 0
    %1983 = vperm.xlu0 %1982, %v1829
    %v1984 = vpop.permute.xlu0 %1983
    %1987 = vset.pattern.permute.xlu0 0
    %1988 = vperm.xlu0 %1987, %v1830
    %v1989 = vpop.permute.xlu0 %1988
    %1992 = vset.pattern.permute.xlu0 0
    %1993 = vperm.xlu0 %1992, %v1831
    %v1994 = vpop.permute.xlu0 %1993
    %1997 = vset.pattern.permute.xlu0 0
    %1998 = vperm.xlu0 %1997, %v1832
    %v1999 = vpop.permute.xlu0 %1998
    %2002 = vset.pattern.permute.xlu0 0
    %2003 = vperm.xlu0 %2002, %v1833
    %v2004 = vpop.permute.xlu0 %2003
    %2007 = vset.pattern.permute.xlu0 0
    %2008 = vperm.xlu0 %2007, %v1834
    %v2009 = vpop.permute.xlu0 %2008
    %2012 = vset.pattern.permute.xlu0 0
    %2013 = vperm.xlu0 %2012, %v1835
    %v2014 = vpop.permute.xlu0 %2013
    %2017 = vset.pattern.permute.xlu0 0
    %2018 = vperm.xlu0 %2017, %v1836
    %v2019 = vpop.permute.xlu0 %2018
    %2022 = vset.pattern.permute.xlu0 0
    %2023 = vperm.xlu0 %2022, %v1837
    %v2024 = vpop.permute.xlu0 %2023
    %2027 = vset.pattern.permute.xlu0 0
    %2028 = vperm.xlu0 %2027, %v1838
    %v2029 = vpop.permute.xlu0 %2028
    %2032 = vset.pattern.permute.xlu0 0
    %2033 = vperm.xlu0 %2032, %v1839
    %v2034 = vpop.permute.xlu0 %2033
    %2037 = vset.pattern.permute.xlu0 0
    %2038 = vperm.xlu0 %2037, %v1840
    %v2039 = vpop.permute.xlu0 %2038
    %2042 = vset.pattern.permute.xlu0 0
    %2043 = vperm.xlu0 %2042, %v1841
    %v2044 = vpop.permute.xlu0 %2043
    %2047 = vset.pattern.permute.xlu0 0
    %2048 = vperm.xlu0 %2047, %v1842
    %v2049 = vpop.permute.xlu0 %2048
    %2052 = vset.pattern.permute.xlu0 0
    %2053 = vperm.xlu0 %2052, %v1843
    %v2054 = vpop.permute.xlu0 %2053
    %2057 = vset.pattern.permute.xlu0 0
    %2058 = vperm.xlu0 %2057, %v1844
    %v2059 = vpop.permute.xlu0 %2058
    %2062 = vset.pattern.permute.xlu0 0
    %2063 = vperm.xlu0 %2062, %v1845
    %v2064 = vpop.permute.xlu0 %2063
    %2067 = vset.pattern.permute.xlu0 0
    %2068 = vperm.xlu0 %2067, %v1846
    %v2069 = vpop.permute.xlu0 %2068
    %2072 = vset.pattern.permute.xlu0 0
    %2073 = vperm.xlu0 %2072, %v1847
    %v2074 = vpop.permute.xlu0 %2073
    %2077 = vset.pattern.permute.xlu0 0
    %2078 = vperm.xlu0 %2077, %v1848
    %v2079 = vpop.permute.xlu0 %2078
    %2082 = vset.pattern.permute.xlu0 0
    %2083 = vperm.xlu0 %2082, %v1849
    %v2084 = vpop.permute.xlu0 %2083
    %2087 = vset.pattern.permute.xlu0 0
    %2088 = vperm.xlu0 %2087, %v1850
    %v2089 = vpop.permute.xlu0 %2088
    %2092 = vset.pattern.permute.xlu0 0
    %2093 = vperm.xlu0 %2092, %v1851
    %v2094 = vpop.permute.xlu0 %2093
    %2097 = vset.pattern.permute.xlu0 0
    %2098 = vperm.xlu0 %2097, %v1852
    %v2099 = vpop.permute.xlu0 %2098
    %2102 = vset.pattern.permute.xlu0 0
    %2103 = vperm.xlu0 %2102, %v1853
    %v2104 = vpop.permute.xlu0 %2103
    %2107 = vset.pattern.permute.xlu0 0
    %2108 = vperm.xlu0 %2107, %v1854
    %v2109 = vpop.permute.xlu0 %2108
    %2112 = vset.pattern.permute.xlu0 0
    %2113 = vperm.xlu0 %2112, %v1855
    %v2114 = vpop.permute.xlu0 %2113
    %2117 = vset.pattern.permute.xlu0 0
    %2118 = vperm.xlu0 %2117, %v1856
    %v2119 = vpop.permute.xlu0 %2118
    %2122 = vset.pattern.permute.xlu0 0
    %2123 = vperm.xlu0 %2122, %v1857
    %v2124 = vpop.permute.xlu0 %2123
    %2127 = vset.pattern.permute.xlu0 0
    %2128 = vperm.xlu0 %2127, %v1858
    %v2129 = vpop.permute.xlu0 %2128
    %2132 = vset.pattern.permute.xlu0 0
    %2133 = vperm.xlu0 %2132, %v1859
    %v2134 = vpop.permute.xlu0 %2133
    %2137 = vset.pattern.permute.xlu0 0
    %2138 = vperm.xlu0 %2137, %v1860
    %v2139 = vpop.permute.xlu0 %2138
    %2142 = vset.pattern.permute.xlu0 0
    %2143 = vperm.xlu0 %2142, %v1861
    %v2144 = vpop.permute.xlu0 %2143
    %2147 = vset.pattern.permute.xlu0 0
    %2148 = vperm.xlu0 %2147, %v1862
    %v2149 = vpop.permute.xlu0 %2148
    %2152 = vset.pattern.permute.xlu0 0
    %2153 = vperm.xlu0 %2152, %v1863
    %v2154 = vpop.permute.xlu0 %2153
    %2157 = vset.pattern.permute.xlu0 0
    %2158 = vperm.xlu0 %2157, %v1864
    %v2159 = vpop.permute.xlu0 %2158
    %2162 = vset.pattern.permute.xlu0 0
    %2163 = vperm.xlu0 %2162, %v1865
    %v2164 = vpop.permute.xlu0 %2163
    %2167 = vset.pattern.permute.xlu0 0
    %2168 = vperm.xlu0 %2167, %v1866
    %v2169 = vpop.permute.xlu0 %2168
    %2172 = vset.pattern.permute.xlu0 0
    %2173 = vperm.xlu0 %2172, %v1867
    %v2174 = vpop.permute.xlu0 %2173
    %2177 = vset.pattern.permute.xlu0 0
    %2178 = vperm.xlu0 %2177, %v1868
    %v2179 = vpop.permute.xlu0 %2178
    %2182 = vset.pattern.permute.xlu0 0
    %2183 = vperm.xlu0 %2182, %v1869
    %v2184 = vpop.permute.xlu0 %2183
    %2187 = vset.pattern.permute.xlu0 0
    %2188 = vperm.xlu0 %2187, %v1870
    %v2189 = vpop.permute.xlu0 %2188
    %v2191 = vperm.slane %v266, 3
    %v2192 = vmul.f32 %v1874, %v2191
    %v2193 = vmul.f32 %v1879, %v2191
    %v2194 = vmul.f32 %v1884, %v2191
    %v2195 = vmul.f32 %v1889, %v2191
    %v2196 = vmul.f32 %v1894, %v2191
    %v2197 = vmul.f32 %v1899, %v2191
    %v2198 = vmul.f32 %v1904, %v2191
    %v2199 = vmul.f32 %v1909, %v2191
    %v2200 = vmul.f32 %v1914, %v2191
    %v2201 = vmul.f32 %v1919, %v2191
    %v2202 = vmul.f32 %v1924, %v2191
    %v2203 = vmul.f32 %v1929, %v2191
    %v2204 = vmul.f32 %v1934, %v2191
    %v2205 = vmul.f32 %v1939, %v2191
    %v2206 = vmul.f32 %v1944, %v2191
    %v2207 = vmul.f32 %v1949, %v2191
    %v2208 = vmul.f32 %v1954, %v2191
    %v2209 = vmul.f32 %v1959, %v2191
    %v2210 = vmul.f32 %v1964, %v2191
    %v2211 = vmul.f32 %v1969, %v2191
    %v2212 = vmul.f32 %v1974, %v2191
    %v2213 = vmul.f32 %v1979, %v2191
    %v2214 = vmul.f32 %v1984, %v2191
    %v2215 = vmul.f32 %v1989, %v2191
    %v2216 = vmul.f32 %v1994, %v2191
    %v2217 = vmul.f32 %v1999, %v2191
    %v2218 = vmul.f32 %v2004, %v2191
    %v2219 = vmul.f32 %v2009, %v2191
    %v2220 = vmul.f32 %v2014, %v2191
    %v2221 = vmul.f32 %v2019, %v2191
    %v2222 = vmul.f32 %v2024, %v2191
    %v2223 = vmul.f32 %v2029, %v2191
    %v2224 = vmul.f32 %v2034, %v2191
    %v2225 = vmul.f32 %v2039, %v2191
    %v2226 = vmul.f32 %v2044, %v2191
    %v2227 = vmul.f32 %v2049, %v2191
    %v2228 = vmul.f32 %v2054, %v2191
    %v2229 = vmul.f32 %v2059, %v2191
    %v2230 = vmul.f32 %v2064, %v2191
    %v2231 = vmul.f32 %v2069, %v2191
    %v2232 = vmul.f32 %v2074, %v2191
    %v2233 = vmul.f32 %v2079, %v2191
    %v2234 = vmul.f32 %v2084, %v2191
    %v2235 = vmul.f32 %v2089, %v2191
    %v2236 = vmul.f32 %v2094, %v2191
    %v2237 = vmul.f32 %v2099, %v2191
    %v2238 = vmul.f32 %v2104, %v2191
    %v2239 = vmul.f32 %v2109, %v2191
    %v2240 = vmul.f32 %v2114, %v2191
    %v2241 = vmul.f32 %v2119, %v2191
    %v2242 = vmul.f32 %v2124, %v2191
    %v2243 = vmul.f32 %v2129, %v2191
    %v2244 = vmul.f32 %v2134, %v2191
    %v2245 = vmul.f32 %v2139, %v2191
    %v2246 = vmul.f32 %v2144, %v2191
    %v2247 = vmul.f32 %v2149, %v2191
    %v2248 = vmul.f32 %v2154, %v2191
    %v2249 = vmul.f32 %v2159, %v2191
    %v2250 = vmul.f32 %v2164, %v2191
    %v2251 = vmul.f32 %v2169, %v2191
    %v2252 = vmul.f32 %v2174, %v2191
    %v2253 = vmul.f32 %v2179, %v2191
    %v2254 = vmul.f32 %v2184, %v2191
    %v2255 = vmul.f32 %v2189, %v2191
    %v2256 = vadd.f32 %v1743, %v2192
    %v2257 = vadd.f32 %v1744, %v2193
    %v2258 = vadd.f32 %v1745, %v2194
    %v2259 = vadd.f32 %v1746, %v2195
    %v2260 = vadd.f32 %v1747, %v2196
    %v2261 = vadd.f32 %v1748, %v2197
    %v2262 = vadd.f32 %v1749, %v2198
    %v2263 = vadd.f32 %v1750, %v2199
    %v2264 = vadd.f32 %v1751, %v2200
    %v2265 = vadd.f32 %v1752, %v2201
    %v2266 = vadd.f32 %v1753, %v2202
    %v2267 = vadd.f32 %v1754, %v2203
    %v2268 = vadd.f32 %v1755, %v2204
    %v2269 = vadd.f32 %v1756, %v2205
    %v2270 = vadd.f32 %v1757, %v2206
    %v2271 = vadd.f32 %v1758, %v2207
    %v2272 = vadd.f32 %v1759, %v2208
    %v2273 = vadd.f32 %v1760, %v2209
    %v2274 = vadd.f32 %v1761, %v2210
    %v2275 = vadd.f32 %v1762, %v2211
    %v2276 = vadd.f32 %v1763, %v2212
    %v2277 = vadd.f32 %v1764, %v2213
    %v2278 = vadd.f32 %v1765, %v2214
    %v2279 = vadd.f32 %v1766, %v2215
    %v2280 = vadd.f32 %v1767, %v2216
    %v2281 = vadd.f32 %v1768, %v2217
    %v2282 = vadd.f32 %v1769, %v2218
    %v2283 = vadd.f32 %v1770, %v2219
    %v2284 = vadd.f32 %v1771, %v2220
    %v2285 = vadd.f32 %v1772, %v2221
    %v2286 = vadd.f32 %v1773, %v2222
    %v2287 = vadd.f32 %v1774, %v2223
    %v2288 = vadd.f32 %v1775, %v2224
    %v2289 = vadd.f32 %v1776, %v2225
    %v2290 = vadd.f32 %v1777, %v2226
    %v2291 = vadd.f32 %v1778, %v2227
    %v2292 = vadd.f32 %v1779, %v2228
    %v2293 = vadd.f32 %v1780, %v2229
    %v2294 = vadd.f32 %v1781, %v2230
    %v2295 = vadd.f32 %v1782, %v2231
    %v2296 = vadd.f32 %v1783, %v2232
    %v2297 = vadd.f32 %v1784, %v2233
    %v2298 = vadd.f32 %v1785, %v2234
    %v2299 = vadd.f32 %v1786, %v2235
    %v2300 = vadd.f32 %v1787, %v2236
    %v2301 = vadd.f32 %v1788, %v2237
    %v2302 = vadd.f32 %v1789, %v2238
    %v2303 = vadd.f32 %v1790, %v2239
    %v2304 = vadd.f32 %v1791, %v2240
    %v2305 = vadd.f32 %v1792, %v2241
    %v2306 = vadd.f32 %v1793, %v2242
    %v2307 = vadd.f32 %v1794, %v2243
    %v2308 = vadd.f32 %v1795, %v2244
    %v2309 = vadd.f32 %v1796, %v2245
    %v2310 = vadd.f32 %v1797, %v2246
    %v2311 = vadd.f32 %v1798, %v2247
    %v2312 = vadd.f32 %v1799, %v2248
    %v2313 = vadd.f32 %v1800, %v2249
    %v2314 = vadd.f32 %v1801, %v2250
    %v2315 = vadd.f32 %v1802, %v2251
    %v2316 = vadd.f32 %v1803, %v2252
    %v2317 = vadd.f32 %v1804, %v2253
    %v2318 = vadd.f32 %v1805, %v2254
    %v2319 = vadd.f32 %v1806, %v2255
    %v2320 = vld [vmem:[%s201 + $0x1] sm:$0xff]
    %v2321 = vld [vmem:[%s201 + $0x9] sm:$0xff]
    %v2322 = vld [vmem:[%s201 + $0x19] sm:$0xff]
    %v2323 = vld [vmem:[%s201 + $0x21] sm:$0xff]
    %v2324 = vld [vmem:[%s201 + $0x31] sm:$0xff]
    %v2325 = vld [vmem:[%s201 + $0x39] sm:$0xff]
    %v2326 = vld [vmem:[%s201 + $0x49] sm:$0xff]
    %v2327 = vld [vmem:[%s201 + $0x51] sm:$0xff]
    %v2328 = vld [vmem:[%s201 + $0x61] sm:$0xff]
    %v2329 = vld [vmem:[%s201 + $0x69] sm:$0xff]
    %v2330 = vld [vmem:[%s201 + $0x79] sm:$0xff]
    %v2331 = vld [vmem:[%s201 + $0x81] sm:$0xff]
    %v2332 = vld [vmem:[%s201 + $0x91] sm:$0xff]
    %v2333 = vld [vmem:[%s201 + $0x99] sm:$0xff]
    %v2334 = vld [vmem:[%s201 + $0xa9] sm:$0xff]
    %v2335 = vld [vmem:[%s201 + $0xb1] sm:$0xff]
    %v2336 = vld [vmem:[%s201 + $0xc1] sm:$0xff]
    %v2337 = vld [vmem:[%s201 + $0xc9] sm:$0xff]
    %v2338 = vld [vmem:[%s201 + $0xd9] sm:$0xff]
    %v2339 = vld [vmem:[%s201 + $0xe1] sm:$0xff]
    %v2340 = vld [vmem:[%s201 + $0xf1] sm:$0xff]
    %v2341 = vld [vmem:[%s201 + $0xf9] sm:$0xff]
    %v2342 = vld [vmem:[%s201 + $0x109] sm:$0xff]
    %v2343 = vld [vmem:[%s201 + $0x111] sm:$0xff]
    %v2344 = vld [vmem:[%s201 + $0x121] sm:$0xff]
    %v2345 = vld [vmem:[%s201 + $0x129] sm:$0xff]
    %v2346 = vld [vmem:[%s201 + $0x139] sm:$0xff]
    %v2347 = vld [vmem:[%s201 + $0x141] sm:$0xff]
    %v2348 = vld [vmem:[%s201 + $0x151] sm:$0xff]
    %v2349 = vld [vmem:[%s201 + $0x159] sm:$0xff]
    %v2350 = vld [vmem:[%s201 + $0x169] sm:$0xff]
    %v2351 = vld [vmem:[%s201 + $0x171] sm:$0xff]
    %v2352 = vld [vmem:[%s201 + $0x1b1] sm:$0xff]
    %v2353 = vld [vmem:[%s201 + $0x1b9] sm:$0xff]
    %v2354 = vld [vmem:[%s201 + $0x1c9] sm:$0xff]
    %v2355 = vld [vmem:[%s201 + $0x1d1] sm:$0xff]
    %v2356 = vld [vmem:[%s201 + $0x1e1] sm:$0xff]
    %v2357 = vld [vmem:[%s201 + $0x1e9] sm:$0xff]
    %v2358 = vld [vmem:[%s201 + $0x1f9] sm:$0xff]
    %v2359 = vld [vmem:[%s201 + $0x201] sm:$0xff]
    %v2360 = vld [vmem:[%s201 + $0x211] sm:$0xff]
    %v2361 = vld [vmem:[%s201 + $0x219] sm:$0xff]
    %v2362 = vld [vmem:[%s201 + $0x229] sm:$0xff]
    %v2363 = vld [vmem:[%s201 + $0x231] sm:$0xff]
    %v2364 = vld [vmem:[%s201 + $0x241] sm:$0xff]
    %v2365 = vld [vmem:[%s201 + $0x249] sm:$0xff]
    %v2366 = vld [vmem:[%s201 + $0x259] sm:$0xff]
    %v2367 = vld [vmem:[%s201 + $0x261] sm:$0xff]
    %v2368 = vld [vmem:[%s201 + $0x271] sm:$0xff]
    %v2369 = vld [vmem:[%s201 + $0x279] sm:$0xff]
    %v2370 = vld [vmem:[%s201 + $0x289] sm:$0xff]
    %v2371 = vld [vmem:[%s201 + $0x291] sm:$0xff]
    %v2372 = vld [vmem:[%s201 + $0x2a1] sm:$0xff]
    %v2373 = vld [vmem:[%s201 + $0x2a9] sm:$0xff]
    %v2374 = vld [vmem:[%s201 + $0x2b9] sm:$0xff]
    %v2375 = vld [vmem:[%s201 + $0x2c1] sm:$0xff]
    %v2376 = vld [vmem:[%s201 + $0x2d1] sm:$0xff]
    %v2377 = vld [vmem:[%s201 + $0x2d9] sm:$0xff]
    %v2378 = vld [vmem:[%s201 + $0x2e9] sm:$0xff]
    %v2379 = vld [vmem:[%s201 + $0x2f1] sm:$0xff]
    %v2380 = vld [vmem:[%s201 + $0x301] sm:$0xff]
    %v2381 = vld [vmem:[%s201 + $0x309] sm:$0xff]
    %v2382 = vld [vmem:[%s201 + $0x319] sm:$0xff]
    %v2383 = vld [vmem:[%s201 + $0x321] sm:$0xff]
    %2385 = vset.pattern.permute.xlu0 0
    %2386 = vperm.xlu0 %2385, %v2320
    %v2387 = vpop.permute.xlu0 %2386
    %2390 = vset.pattern.permute.xlu0 0
    %2391 = vperm.xlu0 %2390, %v2321
    %v2392 = vpop.permute.xlu0 %2391
    %2395 = vset.pattern.permute.xlu0 0
    %2396 = vperm.xlu0 %2395, %v2322
    %v2397 = vpop.permute.xlu0 %2396
    %2400 = vset.pattern.permute.xlu0 0
    %2401 = vperm.xlu0 %2400, %v2323
    %v2402 = vpop.permute.xlu0 %2401
    %2405 = vset.pattern.permute.xlu0 0
    %2406 = vperm.xlu0 %2405, %v2324
    %v2407 = vpop.permute.xlu0 %2406
    %2410 = vset.pattern.permute.xlu0 0
    %2411 = vperm.xlu0 %2410, %v2325
    %v2412 = vpop.permute.xlu0 %2411
    %2415 = vset.pattern.permute.xlu0 0
    %2416 = vperm.xlu0 %2415, %v2326
    %v2417 = vpop.permute.xlu0 %2416
    %2420 = vset.pattern.permute.xlu0 0
    %2421 = vperm.xlu0 %2420, %v2327
    %v2422 = vpop.permute.xlu0 %2421
    %2425 = vset.pattern.permute.xlu0 0
    %2426 = vperm.xlu0 %2425, %v2328
    %v2427 = vpop.permute.xlu0 %2426
    %2430 = vset.pattern.permute.xlu0 0
    %2431 = vperm.xlu0 %2430, %v2329
    %v2432 = vpop.permute.xlu0 %2431
    %2435 = vset.pattern.permute.xlu0 0
    %2436 = vperm.xlu0 %2435, %v2330
    %v2437 = vpop.permute.xlu0 %2436
    %2440 = vset.pattern.permute.xlu0 0
    %2441 = vperm.xlu0 %2440, %v2331
    %v2442 = vpop.permute.xlu0 %2441
    %2445 = vset.pattern.permute.xlu0 0
    %2446 = vperm.xlu0 %2445, %v2332
    %v2447 = vpop.permute.xlu0 %2446
    %2450 = vset.pattern.permute.xlu0 0
    %2451 = vperm.xlu0 %2450, %v2333
    %v2452 = vpop.permute.xlu0 %2451
    %2455 = vset.pattern.permute.xlu0 0
    %2456 = vperm.xlu0 %2455, %v2334
    %v2457 = vpop.permute.xlu0 %2456
    %2460 = vset.pattern.permute.xlu0 0
    %2461 = vperm.xlu0 %2460, %v2335
    %v2462 = vpop.permute.xlu0 %2461
    %2465 = vset.pattern.permute.xlu0 0
    %2466 = vperm.xlu0 %2465, %v2336
    %v2467 = vpop.permute.xlu0 %2466
    %2470 = vset.pattern.permute.xlu0 0
    %2471 = vperm.xlu0 %2470, %v2337
    %v2472 = vpop.permute.xlu0 %2471
    %2475 = vset.pattern.permute.xlu0 0
    %2476 = vperm.xlu0 %2475, %v2338
    %v2477 = vpop.permute.xlu0 %2476
    %2480 = vset.pattern.permute.xlu0 0
    %2481 = vperm.xlu0 %2480, %v2339
    %v2482 = vpop.permute.xlu0 %2481
    %2485 = vset.pattern.permute.xlu0 0
    %2486 = vperm.xlu0 %2485, %v2340
    %v2487 = vpop.permute.xlu0 %2486
    %2490 = vset.pattern.permute.xlu0 0
    %2491 = vperm.xlu0 %2490, %v2341
    %v2492 = vpop.permute.xlu0 %2491
    %2495 = vset.pattern.permute.xlu0 0
    %2496 = vperm.xlu0 %2495, %v2342
    %v2497 = vpop.permute.xlu0 %2496
    %2500 = vset.pattern.permute.xlu0 0
    %2501 = vperm.xlu0 %2500, %v2343
    %v2502 = vpop.permute.xlu0 %2501
    %2505 = vset.pattern.permute.xlu0 0
    %2506 = vperm.xlu0 %2505, %v2344
    %v2507 = vpop.permute.xlu0 %2506
    %2510 = vset.pattern.permute.xlu0 0
    %2511 = vperm.xlu0 %2510, %v2345
    %v2512 = vpop.permute.xlu0 %2511
    %2515 = vset.pattern.permute.xlu0 0
    %2516 = vperm.xlu0 %2515, %v2346
    %v2517 = vpop.permute.xlu0 %2516
    %2520 = vset.pattern.permute.xlu0 0
    %2521 = vperm.xlu0 %2520, %v2347
    %v2522 = vpop.permute.xlu0 %2521
    %2525 = vset.pattern.permute.xlu0 0
    %2526 = vperm.xlu0 %2525, %v2348
    %v2527 = vpop.permute.xlu0 %2526
    %2530 = vset.pattern.permute.xlu0 0
    %2531 = vperm.xlu0 %2530, %v2349
    %v2532 = vpop.permute.xlu0 %2531
    %2535 = vset.pattern.permute.xlu0 0
    %2536 = vperm.xlu0 %2535, %v2350
    %v2537 = vpop.permute.xlu0 %2536
    %2540 = vset.pattern.permute.xlu0 0
    %2541 = vperm.xlu0 %2540, %v2351
    %v2542 = vpop.permute.xlu0 %2541
    %2545 = vset.pattern.permute.xlu0 0
    %2546 = vperm.xlu0 %2545, %v2352
    %v2547 = vpop.permute.xlu0 %2546
    %2550 = vset.pattern.permute.xlu0 0
    %2551 = vperm.xlu0 %2550, %v2353
    %v2552 = vpop.permute.xlu0 %2551
    %2555 = vset.pattern.permute.xlu0 0
    %2556 = vperm.xlu0 %2555, %v2354
    %v2557 = vpop.permute.xlu0 %2556
    %2560 = vset.pattern.permute.xlu0 0
    %2561 = vperm.xlu0 %2560, %v2355
    %v2562 = vpop.permute.xlu0 %2561
    %2565 = vset.pattern.permute.xlu0 0
    %2566 = vperm.xlu0 %2565, %v2356
    %v2567 = vpop.permute.xlu0 %2566
    %2570 = vset.pattern.permute.xlu0 0
    %2571 = vperm.xlu0 %2570, %v2357
    %v2572 = vpop.permute.xlu0 %2571
    %2575 = vset.pattern.permute.xlu0 0
    %2576 = vperm.xlu0 %2575, %v2358
    %v2577 = vpop.permute.xlu0 %2576
    %2580 = vset.pattern.permute.xlu0 0
    %2581 = vperm.xlu0 %2580, %v2359
    %v2582 = vpop.permute.xlu0 %2581
    %2585 = vset.pattern.permute.xlu0 0
    %2586 = vperm.xlu0 %2585, %v2360
    %v2587 = vpop.permute.xlu0 %2586
    %2590 = vset.pattern.permute.xlu0 0
    %2591 = vperm.xlu0 %2590, %v2361
    %v2592 = vpop.permute.xlu0 %2591
    %2595 = vset.pattern.permute.xlu0 0
    %2596 = vperm.xlu0 %2595, %v2362
    %v2597 = vpop.permute.xlu0 %2596
    %2600 = vset.pattern.permute.xlu0 0
    %2601 = vperm.xlu0 %2600, %v2363
    %v2602 = vpop.permute.xlu0 %2601
    %2605 = vset.pattern.permute.xlu0 0
    %2606 = vperm.xlu0 %2605, %v2364
    %v2607 = vpop.permute.xlu0 %2606
    %2610 = vset.pattern.permute.xlu0 0
    %2611 = vperm.xlu0 %2610, %v2365
    %v2612 = vpop.permute.xlu0 %2611
    %2615 = vset.pattern.permute.xlu0 0
    %2616 = vperm.xlu0 %2615, %v2366
    %v2617 = vpop.permute.xlu0 %2616
    %2620 = vset.pattern.permute.xlu0 0
    %2621 = vperm.xlu0 %2620, %v2367
    %v2622 = vpop.permute.xlu0 %2621
    %2625 = vset.pattern.permute.xlu0 0
    %2626 = vperm.xlu0 %2625, %v2368
    %v2627 = vpop.permute.xlu0 %2626
    %2630 = vset.pattern.permute.xlu0 0
    %2631 = vperm.xlu0 %2630, %v2369
    %v2632 = vpop.permute.xlu0 %2631
    %2635 = vset.pattern.permute.xlu0 0
    %2636 = vperm.xlu0 %2635, %v2370
    %v2637 = vpop.permute.xlu0 %2636
    %2640 = vset.pattern.permute.xlu0 0
    %2641 = vperm.xlu0 %2640, %v2371
    %v2642 = vpop.permute.xlu0 %2641
    %2645 = vset.pattern.permute.xlu0 0
    %2646 = vperm.xlu0 %2645, %v2372
    %v2647 = vpop.permute.xlu0 %2646
    %2650 = vset.pattern.permute.xlu0 0
    %2651 = vperm.xlu0 %2650, %v2373
    %v2652 = vpop.permute.xlu0 %2651
    %2655 = vset.pattern.permute.xlu0 0
    %2656 = vperm.xlu0 %2655, %v2374
    %v2657 = vpop.permute.xlu0 %2656
    %2660 = vset.pattern.permute.xlu0 0
    %2661 = vperm.xlu0 %2660, %v2375
    %v2662 = vpop.permute.xlu0 %2661
    %2665 = vset.pattern.permute.xlu0 0
    %2666 = vperm.xlu0 %2665, %v2376
    %v2667 = vpop.permute.xlu0 %2666
    %2670 = vset.pattern.permute.xlu0 0
    %2671 = vperm.xlu0 %2670, %v2377
    %v2672 = vpop.permute.xlu0 %2671
    %2675 = vset.pattern.permute.xlu0 0
    %2676 = vperm.xlu0 %2675, %v2378
    %v2677 = vpop.permute.xlu0 %2676
    %2680 = vset.pattern.permute.xlu0 0
    %2681 = vperm.xlu0 %2680, %v2379
    %v2682 = vpop.permute.xlu0 %2681
    %2685 = vset.pattern.permute.xlu0 0
    %2686 = vperm.xlu0 %2685, %v2380
    %v2687 = vpop.permute.xlu0 %2686
    %2690 = vset.pattern.permute.xlu0 0
    %2691 = vperm.xlu0 %2690, %v2381
    %v2692 = vpop.permute.xlu0 %2691
    %2695 = vset.pattern.permute.xlu0 0
    %2696 = vperm.xlu0 %2695, %v2382
    %v2697 = vpop.permute.xlu0 %2696
    %2700 = vset.pattern.permute.xlu0 0
    %2701 = vperm.xlu0 %2700, %v2383
    %v2702 = vpop.permute.xlu0 %2701
    %v2704 = vperm.slane %v266, 4
    %v2705 = vmul.f32 %v2387, %v2704
    %v2706 = vmul.f32 %v2392, %v2704
    %v2707 = vmul.f32 %v2397, %v2704
    %v2708 = vmul.f32 %v2402, %v2704
    %v2709 = vmul.f32 %v2407, %v2704
    %v2710 = vmul.f32 %v2412, %v2704
    %v2711 = vmul.f32 %v2417, %v2704
    %v2712 = vmul.f32 %v2422, %v2704
    %v2713 = vmul.f32 %v2427, %v2704
    %v2714 = vmul.f32 %v2432, %v2704
    %v2715 = vmul.f32 %v2437, %v2704
    %v2716 = vmul.f32 %v2442, %v2704
    %v2717 = vmul.f32 %v2447, %v2704
    %v2718 = vmul.f32 %v2452, %v2704
    %v2719 = vmul.f32 %v2457, %v2704
    %v2720 = vmul.f32 %v2462, %v2704
    %v2721 = vmul.f32 %v2467, %v2704
    %v2722 = vmul.f32 %v2472, %v2704
    %v2723 = vmul.f32 %v2477, %v2704
    %v2724 = vmul.f32 %v2482, %v2704
    %v2725 = vmul.f32 %v2487, %v2704
    %v2726 = vmul.f32 %v2492, %v2704
    %v2727 = vmul.f32 %v2497, %v2704
    %v2728 = vmul.f32 %v2502, %v2704
    %v2729 = vmul.f32 %v2507, %v2704
    %v2730 = vmul.f32 %v2512, %v2704
    %v2731 = vmul.f32 %v2517, %v2704
    %v2732 = vmul.f32 %v2522, %v2704
    %v2733 = vmul.f32 %v2527, %v2704
    %v2734 = vmul.f32 %v2532, %v2704
    %v2735 = vmul.f32 %v2537, %v2704
    %v2736 = vmul.f32 %v2542, %v2704
    %v2737 = vmul.f32 %v2547, %v2704
    %v2738 = vmul.f32 %v2552, %v2704
    %v2739 = vmul.f32 %v2557, %v2704
    %v2740 = vmul.f32 %v2562, %v2704
    %v2741 = vmul.f32 %v2567, %v2704
    %v2742 = vmul.f32 %v2572, %v2704
    %v2743 = vmul.f32 %v2577, %v2704
    %v2744 = vmul.f32 %v2582, %v2704
    %v2745 = vmul.f32 %v2587, %v2704
    %v2746 = vmul.f32 %v2592, %v2704
    %v2747 = vmul.f32 %v2597, %v2704
    %v2748 = vmul.f32 %v2602, %v2704
    %v2749 = vmul.f32 %v2607, %v2704
    %v2750 = vmul.f32 %v2612, %v2704
    %v2751 = vmul.f32 %v2617, %v2704
    %v2752 = vmul.f32 %v2622, %v2704
    %v2753 = vmul.f32 %v2627, %v2704
    %v2754 = vmul.f32 %v2632, %v2704
    %v2755 = vmul.f32 %v2637, %v2704
    %v2756 = vmul.f32 %v2642, %v2704
    %v2757 = vmul.f32 %v2647, %v2704
    %v2758 = vmul.f32 %v2652, %v2704
    %v2759 = vmul.f32 %v2657, %v2704
    %v2760 = vmul.f32 %v2662, %v2704
    %v2761 = vmul.f32 %v2667, %v2704
    %v2762 = vmul.f32 %v2672, %v2704
    %v2763 = vmul.f32 %v2677, %v2704
    %v2764 = vmul.f32 %v2682, %v2704
    %v2765 = vmul.f32 %v2687, %v2704
    %v2766 = vmul.f32 %v2692, %v2704
    %v2767 = vmul.f32 %v2697, %v2704
    %v2768 = vmul.f32 %v2702, %v2704
    %v2769 = vadd.f32 %v2256, %v2705
    %v2770 = vadd.f32 %v2257, %v2706
    %v2771 = vadd.f32 %v2258, %v2707
    %v2772 = vadd.f32 %v2259, %v2708
    %v2773 = vadd.f32 %v2260, %v2709
    %v2774 = vadd.f32 %v2261, %v2710
    %v2775 = vadd.f32 %v2262, %v2711
    %v2776 = vadd.f32 %v2263, %v2712
    %v2777 = vadd.f32 %v2264, %v2713
    %v2778 = vadd.f32 %v2265, %v2714
    %v2779 = vadd.f32 %v2266, %v2715
    %v2780 = vadd.f32 %v2267, %v2716
    %v2781 = vadd.f32 %v2268, %v2717
    %v2782 = vadd.f32 %v2269, %v2718
    %v2783 = vadd.f32 %v2270, %v2719
    %v2784 = vadd.f32 %v2271, %v2720
    %v2785 = vadd.f32 %v2272, %v2721
    %v2786 = vadd.f32 %v2273, %v2722
    %v2787 = vadd.f32 %v2274, %v2723
    %v2788 = vadd.f32 %v2275, %v2724
    %v2789 = vadd.f32 %v2276, %v2725
    %v2790 = vadd.f32 %v2277, %v2726
    %v2791 = vadd.f32 %v2278, %v2727
    %v2792 = vadd.f32 %v2279, %v2728
    %v2793 = vadd.f32 %v2280, %v2729
    %v2794 = vadd.f32 %v2281, %v2730
    %v2795 = vadd.f32 %v2282, %v2731
    %v2796 = vadd.f32 %v2283, %v2732
    %v2797 = vadd.f32 %v2284, %v2733
    %v2798 = vadd.f32 %v2285, %v2734
    %v2799 = vadd.f32 %v2286, %v2735
    %v2800 = vadd.f32 %v2287, %v2736
    %v2801 = vadd.f32 %v2288, %v2737
    %v2802 = vadd.f32 %v2289, %v2738
    %v2803 = vadd.f32 %v2290, %v2739
    %v2804 = vadd.f32 %v2291, %v2740
    %v2805 = vadd.f32 %v2292, %v2741
    %v2806 = vadd.f32 %v2293, %v2742
    %v2807 = vadd.f32 %v2294, %v2743
    %v2808 = vadd.f32 %v2295, %v2744
    %v2809 = vadd.f32 %v2296, %v2745
    %v2810 = vadd.f32 %v2297, %v2746
    %v2811 = vadd.f32 %v2298, %v2747
    %v2812 = vadd.f32 %v2299, %v2748
    %v2813 = vadd.f32 %v2300, %v2749
    %v2814 = vadd.f32 %v2301, %v2750
    %v2815 = vadd.f32 %v2302, %v2751
    %v2816 = vadd.f32 %v2303, %v2752
    %v2817 = vadd.f32 %v2304, %v2753
    %v2818 = vadd.f32 %v2305, %v2754
    %v2819 = vadd.f32 %v2306, %v2755
    %v2820 = vadd.f32 %v2307, %v2756
    %v2821 = vadd.f32 %v2308, %v2757
    %v2822 = vadd.f32 %v2309, %v2758
    %v2823 = vadd.f32 %v2310, %v2759
    %v2824 = vadd.f32 %v2311, %v2760
    %v2825 = vadd.f32 %v2312, %v2761
    %v2826 = vadd.f32 %v2313, %v2762
    %v2827 = vadd.f32 %v2314, %v2763
    %v2828 = vadd.f32 %v2315, %v2764
    %v2829 = vadd.f32 %v2316, %v2765
    %v2830 = vadd.f32 %v2317, %v2766
    %v2831 = vadd.f32 %v2318, %v2767
    %v2832 = vadd.f32 %v2319, %v2768
    %v2833 = vld [vmem:[%s201 + $0x2] sm:$0xff]
    %v2834 = vld [vmem:[%s201 + $0xa] sm:$0xff]
    %v2835 = vld [vmem:[%s201 + $0x1a] sm:$0xff]
    %v2836 = vld [vmem:[%s201 + $0x22] sm:$0xff]
    %v2837 = vld [vmem:[%s201 + $0x32] sm:$0xff]
    %v2838 = vld [vmem:[%s201 + $0x3a] sm:$0xff]
    %v2839 = vld [vmem:[%s201 + $0x4a] sm:$0xff]
    %v2840 = vld [vmem:[%s201 + $0x52] sm:$0xff]
    %v2841 = vld [vmem:[%s201 + $0x62] sm:$0xff]
    %v2842 = vld [vmem:[%s201 + $0x6a] sm:$0xff]
    %v2843 = vld [vmem:[%s201 + $0x7a] sm:$0xff]
    %v2844 = vld [vmem:[%s201 + $0x82] sm:$0xff]
    %v2845 = vld [vmem:[%s201 + $0x92] sm:$0xff]
    %v2846 = vld [vmem:[%s201 + $0x9a] sm:$0xff]
    %v2847 = vld [vmem:[%s201 + $0xaa] sm:$0xff]
    %v2848 = vld [vmem:[%s201 + $0xb2] sm:$0xff]
    %v2849 = vld [vmem:[%s201 + $0xc2] sm:$0xff]
    %v2850 = vld [vmem:[%s201 + $0xca] sm:$0xff]
    %v2851 = vld [vmem:[%s201 + $0xda] sm:$0xff]
    %v2852 = vld [vmem:[%s201 + $0xe2] sm:$0xff]
    %v2853 = vld [vmem:[%s201 + $0xf2] sm:$0xff]
    %v2854 = vld [vmem:[%s201 + $0xfa] sm:$0xff]
    %v2855 = vld [vmem:[%s201 + $0x10a] sm:$0xff]
    %v2856 = vld [vmem:[%s201 + $0x112] sm:$0xff]
    %v2857 = vld [vmem:[%s201 + $0x122] sm:$0xff]
    %v2858 = vld [vmem:[%s201 + $0x12a] sm:$0xff]
    %v2859 = vld [vmem:[%s201 + $0x13a] sm:$0xff]
    %v2860 = vld [vmem:[%s201 + $0x142] sm:$0xff]
    %v2861 = vld [vmem:[%s201 + $0x152] sm:$0xff]
    %v2862 = vld [vmem:[%s201 + $0x15a] sm:$0xff]
    %v2863 = vld [vmem:[%s201 + $0x16a] sm:$0xff]
    %v2864 = vld [vmem:[%s201 + $0x172] sm:$0xff]
    %v2865 = vld [vmem:[%s201 + $0x1b2] sm:$0xff]
    %v2866 = vld [vmem:[%s201 + $0x1ba] sm:$0xff]
    %v2867 = vld [vmem:[%s201 + $0x1ca] sm:$0xff]
    %v2868 = vld [vmem:[%s201 + $0x1d2] sm:$0xff]
    %v2869 = vld [vmem:[%s201 + $0x1e2] sm:$0xff]
    %v2870 = vld [vmem:[%s201 + $0x1ea] sm:$0xff]
    %v2871 = vld [vmem:[%s201 + $0x1fa] sm:$0xff]
    %v2872 = vld [vmem:[%s201 + $0x202] sm:$0xff]
    %v2873 = vld [vmem:[%s201 + $0x212] sm:$0xff]
    %v2874 = vld [vmem:[%s201 + $0x21a] sm:$0xff]
    %v2875 = vld [vmem:[%s201 + $0x22a] sm:$0xff]
    %v2876 = vld [vmem:[%s201 + $0x232] sm:$0xff]
    %v2877 = vld [vmem:[%s201 + $0x242] sm:$0xff]
    %v2878 = vld [vmem:[%s201 + $0x24a] sm:$0xff]
    %v2879 = vld [vmem:[%s201 + $0x25a] sm:$0xff]
    %v2880 = vld [vmem:[%s201 + $0x262] sm:$0xff]
    %v2881 = vld [vmem:[%s201 + $0x272] sm:$0xff]
    %v2882 = vld [vmem:[%s201 + $0x27a] sm:$0xff]
    %v2883 = vld [vmem:[%s201 + $0x28a] sm:$0xff]
    %v2884 = vld [vmem:[%s201 + $0x292] sm:$0xff]
    %v2885 = vld [vmem:[%s201 + $0x2a2] sm:$0xff]
    %v2886 = vld [vmem:[%s201 + $0x2aa] sm:$0xff]
    %v2887 = vld [vmem:[%s201 + $0x2ba] sm:$0xff]
    %v2888 = vld [vmem:[%s201 + $0x2c2] sm:$0xff]
    %v2889 = vld [vmem:[%s201 + $0x2d2] sm:$0xff]
    %v2890 = vld [vmem:[%s201 + $0x2da] sm:$0xff]
    %v2891 = vld [vmem:[%s201 + $0x2ea] sm:$0xff]
    %v2892 = vld [vmem:[%s201 + $0x2f2] sm:$0xff]
    %v2893 = vld [vmem:[%s201 + $0x302] sm:$0xff]
    %v2894 = vld [vmem:[%s201 + $0x30a] sm:$0xff]
    %v2895 = vld [vmem:[%s201 + $0x31a] sm:$0xff]
    %v2896 = vld [vmem:[%s201 + $0x322] sm:$0xff]
    %2898 = vset.pattern.permute.xlu0 0
    %2899 = vperm.xlu0 %2898, %v2833
    %v2900 = vpop.permute.xlu0 %2899
    %2903 = vset.pattern.permute.xlu0 0
    %2904 = vperm.xlu0 %2903, %v2834
    %v2905 = vpop.permute.xlu0 %2904
    %2908 = vset.pattern.permute.xlu0 0
    %2909 = vperm.xlu0 %2908, %v2835
    %v2910 = vpop.permute.xlu0 %2909
    %2913 = vset.pattern.permute.xlu0 0
    %2914 = vperm.xlu0 %2913, %v2836
    %v2915 = vpop.permute.xlu0 %2914
    %2918 = vset.pattern.permute.xlu0 0
    %2919 = vperm.xlu0 %2918, %v2837
    %v2920 = vpop.permute.xlu0 %2919
    %2923 = vset.pattern.permute.xlu0 0
    %2924 = vperm.xlu0 %2923, %v2838
    %v2925 = vpop.permute.xlu0 %2924
    %2928 = vset.pattern.permute.xlu0 0
    %2929 = vperm.xlu0 %2928, %v2839
    %v2930 = vpop.permute.xlu0 %2929
    %2933 = vset.pattern.permute.xlu0 0
    %2934 = vperm.xlu0 %2933, %v2840
    %v2935 = vpop.permute.xlu0 %2934
    %2938 = vset.pattern.permute.xlu0 0
    %2939 = vperm.xlu0 %2938, %v2841
    %v2940 = vpop.permute.xlu0 %2939
    %2943 = vset.pattern.permute.xlu0 0
    %2944 = vperm.xlu0 %2943, %v2842
    %v2945 = vpop.permute.xlu0 %2944
    %2948 = vset.pattern.permute.xlu0 0
    %2949 = vperm.xlu0 %2948, %v2843
    %v2950 = vpop.permute.xlu0 %2949
    %2953 = vset.pattern.permute.xlu0 0
    %2954 = vperm.xlu0 %2953, %v2844
    %v2955 = vpop.permute.xlu0 %2954
    %2958 = vset.pattern.permute.xlu0 0
    %2959 = vperm.xlu0 %2958, %v2845
    %v2960 = vpop.permute.xlu0 %2959
    %2963 = vset.pattern.permute.xlu0 0
    %2964 = vperm.xlu0 %2963, %v2846
    %v2965 = vpop.permute.xlu0 %2964
    %2968 = vset.pattern.permute.xlu0 0
    %2969 = vperm.xlu0 %2968, %v2847
    %v2970 = vpop.permute.xlu0 %2969
    %2973 = vset.pattern.permute.xlu0 0
    %2974 = vperm.xlu0 %2973, %v2848
    %v2975 = vpop.permute.xlu0 %2974
    %2978 = vset.pattern.permute.xlu0 0
    %2979 = vperm.xlu0 %2978, %v2849
    %v2980 = vpop.permute.xlu0 %2979
    %2983 = vset.pattern.permute.xlu0 0
    %2984 = vperm.xlu0 %2983, %v2850
    %v2985 = vpop.permute.xlu0 %2984
    %2988 = vset.pattern.permute.xlu0 0
    %2989 = vperm.xlu0 %2988, %v2851
    %v2990 = vpop.permute.xlu0 %2989
    %2993 = vset.pattern.permute.xlu0 0
    %2994 = vperm.xlu0 %2993, %v2852
    %v2995 = vpop.permute.xlu0 %2994
    %2998 = vset.pattern.permute.xlu0 0
    %2999 = vperm.xlu0 %2998, %v2853
    %v3000 = vpop.permute.xlu0 %2999
    %3003 = vset.pattern.permute.xlu0 0
    %3004 = vperm.xlu0 %3003, %v2854
    %v3005 = vpop.permute.xlu0 %3004
    %3008 = vset.pattern.permute.xlu0 0
    %3009 = vperm.xlu0 %3008, %v2855
    %v3010 = vpop.permute.xlu0 %3009
    %3013 = vset.pattern.permute.xlu0 0
    %3014 = vperm.xlu0 %3013, %v2856
    %v3015 = vpop.permute.xlu0 %3014
    %3018 = vset.pattern.permute.xlu0 0
    %3019 = vperm.xlu0 %3018, %v2857
    %v3020 = vpop.permute.xlu0 %3019
    %3023 = vset.pattern.permute.xlu0 0
    %3024 = vperm.xlu0 %3023, %v2858
    %v3025 = vpop.permute.xlu0 %3024
    %3028 = vset.pattern.permute.xlu0 0
    %3029 = vperm.xlu0 %3028, %v2859
    %v3030 = vpop.permute.xlu0 %3029
    %3033 = vset.pattern.permute.xlu0 0
    %3034 = vperm.xlu0 %3033, %v2860
    %v3035 = vpop.permute.xlu0 %3034
    %3038 = vset.pattern.permute.xlu0 0
    %3039 = vperm.xlu0 %3038, %v2861
    %v3040 = vpop.permute.xlu0 %3039
    %3043 = vset.pattern.permute.xlu0 0
    %3044 = vperm.xlu0 %3043, %v2862
    %v3045 = vpop.permute.xlu0 %3044
    %3048 = vset.pattern.permute.xlu0 0
    %3049 = vperm.xlu0 %3048, %v2863
    %v3050 = vpop.permute.xlu0 %3049
    %3053 = vset.pattern.permute.xlu0 0
    %3054 = vperm.xlu0 %3053, %v2864
    %v3055 = vpop.permute.xlu0 %3054
    %3058 = vset.pattern.permute.xlu0 0
    %3059 = vperm.xlu0 %3058, %v2865
    %v3060 = vpop.permute.xlu0 %3059
    %3063 = vset.pattern.permute.xlu0 0
    %3064 = vperm.xlu0 %3063, %v2866
    %v3065 = vpop.permute.xlu0 %3064
    %3068 = vset.pattern.permute.xlu0 0
    %3069 = vperm.xlu0 %3068, %v2867
    %v3070 = vpop.permute.xlu0 %3069
    %3073 = vset.pattern.permute.xlu0 0
    %3074 = vperm.xlu0 %3073, %v2868
    %v3075 = vpop.permute.xlu0 %3074
    %3078 = vset.pattern.permute.xlu0 0
    %3079 = vperm.xlu0 %3078, %v2869
    %v3080 = vpop.permute.xlu0 %3079
    %3083 = vset.pattern.permute.xlu0 0
    %3084 = vperm.xlu0 %3083, %v2870
    %v3085 = vpop.permute.xlu0 %3084
    %3088 = vset.pattern.permute.xlu0 0
    %3089 = vperm.xlu0 %3088, %v2871
    %v3090 = vpop.permute.xlu0 %3089
    %3093 = vset.pattern.permute.xlu0 0
    %3094 = vperm.xlu0 %3093, %v2872
    %v3095 = vpop.permute.xlu0 %3094
    %3098 = vset.pattern.permute.xlu0 0
    %3099 = vperm.xlu0 %3098, %v2873
    %v3100 = vpop.permute.xlu0 %3099
    %3103 = vset.pattern.permute.xlu0 0
    %3104 = vperm.xlu0 %3103, %v2874
    %v3105 = vpop.permute.xlu0 %3104
    %3108 = vset.pattern.permute.xlu0 0
    %3109 = vperm.xlu0 %3108, %v2875
    %v3110 = vpop.permute.xlu0 %3109
    %3113 = vset.pattern.permute.xlu0 0
    %3114 = vperm.xlu0 %3113, %v2876
    %v3115 = vpop.permute.xlu0 %3114
    %3118 = vset.pattern.permute.xlu0 0
    %3119 = vperm.xlu0 %3118, %v2877
    %v3120 = vpop.permute.xlu0 %3119
    %3123 = vset.pattern.permute.xlu0 0
    %3124 = vperm.xlu0 %3123, %v2878
    %v3125 = vpop.permute.xlu0 %3124
    %3128 = vset.pattern.permute.xlu0 0
    %3129 = vperm.xlu0 %3128, %v2879
    %v3130 = vpop.permute.xlu0 %3129
    %3133 = vset.pattern.permute.xlu0 0
    %3134 = vperm.xlu0 %3133, %v2880
    %v3135 = vpop.permute.xlu0 %3134
    %3138 = vset.pattern.permute.xlu0 0
    %3139 = vperm.xlu0 %3138, %v2881
    %v3140 = vpop.permute.xlu0 %3139
    %3143 = vset.pattern.permute.xlu0 0
    %3144 = vperm.xlu0 %3143, %v2882
    %v3145 = vpop.permute.xlu0 %3144
    %3148 = vset.pattern.permute.xlu0 0
    %3149 = vperm.xlu0 %3148, %v2883
    %v3150 = vpop.permute.xlu0 %3149
    %3153 = vset.pattern.permute.xlu0 0
    %3154 = vperm.xlu0 %3153, %v2884
    %v3155 = vpop.permute.xlu0 %3154
    %3158 = vset.pattern.permute.xlu0 0
    %3159 = vperm.xlu0 %3158, %v2885
    %v3160 = vpop.permute.xlu0 %3159
    %3163 = vset.pattern.permute.xlu0 0
    %3164 = vperm.xlu0 %3163, %v2886
    %v3165 = vpop.permute.xlu0 %3164
    %3168 = vset.pattern.permute.xlu0 0
    %3169 = vperm.xlu0 %3168, %v2887
    %v3170 = vpop.permute.xlu0 %3169
    %3173 = vset.pattern.permute.xlu0 0
    %3174 = vperm.xlu0 %3173, %v2888
    %v3175 = vpop.permute.xlu0 %3174
    %3178 = vset.pattern.permute.xlu0 0
    %3179 = vperm.xlu0 %3178, %v2889
    %v3180 = vpop.permute.xlu0 %3179
    %3183 = vset.pattern.permute.xlu0 0
    %3184 = vperm.xlu0 %3183, %v2890
    %v3185 = vpop.permute.xlu0 %3184
    %3188 = vset.pattern.permute.xlu0 0
    %3189 = vperm.xlu0 %3188, %v2891
    %v3190 = vpop.permute.xlu0 %3189
    %3193 = vset.pattern.permute.xlu0 0
    %3194 = vperm.xlu0 %3193, %v2892
    %v3195 = vpop.permute.xlu0 %3194
    %3198 = vset.pattern.permute.xlu0 0
    %3199 = vperm.xlu0 %3198, %v2893
    %v3200 = vpop.permute.xlu0 %3199
    %3203 = vset.pattern.permute.xlu0 0
    %3204 = vperm.xlu0 %3203, %v2894
    %v3205 = vpop.permute.xlu0 %3204
    %3208 = vset.pattern.permute.xlu0 0
    %3209 = vperm.xlu0 %3208, %v2895
    %v3210 = vpop.permute.xlu0 %3209
    %3213 = vset.pattern.permute.xlu0 0
    %3214 = vperm.xlu0 %3213, %v2896
    %v3215 = vpop.permute.xlu0 %3214
    %v3217 = vperm.slane %v266, 5
    %v3218 = vmul.f32 %v2900, %v3217
    %v3219 = vmul.f32 %v2905, %v3217
    %v3220 = vmul.f32 %v2910, %v3217
    %v3221 = vmul.f32 %v2915, %v3217
    %v3222 = vmul.f32 %v2920, %v3217
    %v3223 = vmul.f32 %v2925, %v3217
    %v3224 = vmul.f32 %v2930, %v3217
    %v3225 = vmul.f32 %v2935, %v3217
    %v3226 = vmul.f32 %v2940, %v3217
    %v3227 = vmul.f32 %v2945, %v3217
    %v3228 = vmul.f32 %v2950, %v3217
    %v3229 = vmul.f32 %v2955, %v3217
    %v3230 = vmul.f32 %v2960, %v3217
    %v3231 = vmul.f32 %v2965, %v3217
    %v3232 = vmul.f32 %v2970, %v3217
    %v3233 = vmul.f32 %v2975, %v3217
    %v3234 = vmul.f32 %v2980, %v3217
    %v3235 = vmul.f32 %v2985, %v3217
    %v3236 = vmul.f32 %v2990, %v3217
    %v3237 = vmul.f32 %v2995, %v3217
    %v3238 = vmul.f32 %v3000, %v3217
    %v3239 = vmul.f32 %v3005, %v3217
    %v3240 = vmul.f32 %v3010, %v3217
    %v3241 = vmul.f32 %v3015, %v3217
    %v3242 = vmul.f32 %v3020, %v3217
    %v3243 = vmul.f32 %v3025, %v3217
    %v3244 = vmul.f32 %v3030, %v3217
    %v3245 = vmul.f32 %v3035, %v3217
    %v3246 = vmul.f32 %v3040, %v3217
    %v3247 = vmul.f32 %v3045, %v3217
    %v3248 = vmul.f32 %v3050, %v3217
    %v3249 = vmul.f32 %v3055, %v3217
    %v3250 = vmul.f32 %v3060, %v3217
    %v3251 = vmul.f32 %v3065, %v3217
    %v3252 = vmul.f32 %v3070, %v3217
    %v3253 = vmul.f32 %v3075, %v3217
    %v3254 = vmul.f32 %v3080, %v3217
    %v3255 = vmul.f32 %v3085, %v3217
    %v3256 = vmul.f32 %v3090, %v3217
    %v3257 = vmul.f32 %v3095, %v3217
    %v3258 = vmul.f32 %v3100, %v3217
    %v3259 = vmul.f32 %v3105, %v3217
    %v3260 = vmul.f32 %v3110, %v3217
    %v3261 = vmul.f32 %v3115, %v3217
    %v3262 = vmul.f32 %v3120, %v3217
    %v3263 = vmul.f32 %v3125, %v3217
    %v3264 = vmul.f32 %v3130, %v3217
    %v3265 = vmul.f32 %v3135, %v3217
    %v3266 = vmul.f32 %v3140, %v3217
    %v3267 = vmul.f32 %v3145, %v3217
    %v3268 = vmul.f32 %v3150, %v3217
    %v3269 = vmul.f32 %v3155, %v3217
    %v3270 = vmul.f32 %v3160, %v3217
    %v3271 = vmul.f32 %v3165, %v3217
    %v3272 = vmul.f32 %v3170, %v3217
    %v3273 = vmul.f32 %v3175, %v3217
    %v3274 = vmul.f32 %v3180, %v3217
    %v3275 = vmul.f32 %v3185, %v3217
    %v3276 = vmul.f32 %v3190, %v3217
    %v3277 = vmul.f32 %v3195, %v3217
    %v3278 = vmul.f32 %v3200, %v3217
    %v3279 = vmul.f32 %v3205, %v3217
    %v3280 = vmul.f32 %v3210, %v3217
    %v3281 = vmul.f32 %v3215, %v3217
    %v3282 = vadd.f32 %v2769, %v3218
    %v3283 = vadd.f32 %v2770, %v3219
    %v3284 = vadd.f32 %v2771, %v3220
    %v3285 = vadd.f32 %v2772, %v3221
    %v3286 = vadd.f32 %v2773, %v3222
    %v3287 = vadd.f32 %v2774, %v3223
    %v3288 = vadd.f32 %v2775, %v3224
    %v3289 = vadd.f32 %v2776, %v3225
    %v3290 = vadd.f32 %v2777, %v3226
    %v3291 = vadd.f32 %v2778, %v3227
    %v3292 = vadd.f32 %v2779, %v3228
    %v3293 = vadd.f32 %v2780, %v3229
    %v3294 = vadd.f32 %v2781, %v3230
    %v3295 = vadd.f32 %v2782, %v3231
    %v3296 = vadd.f32 %v2783, %v3232
    %v3297 = vadd.f32 %v2784, %v3233
    %v3298 = vadd.f32 %v2785, %v3234
    %v3299 = vadd.f32 %v2786, %v3235
    %v3300 = vadd.f32 %v2787, %v3236
    %v3301 = vadd.f32 %v2788, %v3237
    %v3302 = vadd.f32 %v2789, %v3238
    %v3303 = vadd.f32 %v2790, %v3239
    %v3304 = vadd.f32 %v2791, %v3240
    %v3305 = vadd.f32 %v2792, %v3241
    %v3306 = vadd.f32 %v2793, %v3242
    %v3307 = vadd.f32 %v2794, %v3243
    %v3308 = vadd.f32 %v2795, %v3244
    %v3309 = vadd.f32 %v2796, %v3245
    %v3310 = vadd.f32 %v2797, %v3246
    %v3311 = vadd.f32 %v2798, %v3247
    %v3312 = vadd.f32 %v2799, %v3248
    %v3313 = vadd.f32 %v2800, %v3249
    %v3314 = vadd.f32 %v2801, %v3250
    %v3315 = vadd.f32 %v2802, %v3251
    %v3316 = vadd.f32 %v2803, %v3252
    %v3317 = vadd.f32 %v2804, %v3253
    %v3318 = vadd.f32 %v2805, %v3254
    %v3319 = vadd.f32 %v2806, %v3255
    %v3320 = vadd.f32 %v2807, %v3256
    %v3321 = vadd.f32 %v2808, %v3257
    %v3322 = vadd.f32 %v2809, %v3258
    %v3323 = vadd.f32 %v2810, %v3259
    %v3324 = vadd.f32 %v2811, %v3260
    %v3325 = vadd.f32 %v2812, %v3261
    %v3326 = vadd.f32 %v2813, %v3262
    %v3327 = vadd.f32 %v2814, %v3263
    %v3328 = vadd.f32 %v2815, %v3264
    %v3329 = vadd.f32 %v2816, %v3265
    %v3330 = vadd.f32 %v2817, %v3266
    %v3331 = vadd.f32 %v2818, %v3267
    %v3332 = vadd.f32 %v2819, %v3268
    %v3333 = vadd.f32 %v2820, %v3269
    %v3334 = vadd.f32 %v2821, %v3270
    %v3335 = vadd.f32 %v2822, %v3271
    %v3336 = vadd.f32 %v2823, %v3272
    %v3337 = vadd.f32 %v2824, %v3273
    %v3338 = vadd.f32 %v2825, %v3274
    %v3339 = vadd.f32 %v2826, %v3275
    %v3340 = vadd.f32 %v2827, %v3276
    %v3341 = vadd.f32 %v2828, %v3277
    %v3342 = vadd.f32 %v2829, %v3278
    %v3343 = vadd.f32 %v2830, %v3279
    %v3344 = vadd.f32 %v2831, %v3280
    %v3345 = vadd.f32 %v2832, %v3281
    %s3346 = scalar_lea.vmem [#allocation2], 48
    %v3347 = vld [vmem:[%s3346] sm:$0xff]
    %v3348 = vld [vmem:[%s3346 + $0x8] sm:$0xff]
    %v3349 = vld [vmem:[%s3346 + $0x18] sm:$0xff]
    %v3350 = vld [vmem:[%s3346 + $0x20] sm:$0xff]
    %v3351 = vld [vmem:[%s3346 + $0x30] sm:$0xff]
    %v3352 = vld [vmem:[%s3346 + $0x38] sm:$0xff]
    %v3353 = vld [vmem:[%s3346 + $0x48] sm:$0xff]
    %v3354 = vld [vmem:[%s3346 + $0x50] sm:$0xff]
    %v3355 = vld [vmem:[%s3346 + $0x60] sm:$0xff]
    %v3356 = vld [vmem:[%s3346 + $0x68] sm:$0xff]
    %v3357 = vld [vmem:[%s3346 + $0x78] sm:$0xff]
    %v3358 = vld [vmem:[%s3346 + $0x80] sm:$0xff]
    %v3359 = vld [vmem:[%s3346 + $0x90] sm:$0xff]
    %v3360 = vld [vmem:[%s3346 + $0x98] sm:$0xff]
    %v3361 = vld [vmem:[%s3346 + $0xa8] sm:$0xff]
    %v3362 = vld [vmem:[%s3346 + $0xb0] sm:$0xff]
    %v3363 = vld [vmem:[%s3346 + $0xc0] sm:$0xff]
    %v3364 = vld [vmem:[%s3346 + $0xc8] sm:$0xff]
    %v3365 = vld [vmem:[%s3346 + $0xd8] sm:$0xff]
    %v3366 = vld [vmem:[%s3346 + $0xe0] sm:$0xff]
    %v3367 = vld [vmem:[%s3346 + $0xf0] sm:$0xff]
    %v3368 = vld [vmem:[%s3346 + $0xf8] sm:$0xff]
    %v3369 = vld [vmem:[%s3346 + $0x108] sm:$0xff]
    %v3370 = vld [vmem:[%s3346 + $0x110] sm:$0xff]
    %v3371 = vld [vmem:[%s3346 + $0x120] sm:$0xff]
    %v3372 = vld [vmem:[%s3346 + $0x128] sm:$0xff]
    %v3373 = vld [vmem:[%s3346 + $0x138] sm:$0xff]
    %v3374 = vld [vmem:[%s3346 + $0x140] sm:$0xff]
    %v3375 = vld [vmem:[%s3346 + $0x150] sm:$0xff]
    %v3376 = vld [vmem:[%s3346 + $0x158] sm:$0xff]
    %v3377 = vld [vmem:[%s3346 + $0x168] sm:$0xff]
    %v3378 = vld [vmem:[%s3346 + $0x170] sm:$0xff]
    %v3379 = vld [vmem:[%s3346 + $0x1b0] sm:$0xff]
    %v3380 = vld [vmem:[%s3346 + $0x1b8] sm:$0xff]
    %v3381 = vld [vmem:[%s3346 + $0x1c8] sm:$0xff]
    %v3382 = vld [vmem:[%s3346 + $0x1d0] sm:$0xff]
    %v3383 = vld [vmem:[%s3346 + $0x1e0] sm:$0xff]
    %v3384 = vld [vmem:[%s3346 + $0x1e8] sm:$0xff]
    %v3385 = vld [vmem:[%s3346 + $0x1f8] sm:$0xff]
    %v3386 = vld [vmem:[%s3346 + $0x200] sm:$0xff]
    %v3387 = vld [vmem:[%s3346 + $0x210] sm:$0xff]
    %v3388 = vld [vmem:[%s3346 + $0x218] sm:$0xff]
    %v3389 = vld [vmem:[%s3346 + $0x228] sm:$0xff]
    %v3390 = vld [vmem:[%s3346 + $0x230] sm:$0xff]
    %v3391 = vld [vmem:[%s3346 + $0x240] sm:$0xff]
    %v3392 = vld [vmem:[%s3346 + $0x248] sm:$0xff]
    %v3393 = vld [vmem:[%s3346 + $0x258] sm:$0xff]
    %v3394 = vld [vmem:[%s3346 + $0x260] sm:$0xff]
    %v3395 = vld [vmem:[%s3346 + $0x270] sm:$0xff]
    %v3396 = vld [vmem:[%s3346 + $0x278] sm:$0xff]
    %v3397 = vld [vmem:[%s3346 + $0x288] sm:$0xff]
    %v3398 = vld [vmem:[%s3346 + $0x290] sm:$0xff]
    %v3399 = vld [vmem:[%s3346 + $0x2a0] sm:$0xff]
    %v3400 = vld [vmem:[%s3346 + $0x2a8] sm:$0xff]
    %v3401 = vld [vmem:[%s3346 + $0x2b8] sm:$0xff]
    %v3402 = vld [vmem:[%s3346 + $0x2c0] sm:$0xff]
    %v3403 = vld [vmem:[%s3346 + $0x2d0] sm:$0xff]
    %v3404 = vld [vmem:[%s3346 + $0x2d8] sm:$0xff]
    %v3405 = vld [vmem:[%s3346 + $0x2e8] sm:$0xff]
    %v3406 = vld [vmem:[%s3346 + $0x2f0] sm:$0xff]
    %v3407 = vld [vmem:[%s3346 + $0x300] sm:$0xff]
    %v3408 = vld [vmem:[%s3346 + $0x308] sm:$0xff]
    %v3409 = vld [vmem:[%s3346 + $0x318] sm:$0xff]
    %v3410 = vld [vmem:[%s3346 + $0x320] sm:$0xff]
    %3412 = vset.pattern.permute.xlu0 0
    %3413 = vperm.xlu0 %3412, %v3347
    %v3414 = vpop.permute.xlu0 %3413
    %3417 = vset.pattern.permute.xlu0 0
    %3418 = vperm.xlu0 %3417, %v3348
    %v3419 = vpop.permute.xlu0 %3418
    %3422 = vset.pattern.permute.xlu0 0
    %3423 = vperm.xlu0 %3422, %v3349
    %v3424 = vpop.permute.xlu0 %3423
    %3427 = vset.pattern.permute.xlu0 0
    %3428 = vperm.xlu0 %3427, %v3350
    %v3429 = vpop.permute.xlu0 %3428
    %3432 = vset.pattern.permute.xlu0 0
    %3433 = vperm.xlu0 %3432, %v3351
    %v3434 = vpop.permute.xlu0 %3433
    %3437 = vset.pattern.permute.xlu0 0
    %3438 = vperm.xlu0 %3437, %v3352
    %v3439 = vpop.permute.xlu0 %3438
    %3442 = vset.pattern.permute.xlu0 0
    %3443 = vperm.xlu0 %3442, %v3353
    %v3444 = vpop.permute.xlu0 %3443
    %3447 = vset.pattern.permute.xlu0 0
    %3448 = vperm.xlu0 %3447, %v3354
    %v3449 = vpop.permute.xlu0 %3448
    %3452 = vset.pattern.permute.xlu0 0
    %3453 = vperm.xlu0 %3452, %v3355
    %v3454 = vpop.permute.xlu0 %3453
    %3457 = vset.pattern.permute.xlu0 0
    %3458 = vperm.xlu0 %3457, %v3356
    %v3459 = vpop.permute.xlu0 %3458
    %3462 = vset.pattern.permute.xlu0 0
    %3463 = vperm.xlu0 %3462, %v3357
    %v3464 = vpop.permute.xlu0 %3463
    %3467 = vset.pattern.permute.xlu0 0
    %3468 = vperm.xlu0 %3467, %v3358
    %v3469 = vpop.permute.xlu0 %3468
    %3472 = vset.pattern.permute.xlu0 0
    %3473 = vperm.xlu0 %3472, %v3359
    %v3474 = vpop.permute.xlu0 %3473
    %3477 = vset.pattern.permute.xlu0 0
    %3478 = vperm.xlu0 %3477, %v3360
    %v3479 = vpop.permute.xlu0 %3478
    %3482 = vset.pattern.permute.xlu0 0
    %3483 = vperm.xlu0 %3482, %v3361
    %v3484 = vpop.permute.xlu0 %3483
    %3487 = vset.pattern.permute.xlu0 0
    %3488 = vperm.xlu0 %3487, %v3362
    %v3489 = vpop.permute.xlu0 %3488
    %3492 = vset.pattern.permute.xlu0 0
    %3493 = vperm.xlu0 %3492, %v3363
    %v3494 = vpop.permute.xlu0 %3493
    %3497 = vset.pattern.permute.xlu0 0
    %3498 = vperm.xlu0 %3497, %v3364
    %v3499 = vpop.permute.xlu0 %3498
    %3502 = vset.pattern.permute.xlu0 0
    %3503 = vperm.xlu0 %3502, %v3365
    %v3504 = vpop.permute.xlu0 %3503
    %3507 = vset.pattern.permute.xlu0 0
    %3508 = vperm.xlu0 %3507, %v3366
    %v3509 = vpop.permute.xlu0 %3508
    %3512 = vset.pattern.permute.xlu0 0
    %3513 = vperm.xlu0 %3512, %v3367
    %v3514 = vpop.permute.xlu0 %3513
    %3517 = vset.pattern.permute.xlu0 0
    %3518 = vperm.xlu0 %3517, %v3368
    %v3519 = vpop.permute.xlu0 %3518
    %3522 = vset.pattern.permute.xlu0 0
    %3523 = vperm.xlu0 %3522, %v3369
    %v3524 = vpop.permute.xlu0 %3523
    %3527 = vset.pattern.permute.xlu0 0
    %3528 = vperm.xlu0 %3527, %v3370
    %v3529 = vpop.permute.xlu0 %3528
    %3532 = vset.pattern.permute.xlu0 0
    %3533 = vperm.xlu0 %3532, %v3371
    %v3534 = vpop.permute.xlu0 %3533
    %3537 = vset.pattern.permute.xlu0 0
    %3538 = vperm.xlu0 %3537, %v3372
    %v3539 = vpop.permute.xlu0 %3538
    %3542 = vset.pattern.permute.xlu0 0
    %3543 = vperm.xlu0 %3542, %v3373
    %v3544 = vpop.permute.xlu0 %3543
    %3547 = vset.pattern.permute.xlu0 0
    %3548 = vperm.xlu0 %3547, %v3374
    %v3549 = vpop.permute.xlu0 %3548
    %3552 = vset.pattern.permute.xlu0 0
    %3553 = vperm.xlu0 %3552, %v3375
    %v3554 = vpop.permute.xlu0 %3553
    %3557 = vset.pattern.permute.xlu0 0
    %3558 = vperm.xlu0 %3557, %v3376
    %v3559 = vpop.permute.xlu0 %3558
    %3562 = vset.pattern.permute.xlu0 0
    %3563 = vperm.xlu0 %3562, %v3377
    %v3564 = vpop.permute.xlu0 %3563
    %3567 = vset.pattern.permute.xlu0 0
    %3568 = vperm.xlu0 %3567, %v3378
    %v3569 = vpop.permute.xlu0 %3568
    %3572 = vset.pattern.permute.xlu0 0
    %3573 = vperm.xlu0 %3572, %v3379
    %v3574 = vpop.permute.xlu0 %3573
    %3577 = vset.pattern.permute.xlu0 0
    %3578 = vperm.xlu0 %3577, %v3380
    %v3579 = vpop.permute.xlu0 %3578
    %3582 = vset.pattern.permute.xlu0 0
    %3583 = vperm.xlu0 %3582, %v3381
    %v3584 = vpop.permute.xlu0 %3583
    %3587 = vset.pattern.permute.xlu0 0
    %3588 = vperm.xlu0 %3587, %v3382
    %v3589 = vpop.permute.xlu0 %3588
    %3592 = vset.pattern.permute.xlu0 0
    %3593 = vperm.xlu0 %3592, %v3383
    %v3594 = vpop.permute.xlu0 %3593
    %3597 = vset.pattern.permute.xlu0 0
    %3598 = vperm.xlu0 %3597, %v3384
    %v3599 = vpop.permute.xlu0 %3598
    %3602 = vset.pattern.permute.xlu0 0
    %3603 = vperm.xlu0 %3602, %v3385
    %v3604 = vpop.permute.xlu0 %3603
    %3607 = vset.pattern.permute.xlu0 0
    %3608 = vperm.xlu0 %3607, %v3386
    %v3609 = vpop.permute.xlu0 %3608
    %3612 = vset.pattern.permute.xlu0 0
    %3613 = vperm.xlu0 %3612, %v3387
    %v3614 = vpop.permute.xlu0 %3613
    %3617 = vset.pattern.permute.xlu0 0
    %3618 = vperm.xlu0 %3617, %v3388
    %v3619 = vpop.permute.xlu0 %3618
    %3622 = vset.pattern.permute.xlu0 0
    %3623 = vperm.xlu0 %3622, %v3389
    %v3624 = vpop.permute.xlu0 %3623
    %3627 = vset.pattern.permute.xlu0 0
    %3628 = vperm.xlu0 %3627, %v3390
    %v3629 = vpop.permute.xlu0 %3628
    %3632 = vset.pattern.permute.xlu0 0
    %3633 = vperm.xlu0 %3632, %v3391
    %v3634 = vpop.permute.xlu0 %3633
    %3637 = vset.pattern.permute.xlu0 0
    %3638 = vperm.xlu0 %3637, %v3392
    %v3639 = vpop.permute.xlu0 %3638
    %3642 = vset.pattern.permute.xlu0 0
    %3643 = vperm.xlu0 %3642, %v3393
    %v3644 = vpop.permute.xlu0 %3643
    %3647 = vset.pattern.permute.xlu0 0
    %3648 = vperm.xlu0 %3647, %v3394
    %v3649 = vpop.permute.xlu0 %3648
    %3652 = vset.pattern.permute.xlu0 0
    %3653 = vperm.xlu0 %3652, %v3395
    %v3654 = vpop.permute.xlu0 %3653
    %3657 = vset.pattern.permute.xlu0 0
    %3658 = vperm.xlu0 %3657, %v3396
    %v3659 = vpop.permute.xlu0 %3658
    %3662 = vset.pattern.permute.xlu0 0
    %3663 = vperm.xlu0 %3662, %v3397
    %v3664 = vpop.permute.xlu0 %3663
    %3667 = vset.pattern.permute.xlu0 0
    %3668 = vperm.xlu0 %3667, %v3398
    %v3669 = vpop.permute.xlu0 %3668
    %3672 = vset.pattern.permute.xlu0 0
    %3673 = vperm.xlu0 %3672, %v3399
    %v3674 = vpop.permute.xlu0 %3673
    %3677 = vset.pattern.permute.xlu0 0
    %3678 = vperm.xlu0 %3677, %v3400
    %v3679 = vpop.permute.xlu0 %3678
    %3682 = vset.pattern.permute.xlu0 0
    %3683 = vperm.xlu0 %3682, %v3401
    %v3684 = vpop.permute.xlu0 %3683
    %3687 = vset.pattern.permute.xlu0 0
    %3688 = vperm.xlu0 %3687, %v3402
    %v3689 = vpop.permute.xlu0 %3688
    %3692 = vset.pattern.permute.xlu0 0
    %3693 = vperm.xlu0 %3692, %v3403
    %v3694 = vpop.permute.xlu0 %3693
    %3697 = vset.pattern.permute.xlu0 0
    %3698 = vperm.xlu0 %3697, %v3404
    %v3699 = vpop.permute.xlu0 %3698
    %3702 = vset.pattern.permute.xlu0 0
    %3703 = vperm.xlu0 %3702, %v3405
    %v3704 = vpop.permute.xlu0 %3703
    %3707 = vset.pattern.permute.xlu0 0
    %3708 = vperm.xlu0 %3707, %v3406
    %v3709 = vpop.permute.xlu0 %3708
    %3712 = vset.pattern.permute.xlu0 0
    %3713 = vperm.xlu0 %3712, %v3407
    %v3714 = vpop.permute.xlu0 %3713
    %3717 = vset.pattern.permute.xlu0 0
    %3718 = vperm.xlu0 %3717, %v3408
    %v3719 = vpop.permute.xlu0 %3718
    %3722 = vset.pattern.permute.xlu0 0
    %3723 = vperm.xlu0 %3722, %v3409
    %v3724 = vpop.permute.xlu0 %3723
    %3727 = vset.pattern.permute.xlu0 0
    %3728 = vperm.xlu0 %3727, %v3410
    %v3729 = vpop.permute.xlu0 %3728
    %v3731 = vperm.slane %v266, 6
    %v3732 = vmul.f32 %v3414, %v3731
    %v3733 = vmul.f32 %v3419, %v3731
    %v3734 = vmul.f32 %v3424, %v3731
    %v3735 = vmul.f32 %v3429, %v3731
    %v3736 = vmul.f32 %v3434, %v3731
    %v3737 = vmul.f32 %v3439, %v3731
    %v3738 = vmul.f32 %v3444, %v3731
    %v3739 = vmul.f32 %v3449, %v3731
    %v3740 = vmul.f32 %v3454, %v3731
    %v3741 = vmul.f32 %v3459, %v3731
    %v3742 = vmul.f32 %v3464, %v3731
    %v3743 = vmul.f32 %v3469, %v3731
    %v3744 = vmul.f32 %v3474, %v3731
    %v3745 = vmul.f32 %v3479, %v3731
    %v3746 = vmul.f32 %v3484, %v3731
    %v3747 = vmul.f32 %v3489, %v3731
    %v3748 = vmul.f32 %v3494, %v3731
    %v3749 = vmul.f32 %v3499, %v3731
    %v3750 = vmul.f32 %v3504, %v3731
    %v3751 = vmul.f32 %v3509, %v3731
    %v3752 = vmul.f32 %v3514, %v3731
    %v3753 = vmul.f32 %v3519, %v3731
    %v3754 = vmul.f32 %v3524, %v3731
    %v3755 = vmul.f32 %v3529, %v3731
    %v3756 = vmul.f32 %v3534, %v3731
    %v3757 = vmul.f32 %v3539, %v3731
    %v3758 = vmul.f32 %v3544, %v3731
    %v3759 = vmul.f32 %v3549, %v3731
    %v3760 = vmul.f32 %v3554, %v3731
    %v3761 = vmul.f32 %v3559, %v3731
    %v3762 = vmul.f32 %v3564, %v3731
    %v3763 = vmul.f32 %v3569, %v3731
    %v3764 = vmul.f32 %v3574, %v3731
    %v3765 = vmul.f32 %v3579, %v3731
    %v3766 = vmul.f32 %v3584, %v3731
    %v3767 = vmul.f32 %v3589, %v3731
    %v3768 = vmul.f32 %v3594, %v3731
    %v3769 = vmul.f32 %v3599, %v3731
    %v3770 = vmul.f32 %v3604, %v3731
    %v3771 = vmul.f32 %v3609, %v3731
    %v3772 = vmul.f32 %v3614, %v3731
    %v3773 = vmul.f32 %v3619, %v3731
    %v3774 = vmul.f32 %v3624, %v3731
    %v3775 = vmul.f32 %v3629, %v3731
    %v3776 = vmul.f32 %v3634, %v3731
    %v3777 = vmul.f32 %v3639, %v3731
    %v3778 = vmul.f32 %v3644, %v3731
    %v3779 = vmul.f32 %v3649, %v3731
    %v3780 = vmul.f32 %v3654, %v3731
    %v3781 = vmul.f32 %v3659, %v3731
    %v3782 = vmul.f32 %v3664, %v3731
    %v3783 = vmul.f32 %v3669, %v3731
    %v3784 = vmul.f32 %v3674, %v3731
    %v3785 = vmul.f32 %v3679, %v3731
    %v3786 = vmul.f32 %v3684, %v3731
    %v3787 = vmul.f32 %v3689, %v3731
    %v3788 = vmul.f32 %v3694, %v3731
    %v3789 = vmul.f32 %v3699, %v3731
    %v3790 = vmul.f32 %v3704, %v3731
    %v3791 = vmul.f32 %v3709, %v3731
    %v3792 = vmul.f32 %v3714, %v3731
    %v3793 = vmul.f32 %v3719, %v3731
    %v3794 = vmul.f32 %v3724, %v3731
    %v3795 = vmul.f32 %v3729, %v3731
    %v3796 = vadd.f32 %v3282, %v3732
    %v3797 = vadd.f32 %v3283, %v3733
    %v3798 = vadd.f32 %v3284, %v3734
    %v3799 = vadd.f32 %v3285, %v3735
    %v3800 = vadd.f32 %v3286, %v3736
    %v3801 = vadd.f32 %v3287, %v3737
    %v3802 = vadd.f32 %v3288, %v3738
    %v3803 = vadd.f32 %v3289, %v3739
    %v3804 = vadd.f32 %v3290, %v3740
    %v3805 = vadd.f32 %v3291, %v3741
    %v3806 = vadd.f32 %v3292, %v3742
    %v3807 = vadd.f32 %v3293, %v3743
    %v3808 = vadd.f32 %v3294, %v3744
    %v3809 = vadd.f32 %v3295, %v3745
    %v3810 = vadd.f32 %v3296, %v3746
    %v3811 = vadd.f32 %v3297, %v3747
    %v3812 = vadd.f32 %v3298, %v3748
    %v3813 = vadd.f32 %v3299, %v3749
    %v3814 = vadd.f32 %v3300, %v3750
    %v3815 = vadd.f32 %v3301, %v3751
    %v3816 = vadd.f32 %v3302, %v3752
    %v3817 = vadd.f32 %v3303, %v3753
    %v3818 = vadd.f32 %v3304, %v3754
    %v3819 = vadd.f32 %v3305, %v3755
    %v3820 = vadd.f32 %v3306, %v3756
    %v3821 = vadd.f32 %v3307, %v3757
    %v3822 = vadd.f32 %v3308, %v3758
    %v3823 = vadd.f32 %v3309, %v3759
    %v3824 = vadd.f32 %v3310, %v3760
    %v3825 = vadd.f32 %v3311, %v3761
    %v3826 = vadd.f32 %v3312, %v3762
    %v3827 = vadd.f32 %v3313, %v3763
    %v3828 = vadd.f32 %v3314, %v3764
    %v3829 = vadd.f32 %v3315, %v3765
    %v3830 = vadd.f32 %v3316, %v3766
    %v3831 = vadd.f32 %v3317, %v3767
    %v3832 = vadd.f32 %v3318, %v3768
    %v3833 = vadd.f32 %v3319, %v3769
    %v3834 = vadd.f32 %v3320, %v3770
    %v3835 = vadd.f32 %v3321, %v3771
    %v3836 = vadd.f32 %v3322, %v3772
    %v3837 = vadd.f32 %v3323, %v3773
    %v3838 = vadd.f32 %v3324, %v3774
    %v3839 = vadd.f32 %v3325, %v3775
    %v3840 = vadd.f32 %v3326, %v3776
    %v3841 = vadd.f32 %v3327, %v3777
    %v3842 = vadd.f32 %v3328, %v3778
    %v3843 = vadd.f32 %v3329, %v3779
    %v3844 = vadd.f32 %v3330, %v3780
    %v3845 = vadd.f32 %v3331, %v3781
    %v3846 = vadd.f32 %v3332, %v3782
    %v3847 = vadd.f32 %v3333, %v3783
    %v3848 = vadd.f32 %v3334, %v3784
    %v3849 = vadd.f32 %v3335, %v3785
    %v3850 = vadd.f32 %v3336, %v3786
    %v3851 = vadd.f32 %v3337, %v3787
    %v3852 = vadd.f32 %v3338, %v3788
    %v3853 = vadd.f32 %v3339, %v3789
    %v3854 = vadd.f32 %v3340, %v3790
    %v3855 = vadd.f32 %v3341, %v3791
    %v3856 = vadd.f32 %v3342, %v3792
    %v3857 = vadd.f32 %v3343, %v3793
    %v3858 = vadd.f32 %v3344, %v3794
    %v3859 = vadd.f32 %v3345, %v3795
    %v3860 = vld [vmem:[%s3346 + $0x1] sm:$0xff]
    %v3861 = vld [vmem:[%s3346 + $0x9] sm:$0xff]
    %v3862 = vld [vmem:[%s3346 + $0x19] sm:$0xff]
    %v3863 = vld [vmem:[%s3346 + $0x21] sm:$0xff]
    %v3864 = vld [vmem:[%s3346 + $0x31] sm:$0xff]
    %v3865 = vld [vmem:[%s3346 + $0x39] sm:$0xff]
    %v3866 = vld [vmem:[%s3346 + $0x49] sm:$0xff]
    %v3867 = vld [vmem:[%s3346 + $0x51] sm:$0xff]
    %v3868 = vld [vmem:[%s3346 + $0x61] sm:$0xff]
    %v3869 = vld [vmem:[%s3346 + $0x69] sm:$0xff]
    %v3870 = vld [vmem:[%s3346 + $0x79] sm:$0xff]
    %v3871 = vld [vmem:[%s3346 + $0x81] sm:$0xff]
    %v3872 = vld [vmem:[%s3346 + $0x91] sm:$0xff]
    %v3873 = vld [vmem:[%s3346 + $0x99] sm:$0xff]
    %v3874 = vld [vmem:[%s3346 + $0xa9] sm:$0xff]
    %v3875 = vld [vmem:[%s3346 + $0xb1] sm:$0xff]
    %v3876 = vld [vmem:[%s3346 + $0xc1] sm:$0xff]
    %v3877 = vld [vmem:[%s3346 + $0xc9] sm:$0xff]
    %v3878 = vld [vmem:[%s3346 + $0xd9] sm:$0xff]
    %v3879 = vld [vmem:[%s3346 + $0xe1] sm:$0xff]
    %v3880 = vld [vmem:[%s3346 + $0xf1] sm:$0xff]
    %v3881 = vld [vmem:[%s3346 + $0xf9] sm:$0xff]
    %v3882 = vld [vmem:[%s3346 + $0x109] sm:$0xff]
    %v3883 = vld [vmem:[%s3346 + $0x111] sm:$0xff]
    %v3884 = vld [vmem:[%s3346 + $0x121] sm:$0xff]
    %v3885 = vld [vmem:[%s3346 + $0x129] sm:$0xff]
    %v3886 = vld [vmem:[%s3346 + $0x139] sm:$0xff]
    %v3887 = vld [vmem:[%s3346 + $0x141] sm:$0xff]
    %v3888 = vld [vmem:[%s3346 + $0x151] sm:$0xff]
    %v3889 = vld [vmem:[%s3346 + $0x159] sm:$0xff]
    %v3890 = vld [vmem:[%s3346 + $0x169] sm:$0xff]
    %v3891 = vld [vmem:[%s3346 + $0x171] sm:$0xff]
    %v3892 = vld [vmem:[%s3346 + $0x1b1] sm:$0xff]
    %v3893 = vld [vmem:[%s3346 + $0x1b9] sm:$0xff]
    %v3894 = vld [vmem:[%s3346 + $0x1c9] sm:$0xff]
    %v3895 = vld [vmem:[%s3346 + $0x1d1] sm:$0xff]
    %v3896 = vld [vmem:[%s3346 + $0x1e1] sm:$0xff]
    %v3897 = vld [vmem:[%s3346 + $0x1e9] sm:$0xff]
    %v3898 = vld [vmem:[%s3346 + $0x1f9] sm:$0xff]
    %v3899 = vld [vmem:[%s3346 + $0x201] sm:$0xff]
    %v3900 = vld [vmem:[%s3346 + $0x211] sm:$0xff]
    %v3901 = vld [vmem:[%s3346 + $0x219] sm:$0xff]
    %v3902 = vld [vmem:[%s3346 + $0x229] sm:$0xff]
    %v3903 = vld [vmem:[%s3346 + $0x231] sm:$0xff]
    %v3904 = vld [vmem:[%s3346 + $0x241] sm:$0xff]
    %v3905 = vld [vmem:[%s3346 + $0x249] sm:$0xff]
    %v3906 = vld [vmem:[%s3346 + $0x259] sm:$0xff]
    %v3907 = vld [vmem:[%s3346 + $0x261] sm:$0xff]
    %v3908 = vld [vmem:[%s3346 + $0x271] sm:$0xff]
    %v3909 = vld [vmem:[%s3346 + $0x279] sm:$0xff]
    %v3910 = vld [vmem:[%s3346 + $0x289] sm:$0xff]
    %v3911 = vld [vmem:[%s3346 + $0x291] sm:$0xff]
    %v3912 = vld [vmem:[%s3346 + $0x2a1] sm:$0xff]
    %v3913 = vld [vmem:[%s3346 + $0x2a9] sm:$0xff]
    %v3914 = vld [vmem:[%s3346 + $0x2b9] sm:$0xff]
    %v3915 = vld [vmem:[%s3346 + $0x2c1] sm:$0xff]
    %v3916 = vld [vmem:[%s3346 + $0x2d1] sm:$0xff]
    %v3917 = vld [vmem:[%s3346 + $0x2d9] sm:$0xff]
    %v3918 = vld [vmem:[%s3346 + $0x2e9] sm:$0xff]
    %v3919 = vld [vmem:[%s3346 + $0x2f1] sm:$0xff]
    %v3920 = vld [vmem:[%s3346 + $0x301] sm:$0xff]
    %v3921 = vld [vmem:[%s3346 + $0x309] sm:$0xff]
    %v3922 = vld [vmem:[%s3346 + $0x319] sm:$0xff]
    %v3923 = vld [vmem:[%s3346 + $0x321] sm:$0xff]
    %3925 = vset.pattern.permute.xlu0 0
    %3926 = vperm.xlu0 %3925, %v3860
    %v3927 = vpop.permute.xlu0 %3926
    %3930 = vset.pattern.permute.xlu0 0
    %3931 = vperm.xlu0 %3930, %v3861
    %v3932 = vpop.permute.xlu0 %3931
    %3935 = vset.pattern.permute.xlu0 0
    %3936 = vperm.xlu0 %3935, %v3862
    %v3937 = vpop.permute.xlu0 %3936
    %3940 = vset.pattern.permute.xlu0 0
    %3941 = vperm.xlu0 %3940, %v3863
    %v3942 = vpop.permute.xlu0 %3941
    %3945 = vset.pattern.permute.xlu0 0
    %3946 = vperm.xlu0 %3945, %v3864
    %v3947 = vpop.permute.xlu0 %3946
    %3950 = vset.pattern.permute.xlu0 0
    %3951 = vperm.xlu0 %3950, %v3865
    %v3952 = vpop.permute.xlu0 %3951
    %3955 = vset.pattern.permute.xlu0 0
    %3956 = vperm.xlu0 %3955, %v3866
    %v3957 = vpop.permute.xlu0 %3956
    %3960 = vset.pattern.permute.xlu0 0
    %3961 = vperm.xlu0 %3960, %v3867
    %v3962 = vpop.permute.xlu0 %3961
    %3965 = vset.pattern.permute.xlu0 0
    %3966 = vperm.xlu0 %3965, %v3868
    %v3967 = vpop.permute.xlu0 %3966
    %3970 = vset.pattern.permute.xlu0 0
    %3971 = vperm.xlu0 %3970, %v3869
    %v3972 = vpop.permute.xlu0 %3971
    %3975 = vset.pattern.permute.xlu0 0
    %3976 = vperm.xlu0 %3975, %v3870
    %v3977 = vpop.permute.xlu0 %3976
    %3980 = vset.pattern.permute.xlu0 0
    %3981 = vperm.xlu0 %3980, %v3871
    %v3982 = vpop.permute.xlu0 %3981
    %3985 = vset.pattern.permute.xlu0 0
    %3986 = vperm.xlu0 %3985, %v3872
    %v3987 = vpop.permute.xlu0 %3986
    %3990 = vset.pattern.permute.xlu0 0
    %3991 = vperm.xlu0 %3990, %v3873
    %v3992 = vpop.permute.xlu0 %3991
    %3995 = vset.pattern.permute.xlu0 0
    %3996 = vperm.xlu0 %3995, %v3874
    %v3997 = vpop.permute.xlu0 %3996
    %4000 = vset.pattern.permute.xlu0 0
    %4001 = vperm.xlu0 %4000, %v3875
    %v4002 = vpop.permute.xlu0 %4001
    %4005 = vset.pattern.permute.xlu0 0
    %4006 = vperm.xlu0 %4005, %v3876
    %v4007 = vpop.permute.xlu0 %4006
    %4010 = vset.pattern.permute.xlu0 0
    %4011 = vperm.xlu0 %4010, %v3877
    %v4012 = vpop.permute.xlu0 %4011
    %4015 = vset.pattern.permute.xlu0 0
    %4016 = vperm.xlu0 %4015, %v3878
    %v4017 = vpop.permute.xlu0 %4016
    %4020 = vset.pattern.permute.xlu0 0
    %4021 = vperm.xlu0 %4020, %v3879
    %v4022 = vpop.permute.xlu0 %4021
    %4025 = vset.pattern.permute.xlu0 0
    %4026 = vperm.xlu0 %4025, %v3880
    %v4027 = vpop.permute.xlu0 %4026
    %4030 = vset.pattern.permute.xlu0 0
    %4031 = vperm.xlu0 %4030, %v3881
    %v4032 = vpop.permute.xlu0 %4031
    %4035 = vset.pattern.permute.xlu0 0
    %4036 = vperm.xlu0 %4035, %v3882
    %v4037 = vpop.permute.xlu0 %4036
    %4040 = vset.pattern.permute.xlu0 0
    %4041 = vperm.xlu0 %4040, %v3883
    %v4042 = vpop.permute.xlu0 %4041
    %4045 = vset.pattern.permute.xlu0 0
    %4046 = vperm.xlu0 %4045, %v3884
    %v4047 = vpop.permute.xlu0 %4046
    %4050 = vset.pattern.permute.xlu0 0
    %4051 = vperm.xlu0 %4050, %v3885
    %v4052 = vpop.permute.xlu0 %4051
    %4055 = vset.pattern.permute.xlu0 0
    %4056 = vperm.xlu0 %4055, %v3886
    %v4057 = vpop.permute.xlu0 %4056
    %4060 = vset.pattern.permute.xlu0 0
    %4061 = vperm.xlu0 %4060, %v3887
    %v4062 = vpop.permute.xlu0 %4061
    %4065 = vset.pattern.permute.xlu0 0
    %4066 = vperm.xlu0 %4065, %v3888
    %v4067 = vpop.permute.xlu0 %4066
    %4070 = vset.pattern.permute.xlu0 0
    %4071 = vperm.xlu0 %4070, %v3889
    %v4072 = vpop.permute.xlu0 %4071
    %4075 = vset.pattern.permute.xlu0 0
    %4076 = vperm.xlu0 %4075, %v3890
    %v4077 = vpop.permute.xlu0 %4076
    %4080 = vset.pattern.permute.xlu0 0
    %4081 = vperm.xlu0 %4080, %v3891
    %v4082 = vpop.permute.xlu0 %4081
    %4085 = vset.pattern.permute.xlu0 0
    %4086 = vperm.xlu0 %4085, %v3892
    %v4087 = vpop.permute.xlu0 %4086
    %4090 = vset.pattern.permute.xlu0 0
    %4091 = vperm.xlu0 %4090, %v3893
    %v4092 = vpop.permute.xlu0 %4091
    %4095 = vset.pattern.permute.xlu0 0
    %4096 = vperm.xlu0 %4095, %v3894
    %v4097 = vpop.permute.xlu0 %4096
    %4100 = vset.pattern.permute.xlu0 0
    %4101 = vperm.xlu0 %4100, %v3895
    %v4102 = vpop.permute.xlu0 %4101
    %4105 = vset.pattern.permute.xlu0 0
    %4106 = vperm.xlu0 %4105, %v3896
    %v4107 = vpop.permute.xlu0 %4106
    %4110 = vset.pattern.permute.xlu0 0
    %4111 = vperm.xlu0 %4110, %v3897
    %v4112 = vpop.permute.xlu0 %4111
    %4115 = vset.pattern.permute.xlu0 0
    %4116 = vperm.xlu0 %4115, %v3898
    %v4117 = vpop.permute.xlu0 %4116
    %4120 = vset.pattern.permute.xlu0 0
    %4121 = vperm.xlu0 %4120, %v3899
    %v4122 = vpop.permute.xlu0 %4121
    %4125 = vset.pattern.permute.xlu0 0
    %4126 = vperm.xlu0 %4125, %v3900
    %v4127 = vpop.permute.xlu0 %4126
    %4130 = vset.pattern.permute.xlu0 0
    %4131 = vperm.xlu0 %4130, %v3901
    %v4132 = vpop.permute.xlu0 %4131
    %4135 = vset.pattern.permute.xlu0 0
    %4136 = vperm.xlu0 %4135, %v3902
    %v4137 = vpop.permute.xlu0 %4136
    %4140 = vset.pattern.permute.xlu0 0
    %4141 = vperm.xlu0 %4140, %v3903
    %v4142 = vpop.permute.xlu0 %4141
    %4145 = vset.pattern.permute.xlu0 0
    %4146 = vperm.xlu0 %4145, %v3904
    %v4147 = vpop.permute.xlu0 %4146
    %4150 = vset.pattern.permute.xlu0 0
    %4151 = vperm.xlu0 %4150, %v3905
    %v4152 = vpop.permute.xlu0 %4151
    %4155 = vset.pattern.permute.xlu0 0
    %4156 = vperm.xlu0 %4155, %v3906
    %v4157 = vpop.permute.xlu0 %4156
    %4160 = vset.pattern.permute.xlu0 0
    %4161 = vperm.xlu0 %4160, %v3907
    %v4162 = vpop.permute.xlu0 %4161
    %4165 = vset.pattern.permute.xlu0 0
    %4166 = vperm.xlu0 %4165, %v3908
    %v4167 = vpop.permute.xlu0 %4166
    %4170 = vset.pattern.permute.xlu0 0
    %4171 = vperm.xlu0 %4170, %v3909
    %v4172 = vpop.permute.xlu0 %4171
    %4175 = vset.pattern.permute.xlu0 0
    %4176 = vperm.xlu0 %4175, %v3910
    %v4177 = vpop.permute.xlu0 %4176
    %4180 = vset.pattern.permute.xlu0 0
    %4181 = vperm.xlu0 %4180, %v3911
    %v4182 = vpop.permute.xlu0 %4181
    %4185 = vset.pattern.permute.xlu0 0
    %4186 = vperm.xlu0 %4185, %v3912
    %v4187 = vpop.permute.xlu0 %4186
    %4190 = vset.pattern.permute.xlu0 0
    %4191 = vperm.xlu0 %4190, %v3913
    %v4192 = vpop.permute.xlu0 %4191
    %4195 = vset.pattern.permute.xlu0 0
    %4196 = vperm.xlu0 %4195, %v3914
    %v4197 = vpop.permute.xlu0 %4196
    %4200 = vset.pattern.permute.xlu0 0
    %4201 = vperm.xlu0 %4200, %v3915
    %v4202 = vpop.permute.xlu0 %4201
    %4205 = vset.pattern.permute.xlu0 0
    %4206 = vperm.xlu0 %4205, %v3916
    %v4207 = vpop.permute.xlu0 %4206
    %4210 = vset.pattern.permute.xlu0 0
    %4211 = vperm.xlu0 %4210, %v3917
    %v4212 = vpop.permute.xlu0 %4211
    %4215 = vset.pattern.permute.xlu0 0
    %4216 = vperm.xlu0 %4215, %v3918
    %v4217 = vpop.permute.xlu0 %4216
    %4220 = vset.pattern.permute.xlu0 0
    %4221 = vperm.xlu0 %4220, %v3919
    %v4222 = vpop.permute.xlu0 %4221
    %4225 = vset.pattern.permute.xlu0 0
    %4226 = vperm.xlu0 %4225, %v3920
    %v4227 = vpop.permute.xlu0 %4226
    %4230 = vset.pattern.permute.xlu0 0
    %4231 = vperm.xlu0 %4230, %v3921
    %v4232 = vpop.permute.xlu0 %4231
    %4235 = vset.pattern.permute.xlu0 0
    %4236 = vperm.xlu0 %4235, %v3922
    %v4237 = vpop.permute.xlu0 %4236
    %4240 = vset.pattern.permute.xlu0 0
    %4241 = vperm.xlu0 %4240, %v3923
    %v4242 = vpop.permute.xlu0 %4241
    %v4244 = vperm.slane %v266, 7
    %v4245 = vmul.f32 %v3927, %v4244
    %v4246 = vmul.f32 %v3932, %v4244
    %v4247 = vmul.f32 %v3937, %v4244
    %v4248 = vmul.f32 %v3942, %v4244
    %v4249 = vmul.f32 %v3947, %v4244
    %v4250 = vmul.f32 %v3952, %v4244
    %v4251 = vmul.f32 %v3957, %v4244
    %v4252 = vmul.f32 %v3962, %v4244
    %v4253 = vmul.f32 %v3967, %v4244
    %v4254 = vmul.f32 %v3972, %v4244
    %v4255 = vmul.f32 %v3977, %v4244
    %v4256 = vmul.f32 %v3982, %v4244
    %v4257 = vmul.f32 %v3987, %v4244
    %v4258 = vmul.f32 %v3992, %v4244
    %v4259 = vmul.f32 %v3997, %v4244
    %v4260 = vmul.f32 %v4002, %v4244
    %v4261 = vmul.f32 %v4007, %v4244
    %v4262 = vmul.f32 %v4012, %v4244
    %v4263 = vmul.f32 %v4017, %v4244
    %v4264 = vmul.f32 %v4022, %v4244
    %v4265 = vmul.f32 %v4027, %v4244
    %v4266 = vmul.f32 %v4032, %v4244
    %v4267 = vmul.f32 %v4037, %v4244
    %v4268 = vmul.f32 %v4042, %v4244
    %v4269 = vmul.f32 %v4047, %v4244
    %v4270 = vmul.f32 %v4052, %v4244
    %v4271 = vmul.f32 %v4057, %v4244
    %v4272 = vmul.f32 %v4062, %v4244
    %v4273 = vmul.f32 %v4067, %v4244
    %v4274 = vmul.f32 %v4072, %v4244
    %v4275 = vmul.f32 %v4077, %v4244
    %v4276 = vmul.f32 %v4082, %v4244
    %v4277 = vmul.f32 %v4087, %v4244
    %v4278 = vmul.f32 %v4092, %v4244
    %v4279 = vmul.f32 %v4097, %v4244
    %v4280 = vmul.f32 %v4102, %v4244
    %v4281 = vmul.f32 %v4107, %v4244
    %v4282 = vmul.f32 %v4112, %v4244
    %v4283 = vmul.f32 %v4117, %v4244
    %v4284 = vmul.f32 %v4122, %v4244
    %v4285 = vmul.f32 %v4127, %v4244
    %v4286 = vmul.f32 %v4132, %v4244
    %v4287 = vmul.f32 %v4137, %v4244
    %v4288 = vmul.f32 %v4142, %v4244
    %v4289 = vmul.f32 %v4147, %v4244
    %v4290 = vmul.f32 %v4152, %v4244
    %v4291 = vmul.f32 %v4157, %v4244
    %v4292 = vmul.f32 %v4162, %v4244
    %v4293 = vmul.f32 %v4167, %v4244
    %v4294 = vmul.f32 %v4172, %v4244
    %v4295 = vmul.f32 %v4177, %v4244
    %v4296 = vmul.f32 %v4182, %v4244
    %v4297 = vmul.f32 %v4187, %v4244
    %v4298 = vmul.f32 %v4192, %v4244
    %v4299 = vmul.f32 %v4197, %v4244
    %v4300 = vmul.f32 %v4202, %v4244
    %v4301 = vmul.f32 %v4207, %v4244
    %v4302 = vmul.f32 %v4212, %v4244
    %v4303 = vmul.f32 %v4217, %v4244
    %v4304 = vmul.f32 %v4222, %v4244
    %v4305 = vmul.f32 %v4227, %v4244
    %v4306 = vmul.f32 %v4232, %v4244
    %v4307 = vmul.f32 %v4237, %v4244
    %v4308 = vmul.f32 %v4242, %v4244
    %v4309 = vadd.f32 %v3796, %v4245
    %v4310 = vadd.f32 %v3797, %v4246
    %v4311 = vadd.f32 %v3798, %v4247
    %v4312 = vadd.f32 %v3799, %v4248
    %v4313 = vadd.f32 %v3800, %v4249
    %v4314 = vadd.f32 %v3801, %v4250
    %v4315 = vadd.f32 %v3802, %v4251
    %v4316 = vadd.f32 %v3803, %v4252
    %v4317 = vadd.f32 %v3804, %v4253
    %v4318 = vadd.f32 %v3805, %v4254
    %v4319 = vadd.f32 %v3806, %v4255
    %v4320 = vadd.f32 %v3807, %v4256
    %v4321 = vadd.f32 %v3808, %v4257
    %v4322 = vadd.f32 %v3809, %v4258
    %v4323 = vadd.f32 %v3810, %v4259
    %v4324 = vadd.f32 %v3811, %v4260
    %v4325 = vadd.f32 %v3812, %v4261
    %v4326 = vadd.f32 %v3813, %v4262
    %v4327 = vadd.f32 %v3814, %v4263
    %v4328 = vadd.f32 %v3815, %v4264
    %v4329 = vadd.f32 %v3816, %v4265
    %v4330 = vadd.f32 %v3817, %v4266
    %v4331 = vadd.f32 %v3818, %v4267
    %v4332 = vadd.f32 %v3819, %v4268
    %v4333 = vadd.f32 %v3820, %v4269
    %v4334 = vadd.f32 %v3821, %v4270
    %v4335 = vadd.f32 %v3822, %v4271
    %v4336 = vadd.f32 %v3823, %v4272
    %v4337 = vadd.f32 %v3824, %v4273
    %v4338 = vadd.f32 %v3825, %v4274
    %v4339 = vadd.f32 %v3826, %v4275
    %v4340 = vadd.f32 %v3827, %v4276
    %v4341 = vadd.f32 %v3828, %v4277
    %v4342 = vadd.f32 %v3829, %v4278
    %v4343 = vadd.f32 %v3830, %v4279
    %v4344 = vadd.f32 %v3831, %v4280
    %v4345 = vadd.f32 %v3832, %v4281
    %v4346 = vadd.f32 %v3833, %v4282
    %v4347 = vadd.f32 %v3834, %v4283
    %v4348 = vadd.f32 %v3835, %v4284
    %v4349 = vadd.f32 %v3836, %v4285
    %v4350 = vadd.f32 %v3837, %v4286
    %v4351 = vadd.f32 %v3838, %v4287
    %v4352 = vadd.f32 %v3839, %v4288
    %v4353 = vadd.f32 %v3840, %v4289
    %v4354 = vadd.f32 %v3841, %v4290
    %v4355 = vadd.f32 %v3842, %v4291
    %v4356 = vadd.f32 %v3843, %v4292
    %v4357 = vadd.f32 %v3844, %v4293
    %v4358 = vadd.f32 %v3845, %v4294
    %v4359 = vadd.f32 %v3846, %v4295
    %v4360 = vadd.f32 %v3847, %v4296
    %v4361 = vadd.f32 %v3848, %v4297
    %v4362 = vadd.f32 %v3849, %v4298
    %v4363 = vadd.f32 %v3850, %v4299
    %v4364 = vadd.f32 %v3851, %v4300
    %v4365 = vadd.f32 %v3852, %v4301
    %v4366 = vadd.f32 %v3853, %v4302
    %v4367 = vadd.f32 %v3854, %v4303
    %v4368 = vadd.f32 %v3855, %v4304
    %v4369 = vadd.f32 %v3856, %v4305
    %v4370 = vadd.f32 %v3857, %v4306
    %v4371 = vadd.f32 %v3858, %v4307
    %v4372 = vadd.f32 %v3859, %v4308
    %v4373 = vld [vmem:[%s3346 + $0x2] sm:$0xff]
    %v4374 = vld [vmem:[%s3346 + $0xa] sm:$0xff]
    %v4375 = vld [vmem:[%s3346 + $0x1a] sm:$0xff]
    %v4376 = vld [vmem:[%s3346 + $0x22] sm:$0xff]
    %v4377 = vld [vmem:[%s3346 + $0x32] sm:$0xff]
    %v4378 = vld [vmem:[%s3346 + $0x3a] sm:$0xff]
    %v4379 = vld [vmem:[%s3346 + $0x4a] sm:$0xff]
    %v4380 = vld [vmem:[%s3346 + $0x52] sm:$0xff]
    %v4381 = vld [vmem:[%s3346 + $0x62] sm:$0xff]
    %v4382 = vld [vmem:[%s3346 + $0x6a] sm:$0xff]
    %v4383 = vld [vmem:[%s3346 + $0x7a] sm:$0xff]
    %v4384 = vld [vmem:[%s3346 + $0x82] sm:$0xff]
    %v4385 = vld [vmem:[%s3346 + $0x92] sm:$0xff]
    %v4386 = vld [vmem:[%s3346 + $0x9a] sm:$0xff]
    %v4387 = vld [vmem:[%s3346 + $0xaa] sm:$0xff]
    %v4388 = vld [vmem:[%s3346 + $0xb2] sm:$0xff]
    %v4389 = vld [vmem:[%s3346 + $0xc2] sm:$0xff]
    %v4390 = vld [vmem:[%s3346 + $0xca] sm:$0xff]
    %v4391 = vld [vmem:[%s3346 + $0xda] sm:$0xff]
    %v4392 = vld [vmem:[%s3346 + $0xe2] sm:$0xff]
    %v4393 = vld [vmem:[%s3346 + $0xf2] sm:$0xff]
    %v4394 = vld [vmem:[%s3346 + $0xfa] sm:$0xff]
    %v4395 = vld [vmem:[%s3346 + $0x10a] sm:$0xff]
    %v4396 = vld [vmem:[%s3346 + $0x112] sm:$0xff]
    %v4397 = vld [vmem:[%s3346 + $0x122] sm:$0xff]
    %v4398 = vld [vmem:[%s3346 + $0x12a] sm:$0xff]
    %v4399 = vld [vmem:[%s3346 + $0x13a] sm:$0xff]
    %v4400 = vld [vmem:[%s3346 + $0x142] sm:$0xff]
    %v4401 = vld [vmem:[%s3346 + $0x152] sm:$0xff]
    %v4402 = vld [vmem:[%s3346 + $0x15a] sm:$0xff]
    %v4403 = vld [vmem:[%s3346 + $0x16a] sm:$0xff]
    %v4404 = vld [vmem:[%s3346 + $0x172] sm:$0xff]
    %v4405 = vld [vmem:[%s3346 + $0x1b2] sm:$0xff]
    %v4406 = vld [vmem:[%s3346 + $0x1ba] sm:$0xff]
    %v4407 = vld [vmem:[%s3346 + $0x1ca] sm:$0xff]
    %v4408 = vld [vmem:[%s3346 + $0x1d2] sm:$0xff]
    %v4409 = vld [vmem:[%s3346 + $0x1e2] sm:$0xff]
    %v4410 = vld [vmem:[%s3346 + $0x1ea] sm:$0xff]
    %v4411 = vld [vmem:[%s3346 + $0x1fa] sm:$0xff]
    %v4412 = vld [vmem:[%s3346 + $0x202] sm:$0xff]
    %v4413 = vld [vmem:[%s3346 + $0x212] sm:$0xff]
    %v4414 = vld [vmem:[%s3346 + $0x21a] sm:$0xff]
    %v4415 = vld [vmem:[%s3346 + $0x22a] sm:$0xff]
    %v4416 = vld [vmem:[%s3346 + $0x232] sm:$0xff]
    %v4417 = vld [vmem:[%s3346 + $0x242] sm:$0xff]
    %v4418 = vld [vmem:[%s3346 + $0x24a] sm:$0xff]
    %v4419 = vld [vmem:[%s3346 + $0x25a] sm:$0xff]
    %v4420 = vld [vmem:[%s3346 + $0x262] sm:$0xff]
    %v4421 = vld [vmem:[%s3346 + $0x272] sm:$0xff]
    %v4422 = vld [vmem:[%s3346 + $0x27a] sm:$0xff]
    %v4423 = vld [vmem:[%s3346 + $0x28a] sm:$0xff]
    %v4424 = vld [vmem:[%s3346 + $0x292] sm:$0xff]
    %v4425 = vld [vmem:[%s3346 + $0x2a2] sm:$0xff]
    %v4426 = vld [vmem:[%s3346 + $0x2aa] sm:$0xff]
    %v4427 = vld [vmem:[%s3346 + $0x2ba] sm:$0xff]
    %v4428 = vld [vmem:[%s3346 + $0x2c2] sm:$0xff]
    %v4429 = vld [vmem:[%s3346 + $0x2d2] sm:$0xff]
    %v4430 = vld [vmem:[%s3346 + $0x2da] sm:$0xff]
    %v4431 = vld [vmem:[%s3346 + $0x2ea] sm:$0xff]
    %v4432 = vld [vmem:[%s3346 + $0x2f2] sm:$0xff]
    %v4433 = vld [vmem:[%s3346 + $0x302] sm:$0xff]
    %v4434 = vld [vmem:[%s3346 + $0x30a] sm:$0xff]
    %v4435 = vld [vmem:[%s3346 + $0x31a] sm:$0xff]
    %v4436 = vld [vmem:[%s3346 + $0x322] sm:$0xff]
    %4438 = vset.pattern.permute.xlu0 0
    %4439 = vperm.xlu0 %4438, %v4373
    %v4440 = vpop.permute.xlu0 %4439
    %4443 = vset.pattern.permute.xlu0 0
    %4444 = vperm.xlu0 %4443, %v4374
    %v4445 = vpop.permute.xlu0 %4444
    %4448 = vset.pattern.permute.xlu0 0
    %4449 = vperm.xlu0 %4448, %v4375
    %v4450 = vpop.permute.xlu0 %4449
    %4453 = vset.pattern.permute.xlu0 0
    %4454 = vperm.xlu0 %4453, %v4376
    %v4455 = vpop.permute.xlu0 %4454
    %4458 = vset.pattern.permute.xlu0 0
    %4459 = vperm.xlu0 %4458, %v4377
    %v4460 = vpop.permute.xlu0 %4459
    %4463 = vset.pattern.permute.xlu0 0
    %4464 = vperm.xlu0 %4463, %v4378
    %v4465 = vpop.permute.xlu0 %4464
    %4468 = vset.pattern.permute.xlu0 0
    %4469 = vperm.xlu0 %4468, %v4379
    %v4470 = vpop.permute.xlu0 %4469
    %4473 = vset.pattern.permute.xlu0 0
    %4474 = vperm.xlu0 %4473, %v4380
    %v4475 = vpop.permute.xlu0 %4474
    %4478 = vset.pattern.permute.xlu0 0
    %4479 = vperm.xlu0 %4478, %v4381
    %v4480 = vpop.permute.xlu0 %4479
    %4483 = vset.pattern.permute.xlu0 0
    %4484 = vperm.xlu0 %4483, %v4382
    %v4485 = vpop.permute.xlu0 %4484
    %4488 = vset.pattern.permute.xlu0 0
    %4489 = vperm.xlu0 %4488, %v4383
    %v4490 = vpop.permute.xlu0 %4489
    %4493 = vset.pattern.permute.xlu0 0
    %4494 = vperm.xlu0 %4493, %v4384
    %v4495 = vpop.permute.xlu0 %4494
    %4498 = vset.pattern.permute.xlu0 0
    %4499 = vperm.xlu0 %4498, %v4385
    %v4500 = vpop.permute.xlu0 %4499
    %4503 = vset.pattern.permute.xlu0 0
    %4504 = vperm.xlu0 %4503, %v4386
    %v4505 = vpop.permute.xlu0 %4504
    %4508 = vset.pattern.permute.xlu0 0
    %4509 = vperm.xlu0 %4508, %v4387
    %v4510 = vpop.permute.xlu0 %4509
    %4513 = vset.pattern.permute.xlu0 0
    %4514 = vperm.xlu0 %4513, %v4388
    %v4515 = vpop.permute.xlu0 %4514
    %4518 = vset.pattern.permute.xlu0 0
    %4519 = vperm.xlu0 %4518, %v4389
    %v4520 = vpop.permute.xlu0 %4519
    %4523 = vset.pattern.permute.xlu0 0
    %4524 = vperm.xlu0 %4523, %v4390
    %v4525 = vpop.permute.xlu0 %4524
    %4528 = vset.pattern.permute.xlu0 0
    %4529 = vperm.xlu0 %4528, %v4391
    %v4530 = vpop.permute.xlu0 %4529
    %4533 = vset.pattern.permute.xlu0 0
    %4534 = vperm.xlu0 %4533, %v4392
    %v4535 = vpop.permute.xlu0 %4534
    %4538 = vset.pattern.permute.xlu0 0
    %4539 = vperm.xlu0 %4538, %v4393
    %v4540 = vpop.permute.xlu0 %4539
    %4543 = vset.pattern.permute.xlu0 0
    %4544 = vperm.xlu0 %4543, %v4394
    %v4545 = vpop.permute.xlu0 %4544
    %4548 = vset.pattern.permute.xlu0 0
    %4549 = vperm.xlu0 %4548, %v4395
    %v4550 = vpop.permute.xlu0 %4549
    %4553 = vset.pattern.permute.xlu0 0
    %4554 = vperm.xlu0 %4553, %v4396
    %v4555 = vpop.permute.xlu0 %4554
    %4558 = vset.pattern.permute.xlu0 0
    %4559 = vperm.xlu0 %4558, %v4397
    %v4560 = vpop.permute.xlu0 %4559
    %4563 = vset.pattern.permute.xlu0 0
    %4564 = vperm.xlu0 %4563, %v4398
    %v4565 = vpop.permute.xlu0 %4564
    %4568 = vset.pattern.permute.xlu0 0
    %4569 = vperm.xlu0 %4568, %v4399
    %v4570 = vpop.permute.xlu0 %4569
    %4573 = vset.pattern.permute.xlu0 0
    %4574 = vperm.xlu0 %4573, %v4400
    %v4575 = vpop.permute.xlu0 %4574
    %4578 = vset.pattern.permute.xlu0 0
    %4579 = vperm.xlu0 %4578, %v4401
    %v4580 = vpop.permute.xlu0 %4579
    %4583 = vset.pattern.permute.xlu0 0
    %4584 = vperm.xlu0 %4583, %v4402
    %v4585 = vpop.permute.xlu0 %4584
    %4588 = vset.pattern.permute.xlu0 0
    %4589 = vperm.xlu0 %4588, %v4403
    %v4590 = vpop.permute.xlu0 %4589
    %4593 = vset.pattern.permute.xlu0 0
    %4594 = vperm.xlu0 %4593, %v4404
    %v4595 = vpop.permute.xlu0 %4594
    %4598 = vset.pattern.permute.xlu0 0
    %4599 = vperm.xlu0 %4598, %v4405
    %v4600 = vpop.permute.xlu0 %4599
    %4603 = vset.pattern.permute.xlu0 0
    %4604 = vperm.xlu0 %4603, %v4406
    %v4605 = vpop.permute.xlu0 %4604
    %4608 = vset.pattern.permute.xlu0 0
    %4609 = vperm.xlu0 %4608, %v4407
    %v4610 = vpop.permute.xlu0 %4609
    %4613 = vset.pattern.permute.xlu0 0
    %4614 = vperm.xlu0 %4613, %v4408
    %v4615 = vpop.permute.xlu0 %4614
    %4618 = vset.pattern.permute.xlu0 0
    %4619 = vperm.xlu0 %4618, %v4409
    %v4620 = vpop.permute.xlu0 %4619
    %4623 = vset.pattern.permute.xlu0 0
    %4624 = vperm.xlu0 %4623, %v4410
    %v4625 = vpop.permute.xlu0 %4624
    %4628 = vset.pattern.permute.xlu0 0
    %4629 = vperm.xlu0 %4628, %v4411
    %v4630 = vpop.permute.xlu0 %4629
    %4633 = vset.pattern.permute.xlu0 0
    %4634 = vperm.xlu0 %4633, %v4412
    %v4635 = vpop.permute.xlu0 %4634
    %4638 = vset.pattern.permute.xlu0 0
    %4639 = vperm.xlu0 %4638, %v4413
    %v4640 = vpop.permute.xlu0 %4639
    %4643 = vset.pattern.permute.xlu0 0
    %4644 = vperm.xlu0 %4643, %v4414
    %v4645 = vpop.permute.xlu0 %4644
    %4648 = vset.pattern.permute.xlu0 0
    %4649 = vperm.xlu0 %4648, %v4415
    %v4650 = vpop.permute.xlu0 %4649
    %4653 = vset.pattern.permute.xlu0 0
    %4654 = vperm.xlu0 %4653, %v4416
    %v4655 = vpop.permute.xlu0 %4654
    %4658 = vset.pattern.permute.xlu0 0
    %4659 = vperm.xlu0 %4658, %v4417
    %v4660 = vpop.permute.xlu0 %4659
    %4663 = vset.pattern.permute.xlu0 0
    %4664 = vperm.xlu0 %4663, %v4418
    %v4665 = vpop.permute.xlu0 %4664
    %4668 = vset.pattern.permute.xlu0 0
    %4669 = vperm.xlu0 %4668, %v4419
    %v4670 = vpop.permute.xlu0 %4669
    %4673 = vset.pattern.permute.xlu0 0
    %4674 = vperm.xlu0 %4673, %v4420
    %v4675 = vpop.permute.xlu0 %4674
    %4678 = vset.pattern.permute.xlu0 0
    %4679 = vperm.xlu0 %4678, %v4421
    %v4680 = vpop.permute.xlu0 %4679
    %4683 = vset.pattern.permute.xlu0 0
    %4684 = vperm.xlu0 %4683, %v4422
    %v4685 = vpop.permute.xlu0 %4684
    %4688 = vset.pattern.permute.xlu0 0
    %4689 = vperm.xlu0 %4688, %v4423
    %v4690 = vpop.permute.xlu0 %4689
    %4693 = vset.pattern.permute.xlu0 0
    %4694 = vperm.xlu0 %4693, %v4424
    %v4695 = vpop.permute.xlu0 %4694
    %4698 = vset.pattern.permute.xlu0 0
    %4699 = vperm.xlu0 %4698, %v4425
    %v4700 = vpop.permute.xlu0 %4699
    %4703 = vset.pattern.permute.xlu0 0
    %4704 = vperm.xlu0 %4703, %v4426
    %v4705 = vpop.permute.xlu0 %4704
    %4708 = vset.pattern.permute.xlu0 0
    %4709 = vperm.xlu0 %4708, %v4427
    %v4710 = vpop.permute.xlu0 %4709
    %4713 = vset.pattern.permute.xlu0 0
    %4714 = vperm.xlu0 %4713, %v4428
    %v4715 = vpop.permute.xlu0 %4714
    %4718 = vset.pattern.permute.xlu0 0
    %4719 = vperm.xlu0 %4718, %v4429
    %v4720 = vpop.permute.xlu0 %4719
    %4723 = vset.pattern.permute.xlu0 0
    %4724 = vperm.xlu0 %4723, %v4430
    %v4725 = vpop.permute.xlu0 %4724
    %4728 = vset.pattern.permute.xlu0 0
    %4729 = vperm.xlu0 %4728, %v4431
    %v4730 = vpop.permute.xlu0 %4729
    %4733 = vset.pattern.permute.xlu0 0
    %4734 = vperm.xlu0 %4733, %v4432
    %v4735 = vpop.permute.xlu0 %4734
    %4738 = vset.pattern.permute.xlu0 0
    %4739 = vperm.xlu0 %4738, %v4433
    %v4740 = vpop.permute.xlu0 %4739
    %4743 = vset.pattern.permute.xlu0 0
    %4744 = vperm.xlu0 %4743, %v4434
    %v4745 = vpop.permute.xlu0 %4744
    %4748 = vset.pattern.permute.xlu0 0
    %4749 = vperm.xlu0 %4748, %v4435
    %v4750 = vpop.permute.xlu0 %4749
    %4753 = vset.pattern.permute.xlu0 0
    %4754 = vperm.xlu0 %4753, %v4436
    %v4755 = vpop.permute.xlu0 %4754
    %v4757 = vperm.slane %v267, 0
    %v4758 = vmul.f32 %v4440, %v4757
    %v4759 = vmul.f32 %v4445, %v4757
    %v4760 = vmul.f32 %v4450, %v4757
    %v4761 = vmul.f32 %v4455, %v4757
    %v4762 = vmul.f32 %v4460, %v4757
    %v4763 = vmul.f32 %v4465, %v4757
    %v4764 = vmul.f32 %v4470, %v4757
    %v4765 = vmul.f32 %v4475, %v4757
    %v4766 = vmul.f32 %v4480, %v4757
    %v4767 = vmul.f32 %v4485, %v4757
    %v4768 = vmul.f32 %v4490, %v4757
    %v4769 = vmul.f32 %v4495, %v4757
    %v4770 = vmul.f32 %v4500, %v4757
    %v4771 = vmul.f32 %v4505, %v4757
    %v4772 = vmul.f32 %v4510, %v4757
    %v4773 = vmul.f32 %v4515, %v4757
    %v4774 = vmul.f32 %v4520, %v4757
    %v4775 = vmul.f32 %v4525, %v4757
    %v4776 = vmul.f32 %v4530, %v4757
    %v4777 = vmul.f32 %v4535, %v4757
    %v4778 = vmul.f32 %v4540, %v4757
    %v4779 = vmul.f32 %v4545, %v4757
    %v4780 = vmul.f32 %v4550, %v4757
    %v4781 = vmul.f32 %v4555, %v4757
    %v4782 = vmul.f32 %v4560, %v4757
    %v4783 = vmul.f32 %v4565, %v4757
    %v4784 = vmul.f32 %v4570, %v4757
    %v4785 = vmul.f32 %v4575, %v4757
    %v4786 = vmul.f32 %v4580, %v4757
    %v4787 = vmul.f32 %v4585, %v4757
    %v4788 = vmul.f32 %v4590, %v4757
    %v4789 = vmul.f32 %v4595, %v4757
    %v4790 = vmul.f32 %v4600, %v4757
    %v4791 = vmul.f32 %v4605, %v4757
    %v4792 = vmul.f32 %v4610, %v4757
    %v4793 = vmul.f32 %v4615, %v4757
    %v4794 = vmul.f32 %v4620, %v4757
    %v4795 = vmul.f32 %v4625, %v4757
    %v4796 = vmul.f32 %v4630, %v4757
    %v4797 = vmul.f32 %v4635, %v4757
    %v4798 = vmul.f32 %v4640, %v4757
    %v4799 = vmul.f32 %v4645, %v4757
    %v4800 = vmul.f32 %v4650, %v4757
    %v4801 = vmul.f32 %v4655, %v4757
    %v4802 = vmul.f32 %v4660, %v4757
    %v4803 = vmul.f32 %v4665, %v4757
    %v4804 = vmul.f32 %v4670, %v4757
    %v4805 = vmul.f32 %v4675, %v4757
    %v4806 = vmul.f32 %v4680, %v4757
    %v4807 = vmul.f32 %v4685, %v4757
    %v4808 = vmul.f32 %v4690, %v4757
    %v4809 = vmul.f32 %v4695, %v4757
    %v4810 = vmul.f32 %v4700, %v4757
    %v4811 = vmul.f32 %v4705, %v4757
    %v4812 = vmul.f32 %v4710, %v4757
    %v4813 = vmul.f32 %v4715, %v4757
    %v4814 = vmul.f32 %v4720, %v4757
    %v4815 = vmul.f32 %v4725, %v4757
    %v4816 = vmul.f32 %v4730, %v4757
    %v4817 = vmul.f32 %v4735, %v4757
    %v4818 = vmul.f32 %v4740, %v4757
    %v4819 = vmul.f32 %v4745, %v4757
    %v4820 = vmul.f32 %v4750, %v4757
    %v4821 = vmul.f32 %v4755, %v4757
    %v4822 = vadd.f32 %v4309, %v4758
    %v4823 = vadd.f32 %v4310, %v4759
    %v4824 = vadd.f32 %v4311, %v4760
    %v4825 = vadd.f32 %v4312, %v4761
    %v4826 = vadd.f32 %v4313, %v4762
    %v4827 = vadd.f32 %v4314, %v4763
    %v4828 = vadd.f32 %v4315, %v4764
    %v4829 = vadd.f32 %v4316, %v4765
    %v4830 = vadd.f32 %v4317, %v4766
    %v4831 = vadd.f32 %v4318, %v4767
    %v4832 = vadd.f32 %v4319, %v4768
    %v4833 = vadd.f32 %v4320, %v4769
    %v4834 = vadd.f32 %v4321, %v4770
    %v4835 = vadd.f32 %v4322, %v4771
    %v4836 = vadd.f32 %v4323, %v4772
    %v4837 = vadd.f32 %v4324, %v4773
    %v4838 = vadd.f32 %v4325, %v4774
    %v4839 = vadd.f32 %v4326, %v4775
    %v4840 = vadd.f32 %v4327, %v4776
    %v4841 = vadd.f32 %v4328, %v4777
    %v4842 = vadd.f32 %v4329, %v4778
    %v4843 = vadd.f32 %v4330, %v4779
    %v4844 = vadd.f32 %v4331, %v4780
    %v4845 = vadd.f32 %v4332, %v4781
    %v4846 = vadd.f32 %v4333, %v4782
    %v4847 = vadd.f32 %v4334, %v4783
    %v4848 = vadd.f32 %v4335, %v4784
    %v4849 = vadd.f32 %v4336, %v4785
    %v4850 = vadd.f32 %v4337, %v4786
    %v4851 = vadd.f32 %v4338, %v4787
    %v4852 = vadd.f32 %v4339, %v4788
    %v4853 = vadd.f32 %v4340, %v4789
    %v4854 = vadd.f32 %v4341, %v4790
    %v4855 = vadd.f32 %v4342, %v4791
    %v4856 = vadd.f32 %v4343, %v4792
    %v4857 = vadd.f32 %v4344, %v4793
    %v4858 = vadd.f32 %v4345, %v4794
    %v4859 = vadd.f32 %v4346, %v4795
    %v4860 = vadd.f32 %v4347, %v4796
    %v4861 = vadd.f32 %v4348, %v4797
    %v4862 = vadd.f32 %v4349, %v4798
    %v4863 = vadd.f32 %v4350, %v4799
    %v4864 = vadd.f32 %v4351, %v4800
    %v4865 = vadd.f32 %v4352, %v4801
    %v4866 = vadd.f32 %v4353, %v4802
    %v4867 = vadd.f32 %v4354, %v4803
    %v4868 = vadd.f32 %v4355, %v4804
    %v4869 = vadd.f32 %v4356, %v4805
    %v4870 = vadd.f32 %v4357, %v4806
    %v4871 = vadd.f32 %v4358, %v4807
    %v4872 = vadd.f32 %v4359, %v4808
    %v4873 = vadd.f32 %v4360, %v4809
    %v4874 = vadd.f32 %v4361, %v4810
    %v4875 = vadd.f32 %v4362, %v4811
    %v4876 = vadd.f32 %v4363, %v4812
    %v4877 = vadd.f32 %v4364, %v4813
    %v4878 = vadd.f32 %v4365, %v4814
    %v4879 = vadd.f32 %v4366, %v4815
    %v4880 = vadd.f32 %v4367, %v4816
    %v4881 = vadd.f32 %v4368, %v4817
    %v4882 = vadd.f32 %v4369, %v4818
    %v4883 = vadd.f32 %v4370, %v4819
    %v4884 = vadd.f32 %v4371, %v4820
    %v4885 = vadd.f32 %v4372, %v4821
    %v4886 = vld [vmem:[%s2] sm:$0x1]
    %v4888 = vperm.slane %v4886, 0
    %v4890 = vadd.f32 %v4822, %v4888
    %v4891 = vadd.f32 %v4823, %v4888
    %v4892 = vadd.f32 %v4824, %v4888
    %v4893 = vadd.f32 %v4825, %v4888
    %v4894 = vadd.f32 %v4826, %v4888
    %v4895 = vadd.f32 %v4827, %v4888
    %v4896 = vadd.f32 %v4828, %v4888
    %v4897 = vadd.f32 %v4829, %v4888
    %v4898 = vadd.f32 %v4830, %v4888
    %v4899 = vadd.f32 %v4831, %v4888
    %v4900 = vadd.f32 %v4832, %v4888
    %v4901 = vadd.f32 %v4833, %v4888
    %v4902 = vadd.f32 %v4834, %v4888
    %v4903 = vadd.f32 %v4835, %v4888
    %v4904 = vadd.f32 %v4836, %v4888
    %v4905 = vadd.f32 %v4837, %v4888
    %v4906 = vadd.f32 %v4838, %v4888
    %v4907 = vadd.f32 %v4839, %v4888
    %v4908 = vadd.f32 %v4840, %v4888
    %v4909 = vadd.f32 %v4841, %v4888
    %v4910 = vadd.f32 %v4842, %v4888
    %v4911 = vadd.f32 %v4843, %v4888
    %v4912 = vadd.f32 %v4844, %v4888
    %v4913 = vadd.f32 %v4845, %v4888
    %v4914 = vadd.f32 %v4846, %v4888
    %v4915 = vadd.f32 %v4847, %v4888
    %v4916 = vadd.f32 %v4848, %v4888
    %v4917 = vadd.f32 %v4849, %v4888
    %v4918 = vadd.f32 %v4850, %v4888
    %v4919 = vadd.f32 %v4851, %v4888
    %v4920 = vadd.f32 %v4852, %v4888
    %v4921 = vadd.f32 %v4853, %v4888
    %v4922 = vadd.f32 %v4854, %v4888
    %v4923 = vadd.f32 %v4855, %v4888
    %v4924 = vadd.f32 %v4856, %v4888
    %v4925 = vadd.f32 %v4857, %v4888
    %v4926 = vadd.f32 %v4858, %v4888
    %v4927 = vadd.f32 %v4859, %v4888
    %v4928 = vadd.f32 %v4860, %v4888
    %v4929 = vadd.f32 %v4861, %v4888
    %v4930 = vadd.f32 %v4862, %v4888
    %v4931 = vadd.f32 %v4863, %v4888
    %v4932 = vadd.f32 %v4864, %v4888
    %v4933 = vadd.f32 %v4865, %v4888
    %v4934 = vadd.f32 %v4866, %v4888
    %v4935 = vadd.f32 %v4867, %v4888
    %v4936 = vadd.f32 %v4868, %v4888
    %v4937 = vadd.f32 %v4869, %v4888
    %v4938 = vadd.f32 %v4870, %v4888
    %v4939 = vadd.f32 %v4871, %v4888
    %v4940 = vadd.f32 %v4872, %v4888
    %v4941 = vadd.f32 %v4873, %v4888
    %v4942 = vadd.f32 %v4874, %v4888
    %v4943 = vadd.f32 %v4875, %v4888
    %v4944 = vadd.f32 %v4876, %v4888
    %v4945 = vadd.f32 %v4877, %v4888
    %v4946 = vadd.f32 %v4878, %v4888
    %v4947 = vadd.f32 %v4879, %v4888
    %v4948 = vadd.f32 %v4880, %v4888
    %v4949 = vadd.f32 %v4881, %v4888
    %v4950 = vadd.f32 %v4882, %v4888
    %v4951 = vadd.f32 %v4883, %v4888
    %v4952 = vadd.f32 %v4884, %v4888
    %v4953 = vadd.f32 %v4885, %v4888
    %v4954 = vmax.f32 %v4890, 0.0
    %v4955 = vmax.f32 %v4891, 0.0
    %v4956 = vmax.f32 %v4892, 0.0
    %v4957 = vmax.f32 %v4893, 0.0
    %v4958 = vmax.f32 %v4894, 0.0
    %v4959 = vmax.f32 %v4895, 0.0
    %v4960 = vmax.f32 %v4896, 0.0
    %v4961 = vmax.f32 %v4897, 0.0
    %v4962 = vmax.f32 %v4898, 0.0
    %v4963 = vmax.f32 %v4899, 0.0
    %v4964 = vmax.f32 %v4900, 0.0
    %v4965 = vmax.f32 %v4901, 0.0
    %v4966 = vmax.f32 %v4902, 0.0
    %v4967 = vmax.f32 %v4903, 0.0
    %v4968 = vmax.f32 %v4904, 0.0
    %v4969 = vmax.f32 %v4905, 0.0
    %v4970 = vmax.f32 %v4906, 0.0
    %v4971 = vmax.f32 %v4907, 0.0
    %v4972 = vmax.f32 %v4908, 0.0
    %v4973 = vmax.f32 %v4909, 0.0
    %v4974 = vmax.f32 %v4910, 0.0
    %v4975 = vmax.f32 %v4911, 0.0
    %v4976 = vmax.f32 %v4912, 0.0
    %v4977 = vmax.f32 %v4913, 0.0
    %v4978 = vmax.f32 %v4914, 0.0
    %v4979 = vmax.f32 %v4915, 0.0
    %v4980 = vmax.f32 %v4916, 0.0
    %v4981 = vmax.f32 %v4917, 0.0
    %v4982 = vmax.f32 %v4918, 0.0
    %v4983 = vmax.f32 %v4919, 0.0
    %v4984 = vmax.f32 %v4920, 0.0
    %v4985 = vmax.f32 %v4921, 0.0
    %v4986 = vmax.f32 %v4922, 0.0
    %v4987 = vmax.f32 %v4923, 0.0
    %v4988 = vmax.f32 %v4924, 0.0
    %v4989 = vmax.f32 %v4925, 0.0
    %v4990 = vmax.f32 %v4926, 0.0
    %v4991 = vmax.f32 %v4927, 0.0
    %v4992 = vmax.f32 %v4928, 0.0
    %v4993 = vmax.f32 %v4929, 0.0
    %v4994 = vmax.f32 %v4930, 0.0
    %v4995 = vmax.f32 %v4931, 0.0
    %v4996 = vmax.f32 %v4932, 0.0
    %v4997 = vmax.f32 %v4933, 0.0
    %v4998 = vmax.f32 %v4934, 0.0
    %v4999 = vmax.f32 %v4935, 0.0
    %v5000 = vmax.f32 %v4936, 0.0
    %v5001 = vmax.f32 %v4937, 0.0
    %v5002 = vmax.f32 %v4938, 0.0
    %v5003 = vmax.f32 %v4939, 0.0
    %v5004 = vmax.f32 %v4940, 0.0
    %v5005 = vmax.f32 %v4941, 0.0
    %v5006 = vmax.f32 %v4942, 0.0
    %v5007 = vmax.f32 %v4943, 0.0
    %v5008 = vmax.f32 %v4944, 0.0
    %v5009 = vmax.f32 %v4945, 0.0
    %v5010 = vmax.f32 %v4946, 0.0
    %v5011 = vmax.f32 %v4947, 0.0
    %v5012 = vmax.f32 %v4948, 0.0
    %v5013 = vmax.f32 %v4949, 0.0
    %v5014 = vmax.f32 %v4950, 0.0
    %v5015 = vmax.f32 %v4951, 0.0
    %v5016 = vmax.f32 %v4952, 0.0
    %v5017 = vmax.f32 %v4953, 0.0
    %vm5018 = vcmask 259072
    %5019 = vst.msk [vmem:[#allocation3] sm:$0x3f] %vm5018, 0.0
    %5020 = vst.msk [vmem:[#allocation3 + $0x8] sm:$0x3f] %vm5018, 0.0
    %5021 = vst.msk [vmem:[#allocation3 + $0x10] sm:$0x3f] %vm5018, 0.0
    %5022 = vst.msk [vmem:[#allocation3 + $0x18] sm:$0x3f] %vm5018, 0.0
    %5023 = vst.msk [vmem:[#allocation3 + $0x20] sm:$0x3f] %vm5018, 0.0
    %5024 = vst.msk [vmem:[#allocation3 + $0x28] sm:$0x3f] %vm5018, 0.0
    %5025 = vst.msk [vmem:[#allocation3 + $0x30] sm:$0x3f] %vm5018, 0.0
    %5026 = vst.msk [vmem:[#allocation3 + $0x38] sm:$0x3f] %vm5018, 0.0
    %5027 = vst.msk [vmem:[#allocation3 + $0x40] sm:$0x3f] %vm5018, 0.0
    %5028 = vst.msk [vmem:[#allocation3 + $0x48] sm:$0x3f] %vm5018, 0.0
    %5029 = vst.msk [vmem:[#allocation3 + $0x50] sm:$0x3f] %vm5018, 0.0
    %5030 = vst.msk [vmem:[#allocation3 + $0x58] sm:$0x3f] %vm5018, 0.0
    %v5095 = vrot.slane %v4954, 4
    %v5096 = vrot.slane %v4955, 4
    %v5097 = vrot.slane %v4956, 4
    %v5098 = vrot.slane %v4957, 4
    %v5099 = vrot.slane %v4958, 4
    %v5100 = vrot.slane %v4959, 4
    %v5101 = vrot.slane %v4960, 4
    %v5102 = vrot.slane %v4961, 4
    %v5103 = vrot.slane %v4962, 4
    %v5104 = vrot.slane %v4963, 4
    %v5105 = vrot.slane %v4964, 4
    %v5106 = vrot.slane %v4965, 4
    %v5107 = vrot.slane %v4966, 4
    %v5108 = vrot.slane %v4967, 4
    %v5109 = vrot.slane %v4968, 4
    %v5110 = vrot.slane %v4969, 4
    %v5111 = vrot.slane %v4970, 4
    %v5112 = vrot.slane %v4971, 4
    %v5113 = vrot.slane %v4972, 4
    %v5114 = vrot.slane %v4973, 4
    %v5115 = vrot.slane %v4974, 4
    %v5116 = vrot.slane %v4975, 4
    %v5117 = vrot.slane %v4976, 4
    %v5118 = vrot.slane %v4977, 4
    %v5119 = vrot.slane %v4978, 4
    %v5120 = vrot.slane %v4979, 4
    %v5121 = vrot.slane %v4980, 4
    %v5122 = vrot.slane %v4981, 4
    %v5123 = vrot.slane %v4982, 4
    %v5124 = vrot.slane %v4983, 4
    %v5125 = vrot.slane %v4984, 4
    %v5126 = vrot.slane %v4985, 4
    %v5127 = vrot.slane %v4986, 4
    %v5128 = vrot.slane %v4987, 4
    %v5129 = vrot.slane %v4988, 4
    %v5130 = vrot.slane %v4989, 4
    %v5131 = vrot.slane %v4990, 4
    %v5132 = vrot.slane %v4991, 4
    %v5133 = vrot.slane %v4992, 4
    %v5134 = vrot.slane %v4993, 4
    %v5135 = vrot.slane %v4994, 4
    %v5136 = vrot.slane %v4995, 4
    %v5137 = vrot.slane %v4996, 4
    %v5138 = vrot.slane %v4997, 4
    %v5139 = vrot.slane %v4998, 4
    %v5140 = vrot.slane %v4999, 4
    %v5141 = vrot.slane %v5000, 4
    %v5142 = vrot.slane %v5001, 4
    %v5143 = vrot.slane %v5002, 4
    %v5144 = vrot.slane %v5003, 4
    %v5145 = vrot.slane %v5004, 4
    %v5146 = vrot.slane %v5005, 4
    %v5147 = vrot.slane %v5006, 4
    %v5148 = vrot.slane %v5007, 4
    %v5149 = vrot.slane %v5008, 4
    %v5150 = vrot.slane %v5009, 4
    %v5151 = vrot.slane %v5010, 4
    %v5152 = vrot.slane %v5011, 4
    %v5153 = vrot.slane %v5012, 4
    %v5154 = vrot.slane %v5013, 4
    %v5155 = vrot.slane %v5014, 4
    %v5156 = vrot.slane %v5015, 4
    %v5157 = vrot.slane %v5016, 4
    %v5158 = vrot.slane %v5017, 4
    %vm5223 = vcmask 257024
    %v5224 = vsel %vm5223, %v4954, -inf
    %v5225 = vrot.slane %v5224, 4
    %v5226 = vmax.f32 %v5224, %v5225
    %v5227 = vrot.slane %v5226, 2
    %v5228 = vmax.f32 %v5226, %v5227
    %v5229 = vrot.slane %v5228, 1
    %v5230 = vmax.f32 %v5228, %v5229
    %v5231 = vsel %vm5223, %v5095, -inf
    %v5232 = vrot.slane %v5231, 4
    %v5233 = vmax.f32 %v5231, %v5232
    %v5234 = vrot.slane %v5233, 2
    %v5235 = vmax.f32 %v5233, %v5234
    %v5236 = vrot.slane %v5235, 1
    %v5237 = vmax.f32 %v5235, %v5236
    %v5238 = vsel %vm5223, %v4955, -inf
    %v5239 = vrot.slane %v5238, 4
    %v5240 = vmax.f32 %v5238, %v5239
    %v5241 = vrot.slane %v5240, 2
    %v5242 = vmax.f32 %v5240, %v5241
    %v5243 = vrot.slane %v5242, 1
    %v5244 = vmax.f32 %v5242, %v5243
    %v5245 = vsel %vm5223, %v5096, -inf
    %v5246 = vrot.slane %v5245, 4
    %v5247 = vmax.f32 %v5245, %v5246
    %v5248 = vrot.slane %v5247, 2
    %v5249 = vmax.f32 %v5247, %v5248
    %v5250 = vrot.slane %v5249, 1
    %v5251 = vmax.f32 %v5249, %v5250
    %v5252 = vsel %vm5223, %v4956, -inf
    %v5253 = vrot.slane %v5252, 4
    %v5254 = vmax.f32 %v5252, %v5253
    %v5255 = vrot.slane %v5254, 2
    %v5256 = vmax.f32 %v5254, %v5255
    %v5257 = vrot.slane %v5256, 1
    %v5258 = vmax.f32 %v5256, %v5257
    %v5259 = vsel %vm5223, %v5097, -inf
    %v5260 = vrot.slane %v5259, 4
    %v5261 = vmax.f32 %v5259, %v5260
    %v5262 = vrot.slane %v5261, 2
    %v5263 = vmax.f32 %v5261, %v5262
    %v5264 = vrot.slane %v5263, 1
    %v5265 = vmax.f32 %v5263, %v5264
    %v5266 = vsel %vm5223, %v4957, -inf
    %v5267 = vrot.slane %v5266, 4
    %v5268 = vmax.f32 %v5266, %v5267
    %v5269 = vrot.slane %v5268, 2
    %v5270 = vmax.f32 %v5268, %v5269
    %v5271 = vrot.slane %v5270, 1
    %v5272 = vmax.f32 %v5270, %v5271
    %v5273 = vsel %vm5223, %v5098, -inf
    %v5274 = vrot.slane %v5273, 4
    %v5275 = vmax.f32 %v5273, %v5274
    %v5276 = vrot.slane %v5275, 2
    %v5277 = vmax.f32 %v5275, %v5276
    %v5278 = vrot.slane %v5277, 1
    %v5279 = vmax.f32 %v5277, %v5278
    %v5280 = vsel %vm5223, %v4958, -inf
    %v5281 = vrot.slane %v5280, 4
    %v5282 = vmax.f32 %v5280, %v5281
    %v5283 = vrot.slane %v5282, 2
    %v5284 = vmax.f32 %v5282, %v5283
    %v5285 = vrot.slane %v5284, 1
    %v5286 = vmax.f32 %v5284, %v5285
    %v5287 = vsel %vm5223, %v5099, -inf
    %v5288 = vrot.slane %v5287, 4
    %v5289 = vmax.f32 %v5287, %v5288
    %v5290 = vrot.slane %v5289, 2
    %v5291 = vmax.f32 %v5289, %v5290
    %v5292 = vrot.slane %v5291, 1
    %v5293 = vmax.f32 %v5291, %v5292
    %v5294 = vsel %vm5223, %v4959, -inf
    %v5295 = vrot.slane %v5294, 4
    %v5296 = vmax.f32 %v5294, %v5295
    %v5297 = vrot.slane %v5296, 2
    %v5298 = vmax.f32 %v5296, %v5297
    %v5299 = vrot.slane %v5298, 1
    %v5300 = vmax.f32 %v5298, %v5299
    %v5301 = vsel %vm5223, %v5100, -inf
    %v5302 = vrot.slane %v5301, 4
    %v5303 = vmax.f32 %v5301, %v5302
    %v5304 = vrot.slane %v5303, 2
    %v5305 = vmax.f32 %v5303, %v5304
    %v5306 = vrot.slane %v5305, 1
    %v5307 = vmax.f32 %v5305, %v5306
    %v5308 = vsel %vm5223, %v4960, -inf
    %v5309 = vrot.slane %v5308, 4
    %v5310 = vmax.f32 %v5308, %v5309
    %v5311 = vrot.slane %v5310, 2
    %v5312 = vmax.f32 %v5310, %v5311
    %v5313 = vrot.slane %v5312, 1
    %v5314 = vmax.f32 %v5312, %v5313
    %v5315 = vsel %vm5223, %v5101, -inf
    %v5316 = vrot.slane %v5315, 4
    %v5317 = vmax.f32 %v5315, %v5316
    %v5318 = vrot.slane %v5317, 2
    %v5319 = vmax.f32 %v5317, %v5318
    %v5320 = vrot.slane %v5319, 1
    %v5321 = vmax.f32 %v5319, %v5320
    %v5322 = vsel %vm5223, %v4961, -inf
    %v5323 = vrot.slane %v5322, 4
    %v5324 = vmax.f32 %v5322, %v5323
    %v5325 = vrot.slane %v5324, 2
    %v5326 = vmax.f32 %v5324, %v5325
    %v5327 = vrot.slane %v5326, 1
    %v5328 = vmax.f32 %v5326, %v5327
    %v5329 = vsel %vm5223, %v5102, -inf
    %v5330 = vrot.slane %v5329, 4
    %v5331 = vmax.f32 %v5329, %v5330
    %v5332 = vrot.slane %v5331, 2
    %v5333 = vmax.f32 %v5331, %v5332
    %v5334 = vrot.slane %v5333, 1
    %v5335 = vmax.f32 %v5333, %v5334
    %v5336 = vsel %vm5223, %v4962, -inf
    %v5337 = vrot.slane %v5336, 4
    %v5338 = vmax.f32 %v5336, %v5337
    %v5339 = vrot.slane %v5338, 2
    %v5340 = vmax.f32 %v5338, %v5339
    %v5341 = vrot.slane %v5340, 1
    %v5342 = vmax.f32 %v5340, %v5341
    %v5343 = vsel %vm5223, %v5103, -inf
    %v5344 = vrot.slane %v5343, 4
    %v5345 = vmax.f32 %v5343, %v5344
    %v5346 = vrot.slane %v5345, 2
    %v5347 = vmax.f32 %v5345, %v5346
    %v5348 = vrot.slane %v5347, 1
    %v5349 = vmax.f32 %v5347, %v5348
    %v5350 = vsel %vm5223, %v4963, -inf
    %v5351 = vrot.slane %v5350, 4
    %v5352 = vmax.f32 %v5350, %v5351
    %v5353 = vrot.slane %v5352, 2
    %v5354 = vmax.f32 %v5352, %v5353
    %v5355 = vrot.slane %v5354, 1
    %v5356 = vmax.f32 %v5354, %v5355
    %v5357 = vsel %vm5223, %v5104, -inf
    %v5358 = vrot.slane %v5357, 4
    %v5359 = vmax.f32 %v5357, %v5358
    %v5360 = vrot.slane %v5359, 2
    %v5361 = vmax.f32 %v5359, %v5360
    %v5362 = vrot.slane %v5361, 1
    %v5363 = vmax.f32 %v5361, %v5362
    %v5364 = vsel %vm5223, %v4964, -inf
    %v5365 = vrot.slane %v5364, 4
    %v5366 = vmax.f32 %v5364, %v5365
    %v5367 = vrot.slane %v5366, 2
    %v5368 = vmax.f32 %v5366, %v5367
    %v5369 = vrot.slane %v5368, 1
    %v5370 = vmax.f32 %v5368, %v5369
    %v5371 = vsel %vm5223, %v5105, -inf
    %v5372 = vrot.slane %v5371, 4
    %v5373 = vmax.f32 %v5371, %v5372
    %v5374 = vrot.slane %v5373, 2
    %v5375 = vmax.f32 %v5373, %v5374
    %v5376 = vrot.slane %v5375, 1
    %v5377 = vmax.f32 %v5375, %v5376
    %v5378 = vsel %vm5223, %v4965, -inf
    %v5379 = vrot.slane %v5378, 4
    %v5380 = vmax.f32 %v5378, %v5379
    %v5381 = vrot.slane %v5380, 2
    %v5382 = vmax.f32 %v5380, %v5381
    %v5383 = vrot.slane %v5382, 1
    %v5384 = vmax.f32 %v5382, %v5383
    %v5385 = vsel %vm5223, %v5106, -inf
    %v5386 = vrot.slane %v5385, 4
    %v5387 = vmax.f32 %v5385, %v5386
    %v5388 = vrot.slane %v5387, 2
    %v5389 = vmax.f32 %v5387, %v5388
    %v5390 = vrot.slane %v5389, 1
    %v5391 = vmax.f32 %v5389, %v5390
    %v5392 = vsel %vm5223, %v4966, -inf
    %v5393 = vrot.slane %v5392, 4
    %v5394 = vmax.f32 %v5392, %v5393
    %v5395 = vrot.slane %v5394, 2
    %v5396 = vmax.f32 %v5394, %v5395
    %v5397 = vrot.slane %v5396, 1
    %v5398 = vmax.f32 %v5396, %v5397
    %v5399 = vsel %vm5223, %v5107, -inf
    %v5400 = vrot.slane %v5399, 4
    %v5401 = vmax.f32 %v5399, %v5400
    %v5402 = vrot.slane %v5401, 2
    %v5403 = vmax.f32 %v5401, %v5402
    %v5404 = vrot.slane %v5403, 1
    %v5405 = vmax.f32 %v5403, %v5404
    %v5406 = vsel %vm5223, %v4967, -inf
    %v5407 = vrot.slane %v5406, 4
    %v5408 = vmax.f32 %v5406, %v5407
    %v5409 = vrot.slane %v5408, 2
    %v5410 = vmax.f32 %v5408, %v5409
    %v5411 = vrot.slane %v5410, 1
    %v5412 = vmax.f32 %v5410, %v5411
    %v5413 = vsel %vm5223, %v5108, -inf
    %v5414 = vrot.slane %v5413, 4
    %v5415 = vmax.f32 %v5413, %v5414
    %v5416 = vrot.slane %v5415, 2
    %v5417 = vmax.f32 %v5415, %v5416
    %v5418 = vrot.slane %v5417, 1
    %v5419 = vmax.f32 %v5417, %v5418
    %v5420 = vsel %vm5223, %v4968, -inf
    %v5421 = vrot.slane %v5420, 4
    %v5422 = vmax.f32 %v5420, %v5421
    %v5423 = vrot.slane %v5422, 2
    %v5424 = vmax.f32 %v5422, %v5423
    %v5425 = vrot.slane %v5424, 1
    %v5426 = vmax.f32 %v5424, %v5425
    %v5427 = vsel %vm5223, %v5109, -inf
    %v5428 = vrot.slane %v5427, 4
    %v5429 = vmax.f32 %v5427, %v5428
    %v5430 = vrot.slane %v5429, 2
    %v5431 = vmax.f32 %v5429, %v5430
    %v5432 = vrot.slane %v5431, 1
    %v5433 = vmax.f32 %v5431, %v5432
    %v5434 = vsel %vm5223, %v4969, -inf
    %v5435 = vrot.slane %v5434, 4
    %v5436 = vmax.f32 %v5434, %v5435
    %v5437 = vrot.slane %v5436, 2
    %v5438 = vmax.f32 %v5436, %v5437
    %v5439 = vrot.slane %v5438, 1
    %v5440 = vmax.f32 %v5438, %v5439
    %v5441 = vsel %vm5223, %v5110, -inf
    %v5442 = vrot.slane %v5441, 4
    %v5443 = vmax.f32 %v5441, %v5442
    %v5444 = vrot.slane %v5443, 2
    %v5445 = vmax.f32 %v5443, %v5444
    %v5446 = vrot.slane %v5445, 1
    %v5447 = vmax.f32 %v5445, %v5446
    %v5448 = vsel %vm5223, %v4970, -inf
    %v5449 = vrot.slane %v5448, 4
    %v5450 = vmax.f32 %v5448, %v5449
    %v5451 = vrot.slane %v5450, 2
    %v5452 = vmax.f32 %v5450, %v5451
    %v5453 = vrot.slane %v5452, 1
    %v5454 = vmax.f32 %v5452, %v5453
    %v5455 = vsel %vm5223, %v5111, -inf
    %v5456 = vrot.slane %v5455, 4
    %v5457 = vmax.f32 %v5455, %v5456
    %v5458 = vrot.slane %v5457, 2
    %v5459 = vmax.f32 %v5457, %v5458
    %v5460 = vrot.slane %v5459, 1
    %v5461 = vmax.f32 %v5459, %v5460
    %v5462 = vsel %vm5223, %v4971, -inf
    %v5463 = vrot.slane %v5462, 4
    %v5464 = vmax.f32 %v5462, %v5463
    %v5465 = vrot.slane %v5464, 2
    %v5466 = vmax.f32 %v5464, %v5465
    %v5467 = vrot.slane %v5466, 1
    %v5468 = vmax.f32 %v5466, %v5467
    %v5469 = vsel %vm5223, %v5112, -inf
    %v5470 = vrot.slane %v5469, 4
    %v5471 = vmax.f32 %v5469, %v5470
    %v5472 = vrot.slane %v5471, 2
    %v5473 = vmax.f32 %v5471, %v5472
    %v5474 = vrot.slane %v5473, 1
    %v5475 = vmax.f32 %v5473, %v5474
    %v5476 = vsel %vm5223, %v4972, -inf
    %v5477 = vrot.slane %v5476, 4
    %v5478 = vmax.f32 %v5476, %v5477
    %v5479 = vrot.slane %v5478, 2
    %v5480 = vmax.f32 %v5478, %v5479
    %v5481 = vrot.slane %v5480, 1
    %v5482 = vmax.f32 %v5480, %v5481
    %v5483 = vsel %vm5223, %v5113, -inf
    %v5484 = vrot.slane %v5483, 4
    %v5485 = vmax.f32 %v5483, %v5484
    %v5486 = vrot.slane %v5485, 2
    %v5487 = vmax.f32 %v5485, %v5486
    %v5488 = vrot.slane %v5487, 1
    %v5489 = vmax.f32 %v5487, %v5488
    %v5490 = vsel %vm5223, %v4973, -inf
    %v5491 = vrot.slane %v5490, 4
    %v5492 = vmax.f32 %v5490, %v5491
    %v5493 = vrot.slane %v5492, 2
    %v5494 = vmax.f32 %v5492, %v5493
    %v5495 = vrot.slane %v5494, 1
    %v5496 = vmax.f32 %v5494, %v5495
    %v5497 = vsel %vm5223, %v5114, -inf
    %v5498 = vrot.slane %v5497, 4
    %v5499 = vmax.f32 %v5497, %v5498
    %v5500 = vrot.slane %v5499, 2
    %v5501 = vmax.f32 %v5499, %v5500
    %v5502 = vrot.slane %v5501, 1
    %v5503 = vmax.f32 %v5501, %v5502
    %v5504 = vsel %vm5223, %v4974, -inf
    %v5505 = vrot.slane %v5504, 4
    %v5506 = vmax.f32 %v5504, %v5505
    %v5507 = vrot.slane %v5506, 2
    %v5508 = vmax.f32 %v5506, %v5507
    %v5509 = vrot.slane %v5508, 1
    %v5510 = vmax.f32 %v5508, %v5509
    %v5511 = vsel %vm5223, %v5115, -inf
    %v5512 = vrot.slane %v5511, 4
    %v5513 = vmax.f32 %v5511, %v5512
    %v5514 = vrot.slane %v5513, 2
    %v5515 = vmax.f32 %v5513, %v5514
    %v5516 = vrot.slane %v5515, 1
    %v5517 = vmax.f32 %v5515, %v5516
    %v5518 = vsel %vm5223, %v4975, -inf
    %v5519 = vrot.slane %v5518, 4
    %v5520 = vmax.f32 %v5518, %v5519
    %v5521 = vrot.slane %v5520, 2
    %v5522 = vmax.f32 %v5520, %v5521
    %v5523 = vrot.slane %v5522, 1
    %v5524 = vmax.f32 %v5522, %v5523
    %v5525 = vsel %vm5223, %v5116, -inf
    %v5526 = vrot.slane %v5525, 4
    %v5527 = vmax.f32 %v5525, %v5526
    %v5528 = vrot.slane %v5527, 2
    %v5529 = vmax.f32 %v5527, %v5528
    %v5530 = vrot.slane %v5529, 1
    %v5531 = vmax.f32 %v5529, %v5530
    %v5532 = vsel %vm5223, %v4976, -inf
    %v5533 = vrot.slane %v5532, 4
    %v5534 = vmax.f32 %v5532, %v5533
    %v5535 = vrot.slane %v5534, 2
    %v5536 = vmax.f32 %v5534, %v5535
    %v5537 = vrot.slane %v5536, 1
    %v5538 = vmax.f32 %v5536, %v5537
    %v5539 = vsel %vm5223, %v5117, -inf
    %v5540 = vrot.slane %v5539, 4
    %v5541 = vmax.f32 %v5539, %v5540
    %v5542 = vrot.slane %v5541, 2
    %v5543 = vmax.f32 %v5541, %v5542
    %v5544 = vrot.slane %v5543, 1
    %v5545 = vmax.f32 %v5543, %v5544
    %v5546 = vsel %vm5223, %v4977, -inf
    %v5547 = vrot.slane %v5546, 4
    %v5548 = vmax.f32 %v5546, %v5547
    %v5549 = vrot.slane %v5548, 2
    %v5550 = vmax.f32 %v5548, %v5549
    %v5551 = vrot.slane %v5550, 1
    %v5552 = vmax.f32 %v5550, %v5551
    %v5553 = vsel %vm5223, %v5118, -inf
    %v5554 = vrot.slane %v5553, 4
    %v5555 = vmax.f32 %v5553, %v5554
    %v5556 = vrot.slane %v5555, 2
    %v5557 = vmax.f32 %v5555, %v5556
    %v5558 = vrot.slane %v5557, 1
    %v5559 = vmax.f32 %v5557, %v5558
    %v5560 = vsel %vm5223, %v4978, -inf
    %v5561 = vrot.slane %v5560, 4
    %v5562 = vmax.f32 %v5560, %v5561
    %v5563 = vrot.slane %v5562, 2
    %v5564 = vmax.f32 %v5562, %v5563
    %v5565 = vrot.slane %v5564, 1
    %v5566 = vmax.f32 %v5564, %v5565
    %v5567 = vsel %vm5223, %v5119, -inf
    %v5568 = vrot.slane %v5567, 4
    %v5569 = vmax.f32 %v5567, %v5568
    %v5570 = vrot.slane %v5569, 2
    %v5571 = vmax.f32 %v5569, %v5570
    %v5572 = vrot.slane %v5571, 1
    %v5573 = vmax.f32 %v5571, %v5572
    %v5574 = vsel %vm5223, %v4979, -inf
    %v5575 = vrot.slane %v5574, 4
    %v5576 = vmax.f32 %v5574, %v5575
    %v5577 = vrot.slane %v5576, 2
    %v5578 = vmax.f32 %v5576, %v5577
    %v5579 = vrot.slane %v5578, 1
    %v5580 = vmax.f32 %v5578, %v5579
    %v5581 = vsel %vm5223, %v5120, -inf
    %v5582 = vrot.slane %v5581, 4
    %v5583 = vmax.f32 %v5581, %v5582
    %v5584 = vrot.slane %v5583, 2
    %v5585 = vmax.f32 %v5583, %v5584
    %v5586 = vrot.slane %v5585, 1
    %v5587 = vmax.f32 %v5585, %v5586
    %v5588 = vsel %vm5223, %v4980, -inf
    %v5589 = vrot.slane %v5588, 4
    %v5590 = vmax.f32 %v5588, %v5589
    %v5591 = vrot.slane %v5590, 2
    %v5592 = vmax.f32 %v5590, %v5591
    %v5593 = vrot.slane %v5592, 1
    %v5594 = vmax.f32 %v5592, %v5593
    %v5595 = vsel %vm5223, %v5121, -inf
    %v5596 = vrot.slane %v5595, 4
    %v5597 = vmax.f32 %v5595, %v5596
    %v5598 = vrot.slane %v5597, 2
    %v5599 = vmax.f32 %v5597, %v5598
    %v5600 = vrot.slane %v5599, 1
    %v5601 = vmax.f32 %v5599, %v5600
    %v5602 = vsel %vm5223, %v4981, -inf
    %v5603 = vrot.slane %v5602, 4
    %v5604 = vmax.f32 %v5602, %v5603
    %v5605 = vrot.slane %v5604, 2
    %v5606 = vmax.f32 %v5604, %v5605
    %v5607 = vrot.slane %v5606, 1
    %v5608 = vmax.f32 %v5606, %v5607
    %v5609 = vsel %vm5223, %v5122, -inf
    %v5610 = vrot.slane %v5609, 4
    %v5611 = vmax.f32 %v5609, %v5610
    %v5612 = vrot.slane %v5611, 2
    %v5613 = vmax.f32 %v5611, %v5612
    %v5614 = vrot.slane %v5613, 1
    %v5615 = vmax.f32 %v5613, %v5614
    %v5616 = vsel %vm5223, %v4982, -inf
    %v5617 = vrot.slane %v5616, 4
    %v5618 = vmax.f32 %v5616, %v5617
    %v5619 = vrot.slane %v5618, 2
    %v5620 = vmax.f32 %v5618, %v5619
    %v5621 = vrot.slane %v5620, 1
    %v5622 = vmax.f32 %v5620, %v5621
    %v5623 = vsel %vm5223, %v5123, -inf
    %v5624 = vrot.slane %v5623, 4
    %v5625 = vmax.f32 %v5623, %v5624
    %v5626 = vrot.slane %v5625, 2
    %v5627 = vmax.f32 %v5625, %v5626
    %v5628 = vrot.slane %v5627, 1
    %v5629 = vmax.f32 %v5627, %v5628
    %v5630 = vsel %vm5223, %v4983, -inf
    %v5631 = vrot.slane %v5630, 4
    %v5632 = vmax.f32 %v5630, %v5631
    %v5633 = vrot.slane %v5632, 2
    %v5634 = vmax.f32 %v5632, %v5633
    %v5635 = vrot.slane %v5634, 1
    %v5636 = vmax.f32 %v5634, %v5635
    %v5637 = vsel %vm5223, %v5124, -inf
    %v5638 = vrot.slane %v5637, 4
    %v5639 = vmax.f32 %v5637, %v5638
    %v5640 = vrot.slane %v5639, 2
    %v5641 = vmax.f32 %v5639, %v5640
    %v5642 = vrot.slane %v5641, 1
    %v5643 = vmax.f32 %v5641, %v5642
    %v5644 = vsel %vm5223, %v4984, -inf
    %v5645 = vrot.slane %v5644, 4
    %v5646 = vmax.f32 %v5644, %v5645
    %v5647 = vrot.slane %v5646, 2
    %v5648 = vmax.f32 %v5646, %v5647
    %v5649 = vrot.slane %v5648, 1
    %v5650 = vmax.f32 %v5648, %v5649
    %v5651 = vsel %vm5223, %v5125, -inf
    %v5652 = vrot.slane %v5651, 4
    %v5653 = vmax.f32 %v5651, %v5652
    %v5654 = vrot.slane %v5653, 2
    %v5655 = vmax.f32 %v5653, %v5654
    %v5656 = vrot.slane %v5655, 1
    %v5657 = vmax.f32 %v5655, %v5656
    %v5658 = vsel %vm5223, %v4985, -inf
    %v5659 = vrot.slane %v5658, 4
    %v5660 = vmax.f32 %v5658, %v5659
    %v5661 = vrot.slane %v5660, 2
    %v5662 = vmax.f32 %v5660, %v5661
    %v5663 = vrot.slane %v5662, 1
    %v5664 = vmax.f32 %v5662, %v5663
    %v5665 = vsel %vm5223, %v5126, -inf
    %v5666 = vrot.slane %v5665, 4
    %v5667 = vmax.f32 %v5665, %v5666
    %v5668 = vrot.slane %v5667, 2
    %v5669 = vmax.f32 %v5667, %v5668
    %v5670 = vrot.slane %v5669, 1
    %v5671 = vmax.f32 %v5669, %v5670
    %v5672 = vsel %vm5223, %v4986, -inf
    %v5673 = vrot.slane %v5672, 4
    %v5674 = vmax.f32 %v5672, %v5673
    %v5675 = vrot.slane %v5674, 2
    %v5676 = vmax.f32 %v5674, %v5675
    %v5677 = vrot.slane %v5676, 1
    %v5678 = vmax.f32 %v5676, %v5677
    %v5679 = vsel %vm5223, %v5127, -inf
    %v5680 = vrot.slane %v5679, 4
    %v5681 = vmax.f32 %v5679, %v5680
    %v5682 = vrot.slane %v5681, 2
    %v5683 = vmax.f32 %v5681, %v5682
    %v5684 = vrot.slane %v5683, 1
    %v5685 = vmax.f32 %v5683, %v5684
    %v5686 = vsel %vm5223, %v4987, -inf
    %v5687 = vrot.slane %v5686, 4
    %v5688 = vmax.f32 %v5686, %v5687
    %v5689 = vrot.slane %v5688, 2
    %v5690 = vmax.f32 %v5688, %v5689
    %v5691 = vrot.slane %v5690, 1
    %v5692 = vmax.f32 %v5690, %v5691
    %v5693 = vsel %vm5223, %v5128, -inf
    %v5694 = vrot.slane %v5693, 4
    %v5695 = vmax.f32 %v5693, %v5694
    %v5696 = vrot.slane %v5695, 2
    %v5697 = vmax.f32 %v5695, %v5696
    %v5698 = vrot.slane %v5697, 1
    %v5699 = vmax.f32 %v5697, %v5698
    %v5700 = vsel %vm5223, %v4988, -inf
    %v5701 = vrot.slane %v5700, 4
    %v5702 = vmax.f32 %v5700, %v5701
    %v5703 = vrot.slane %v5702, 2
    %v5704 = vmax.f32 %v5702, %v5703
    %v5705 = vrot.slane %v5704, 1
    %v5706 = vmax.f32 %v5704, %v5705
    %v5707 = vsel %vm5223, %v5129, -inf
    %v5708 = vrot.slane %v5707, 4
    %v5709 = vmax.f32 %v5707, %v5708
    %v5710 = vrot.slane %v5709, 2
    %v5711 = vmax.f32 %v5709, %v5710
    %v5712 = vrot.slane %v5711, 1
    %v5713 = vmax.f32 %v5711, %v5712
    %v5714 = vsel %vm5223, %v4989, -inf
    %v5715 = vrot.slane %v5714, 4
    %v5716 = vmax.f32 %v5714, %v5715
    %v5717 = vrot.slane %v5716, 2
    %v5718 = vmax.f32 %v5716, %v5717
    %v5719 = vrot.slane %v5718, 1
    %v5720 = vmax.f32 %v5718, %v5719
    %v5721 = vsel %vm5223, %v5130, -inf
    %v5722 = vrot.slane %v5721, 4
    %v5723 = vmax.f32 %v5721, %v5722
    %v5724 = vrot.slane %v5723, 2
    %v5725 = vmax.f32 %v5723, %v5724
    %v5726 = vrot.slane %v5725, 1
    %v5727 = vmax.f32 %v5725, %v5726
    %v5728 = vsel %vm5223, %v4990, -inf
    %v5729 = vrot.slane %v5728, 4
    %v5730 = vmax.f32 %v5728, %v5729
    %v5731 = vrot.slane %v5730, 2
    %v5732 = vmax.f32 %v5730, %v5731
    %v5733 = vrot.slane %v5732, 1
    %v5734 = vmax.f32 %v5732, %v5733
    %v5735 = vsel %vm5223, %v5131, -inf
    %v5736 = vrot.slane %v5735, 4
    %v5737 = vmax.f32 %v5735, %v5736
    %v5738 = vrot.slane %v5737, 2
    %v5739 = vmax.f32 %v5737, %v5738
    %v5740 = vrot.slane %v5739, 1
    %v5741 = vmax.f32 %v5739, %v5740
    %v5742 = vsel %vm5223, %v4991, -inf
    %v5743 = vrot.slane %v5742, 4
    %v5744 = vmax.f32 %v5742, %v5743
    %v5745 = vrot.slane %v5744, 2
    %v5746 = vmax.f32 %v5744, %v5745
    %v5747 = vrot.slane %v5746, 1
    %v5748 = vmax.f32 %v5746, %v5747
    %v5749 = vsel %vm5223, %v5132, -inf
    %v5750 = vrot.slane %v5749, 4
    %v5751 = vmax.f32 %v5749, %v5750
    %v5752 = vrot.slane %v5751, 2
    %v5753 = vmax.f32 %v5751, %v5752
    %v5754 = vrot.slane %v5753, 1
    %v5755 = vmax.f32 %v5753, %v5754
    %v5756 = vsel %vm5223, %v4992, -inf
    %v5757 = vrot.slane %v5756, 4
    %v5758 = vmax.f32 %v5756, %v5757
    %v5759 = vrot.slane %v5758, 2
    %v5760 = vmax.f32 %v5758, %v5759
    %v5761 = vrot.slane %v5760, 1
    %v5762 = vmax.f32 %v5760, %v5761
    %v5763 = vsel %vm5223, %v5133, -inf
    %v5764 = vrot.slane %v5763, 4
    %v5765 = vmax.f32 %v5763, %v5764
    %v5766 = vrot.slane %v5765, 2
    %v5767 = vmax.f32 %v5765, %v5766
    %v5768 = vrot.slane %v5767, 1
    %v5769 = vmax.f32 %v5767, %v5768
    %v5770 = vsel %vm5223, %v4993, -inf
    %v5771 = vrot.slane %v5770, 4
    %v5772 = vmax.f32 %v5770, %v5771
    %v5773 = vrot.slane %v5772, 2
    %v5774 = vmax.f32 %v5772, %v5773
    %v5775 = vrot.slane %v5774, 1
    %v5776 = vmax.f32 %v5774, %v5775
    %v5777 = vsel %vm5223, %v5134, -inf
    %v5778 = vrot.slane %v5777, 4
    %v5779 = vmax.f32 %v5777, %v5778
    %v5780 = vrot.slane %v5779, 2
    %v5781 = vmax.f32 %v5779, %v5780
    %v5782 = vrot.slane %v5781, 1
    %v5783 = vmax.f32 %v5781, %v5782
    %v5784 = vsel %vm5223, %v4994, -inf
    %v5785 = vrot.slane %v5784, 4
    %v5786 = vmax.f32 %v5784, %v5785
    %v5787 = vrot.slane %v5786, 2
    %v5788 = vmax.f32 %v5786, %v5787
    %v5789 = vrot.slane %v5788, 1
    %v5790 = vmax.f32 %v5788, %v5789
    %v5791 = vsel %vm5223, %v5135, -inf
    %v5792 = vrot.slane %v5791, 4
    %v5793 = vmax.f32 %v5791, %v5792
    %v5794 = vrot.slane %v5793, 2
    %v5795 = vmax.f32 %v5793, %v5794
    %v5796 = vrot.slane %v5795, 1
    %v5797 = vmax.f32 %v5795, %v5796
    %v5798 = vsel %vm5223, %v4995, -inf
    %v5799 = vrot.slane %v5798, 4
    %v5800 = vmax.f32 %v5798, %v5799
    %v5801 = vrot.slane %v5800, 2
    %v5802 = vmax.f32 %v5800, %v5801
    %v5803 = vrot.slane %v5802, 1
    %v5804 = vmax.f32 %v5802, %v5803
    %v5805 = vsel %vm5223, %v5136, -inf
    %v5806 = vrot.slane %v5805, 4
    %v5807 = vmax.f32 %v5805, %v5806
    %v5808 = vrot.slane %v5807, 2
    %v5809 = vmax.f32 %v5807, %v5808
    %v5810 = vrot.slane %v5809, 1
    %v5811 = vmax.f32 %v5809, %v5810
    %v5812 = vsel %vm5223, %v4996, -inf
    %v5813 = vrot.slane %v5812, 4
    %v5814 = vmax.f32 %v5812, %v5813
    %v5815 = vrot.slane %v5814, 2
    %v5816 = vmax.f32 %v5814, %v5815
    %v5817 = vrot.slane %v5816, 1
    %v5818 = vmax.f32 %v5816, %v5817
    %v5819 = vsel %vm5223, %v5137, -inf
    %v5820 = vrot.slane %v5819, 4
    %v5821 = vmax.f32 %v5819, %v5820
    %v5822 = vrot.slane %v5821, 2
    %v5823 = vmax.f32 %v5821, %v5822
    %v5824 = vrot.slane %v5823, 1
    %v5825 = vmax.f32 %v5823, %v5824
    %v5826 = vsel %vm5223, %v4997, -inf
    %v5827 = vrot.slane %v5826, 4
    %v5828 = vmax.f32 %v5826, %v5827
    %v5829 = vrot.slane %v5828, 2
    %v5830 = vmax.f32 %v5828, %v5829
    %v5831 = vrot.slane %v5830, 1
    %v5832 = vmax.f32 %v5830, %v5831
    %v5833 = vsel %vm5223, %v5138, -inf
    %v5834 = vrot.slane %v5833, 4
    %v5835 = vmax.f32 %v5833, %v5834
    %v5836 = vrot.slane %v5835, 2
    %v5837 = vmax.f32 %v5835, %v5836
    %v5838 = vrot.slane %v5837, 1
    %v5839 = vmax.f32 %v5837, %v5838
    %v5840 = vsel %vm5223, %v4998, -inf
    %v5841 = vrot.slane %v5840, 4
    %v5842 = vmax.f32 %v5840, %v5841
    %v5843 = vrot.slane %v5842, 2
    %v5844 = vmax.f32 %v5842, %v5843
    %v5845 = vrot.slane %v5844, 1
    %v5846 = vmax.f32 %v5844, %v5845
    %v5847 = vsel %vm5223, %v5139, -inf
    %v5848 = vrot.slane %v5847, 4
    %v5849 = vmax.f32 %v5847, %v5848
    %v5850 = vrot.slane %v5849, 2
    %v5851 = vmax.f32 %v5849, %v5850
    %v5852 = vrot.slane %v5851, 1
    %v5853 = vmax.f32 %v5851, %v5852
    %v5854 = vsel %vm5223, %v4999, -inf
    %v5855 = vrot.slane %v5854, 4
    %v5856 = vmax.f32 %v5854, %v5855
    %v5857 = vrot.slane %v5856, 2
    %v5858 = vmax.f32 %v5856, %v5857
    %v5859 = vrot.slane %v5858, 1
    %v5860 = vmax.f32 %v5858, %v5859
    %v5861 = vsel %vm5223, %v5140, -inf
    %v5862 = vrot.slane %v5861, 4
    %v5863 = vmax.f32 %v5861, %v5862
    %v5864 = vrot.slane %v5863, 2
    %v5865 = vmax.f32 %v5863, %v5864
    %v5866 = vrot.slane %v5865, 1
    %v5867 = vmax.f32 %v5865, %v5866
    %v5868 = vsel %vm5223, %v5000, -inf
    %v5869 = vrot.slane %v5868, 4
    %v5870 = vmax.f32 %v5868, %v5869
    %v5871 = vrot.slane %v5870, 2
    %v5872 = vmax.f32 %v5870, %v5871
    %v5873 = vrot.slane %v5872, 1
    %v5874 = vmax.f32 %v5872, %v5873
    %v5875 = vsel %vm5223, %v5141, -inf
    %v5876 = vrot.slane %v5875, 4
    %v5877 = vmax.f32 %v5875, %v5876
    %v5878 = vrot.slane %v5877, 2
    %v5879 = vmax.f32 %v5877, %v5878
    %v5880 = vrot.slane %v5879, 1
    %v5881 = vmax.f32 %v5879, %v5880
    %v5882 = vsel %vm5223, %v5001, -inf
    %v5883 = vrot.slane %v5882, 4
    %v5884 = vmax.f32 %v5882, %v5883
    %v5885 = vrot.slane %v5884, 2
    %v5886 = vmax.f32 %v5884, %v5885
    %v5887 = vrot.slane %v5886, 1
    %v5888 = vmax.f32 %v5886, %v5887
    %v5889 = vsel %vm5223, %v5142, -inf
    %v5890 = vrot.slane %v5889, 4
    %v5891 = vmax.f32 %v5889, %v5890
    %v5892 = vrot.slane %v5891, 2
    %v5893 = vmax.f32 %v5891, %v5892
    %v5894 = vrot.slane %v5893, 1
    %v5895 = vmax.f32 %v5893, %v5894
    %v5896 = vsel %vm5223, %v5002, -inf
    %v5897 = vrot.slane %v5896, 4
    %v5898 = vmax.f32 %v5896, %v5897
    %v5899 = vrot.slane %v5898, 2
    %v5900 = vmax.f32 %v5898, %v5899
    %v5901 = vrot.slane %v5900, 1
    %v5902 = vmax.f32 %v5900, %v5901
    %v5903 = vsel %vm5223, %v5143, -inf
    %v5904 = vrot.slane %v5903, 4
    %v5905 = vmax.f32 %v5903, %v5904
    %v5906 = vrot.slane %v5905, 2
    %v5907 = vmax.f32 %v5905, %v5906
    %v5908 = vrot.slane %v5907, 1
    %v5909 = vmax.f32 %v5907, %v5908
    %v5910 = vsel %vm5223, %v5003, -inf
    %v5911 = vrot.slane %v5910, 4
    %v5912 = vmax.f32 %v5910, %v5911
    %v5913 = vrot.slane %v5912, 2
    %v5914 = vmax.f32 %v5912, %v5913
    %v5915 = vrot.slane %v5914, 1
    %v5916 = vmax.f32 %v5914, %v5915
    %v5917 = vsel %vm5223, %v5144, -inf
    %v5918 = vrot.slane %v5917, 4
    %v5919 = vmax.f32 %v5917, %v5918
    %v5920 = vrot.slane %v5919, 2
    %v5921 = vmax.f32 %v5919, %v5920
    %v5922 = vrot.slane %v5921, 1
    %v5923 = vmax.f32 %v5921, %v5922
    %v5924 = vsel %vm5223, %v5004, -inf
    %v5925 = vrot.slane %v5924, 4
    %v5926 = vmax.f32 %v5924, %v5925
    %v5927 = vrot.slane %v5926, 2
    %v5928 = vmax.f32 %v5926, %v5927
    %v5929 = vrot.slane %v5928, 1
    %v5930 = vmax.f32 %v5928, %v5929
    %v5931 = vsel %vm5223, %v5145, -inf
    %v5932 = vrot.slane %v5931, 4
    %v5933 = vmax.f32 %v5931, %v5932
    %v5934 = vrot.slane %v5933, 2
    %v5935 = vmax.f32 %v5933, %v5934
    %v5936 = vrot.slane %v5935, 1
    %v5937 = vmax.f32 %v5935, %v5936
    %v5938 = vsel %vm5223, %v5005, -inf
    %v5939 = vrot.slane %v5938, 4
    %v5940 = vmax.f32 %v5938, %v5939
    %v5941 = vrot.slane %v5940, 2
    %v5942 = vmax.f32 %v5940, %v5941
    %v5943 = vrot.slane %v5942, 1
    %v5944 = vmax.f32 %v5942, %v5943
    %v5945 = vsel %vm5223, %v5146, -inf
    %v5946 = vrot.slane %v5945, 4
    %v5947 = vmax.f32 %v5945, %v5946
    %v5948 = vrot.slane %v5947, 2
    %v5949 = vmax.f32 %v5947, %v5948
    %v5950 = vrot.slane %v5949, 1
    %v5951 = vmax.f32 %v5949, %v5950
    %v5952 = vsel %vm5223, %v5006, -inf
    %v5953 = vrot.slane %v5952, 4
    %v5954 = vmax.f32 %v5952, %v5953
    %v5955 = vrot.slane %v5954, 2
    %v5956 = vmax.f32 %v5954, %v5955
    %v5957 = vrot.slane %v5956, 1
    %v5958 = vmax.f32 %v5956, %v5957
    %v5959 = vsel %vm5223, %v5147, -inf
    %v5960 = vrot.slane %v5959, 4
    %v5961 = vmax.f32 %v5959, %v5960
    %v5962 = vrot.slane %v5961, 2
    %v5963 = vmax.f32 %v5961, %v5962
    %v5964 = vrot.slane %v5963, 1
    %v5965 = vmax.f32 %v5963, %v5964
    %v5966 = vsel %vm5223, %v5007, -inf
    %v5967 = vrot.slane %v5966, 4
    %v5968 = vmax.f32 %v5966, %v5967
    %v5969 = vrot.slane %v5968, 2
    %v5970 = vmax.f32 %v5968, %v5969
    %v5971 = vrot.slane %v5970, 1
    %v5972 = vmax.f32 %v5970, %v5971
    %v5973 = vsel %vm5223, %v5148, -inf
    %v5974 = vrot.slane %v5973, 4
    %v5975 = vmax.f32 %v5973, %v5974
    %v5976 = vrot.slane %v5975, 2
    %v5977 = vmax.f32 %v5975, %v5976
    %v5978 = vrot.slane %v5977, 1
    %v5979 = vmax.f32 %v5977, %v5978
    %v5980 = vsel %vm5223, %v5008, -inf
    %v5981 = vrot.slane %v5980, 4
    %v5982 = vmax.f32 %v5980, %v5981
    %v5983 = vrot.slane %v5982, 2
    %v5984 = vmax.f32 %v5982, %v5983
    %v5985 = vrot.slane %v5984, 1
    %v5986 = vmax.f32 %v5984, %v5985
    %v5987 = vsel %vm5223, %v5149, -inf
    %v5988 = vrot.slane %v5987, 4
    %v5989 = vmax.f32 %v5987, %v5988
    %v5990 = vrot.slane %v5989, 2
    %v5991 = vmax.f32 %v5989, %v5990
    %v5992 = vrot.slane %v5991, 1
    %v5993 = vmax.f32 %v5991, %v5992
    %v5994 = vsel %vm5223, %v5009, -inf
    %v5995 = vrot.slane %v5994, 4
    %v5996 = vmax.f32 %v5994, %v5995
    %v5997 = vrot.slane %v5996, 2
    %v5998 = vmax.f32 %v5996, %v5997
    %v5999 = vrot.slane %v5998, 1
    %v6000 = vmax.f32 %v5998, %v5999
    %v6001 = vsel %vm5223, %v5150, -inf
    %v6002 = vrot.slane %v6001, 4
    %v6003 = vmax.f32 %v6001, %v6002
    %v6004 = vrot.slane %v6003, 2
    %v6005 = vmax.f32 %v6003, %v6004
    %v6006 = vrot.slane %v6005, 1
    %v6007 = vmax.f32 %v6005, %v6006
    %v6008 = vsel %vm5223, %v5010, -inf
    %v6009 = vrot.slane %v6008, 4
    %v6010 = vmax.f32 %v6008, %v6009
    %v6011 = vrot.slane %v6010, 2
    %v6012 = vmax.f32 %v6010, %v6011
    %v6013 = vrot.slane %v6012, 1
    %v6014 = vmax.f32 %v6012, %v6013
    %v6015 = vsel %vm5223, %v5151, -inf
    %v6016 = vrot.slane %v6015, 4
    %v6017 = vmax.f32 %v6015, %v6016
    %v6018 = vrot.slane %v6017, 2
    %v6019 = vmax.f32 %v6017, %v6018
    %v6020 = vrot.slane %v6019, 1
    %v6021 = vmax.f32 %v6019, %v6020
    %v6022 = vsel %vm5223, %v5011, -inf
    %v6023 = vrot.slane %v6022, 4
    %v6024 = vmax.f32 %v6022, %v6023
    %v6025 = vrot.slane %v6024, 2
    %v6026 = vmax.f32 %v6024, %v6025
    %v6027 = vrot.slane %v6026, 1
    %v6028 = vmax.f32 %v6026, %v6027
    %v6029 = vsel %vm5223, %v5152, -inf
    %v6030 = vrot.slane %v6029, 4
    %v6031 = vmax.f32 %v6029, %v6030
    %v6032 = vrot.slane %v6031, 2
    %v6033 = vmax.f32 %v6031, %v6032
    %v6034 = vrot.slane %v6033, 1
    %v6035 = vmax.f32 %v6033, %v6034
    %v6036 = vsel %vm5223, %v5012, -inf
    %v6037 = vrot.slane %v6036, 4
    %v6038 = vmax.f32 %v6036, %v6037
    %v6039 = vrot.slane %v6038, 2
    %v6040 = vmax.f32 %v6038, %v6039
    %v6041 = vrot.slane %v6040, 1
    %v6042 = vmax.f32 %v6040, %v6041
    %v6043 = vsel %vm5223, %v5153, -inf
    %v6044 = vrot.slane %v6043, 4
    %v6045 = vmax.f32 %v6043, %v6044
    %v6046 = vrot.slane %v6045, 2
    %v6047 = vmax.f32 %v6045, %v6046
    %v6048 = vrot.slane %v6047, 1
    %v6049 = vmax.f32 %v6047, %v6048
    %v6050 = vsel %vm5223, %v5013, -inf
    %v6051 = vrot.slane %v6050, 4
    %v6052 = vmax.f32 %v6050, %v6051
    %v6053 = vrot.slane %v6052, 2
    %v6054 = vmax.f32 %v6052, %v6053
    %v6055 = vrot.slane %v6054, 1
    %v6056 = vmax.f32 %v6054, %v6055
    %v6057 = vsel %vm5223, %v5154, -inf
    %v6058 = vrot.slane %v6057, 4
    %v6059 = vmax.f32 %v6057, %v6058
    %v6060 = vrot.slane %v6059, 2
    %v6061 = vmax.f32 %v6059, %v6060
    %v6062 = vrot.slane %v6061, 1
    %v6063 = vmax.f32 %v6061, %v6062
    %v6064 = vsel %vm5223, %v5014, -inf
    %v6065 = vrot.slane %v6064, 4
    %v6066 = vmax.f32 %v6064, %v6065
    %v6067 = vrot.slane %v6066, 2
    %v6068 = vmax.f32 %v6066, %v6067
    %v6069 = vrot.slane %v6068, 1
    %v6070 = vmax.f32 %v6068, %v6069
    %v6071 = vsel %vm5223, %v5155, -inf
    %v6072 = vrot.slane %v6071, 4
    %v6073 = vmax.f32 %v6071, %v6072
    %v6074 = vrot.slane %v6073, 2
    %v6075 = vmax.f32 %v6073, %v6074
    %v6076 = vrot.slane %v6075, 1
    %v6077 = vmax.f32 %v6075, %v6076
    %v6078 = vsel %vm5223, %v5015, -inf
    %v6079 = vrot.slane %v6078, 4
    %v6080 = vmax.f32 %v6078, %v6079
    %v6081 = vrot.slane %v6080, 2
    %v6082 = vmax.f32 %v6080, %v6081
    %v6083 = vrot.slane %v6082, 1
    %v6084 = vmax.f32 %v6082, %v6083
    %v6085 = vsel %vm5223, %v5156, -inf
    %v6086 = vrot.slane %v6085, 4
    %v6087 = vmax.f32 %v6085, %v6086
    %v6088 = vrot.slane %v6087, 2
    %v6089 = vmax.f32 %v6087, %v6088
    %v6090 = vrot.slane %v6089, 1
    %v6091 = vmax.f32 %v6089, %v6090
    %v6092 = vsel %vm5223, %v5016, -inf
    %v6093 = vrot.slane %v6092, 4
    %v6094 = vmax.f32 %v6092, %v6093
    %v6095 = vrot.slane %v6094, 2
    %v6096 = vmax.f32 %v6094, %v6095
    %v6097 = vrot.slane %v6096, 1
    %v6098 = vmax.f32 %v6096, %v6097
    %v6099 = vsel %vm5223, %v5157, -inf
    %v6100 = vrot.slane %v6099, 4
    %v6101 = vmax.f32 %v6099, %v6100
    %v6102 = vrot.slane %v6101, 2
    %v6103 = vmax.f32 %v6101, %v6102
    %v6104 = vrot.slane %v6103, 1
    %v6105 = vmax.f32 %v6103, %v6104
    %v6106 = vsel %vm5223, %v5017, -inf
    %v6107 = vrot.slane %v6106, 4
    %v6108 = vmax.f32 %v6106, %v6107
    %v6109 = vrot.slane %v6108, 2
    %v6110 = vmax.f32 %v6108, %v6109
    %v6111 = vrot.slane %v6110, 1
    %v6112 = vmax.f32 %v6110, %v6111
    %v6113 = vsel %vm5223, %v5158, -inf
    %v6114 = vrot.slane %v6113, 4
    %v6115 = vmax.f32 %v6113, %v6114
    %v6116 = vrot.slane %v6115, 2
    %v6117 = vmax.f32 %v6115, %v6116
    %v6118 = vrot.slane %v6117, 1
    %v6119 = vmax.f32 %v6117, %v6118
    %vm6120 = vcmask 261120
    %v6121 = vsel %vm6120, %v5230, -inf
    %v6122 = vsel %vm6120, %v5258, -inf
    %v6123 = vmax.f32 %v6121, %v6122
    %v6124 = vsel %vm6120, %v5286, -inf
    %v6125 = vmax.f32 %v6123, %v6124
    %v6126 = vsel %vm6120, %v5314, -inf
    %v6127 = vmax.f32 %v6125, %v6126
    %v6128 = vsel %vm6120, %v5237, -inf
    %v6129 = vsel %vm6120, %v5265, -inf
    %v6130 = vmax.f32 %v6128, %v6129
    %v6131 = vsel %vm6120, %v5293, -inf
    %v6132 = vmax.f32 %v6130, %v6131
    %v6133 = vsel %vm6120, %v5321, -inf
    %v6134 = vmax.f32 %v6132, %v6133
    %v6135 = vsel %vm6120, %v5244, -inf
    %v6136 = vsel %vm6120, %v5272, -inf
    %v6137 = vmax.f32 %v6135, %v6136
    %v6138 = vsel %vm6120, %v5300, -inf
    %v6139 = vmax.f32 %v6137, %v6138
    %v6140 = vsel %vm6120, %v5328, -inf
    %v6141 = vmax.f32 %v6139, %v6140
    %v6142 = vsel %vm6120, %v5251, -inf
    %v6143 = vsel %vm6120, %v5279, -inf
    %v6144 = vmax.f32 %v6142, %v6143
    %v6145 = vsel %vm6120, %v5307, -inf
    %v6146 = vmax.f32 %v6144, %v6145
    %v6147 = vsel %vm6120, %v5335, -inf
    %v6148 = vmax.f32 %v6146, %v6147
    %v6149 = vsel %vm6120, %v5342, -inf
    %v6150 = vsel %vm6120, %v5370, -inf
    %v6151 = vmax.f32 %v6149, %v6150
    %v6152 = vsel %vm6120, %v5398, -inf
    %v6153 = vmax.f32 %v6151, %v6152
    %v6154 = vsel %vm6120, %v5426, -inf
    %v6155 = vmax.f32 %v6153, %v6154
    %v6156 = vsel %vm6120, %v5349, -inf
    %v6157 = vsel %vm6120, %v5377, -inf
    %v6158 = vmax.f32 %v6156, %v6157
    %v6159 = vsel %vm6120, %v5405, -inf
    %v6160 = vmax.f32 %v6158, %v6159
    %v6161 = vsel %vm6120, %v5433, -inf
    %v6162 = vmax.f32 %v6160, %v6161
    %v6163 = vsel %vm6120, %v5356, -inf
    %v6164 = vsel %vm6120, %v5384, -inf
    %v6165 = vmax.f32 %v6163, %v6164
    %v6166 = vsel %vm6120, %v5412, -inf
    %v6167 = vmax.f32 %v6165, %v6166
    %v6168 = vsel %vm6120, %v5440, -inf
    %v6169 = vmax.f32 %v6167, %v6168
    %v6170 = vsel %vm6120, %v5363, -inf
    %v6171 = vsel %vm6120, %v5391, -inf
    %v6172 = vmax.f32 %v6170, %v6171
    %v6173 = vsel %vm6120, %v5419, -inf
    %v6174 = vmax.f32 %v6172, %v6173
    %v6175 = vsel %vm6120, %v5447, -inf
    %v6176 = vmax.f32 %v6174, %v6175
    %v6177 = vsel %vm6120, %v5454, -inf
    %v6178 = vsel %vm6120, %v5482, -inf
    %v6179 = vmax.f32 %v6177, %v6178
    %v6180 = vsel %vm6120, %v5510, -inf
    %v6181 = vmax.f32 %v6179, %v6180
    %v6182 = vsel %vm6120, %v5538, -inf
    %v6183 = vmax.f32 %v6181, %v6182
    %v6184 = vsel %vm6120, %v5461, -inf
    %v6185 = vsel %vm6120, %v5489, -inf
    %v6186 = vmax.f32 %v6184, %v6185
    %v6187 = vsel %vm6120, %v5517, -inf
    %v6188 = vmax.f32 %v6186, %v6187
    %v6189 = vsel %vm6120, %v5545, -inf
    %v6190 = vmax.f32 %v6188, %v6189
    %v6191 = vsel %vm6120, %v5468, -inf
    %v6192 = vsel %vm6120, %v5496, -inf
    %v6193 = vmax.f32 %v6191, %v6192
    %v6194 = vsel %vm6120, %v5524, -inf
    %v6195 = vmax.f32 %v6193, %v6194
    %v6196 = vsel %vm6120, %v5552, -inf
    %v6197 = vmax.f32 %v6195, %v6196
    %v6198 = vsel %vm6120, %v5475, -inf
    %v6199 = vsel %vm6120, %v5503, -inf
    %v6200 = vmax.f32 %v6198, %v6199
    %v6201 = vsel %vm6120, %v5531, -inf
    %v6202 = vmax.f32 %v6200, %v6201
    %v6203 = vsel %vm6120, %v5559, -inf
    %v6204 = vmax.f32 %v6202, %v6203
    %v6205 = vsel %vm6120, %v5566, -inf
    %v6206 = vsel %vm6120, %v5594, -inf
    %v6207 = vmax.f32 %v6205, %v6206
    %v6208 = vsel %vm6120, %v5622, -inf
    %v6209 = vmax.f32 %v6207, %v6208
    %v6210 = vsel %vm6120, %v5650, -inf
    %v6211 = vmax.f32 %v6209, %v6210
    %v6212 = vsel %vm6120, %v5573, -inf
    %v6213 = vsel %vm6120, %v5601, -inf
    %v6214 = vmax.f32 %v6212, %v6213
    %v6215 = vsel %vm6120, %v5629, -inf
    %v6216 = vmax.f32 %v6214, %v6215
    %v6217 = vsel %vm6120, %v5657, -inf
    %v6218 = vmax.f32 %v6216, %v6217
    %v6219 = vsel %vm6120, %v5580, -inf
    %v6220 = vsel %vm6120, %v5608, -inf
    %v6221 = vmax.f32 %v6219, %v6220
    %v6222 = vsel %vm6120, %v5636, -inf
    %v6223 = vmax.f32 %v6221, %v6222
    %v6224 = vsel %vm6120, %v5664, -inf
    %v6225 = vmax.f32 %v6223, %v6224
    %v6226 = vsel %vm6120, %v5587, -inf
    %v6227 = vsel %vm6120, %v5615, -inf
    %v6228 = vmax.f32 %v6226, %v6227
    %v6229 = vsel %vm6120, %v5643, -inf
    %v6230 = vmax.f32 %v6228, %v6229
    %v6231 = vsel %vm6120, %v5671, -inf
    %v6232 = vmax.f32 %v6230, %v6231
    %v6233 = vsel %vm6120, %v5678, -inf
    %v6234 = vsel %vm6120, %v5706, -inf
    %v6235 = vmax.f32 %v6233, %v6234
    %v6236 = vsel %vm6120, %v5734, -inf
    %v6237 = vmax.f32 %v6235, %v6236
    %v6238 = vsel %vm6120, %v5762, -inf
    %v6239 = vmax.f32 %v6237, %v6238
    %v6240 = vsel %vm6120, %v5685, -inf
    %v6241 = vsel %vm6120, %v5713, -inf
    %v6242 = vmax.f32 %v6240, %v6241
    %v6243 = vsel %vm6120, %v5741, -inf
    %v6244 = vmax.f32 %v6242, %v6243
    %v6245 = vsel %vm6120, %v5769, -inf
    %v6246 = vmax.f32 %v6244, %v6245
    %v6247 = vsel %vm6120, %v5692, -inf
    %v6248 = vsel %vm6120, %v5720, -inf
    %v6249 = vmax.f32 %v6247, %v6248
    %v6250 = vsel %vm6120, %v5748, -inf
    %v6251 = vmax.f32 %v6249, %v6250
    %v6252 = vsel %vm6120, %v5776, -inf
    %v6253 = vmax.f32 %v6251, %v6252
    %v6254 = vsel %vm6120, %v5699, -inf
    %v6255 = vsel %vm6120, %v5727, -inf
    %v6256 = vmax.f32 %v6254, %v6255
    %v6257 = vsel %vm6120, %v5755, -inf
    %v6258 = vmax.f32 %v6256, %v6257
    %v6259 = vsel %vm6120, %v5783, -inf
    %v6260 = vmax.f32 %v6258, %v6259
    %v6261 = vsel %vm6120, %v5790, -inf
    %v6262 = vsel %vm6120, %v5818, -inf
    %v6263 = vmax.f32 %v6261, %v6262
    %v6264 = vsel %vm6120, %v5846, -inf
    %v6265 = vmax.f32 %v6263, %v6264
    %v6266 = vsel %vm6120, %v5874, -inf
    %v6267 = vmax.f32 %v6265, %v6266
    %v6268 = vsel %vm6120, %v5797, -inf
    %v6269 = vsel %vm6120, %v5825, -inf
    %v6270 = vmax.f32 %v6268, %v6269
    %v6271 = vsel %vm6120, %v5853, -inf
    %v6272 = vmax.f32 %v6270, %v6271
    %v6273 = vsel %vm6120, %v5881, -inf
    %v6274 = vmax.f32 %v6272, %v6273
    %v6275 = vsel %vm6120, %v5804, -inf
    %v6276 = vsel %vm6120, %v5832, -inf
    %v6277 = vmax.f32 %v6275, %v6276
    %v6278 = vsel %vm6120, %v5860, -inf
    %v6279 = vmax.f32 %v6277, %v6278
    %v6280 = vsel %vm6120, %v5888, -inf
    %v6281 = vmax.f32 %v6279, %v6280
    %v6282 = vsel %vm6120, %v5811, -inf
    %v6283 = vsel %vm6120, %v5839, -inf
    %v6284 = vmax.f32 %v6282, %v6283
    %v6285 = vsel %vm6120, %v5867, -inf
    %v6286 = vmax.f32 %v6284, %v6285
    %v6287 = vsel %vm6120, %v5895, -inf
    %v6288 = vmax.f32 %v6286, %v6287
    %v6289 = vsel %vm6120, %v5902, -inf
    %v6290 = vsel %vm6120, %v5930, -inf
    %v6291 = vmax.f32 %v6289, %v6290
    %v6292 = vsel %vm6120, %v5958, -inf
    %v6293 = vmax.f32 %v6291, %v6292
    %v6294 = vsel %vm6120, %v5986, -inf
    %v6295 = vmax.f32 %v6293, %v6294
    %v6296 = vsel %vm6120, %v5909, -inf
    %v6297 = vsel %vm6120, %v5937, -inf
    %v6298 = vmax.f32 %v6296, %v6297
    %v6299 = vsel %vm6120, %v5965, -inf
    %v6300 = vmax.f32 %v6298, %v6299
    %v6301 = vsel %vm6120, %v5993, -inf
    %v6302 = vmax.f32 %v6300, %v6301
    %v6303 = vsel %vm6120, %v5916, -inf
    %v6304 = vsel %vm6120, %v5944, -inf
    %v6305 = vmax.f32 %v6303, %v6304
    %v6306 = vsel %vm6120, %v5972, -inf
    %v6307 = vmax.f32 %v6305, %v6306
    %v6308 = vsel %vm6120, %v6000, -inf
    %v6309 = vmax.f32 %v6307, %v6308
    %v6310 = vsel %vm6120, %v5923, -inf
    %v6311 = vsel %vm6120, %v5951, -inf
    %v6312 = vmax.f32 %v6310, %v6311
    %v6313 = vsel %vm6120, %v5979, -inf
    %v6314 = vmax.f32 %v6312, %v6313
    %v6315 = vsel %vm6120, %v6007, -inf
    %v6316 = vmax.f32 %v6314, %v6315
    %v6317 = vsel %vm6120, %v6014, -inf
    %v6318 = vsel %vm6120, %v6042, -inf
    %v6319 = vmax.f32 %v6317, %v6318
    %v6320 = vsel %vm6120, %v6070, -inf
    %v6321 = vmax.f32 %v6319, %v6320
    %v6322 = vsel %vm6120, %v6098, -inf
    %v6323 = vmax.f32 %v6321, %v6322
    %v6324 = vsel %vm6120, %v6021, -inf
    %v6325 = vsel %vm6120, %v6049, -inf
    %v6326 = vmax.f32 %v6324, %v6325
    %v6327 = vsel %vm6120, %v6077, -inf
    %v6328 = vmax.f32 %v6326, %v6327
    %v6329 = vsel %vm6120, %v6105, -inf
    %v6330 = vmax.f32 %v6328, %v6329
    %v6331 = vsel %vm6120, %v6028, -inf
    %v6332 = vsel %vm6120, %v6056, -inf
    %v6333 = vmax.f32 %v6331, %v6332
    %v6334 = vsel %vm6120, %v6084, -inf
    %v6335 = vmax.f32 %v6333, %v6334
    %v6336 = vsel %vm6120, %v6112, -inf
    %v6337 = vmax.f32 %v6335, %v6336
    %v6338 = vsel %vm6120, %v6035, -inf
    %v6339 = vsel %vm6120, %v6063, -inf
    %v6340 = vmax.f32 %v6338, %v6339
    %v6341 = vsel %vm6120, %v6091, -inf
    %v6342 = vmax.f32 %v6340, %v6341
    %v6343 = vsel %vm6120, %v6119, -inf
    %v6344 = vmax.f32 %v6342, %v6343
    %vm6377 = vcmask 1041409
    %v6378 = vsel %vm6377, %v6134, %v6127
    %vm6379 = vcmask 1042434
    %v6380 = vsel %vm6379, %v6141, %v6378
    %vm6381 = vcmask 1043459
    %v6382 = vsel %vm6381, %v6148, %v6380
    %v6383 = vsel %vm6377, %v6162, %v6155
    %v6384 = vsel %vm6379, %v6169, %v6383
    %v6385 = vsel %vm6381, %v6176, %v6384
    %v6386 = vsel %vm6377, %v6190, %v6183
    %v6387 = vsel %vm6379, %v6197, %v6386
    %v6388 = vsel %vm6381, %v6204, %v6387
    %v6389 = vsel %vm6377, %v6218, %v6211
    %v6390 = vsel %vm6379, %v6225, %v6389
    %v6391 = vsel %vm6381, %v6232, %v6390
    %v6392 = vsel %vm6377, %v6246, %v6239
    %v6393 = vsel %vm6379, %v6253, %v6392
    %v6394 = vsel %vm6381, %v6260, %v6393
    %v6395 = vsel %vm6377, %v6274, %v6267
    %v6396 = vsel %vm6379, %v6281, %v6395
    %v6397 = vsel %vm6381, %v6288, %v6396
    %v6398 = vsel %vm6377, %v6302, %v6295
    %v6399 = vsel %vm6379, %v6309, %v6398
    %v6400 = vsel %vm6381, %v6316, %v6399
    %v6401 = vsel %vm6377, %v6330, %v6323
    %v6402 = vsel %vm6379, %v6337, %v6401
    %v6403 = vsel %vm6381, %v6344, %v6402
    %s6412 = scalar_lea.vmem [#allocation3], 8
    %6413 = vst.msk [vmem:[%s6412 + $0x1] sm:$0xf] %vm5223, %v6382
    %6414 = vst.msk [vmem:[%s6412 + $0x9] sm:$0xf] %vm5223, %v6385
    %6415 = vst.msk [vmem:[%s6412 + $0x11] sm:$0xf] %vm5223, %v6388
    %6416 = vst.msk [vmem:[%s6412 + $0x19] sm:$0xf] %vm5223, %v6391
    %6417 = vst.msk [vmem:[%s6412 + $0x31] sm:$0xf] %vm5223, %v6394
    %6418 = vst.msk [vmem:[%s6412 + $0x39] sm:$0xf] %vm5223, %v6397
    %6419 = vst.msk [vmem:[%s6412 + $0x41] sm:$0xf] %vm5223, %v6400
    %6420 = vst.msk [vmem:[%s6412 + $0x49] sm:$0xf] %vm5223, %v6403
    %v6421 = vld [vmem:[%s3] sm:$0xff]
    %v6422 = vld [vmem:[%s3 + $0x8] sm:$0xff]
    %v6423 = vld [vmem:[%s3 + $0x10] sm:$0xff]
    %v6424 = vld [vmem:[%s3 + $0x18] sm:$0xff]
    %v6425 = vld [vmem:[%s3 + $0x20] sm:$0xff]
    %v6426 = vld [vmem:[%s3 + $0x28] sm:$0xff]
    %v6427 = vld [vmem:[%s3 + $0x30] sm:$0xff]
    %v6428 = vld [vmem:[%s3 + $0x38] sm:$0xff]
    %v6429 = vld [vmem:[%s3 + $0x40] sm:$0xff]
    %v6430 = vld [vmem:[%s3 + $0x48] sm:$0xff]
    %v6431 = vld [vmem:[%s3 + $0x50] sm:$0xff]
    %v6432 = vld [vmem:[%s3 + $0x58] sm:$0xff]
    %v6433 = vld [vmem:[%s3 + $0x60] sm:$0xff]
    %v6434 = vld [vmem:[%s3 + $0x68] sm:$0xff]
    %v6435 = vld [vmem:[%s3 + $0x70] sm:$0xff]
    %v6436 = vld [vmem:[%s3 + $0x78] sm:$0xff]
    %v6437 = vld [vmem:[%s3 + $0x80] sm:$0xff]
    %v6438 = vld [vmem:[%s3 + $0x88] sm:$0xff]
    %v6439 = vld [vmem:[%s3 + $0x90] sm:$0xff]
    %v6440 = vld [vmem:[%s3 + $0x98] sm:$0xff]
    %v6441 = vld [vmem:[%s3 + $0xa0] sm:$0xff]
    %v6442 = vld [vmem:[%s3 + $0xa8] sm:$0xff]
    %v6443 = vld [vmem:[%s3 + $0xb0] sm:$0xff]
    %v6444 = vld [vmem:[%s3 + $0xb8] sm:$0xff]
    %v6445 = vld [vmem:[%s3 + $0xc0] sm:$0xff]
    %v6446 = vld [vmem:[%s3 + $0xc8] sm:$0xff]
    %v6447 = vld [vmem:[%s3 + $0xd0] sm:$0xff]
    %v6448 = vld [vmem:[%s3 + $0xd8] sm:$0xff]
    %v6449 = vld [vmem:[%s3 + $0xe0] sm:$0xff]
    %v6450 = vld [vmem:[%s3 + $0xe8] sm:$0xff]
    %v6451 = vld [vmem:[%s3 + $0xf0] sm:$0xff]
    %v6452 = vld [vmem:[%s3 + $0xf8] sm:$0xff]
    %v6453 = vld [vmem:[%s3 + $0x100] sm:$0xff]
    %v6454 = vld [vmem:[%s3 + $0x108] sm:$0xff]
    %v6455 = vld [vmem:[%s3 + $0x110] sm:$0xff]
    %v6456 = vld [vmem:[%s3 + $0x118] sm:$0xff]
    %v6457 = vld [vmem:[#allocation3] sm:$0xf]
    %v6458 = vld [vmem:[#allocation3 + $0x8] sm:$0xf]
    %v6459 = vld [vmem:[#allocation3 + $0x10] sm:$0xf]
    %v6460 = vld [vmem:[#allocation3 + $0x18] sm:$0xf]
    %v6461 = vld [vmem:[#allocation3 + $0x30] sm:$0xf]
    %v6462 = vld [vmem:[#allocation3 + $0x38] sm:$0xf]
    %v6463 = vld [vmem:[#allocation3 + $0x40] sm:$0xf]
    %v6464 = vld [vmem:[#allocation3 + $0x48] sm:$0xf]
    %v6465 = vld [vmem:[#allocation3 + $0x1] sm:$0xf]
    %v6466 = vld [vmem:[#allocation3 + $0x9] sm:$0xf]
    %v6467 = vld [vmem:[#allocation3 + $0x11] sm:$0xf]
    %v6468 = vld [vmem:[#allocation3 + $0x19] sm:$0xf]
    %v6469 = vld [vmem:[#allocation3 + $0x31] sm:$0xf]
    %v6470 = vld [vmem:[#allocation3 + $0x39] sm:$0xf]
    %v6471 = vld [vmem:[#allocation3 + $0x41] sm:$0xf]
    %v6472 = vld [vmem:[#allocation3 + $0x49] sm:$0xf]
    %6481 = vst [vmem:[#allocation1] ss:$2 sm:$0xff] %v6465
    %s6482 = scalar_lea.vmem [#allocation1], 1
    %6483 = vst [vmem:[%s6482] ss:$2 sm:$0xff] %v6466
    %s6484 = scalar_lea.vmem [#allocation1], 16
    %6485 = vst [vmem:[%s6484] ss:$2 sm:$0xff] %v6467
    %s6486 = scalar_lea.vmem [#allocation1], 17
    %6487 = vst [vmem:[%s6486] ss:$2 sm:$0xff] %v6468
    %s6488 = scalar_lea.vmem [#allocation1], 32
    %6489 = vst [vmem:[%s6488] ss:$2 sm:$0xff] %v6469
    %s6490 = scalar_lea.vmem [#allocation1], 33
    %6491 = vst [vmem:[%s6490] ss:$2 sm:$0xff] %v6470
    %s6492 = scalar_lea.vmem [#allocation1], 48
    %6493 = vst [vmem:[%s6492] ss:$2 sm:$0xff] %v6471
    %s6494 = scalar_lea.vmem [#allocation1], 49
    %6495 = vst [vmem:[%s6494] ss:$2 sm:$0xff] %v6472
    %v6496 = vld.sshfl [vmem:[#allocation1] sm:$0xff pattern:$0x75316420]
    %v6497 = vld.sshfl [vmem:[#allocation1 + $0x10] sm:$0xff pattern:$0x75316420]
    %v6498 = vld.sshfl [vmem:[#allocation1 + $0x20] sm:$0xff pattern:$0x75316420]
    %v6499 = vld.sshfl [vmem:[#allocation1 + $0x30] sm:$0xff pattern:$0x75316420]
    %v6500 = vsel %vm6120, %v6496, 0
    %v6502 = vsel %vm6120, %v6497, 0
    %v6504 = vsel %vm6120, %v6498, 0
    %v6506 = vsel %vm6120, %v6499, 0
    %6508 = vmatpush.msra.mxu0 0.0
    %6509 = vmatpush.msra.mxu0 0.0
    %6510 = vmatpush.msra.mxu0 0.0
    %6511 = vmatpush.msra.mxu0 0.0
    %6512 = vmatpush.msra.mxu0 0.0
    %6513 = vmatpush.msra.mxu0 0.0
    %6514 = vmatpush.msra.mxu0 0.0
    %6515 = vmatpush.msra.mxu0 0.0
    %6516 = vmatpush.msra.mxu0 0.0
    %6517 = vmatpush.msra.mxu0 0.0
    %6518 = vmatpush.msra.mxu0 0.0
    %6519 = vmatpush.msra.mxu0 0.0
    %6520 = vmatpush.msra.mxu0 %v6428
    %6521 = vmatpush.msra.mxu0 %v6427
    %6522 = vmatpush.msra.mxu0 %v6426
    %6523 = vmatpush.msra.mxu0 %v6425
    %6524 = vmatmul.f32.gmra.mxu0 %v6500
    %v6525 = vpop.f32.mrf.mxu0
    %v6526 = vadd.f32 0.0, %v6525
    %6527 = vmatmul.f32.gmra.mxu0 %v6502
    %v6528 = vpop.f32.mrf.mxu0
    %v6529 = vadd.f32 0.0, %v6528
    %6530 = vmatmul.f32.gmra.mxu0 %v6504
    %v6531 = vpop.f32.mrf.mxu0
    %v6532 = vadd.f32 0.0, %v6531
    %6533 = vmatmul.f32.gmra.mxu0 %v6506
    %v6534 = vpop.f32.mrf.mxu0
    %v6535 = vadd.f32 0.0, %v6534
    %6536 = vdwg.mxu0
    %6545 = vst [vmem:[#allocation1] ss:$2 sm:$0xff] %v6457
    %s6546 = scalar_lea.vmem [#allocation1], 1
    %6547 = vst [vmem:[%s6546] ss:$2 sm:$0xff] %v6458
    %s6548 = scalar_lea.vmem [#allocation1], 16
    %6549 = vst [vmem:[%s6548] ss:$2 sm:$0xff] %v6459
    %s6550 = scalar_lea.vmem [#allocation1], 17
    %6551 = vst [vmem:[%s6550] ss:$2 sm:$0xff] %v6460
    %s6552 = scalar_lea.vmem [#allocation1], 32
    %6553 = vst [vmem:[%s6552] ss:$2 sm:$0xff] %v6461
    %s6554 = scalar_lea.vmem [#allocation1], 33
    %6555 = vst [vmem:[%s6554] ss:$2 sm:$0xff] %v6462
    %s6556 = scalar_lea.vmem [#allocation1], 48
    %6557 = vst [vmem:[%s6556] ss:$2 sm:$0xff] %v6463
    %s6558 = scalar_lea.vmem [#allocation1], 49
    %6559 = vst [vmem:[%s6558] ss:$2 sm:$0xff] %v6464
    %v6560 = vld.sshfl [vmem:[#allocation1] sm:$0xff pattern:$0x75316420]
    %v6561 = vld.sshfl [vmem:[#allocation1 + $0x10] sm:$0xff pattern:$0x75316420]
    %v6562 = vld.sshfl [vmem:[#allocation1 + $0x20] sm:$0xff pattern:$0x75316420]
    %v6563 = vld.sshfl [vmem:[#allocation1 + $0x30] sm:$0xff pattern:$0x75316420]
    %v6564 = vsel %vm6120, %v6560, 0
    %v6566 = vsel %vm6120, %v6561, 0
    %v6568 = vsel %vm6120, %v6562, 0
    %v6570 = vsel %vm6120, %v6563, 0
    %6572 = vmatpush.msra.mxu0 0.0
    %6573 = vmatpush.msra.mxu0 0.0
    %6574 = vmatpush.msra.mxu0 0.0
    %6575 = vmatpush.msra.mxu0 0.0
    %6576 = vmatpush.msra.mxu0 0.0
    %6577 = vmatpush.msra.mxu0 0.0
    %6578 = vmatpush.msra.mxu0 0.0
    %6579 = vmatpush.msra.mxu0 0.0
    %6580 = vmatpush.msra.mxu0 0.0
    %6581 = vmatpush.msra.mxu0 0.0
    %6582 = vmatpush.msra.mxu0 0.0
    %6583 = vmatpush.msra.mxu0 0.0
    %6584 = vmatpush.msra.mxu0 %v6424
    %6585 = vmatpush.msra.mxu0 %v6423
    %6586 = vmatpush.msra.mxu0 %v6422
    %6587 = vmatpush.msra.mxu0 %v6421
    %6588 = vmatmul.f32.gmra.mxu0 %v6564
    %v6589 = vpop.f32.mrf.mxu0
    %v6590 = vadd.f32 %v6526, %v6589
    %6591 = vmatmul.f32.gmra.mxu0 %v6566
    %v6592 = vpop.f32.mrf.mxu0
    %v6593 = vadd.f32 %v6529, %v6592
    %6594 = vmatmul.f32.gmra.mxu0 %v6568
    %v6595 = vpop.f32.mrf.mxu0
    %v6596 = vadd.f32 %v6532, %v6595
    %6597 = vmatmul.f32.gmra.mxu0 %v6570
    %v6598 = vpop.f32.mrf.mxu0
    %v6599 = vadd.f32 %v6535, %v6598
    %6600 = vdwg.mxu0
    %v6601 = vld [vmem:[#allocation3 + $0x2] sm:$0xf]
    %v6602 = vld [vmem:[#allocation3 + $0xa] sm:$0xf]
    %v6603 = vld [vmem:[#allocation3 + $0x12] sm:$0xf]
    %v6604 = vld [vmem:[#allocation3 + $0x1a] sm:$0xf]
    %v6605 = vld [vmem:[#allocation3 + $0x32] sm:$0xf]
    %v6606 = vld [vmem:[#allocation3 + $0x3a] sm:$0xf]
    %v6607 = vld [vmem:[#allocation3 + $0x42] sm:$0xf]
    %v6608 = vld [vmem:[#allocation3 + $0x4a] sm:$0xf]
    %6617 = vst [vmem:[#allocation1] ss:$2 sm:$0xff] %v6601
    %s6618 = scalar_lea.vmem [#allocation1], 1
    %6619 = vst [vmem:[%s6618] ss:$2 sm:$0xff] %v6602
    %s6620 = scalar_lea.vmem [#allocation1], 16
    %6621 = vst [vmem:[%s6620] ss:$2 sm:$0xff] %v6603
    %s6622 = scalar_lea.vmem [#allocation1], 17
    %6623 = vst [vmem:[%s6622] ss:$2 sm:$0xff] %v6604
    %s6624 = scalar_lea.vmem [#allocation1], 32
    %6625 = vst [vmem:[%s6624] ss:$2 sm:$0xff] %v6605
    %s6626 = scalar_lea.vmem [#allocation1], 33
    %6627 = vst [vmem:[%s6626] ss:$2 sm:$0xff] %v6606
    %s6628 = scalar_lea.vmem [#allocation1], 48
    %6629 = vst [vmem:[%s6628] ss:$2 sm:$0xff] %v6607
    %s6630 = scalar_lea.vmem [#allocation1], 49
    %6631 = vst [vmem:[%s6630] ss:$2 sm:$0xff] %v6608
    %v6632 = vld.sshfl [vmem:[#allocation1] sm:$0xff pattern:$0x75316420]
    %v6633 = vld.sshfl [vmem:[#allocation1 + $0x10] sm:$0xff pattern:$0x75316420]
    %v6634 = vld.sshfl [vmem:[#allocation1 + $0x20] sm:$0xff pattern:$0x75316420]
    %v6635 = vld.sshfl [vmem:[#allocation1 + $0x30] sm:$0xff pattern:$0x75316420]
    %v6636 = vsel %vm6120, %v6632, 0
    %v6638 = vsel %vm6120, %v6633, 0
    %v6640 = vsel %vm6120, %v6634, 0
    %v6642 = vsel %vm6120, %v6635, 0
    %6644 = vmatpush.msra.mxu0 0.0
    %6645 = vmatpush.msra.mxu0 0.0
    %6646 = vmatpush.msra.mxu0 0.0
    %6647 = vmatpush.msra.mxu0 0.0
    %6648 = vmatpush.msra.mxu0 0.0
    %6649 = vmatpush.msra.mxu0 0.0
    %6650 = vmatpush.msra.mxu0 0.0
    %6651 = vmatpush.msra.mxu0 0.0
    %6652 = vmatpush.msra.mxu0 0.0
    %6653 = vmatpush.msra.mxu0 0.0
    %6654 = vmatpush.msra.mxu0 0.0
    %6655 = vmatpush.msra.mxu0 0.0
    %6656 = vmatpush.msra.mxu0 %v6432
    %6657 = vmatpush.msra.mxu0 %v6431
    %6658 = vmatpush.msra.mxu0 %v6430
    %6659 = vmatpush.msra.mxu0 %v6429
    %6660 = vmatmul.f32.gmra.mxu0 %v6636
    %v6661 = vpop.f32.mrf.mxu0
    %v6662 = vadd.f32 0.0, %v6661
    %6663 = vmatmul.f32.gmra.mxu0 %v6638
    %v6664 = vpop.f32.mrf.mxu0
    %v6665 = vadd.f32 0.0, %v6664
    %6666 = vmatmul.f32.gmra.mxu0 %v6640
    %v6667 = vpop.f32.mrf.mxu0
    %v6668 = vadd.f32 0.0, %v6667
    %6669 = vmatmul.f32.gmra.mxu0 %v6642
    %v6670 = vpop.f32.mrf.mxu0
    %v6671 = vadd.f32 0.0, %v6670
    %6672 = vdwg.mxu0
    %v6673 = vadd.f32 %v6590, %v6662
    %v6674 = vadd.f32 %v6593, %v6665
    %v6675 = vadd.f32 %v6596, %v6668
    %v6676 = vadd.f32 %v6599, %v6671
    %v6677 = vld [vmem:[%s6412] sm:$0xf]
    %v6678 = vld [vmem:[%s6412 + $0x8] sm:$0xf]
    %v6679 = vld [vmem:[%s6412 + $0x10] sm:$0xf]
    %v6680 = vld [vmem:[%s6412 + $0x18] sm:$0xf]
    %v6681 = vld [vmem:[%s6412 + $0x30] sm:$0xf]
    %v6682 = vld [vmem:[%s6412 + $0x38] sm:$0xf]
    %v6683 = vld [vmem:[%s6412 + $0x40] sm:$0xf]
    %v6684 = vld [vmem:[%s6412 + $0x48] sm:$0xf]
    %6693 = vst [vmem:[#allocation1] ss:$2 sm:$0xff] %v6677
    %s6694 = scalar_lea.vmem [#allocation1], 1
    %6695 = vst [vmem:[%s6694] ss:$2 sm:$0xff] %v6678
    %s6696 = scalar_lea.vmem [#allocation1], 16
    %6697 = vst [vmem:[%s6696] ss:$2 sm:$0xff] %v6679
    %s6698 = scalar_lea.vmem [#allocation1], 17
    %6699 = vst [vmem:[%s6698] ss:$2 sm:$0xff] %v6680
    %s6700 = scalar_lea.vmem [#allocation1], 32
    %6701 = vst [vmem:[%s6700] ss:$2 sm:$0xff] %v6681
    %s6702 = scalar_lea.vmem [#allocation1], 33
    %6703 = vst [vmem:[%s6702] ss:$2 sm:$0xff] %v6682
    %s6704 = scalar_lea.vmem [#allocation1], 48
    %6705 = vst [vmem:[%s6704] ss:$2 sm:$0xff] %v6683
    %s6706 = scalar_lea.vmem [#allocation1], 49
    %6707 = vst [vmem:[%s6706] ss:$2 sm:$0xff] %v6684
    %v6708 = vld.sshfl [vmem:[#allocation1] sm:$0xff pattern:$0x75316420]
    %v6709 = vld.sshfl [vmem:[#allocation1 + $0x10] sm:$0xff pattern:$0x75316420]
    %v6710 = vld.sshfl [vmem:[#allocation1 + $0x20] sm:$0xff pattern:$0x75316420]
    %v6711 = vld.sshfl [vmem:[#allocation1 + $0x30] sm:$0xff pattern:$0x75316420]
    %v6712 = vsel %vm6120, %v6708, 0
    %v6714 = vsel %vm6120, %v6709, 0
    %v6716 = vsel %vm6120, %v6710, 0
    %v6718 = vsel %vm6120, %v6711, 0
    %6720 = vmatpush.msra.mxu0 0.0
    %6721 = vmatpush.msra.mxu0 0.0
    %6722 = vmatpush.msra.mxu0 0.0
    %6723 = vmatpush.msra.mxu0 0.0
    %6724 = vmatpush.msra.mxu0 0.0
    %6725 = vmatpush.msra.mxu0 0.0
    %6726 = vmatpush.msra.mxu0 0.0
    %6727 = vmatpush.msra.mxu0 0.0
    %6728 = vmatpush.msra.mxu0 0.0
    %6729 = vmatpush.msra.mxu0 0.0
    %6730 = vmatpush.msra.mxu0 0.0
    %6731 = vmatpush.msra.mxu0 0.0
    %6732 = vmatpush.msra.mxu0 %v6436
    %6733 = vmatpush.msra.mxu0 %v6435
    %6734 = vmatpush.msra.mxu0 %v6434
    %6735 = vmatpush.msra.mxu0 %v6433
    %6736 = vmatmul.f32.gmra.mxu0 %v6712
    %v6737 = vpop.f32.mrf.mxu0
    %v6738 = vadd.f32 0.0, %v6737
    %6739 = vmatmul.f32.gmra.mxu0 %v6714
    %v6740 = vpop.f32.mrf.mxu0
    %v6741 = vadd.f32 0.0, %v6740
    %6742 = vmatmul.f32.gmra.mxu0 %v6716
    %v6743 = vpop.f32.mrf.mxu0
    %v6744 = vadd.f32 0.0, %v6743
    %6745 = vmatmul.f32.gmra.mxu0 %v6718
    %v6746 = vpop.f32.mrf.mxu0
    %v6747 = vadd.f32 0.0, %v6746
    %6748 = vdwg.mxu0
    %v6749 = vadd.f32 %v6673, %v6738
    %v6750 = vadd.f32 %v6674, %v6741
    %v6751 = vadd.f32 %v6675, %v6744
    %v6752 = vadd.f32 %v6676, %v6747
    %v6753 = vld [vmem:[%s6412 + $0x1] sm:$0xf]
    %v6754 = vld [vmem:[%s6412 + $0x9] sm:$0xf]
    %v6755 = vld [vmem:[%s6412 + $0x11] sm:$0xf]
    %v6756 = vld [vmem:[%s6412 + $0x19] sm:$0xf]
    %v6757 = vld [vmem:[%s6412 + $0x31] sm:$0xf]
    %v6758 = vld [vmem:[%s6412 + $0x39] sm:$0xf]
    %v6759 = vld [vmem:[%s6412 + $0x41] sm:$0xf]
    %v6760 = vld [vmem:[%s6412 + $0x49] sm:$0xf]
    %6769 = vst [vmem:[#allocation1] ss:$2 sm:$0xff] %v6753
    %s6770 = scalar_lea.vmem [#allocation1], 1
    %6771 = vst [vmem:[%s6770] ss:$2 sm:$0xff] %v6754
    %s6772 = scalar_lea.vmem [#allocation1], 16
    %6773 = vst [vmem:[%s6772] ss:$2 sm:$0xff] %v6755
    %s6774 = scalar_lea.vmem [#allocation1], 17
    %6775 = vst [vmem:[%s6774] ss:$2 sm:$0xff] %v6756
    %s6776 = scalar_lea.vmem [#allocation1], 32
    %6777 = vst [vmem:[%s6776] ss:$2 sm:$0xff] %v6757
    %s6778 = scalar_lea.vmem [#allocation1], 33
    %6779 = vst [vmem:[%s6778] ss:$2 sm:$0xff] %v6758
    %s6780 = scalar_lea.vmem [#allocation1], 48
    %6781 = vst [vmem:[%s6780] ss:$2 sm:$0xff] %v6759
    %s6782 = scalar_lea.vmem [#allocation1], 49
    %6783 = vst [vmem:[%s6782] ss:$2 sm:$0xff] %v6760
    %v6784 = vld.sshfl [vmem:[#allocation1] sm:$0xff pattern:$0x75316420]
    %v6785 = vld.sshfl [vmem:[#allocation1 + $0x10] sm:$0xff pattern:$0x75316420]
    %v6786 = vld.sshfl [vmem:[#allocation1 + $0x20] sm:$0xff pattern:$0x75316420]
    %v6787 = vld.sshfl [vmem:[#allocation1 + $0x30] sm:$0xff pattern:$0x75316420]
    %v6788 = vsel %vm6120, %v6784, 0
    %v6790 = vsel %vm6120, %v6785, 0
    %v6792 = vsel %vm6120, %v6786, 0
    %v6794 = vsel %vm6120, %v6787, 0
    %6796 = vmatpush.msra.mxu0 0.0
    %6797 = vmatpush.msra.mxu0 0.0
    %6798 = vmatpush.msra.mxu0 0.0
    %6799 = vmatpush.msra.mxu0 0.0
    %6800 = vmatpush.msra.mxu0 0.0
    %6801 = vmatpush.msra.mxu0 0.0
    %6802 = vmatpush.msra.mxu0 0.0
    %6803 = vmatpush.msra.mxu0 0.0
    %6804 = vmatpush.msra.mxu0 0.0
    %6805 = vmatpush.msra.mxu0 0.0
    %6806 = vmatpush.msra.mxu0 0.0
    %6807 = vmatpush.msra.mxu0 0.0
    %6808 = vmatpush.msra.mxu0 %v6440
    %6809 = vmatpush.msra.mxu0 %v6439
    %6810 = vmatpush.msra.mxu0 %v6438
    %6811 = vmatpush.msra.mxu0 %v6437
    %6812 = vmatmul.f32.gmra.mxu0 %v6788
    %v6813 = vpop.f32.mrf.mxu0
    %v6814 = vadd.f32 0.0, %v6813
    %6815 = vmatmul.f32.gmra.mxu0 %v6790
    %v6816 = vpop.f32.mrf.mxu0
    %v6817 = vadd.f32 0.0, %v6816
    %6818 = vmatmul.f32.gmra.mxu0 %v6792
    %v6819 = vpop.f32.mrf.mxu0
    %v6820 = vadd.f32 0.0, %v6819
    %6821 = vmatmul.f32.gmra.mxu0 %v6794
    %v6822 = vpop.f32.mrf.mxu0
    %v6823 = vadd.f32 0.0, %v6822
    %6824 = vdwg.mxu0
    %v6825 = vadd.f32 %v6749, %v6814
    %v6826 = vadd.f32 %v6750, %v6817
    %v6827 = vadd.f32 %v6751, %v6820
    %v6828 = vadd.f32 %v6752, %v6823
    %v6829 = vld [vmem:[%s6412 + $0x2] sm:$0xf]
    %v6830 = vld [vmem:[%s6412 + $0xa] sm:$0xf]
    %v6831 = vld [vmem:[%s6412 + $0x12] sm:$0xf]
    %v6832 = vld [vmem:[%s6412 + $0x1a] sm:$0xf]
    %v6833 = vld [vmem:[%s6412 + $0x32] sm:$0xf]
    %v6834 = vld [vmem:[%s6412 + $0x3a] sm:$0xf]
    %v6835 = vld [vmem:[%s6412 + $0x42] sm:$0xf]
    %v6836 = vld [vmem:[%s6412 + $0x4a] sm:$0xf]
    %6845 = vst [vmem:[#allocation1] ss:$2 sm:$0xff] %v6829
    %s6846 = scalar_lea.vmem [#allocation1], 1
    %6847 = vst [vmem:[%s6846] ss:$2 sm:$0xff] %v6830
    %s6848 = scalar_lea.vmem [#allocation1], 16
    %6849 = vst [vmem:[%s6848] ss:$2 sm:$0xff] %v6831
    %s6850 = scalar_lea.vmem [#allocation1], 17
    %6851 = vst [vmem:[%s6850] ss:$2 sm:$0xff] %v6832
    %s6852 = scalar_lea.vmem [#allocation1], 32
    %6853 = vst [vmem:[%s6852] ss:$2 sm:$0xff] %v6833
    %s6854 = scalar_lea.vmem [#allocation1], 33
    %6855 = vst [vmem:[%s6854] ss:$2 sm:$0xff] %v6834
    %s6856 = scalar_lea.vmem [#allocation1], 48
    %6857 = vst [vmem:[%s6856] ss:$2 sm:$0xff] %v6835
    %s6858 = scalar_lea.vmem [#allocation1], 49
    %6859 = vst [vmem:[%s6858] ss:$2 sm:$0xff] %v6836
    %v6860 = vld.sshfl [vmem:[#allocation1] sm:$0xff pattern:$0x75316420]
    %v6861 = vld.sshfl [vmem:[#allocation1 + $0x10] sm:$0xff pattern:$0x75316420]
    %v6862 = vld.sshfl [vmem:[#allocation1 + $0x20] sm:$0xff pattern:$0x75316420]
    %v6863 = vld.sshfl [vmem:[#allocation1 + $0x30] sm:$0xff pattern:$0x75316420]
    %v6864 = vsel %vm6120, %v6860, 0
    %v6866 = vsel %vm6120, %v6861, 0
    %v6868 = vsel %vm6120, %v6862, 0
    %v6870 = vsel %vm6120, %v6863, 0
    %6872 = vmatpush.msra.mxu0 0.0
    %6873 = vmatpush.msra.mxu0 0.0
    %6874 = vmatpush.msra.mxu0 0.0
    %6875 = vmatpush.msra.mxu0 0.0
    %6876 = vmatpush.msra.mxu0 0.0
    %6877 = vmatpush.msra.mxu0 0.0
    %6878 = vmatpush.msra.mxu0 0.0
    %6879 = vmatpush.msra.mxu0 0.0
    %6880 = vmatpush.msra.mxu0 0.0
    %6881 = vmatpush.msra.mxu0 0.0
    %6882 = vmatpush.msra.mxu0 0.0
    %6883 = vmatpush.msra.mxu0 0.0
    %6884 = vmatpush.msra.mxu0 %v6444
    %6885 = vmatpush.msra.mxu0 %v6443
    %6886 = vmatpush.msra.mxu0 %v6442
    %6887 = vmatpush.msra.mxu0 %v6441
    %6888 = vmatmul.f32.gmra.mxu0 %v6864
    %v6889 = vpop.f32.mrf.mxu0
    %v6890 = vadd.f32 0.0, %v6889
    %6891 = vmatmul.f32.gmra.mxu0 %v6866
    %v6892 = vpop.f32.mrf.mxu0
    %v6893 = vadd.f32 0.0, %v6892
    %6894 = vmatmul.f32.gmra.mxu0 %v6868
    %v6895 = vpop.f32.mrf.mxu0
    %v6896 = vadd.f32 0.0, %v6895
    %6897 = vmatmul.f32.gmra.mxu0 %v6870
    %v6898 = vpop.f32.mrf.mxu0
    %v6899 = vadd.f32 0.0, %v6898
    %6900 = vdwg.mxu0
    %v6901 = vadd.f32 %v6825, %v6890
    %v6902 = vadd.f32 %v6826, %v6893
    %v6903 = vadd.f32 %v6827, %v6896
    %v6904 = vadd.f32 %v6828, %v6899
    %s6905 = scalar_lea.vmem [#allocation3], 16
    %v6906 = vld [vmem:[%s6905] sm:$0xf]
    %v6907 = vld [vmem:[%s6905 + $0x8] sm:$0xf]
    %v6908 = vld [vmem:[%s6905 + $0x10] sm:$0xf]
    %v6909 = vld [vmem:[%s6905 + $0x18] sm:$0xf]
    %v6910 = vld [vmem:[%s6905 + $0x30] sm:$0xf]
    %v6911 = vld [vmem:[%s6905 + $0x38] sm:$0xf]
    %v6912 = vld [vmem:[%s6905 + $0x40] sm:$0xf]
    %v6913 = vld [vmem:[%s6905 + $0x48] sm:$0xf]
    %6922 = vst [vmem:[#allocation1] ss:$2 sm:$0xff] %v6906
    %s6923 = scalar_lea.vmem [#allocation1], 1
    %6924 = vst [vmem:[%s6923] ss:$2 sm:$0xff] %v6907
    %s6925 = scalar_lea.vmem [#allocation1], 16
    %6926 = vst [vmem:[%s6925] ss:$2 sm:$0xff] %v6908
    %s6927 = scalar_lea.vmem [#allocation1], 17
    %6928 = vst [vmem:[%s6927] ss:$2 sm:$0xff] %v6909
    %s6929 = scalar_lea.vmem [#allocation1], 32
    %6930 = vst [vmem:[%s6929] ss:$2 sm:$0xff] %v6910
    %s6931 = scalar_lea.vmem [#allocation1], 33
    %6932 = vst [vmem:[%s6931] ss:$2 sm:$0xff] %v6911
    %s6933 = scalar_lea.vmem [#allocation1], 48
    %6934 = vst [vmem:[%s6933] ss:$2 sm:$0xff] %v6912
    %s6935 = scalar_lea.vmem [#allocation1], 49
    %6936 = vst [vmem:[%s6935] ss:$2 sm:$0xff] %v6913
    %v6937 = vld.sshfl [vmem:[#allocation1] sm:$0xff pattern:$0x75316420]
    %v6938 = vld.sshfl [vmem:[#allocation1 + $0x10] sm:$0xff pattern:$0x75316420]
    %v6939 = vld.sshfl [vmem:[#allocation1 + $0x20] sm:$0xff pattern:$0x75316420]
    %v6940 = vld.sshfl [vmem:[#allocation1 + $0x30] sm:$0xff pattern:$0x75316420]
    %v6941 = vsel %vm6120, %v6937, 0
    %v6943 = vsel %vm6120, %v6938, 0
    %v6945 = vsel %vm6120, %v6939, 0
    %v6947 = vsel %vm6120, %v6940, 0
    %6949 = vmatpush.msra.mxu0 0.0
    %6950 = vmatpush.msra.mxu0 0.0
    %6951 = vmatpush.msra.mxu0 0.0
    %6952 = vmatpush.msra.mxu0 0.0
    %6953 = vmatpush.msra.mxu0 0.0
    %6954 = vmatpush.msra.mxu0 0.0
    %6955 = vmatpush.msra.mxu0 0.0
    %6956 = vmatpush.msra.mxu0 0.0
    %6957 = vmatpush.msra.mxu0 0.0
    %6958 = vmatpush.msra.mxu0 0.0
    %6959 = vmatpush.msra.mxu0 0.0
    %6960 = vmatpush.msra.mxu0 0.0
    %6961 = vmatpush.msra.mxu0 %v6448
    %6962 = vmatpush.msra.mxu0 %v6447
    %6963 = vmatpush.msra.mxu0 %v6446
    %6964 = vmatpush.msra.mxu0 %v6445
    %6965 = vmatmul.f32.gmra.mxu0 %v6941
    %v6966 = vpop.f32.mrf.mxu0
    %v6967 = vadd.f32 0.0, %v6966
    %6968 = vmatmul.f32.gmra.mxu0 %v6943
    %v6969 = vpop.f32.mrf.mxu0
    %v6970 = vadd.f32 0.0, %v6969
    %6971 = vmatmul.f32.gmra.mxu0 %v6945
    %v6972 = vpop.f32.mrf.mxu0
    %v6973 = vadd.f32 0.0, %v6972
    %6974 = vmatmul.f32.gmra.mxu0 %v6947
    %v6975 = vpop.f32.mrf.mxu0
    %v6976 = vadd.f32 0.0, %v6975
    %6977 = vdwg.mxu0
    %v6978 = vadd.f32 %v6901, %v6967
    %v6979 = vadd.f32 %v6902, %v6970
    %v6980 = vadd.f32 %v6903, %v6973
    %v6981 = vadd.f32 %v6904, %v6976
    %v6982 = vld [vmem:[%s6905 + $0x1] sm:$0xf]
    %v6983 = vld [vmem:[%s6905 + $0x9] sm:$0xf]
    %v6984 = vld [vmem:[%s6905 + $0x11] sm:$0xf]
    %v6985 = vld [vmem:[%s6905 + $0x19] sm:$0xf]
    %v6986 = vld [vmem:[%s6905 + $0x31] sm:$0xf]
    %v6987 = vld [vmem:[%s6905 + $0x39] sm:$0xf]
    %v6988 = vld [vmem:[%s6905 + $0x41] sm:$0xf]
    %v6989 = vld [vmem:[%s6905 + $0x49] sm:$0xf]
    %6998 = vst [vmem:[#allocation1] ss:$2 sm:$0xff] %v6982
    %s6999 = scalar_lea.vmem [#allocation1], 1
    %7000 = vst [vmem:[%s6999] ss:$2 sm:$0xff] %v6983
    %s7001 = scalar_lea.vmem [#allocation1], 16
    %7002 = vst [vmem:[%s7001] ss:$2 sm:$0xff] %v6984
    %s7003 = scalar_lea.vmem [#allocation1], 17
    %7004 = vst [vmem:[%s7003] ss:$2 sm:$0xff] %v6985
    %s7005 = scalar_lea.vmem [#allocation1], 32
    %7006 = vst [vmem:[%s7005] ss:$2 sm:$0xff] %v6986
    %s7007 = scalar_lea.vmem [#allocation1], 33
    %7008 = vst [vmem:[%s7007] ss:$2 sm:$0xff] %v6987
    %s7009 = scalar_lea.vmem [#allocation1], 48
    %7010 = vst [vmem:[%s7009] ss:$2 sm:$0xff] %v6988
    %s7011 = scalar_lea.vmem [#allocation1], 49
    %7012 = vst [vmem:[%s7011] ss:$2 sm:$0xff] %v6989
    %v7013 = vld.sshfl [vmem:[#allocation1] sm:$0xff pattern:$0x75316420]
    %v7014 = vld.sshfl [vmem:[#allocation1 + $0x10] sm:$0xff pattern:$0x75316420]
    %v7015 = vld.sshfl [vmem:[#allocation1 + $0x20] sm:$0xff pattern:$0x75316420]
    %v7016 = vld.sshfl [vmem:[#allocation1 + $0x30] sm:$0xff pattern:$0x75316420]
    %v7017 = vsel %vm6120, %v7013, 0
    %v7019 = vsel %vm6120, %v7014, 0
    %v7021 = vsel %vm6120, %v7015, 0
    %v7023 = vsel %vm6120, %v7016, 0
    %7025 = vmatpush.msra.mxu0 0.0
    %7026 = vmatpush.msra.mxu0 0.0
    %7027 = vmatpush.msra.mxu0 0.0
    %7028 = vmatpush.msra.mxu0 0.0
    %7029 = vmatpush.msra.mxu0 0.0
    %7030 = vmatpush.msra.mxu0 0.0
    %7031 = vmatpush.msra.mxu0 0.0
    %7032 = vmatpush.msra.mxu0 0.0
    %7033 = vmatpush.msra.mxu0 0.0
    %7034 = vmatpush.msra.mxu0 0.0
    %7035 = vmatpush.msra.mxu0 0.0
    %7036 = vmatpush.msra.mxu0 0.0
    %7037 = vmatpush.msra.mxu0 %v6452
    %7038 = vmatpush.msra.mxu0 %v6451
    %7039 = vmatpush.msra.mxu0 %v6450
    %7040 = vmatpush.msra.mxu0 %v6449
    %7041 = vmatmul.f32.gmra.mxu0 %v7017
    %v7042 = vpop.f32.mrf.mxu0
    %v7043 = vadd.f32 0.0, %v7042
    %7044 = vmatmul.f32.gmra.mxu0 %v7019
    %v7045 = vpop.f32.mrf.mxu0
    %v7046 = vadd.f32 0.0, %v7045
    %7047 = vmatmul.f32.gmra.mxu0 %v7021
    %v7048 = vpop.f32.mrf.mxu0
    %v7049 = vadd.f32 0.0, %v7048
    %7050 = vmatmul.f32.gmra.mxu0 %v7023
    %v7051 = vpop.f32.mrf.mxu0
    %v7052 = vadd.f32 0.0, %v7051
    %7053 = vdwg.mxu0
    %v7054 = vadd.f32 %v6978, %v7043
    %v7055 = vadd.f32 %v6979, %v7046
    %v7056 = vadd.f32 %v6980, %v7049
    %v7057 = vadd.f32 %v6981, %v7052
    %v7058 = vld [vmem:[%s6905 + $0x2] sm:$0xf]
    %v7059 = vld [vmem:[%s6905 + $0xa] sm:$0xf]
    %v7060 = vld [vmem:[%s6905 + $0x12] sm:$0xf]
    %v7061 = vld [vmem:[%s6905 + $0x1a] sm:$0xf]
    %v7062 = vld [vmem:[%s6905 + $0x32] sm:$0xf]
    %v7063 = vld [vmem:[%s6905 + $0x3a] sm:$0xf]
    %v7064 = vld [vmem:[%s6905 + $0x42] sm:$0xf]
    %v7065 = vld [vmem:[%s6905 + $0x4a] sm:$0xf]
    %7074 = vst [vmem:[#allocation1] ss:$2 sm:$0xff] %v7058
    %s7075 = scalar_lea.vmem [#allocation1], 1
    %7076 = vst [vmem:[%s7075] ss:$2 sm:$0xff] %v7059
    %s7077 = scalar_lea.vmem [#allocation1], 16
    %7078 = vst [vmem:[%s7077] ss:$2 sm:$0xff] %v7060
    %s7079 = scalar_lea.vmem [#allocation1], 17
    %7080 = vst [vmem:[%s7079] ss:$2 sm:$0xff] %v7061
    %s7081 = scalar_lea.vmem [#allocation1], 32
    %7082 = vst [vmem:[%s7081] ss:$2 sm:$0xff] %v7062
    %s7083 = scalar_lea.vmem [#allocation1], 33
    %7084 = vst [vmem:[%s7083] ss:$2 sm:$0xff] %v7063
    %s7085 = scalar_lea.vmem [#allocation1], 48
    %7086 = vst [vmem:[%s7085] ss:$2 sm:$0xff] %v7064
    %s7087 = scalar_lea.vmem [#allocation1], 49
    %7088 = vst [vmem:[%s7087] ss:$2 sm:$0xff] %v7065
    %v7089 = vld.sshfl [vmem:[#allocation1] sm:$0xff pattern:$0x75316420]
    %v7090 = vld.sshfl [vmem:[#allocation1 + $0x10] sm:$0xff pattern:$0x75316420]
    %v7091 = vld.sshfl [vmem:[#allocation1 + $0x20] sm:$0xff pattern:$0x75316420]
    %v7092 = vld.sshfl [vmem:[#allocation1 + $0x30] sm:$0xff pattern:$0x75316420]
    %v7093 = vsel %vm6120, %v7089, 0
    %v7095 = vsel %vm6120, %v7090, 0
    %v7097 = vsel %vm6120, %v7091, 0
    %v7099 = vsel %vm6120, %v7092, 0
    %7101 = vmatpush.msra.mxu0 0.0
    %7102 = vmatpush.msra.mxu0 0.0
    %7103 = vmatpush.msra.mxu0 0.0
    %7104 = vmatpush.msra.mxu0 0.0
    %7105 = vmatpush.msra.mxu0 0.0
    %7106 = vmatpush.msra.mxu0 0.0
    %7107 = vmatpush.msra.mxu0 0.0
    %7108 = vmatpush.msra.mxu0 0.0
    %7109 = vmatpush.msra.mxu0 0.0
    %7110 = vmatpush.msra.mxu0 0.0
    %7111 = vmatpush.msra.mxu0 0.0
    %7112 = vmatpush.msra.mxu0 0.0
    %7113 = vmatpush.msra.mxu0 %v6456
    %7114 = vmatpush.msra.mxu0 %v6455
    %7115 = vmatpush.msra.mxu0 %v6454
    %7116 = vmatpush.msra.mxu0 %v6453
    %7117 = vmatmul.f32.gmra.mxu0 %v7093
    %v7118 = vpop.f32.mrf.mxu0
    %v7119 = vadd.f32 0.0, %v7118
    %7120 = vmatmul.f32.gmra.mxu0 %v7095
    %v7121 = vpop.f32.mrf.mxu0
    %v7122 = vadd.f32 0.0, %v7121
    %7123 = vmatmul.f32.gmra.mxu0 %v7097
    %v7124 = vpop.f32.mrf.mxu0
    %v7125 = vadd.f32 0.0, %v7124
    %7126 = vmatmul.f32.gmra.mxu0 %v7099
    %v7127 = vpop.f32.mrf.mxu0
    %v7128 = vadd.f32 0.0, %v7127
    %7129 = vdwg.mxu0
    %v7130 = vadd.f32 %v7054, %v7119
    %v7131 = vadd.f32 %v7055, %v7122
    %v7132 = vadd.f32 %v7056, %v7125
    %v7133 = vadd.f32 %v7057, %v7128
    %v7134 = vld [vmem:[%s4] sm:$0x1]
    %v7136 = vperm.slane %v7134, 0
    %v7138 = vadd.f32 %v7130, %v7136
    %v7139 = vadd.f32 %v7131, %v7136
    %v7140 = vadd.f32 %v7132, %v7136
    %v7141 = vadd.f32 %v7133, %v7136
    %v7142 = vmax.f32 %v7138, 0.0
    %v7143 = vmax.f32 %v7139, 0.0
    %v7144 = vmax.f32 %v7140, 0.0
    %v7145 = vmax.f32 %v7141, 0.0
    %vm7146 = vcmask 518144
    %7147 = vst.msk [vmem:[#allocation4] sm:$0x7] %vm7146, 0.0
    %7148 = vst.msk [vmem:[#allocation4 + $0x4] sm:$0x7] %vm7146, 0.0
    %7149 = vst.msk [vmem:[#allocation4 + $0x8] sm:$0x7] %vm7146, 0.0
    %7150 = vst.msk [vmem:[#allocation4 + $0xc] sm:$0x7] %vm7146, 0.0
    %7151 = vst.msk [vmem:[#allocation4 + $0x10] sm:$0x7] %vm7146, 0.0
    %7152 = vst.msk [vmem:[#allocation4 + $0x14] sm:$0x7] %vm7146, 0.0
    %v7157 = vrot.slane %v7142, 4
    %v7158 = vrot.slane %v7143, 4
    %v7159 = vrot.slane %v7144, 4
    %v7160 = vrot.slane %v7145, 4
    %vm7165 = vcmask 519168
    %v7166 = vsel %vm7165, %v7142, -inf
    %v7167 = vrot.slane %v7166, 4
    %v7168 = vmax.f32 %v7166, %v7167
    %v7169 = vrot.slane %v7168, 2
    %v7170 = vmax.f32 %v7168, %v7169
    %v7171 = vrot.slane %v7170, 1
    %v7172 = vmax.f32 %v7170, %v7171
    %v7173 = vsel %vm7165, %v7157, -inf
    %v7174 = vrot.slane %v7173, 4
    %v7175 = vmax.f32 %v7173, %v7174
    %v7176 = vrot.slane %v7175, 2
    %v7177 = vmax.f32 %v7175, %v7176
    %v7178 = vrot.slane %v7177, 1
    %v7179 = vmax.f32 %v7177, %v7178
    %v7180 = vsel %vm7165, %v7143, -inf
    %v7181 = vrot.slane %v7180, 4
    %v7182 = vmax.f32 %v7180, %v7181
    %v7183 = vrot.slane %v7182, 2
    %v7184 = vmax.f32 %v7182, %v7183
    %v7185 = vrot.slane %v7184, 1
    %v7186 = vmax.f32 %v7184, %v7185
    %v7187 = vsel %vm7165, %v7158, -inf
    %v7188 = vrot.slane %v7187, 4
    %v7189 = vmax.f32 %v7187, %v7188
    %v7190 = vrot.slane %v7189, 2
    %v7191 = vmax.f32 %v7189, %v7190
    %v7192 = vrot.slane %v7191, 1
    %v7193 = vmax.f32 %v7191, %v7192
    %v7194 = vsel %vm7165, %v7144, -inf
    %v7195 = vrot.slane %v7194, 4
    %v7196 = vmax.f32 %v7194, %v7195
    %v7197 = vrot.slane %v7196, 2
    %v7198 = vmax.f32 %v7196, %v7197
    %v7199 = vrot.slane %v7198, 1
    %v7200 = vmax.f32 %v7198, %v7199
    %v7201 = vsel %vm7165, %v7159, -inf
    %v7202 = vrot.slane %v7201, 4
    %v7203 = vmax.f32 %v7201, %v7202
    %v7204 = vrot.slane %v7203, 2
    %v7205 = vmax.f32 %v7203, %v7204
    %v7206 = vrot.slane %v7205, 1
    %v7207 = vmax.f32 %v7205, %v7206
    %v7208 = vsel %vm7165, %v7145, -inf
    %v7209 = vrot.slane %v7208, 4
    %v7210 = vmax.f32 %v7208, %v7209
    %v7211 = vrot.slane %v7210, 2
    %v7212 = vmax.f32 %v7210, %v7211
    %v7213 = vrot.slane %v7212, 1
    %v7214 = vmax.f32 %v7212, %v7213
    %v7215 = vsel %vm7165, %v7160, -inf
    %v7216 = vrot.slane %v7215, 4
    %v7217 = vmax.f32 %v7215, %v7216
    %v7218 = vrot.slane %v7217, 2
    %v7219 = vmax.f32 %v7217, %v7218
    %v7220 = vrot.slane %v7219, 1
    %v7221 = vmax.f32 %v7219, %v7220
    %vm7222 = vcmask 523264
    %v7223 = vsel %vm7222, %v7172, -inf
    %v7224 = vsel %vm7222, %v7179, -inf
    %v7225 = vsel %vm7222, %v7186, -inf
    %v7226 = vmax.f32 %v7223, %v7225
    %v7227 = vsel %vm7222, %v7193, -inf
    %v7228 = vmax.f32 %v7224, %v7227
    %v7229 = vmax.f32 %v7226, %v7228
    %v7230 = vsel %vm7222, %v7200, -inf
    %v7231 = vsel %vm7222, %v7207, -inf
    %v7232 = vsel %vm7222, %v7214, -inf
    %v7233 = vmax.f32 %v7230, %v7232
    %v7234 = vsel %vm7222, %v7221, -inf
    %v7235 = vmax.f32 %v7231, %v7234
    %v7236 = vmax.f32 %v7233, %v7235
    %s7237 = scalar_lea.vmem [#allocation4], 4
    %vm7238 = vcmask 516096
    %7239 = vst.msk [vmem:[%s7237 + $0x1] sm:$0x1] %vm7238, %v7229
    %7240 = vst.msk [vmem:[%s7237 + $0xd] sm:$0x1] %vm7238, %v7236
    %v7241 = vld [vmem:[%s5 + $0x100] sm:$0xff]
    %v7242 = vld [vmem:[%s5 + $0x108] sm:$0xff]
    %v7243 = vld [vmem:[%s5 + $0x110] sm:$0xff]
    %v7244 = vld [vmem:[%s5 + $0x118] sm:$0xff]
    %v7245 = vld [vmem:[%s5 + $0x120] sm:$0xff]
    %v7246 = vld [vmem:[%s5 + $0x128] sm:$0xff]
    %v7247 = vld [vmem:[%s5 + $0x130] sm:$0xff]
    %v7248 = vld [vmem:[%s5 + $0x138] sm:$0xff]
    %v7249 = vld [vmem:[%s7237 + $0x1] sm:$0x1]
    %v7250 = vld [vmem:[%s7237 + $0xd] sm:$0x1]
    %v7251 = vld [vmem:[%s6] sm:$0x1]
    %v7253 = vperm.slane %v7251, 0
    %v7257 = vrot.slane %v7250, 7
    %v7258 = vsel %vm6377, %v7257, %v7249
    %v7259 = vsel %vm7222, %v7258, 0
    %7261 = vmatpush.msra.mxu0 0.0
    %7262 = vmatpush.msra.mxu0 0.0
    %7263 = vmatpush.msra.mxu0 0.0
    %7264 = vmatpush.msra.mxu0 0.0
    %7265 = vmatpush.msra.mxu0 0.0
    %7266 = vmatpush.msra.mxu0 0.0
    %7267 = vmatpush.msra.mxu0 0.0
    %7268 = vmatpush.msra.mxu0 0.0
    %7269 = vmatpush.msra.mxu0 %v7248
    %7270 = vmatpush.msra.mxu0 %v7247
    %7271 = vmatpush.msra.mxu0 %v7246
    %7272 = vmatpush.msra.mxu0 %v7245
    %7273 = vmatpush.msra.mxu0 %v7244
    %7274 = vmatpush.msra.mxu0 %v7243
    %7275 = vmatpush.msra.mxu0 %v7242
    %7276 = vmatpush.msra.mxu0 %v7241
    %7277 = vmatmul.f32.gmra.mxu0 %v7259
    %v7278 = vpop.f32.mrf.mxu0
    %v7279 = vadd.f32 %v7253, %v7278
    %7280 = vdwg.mxu0
    %v7281 = vmax.f32 %v7279, 0.0
    %v7282 = vadd.f32 %v7281, 0.0
    %vm7283 = vcmask 779264
    %7284 = vst.msk [vmem:[#allocation5] sm:$0x3] %vm7283, %v7282
    // Predicated region
    $region30: #{tpu_custom_call.1} parent=1 // pred_check
      _
    $region31: #{tpu_custom_call.1} parent=1 // pred_check_branch
      %7286 = sbr.rel (0) target = $region33
    $region32: #{tpu_custom_call.1} parent=1 // pred_region
      %7288 = vsyncadd [#allocation6], 0
      %s7290 = sshll.u32 [#allocation5], 4
      %s7291 = int_to_ptr.vmem [resolvable:$true] %s7290
      %s7292 = sshll.u32 %s7, 4
      %s7293 = int_to_ptr.hbm [resolvable:$true] %s7292
      %7295 = dma.vmem_to_hbm [thread:$0]  %s7291, 32, %s7293, [#allocation6]
    $region33: #{tpu_custom_call.1} parent=1 // pred_fallthru
      _
    // Predicated region
    $region34: #{tpu_custom_call.1} parent=1 // pred_check
      _
    $region35: #{tpu_custom_call.1} parent=1 // pred_check_branch
      %7297 = sbr.rel (0) target = $region37
    $region36: #{tpu_custom_call.1} parent=1 // pred_region
      %7299 = dma.done [#allocation6], 32
    $region37: #{tpu_custom_call.1} parent=1 // pred_fallthru
      _
    %7300 = vsyncpa [#allocation6], 1

</llo_original>
